<compile_context>
chip_gen: v6e
topology: v6e:2x2x1
jax: 0.10.0
libtpu: 0.0.40
codegen_flags: <defaults>
</compile_context>

<pallas_src>
import functools

import jax
import jax.numpy as jnp
from jax.experimental import pallas as pl
from jax.experimental.pallas import tpu as pltpu


# ---------------------------------------------------------------------------
# Model configuration (TPU-friendly stand-ins for MobileNetV2's 32/.../1280 widths)
# ---------------------------------------------------------------------------
C_IN = 3            # module n_channels
C_IN_PAD = 8        # zero-padded input channels -> stem K = 4*4*8 = 128 (one MXU pass)
STEM = 128          # stand-in for the 32-wide stem (lane-dense)
CEXP = 256          # expansion width of every block
# (cin, cexp, cout, stride, use_residual)
BLOCKS = [
    (STEM, CEXP, 128, 1, False),
    (128,  CEXP, 128, 2, False),
    (128,  CEXP, 128, 1, True),
]
LAST = 128          # stand-in for the 1280-wide tail
EMBED = 128         # stand-in for embedding_size=512.
# TODO(synk): the reference forward applies `classifier` to the pooled 1280-d features
# although its first Linear expects `embedding_size`; we keep that exact code path and
# set EMBED == LAST so it stays shape-consistent at this reduced scale.
N_CLASSES = 2
LOGITS_PAD = 128    # lane-dense padded logits width (real logits = [:, :N_CLASSES])
IMG = 16            # demo input spatial size


# ---------------------------------------------------------------------------
# Host-side layout transforms (tiny, one-time XLA ops)
# ---------------------------------------------------------------------------
def _stem_preprocess(images):
    """NCHW images -> neighborhood-contiguous space-to-depth(2) layout.

    Output (B, (H/2)*(W/2), 4*4*C_IN_PAD): per stride-2 output pixel, the four 2x2
    space-to-depth cells it reads are laid out contiguously, so the whole 3x3/stride-2
    stem conv is ONE K=128 matmul in-kernel (no under-filled K=32 taps, no im2col at
    conv scale)."""
    bsz, _, h, w = images.shape
    x = jnp.transpose(images, (0, 2, 3, 1)).astype(jnp.float32)        # NCHW -> NHWC
    x = jnp.pad(x, ((0, 0), (0, 0), (0, 0), (0, C_IN_PAD - C_IN)))     # Cin 3 -> 8
    x = jnp.pad(x, ((0, 0), (1, 1), (1, 1), (0, 0)))                   # conv padding=1
    hh, wh = (h + 2) // 2, (w + 2) // 2
    x = x.reshape(bsz, hh, 2, wh, 2, C_IN_PAD)
    x = jnp.transpose(x, (0, 1, 3, 2, 4, 5)).reshape(bsz, hh, wh, 4 * C_IN_PAD)
    ho, wo = h // 2, w // 2
    taps = [x[:, da:da + ho, db:db + wo, :] for da in (0, 1) for db in (0, 1)]
    x = jnp.concatenate(taps, axis=-1)                                 # (B, ho, wo, 128)
    return x.reshape(bsz, ho * wo, 4 * 4 * C_IN_PAD).astype(jnp.bfloat16)


def _stem_weight_fused(w3):
    """(3,3,C_IN_PAD,STEM) 3x3/stride-2 kernel -> (4*4*C_IN_PAD, STEM) weight matching
    the neighborhood-contiguous space-to-depth input layout."""
    c, n = w3.shape[2], w3.shape[3]
    w = jnp.zeros((2, 2, 2, 2, c, n), jnp.float32)        # (da, db, a, b, c, n)
    for da in range(2):
        for db in range(2):
            for a in range(2):
                for b in range(2):
                    ky, kx = 2 * da + a, 2 * db + b
                    if ky <= 2 and kx <= 2:
                        w = w.at[da, db, a, b].set(w3[ky, kx])
    return w.reshape(4 * 4 * c, n)


def _make_stride2_sel(bsz, h, w):
    """Exact 0/1 selection matrix that picks the even (i, j) rows of a row-major
    (B*h*w, C) activation -> (B*(h/2)*(w/2), C).  Applied in-kernel as one tiny matmul
    so the stride-2 subsample happens before the projection, entirely on-chip."""
    h2, w2 = h // 2, w // 2
    o = jnp.arange(h2 * w2)
    src = (o // w2) * (2 * w) + (o % w2) * 2
    s = (src[:, None] == jnp.arange(h * w)[None, :]).astype(jnp.float32)
    sel = jnp.kron(jnp.eye(bsz, dtype=jnp.float32), s)     # block-diag over the batch
    return sel.astype(jnp.bfloat16)


# ---------------------------------------------------------------------------
# The single fused kernel
# ---------------------------------------------------------------------------
def _fused_kernel(xs_ref, sw_ref, sb_ref,
                  ew_ref, eb_ref, dw_ref, db_ref, pw_ref, pb_ref,
                  sel_ref, lw_ref, lb_ref, prw_ref, prb_ref,
                  c1w_ref, c1b_ref, c2w_ref, c2b_ref,
                  logits_ref, emb_ref,
                  pad_a, pad_b,
                  *, bsz, h0, w0, h1, w1):
    f32 = jnp.float32
    bf16 = jnp.bfloat16
    cexp = ew_ref.shape[-1]

    # ---- stem: 3x3/stride-2 conv (BN folded) + ReLU6 as ONE K=128 matmul ----------
    xs = xs_ref[...]                                        # (B, h0*w0, 128) bf16
    x = jnp.dot(xs.reshape(bsz * h0 * w0, xs.shape[-1]), sw_ref[...],
                preferred_element_type=f32) + sb_ref[...]
    x = jnp.clip(x, 0.0, 6.0).astype(bf16)                  # (B*h0*w0, STEM)

    # ---- zero ONLY the 1-pixel borders of the padded depthwise scratches ----------
    # (interiors are fully rewritten by every block; no full-scratch refill stores)
    def _zero_border(pad, hh, ww):
        pad[:, 0:1, :, :] = jnp.zeros((bsz, 1, ww + 2, cexp), f32)
        pad[:, hh + 1:hh + 2, :, :] = jnp.zeros((bsz, 1, ww + 2, cexp), f32)
        pad[:, 1:hh + 1, 0:1, :] = jnp.zeros((bsz, hh, 1, cexp), f32)
        pad[:, 1:hh + 1, ww + 1:ww + 2, :] = jnp.zeros((bsz, hh, 1, cexp), f32)

    _zero_border(pad_a, h0, w0)
    _zero_border(pad_b, h1, w1)

    # ---- fused inverted-residual block: expand 1x1 (+ReLU6) -> depthwise 3x3
    #      (+ReLU6, 9 shifted VPU taps over the zero-padded VMEM scratch) ->
    #      [in-kernel stride-2 subsample] -> project 1x1 -> residual add.
    #      The cexp-wide expanded activation never leaves VMEM.
    def _block(xin, b, hh, ww, pad, stride, use_res):
        m = bsz * hh * ww
        y = jnp.dot(xin, ew_ref[b], preferred_element_type=f32) + eb_ref[b]
        y = jnp.clip(y, 0.0, 6.0)                           # (m, cexp) f32
        pad[:, 1:hh + 1, 1:ww + 1, :] = y.reshape(bsz, hh, ww, cexp)

        dwb = dw_ref[b]                                     # (9, 1, cexp) f32
        acc = jnp.zeros((bsz, hh, ww, cexp), f32)
        # TODO(synk): at real MobileNetV2 widths, do the kx shift with pltpu.roll
        # (XLU slot) instead of sublane-misaligned static slices.
        for ky in range(3):
            for kx in range(3):
                t = 3 * ky + kx
                acc = acc + pad[:, ky:ky + hh, kx:kx + ww, :] * dwb[t:t + 1]
        z = jnp.clip(acc + db_ref[b], 0.0, 6.0)             # (B, hh, ww, cexp)

        zm = z.reshape(m, cexp).astype(bf16)
        if stride == 2:
            # Exact on-chip stride-2: 0/1 selection matmul subsamples the depthwise
            # output to (hh/2, ww/2) BEFORE the projection, so the projection matmul
            # and every downstream op run at quarter resolution.
            # TODO(synk): the depthwise taps above still run at full resolution
            # (negligible VPU work here); phase-decompose the expansion at real scale.
            zm = jnp.dot(sel_ref[...], zm, preferred_element_type=f32).astype(bf16)
        out = jnp.dot(zm, pw_ref[b], preferred_element_type=f32) + pb_ref[b]
        if use_res:
            out = out + xin.astype(f32)
        return out.astype(bf16)

    x = _block(x, 0, h0, w0, pad_a, 1, False)               # (B*h0*w0, 128)
    x = _block(x, 1, h0, w0, pad_a, 2, False)               # (B*h1*w1, 128)
    x = _block(x, 2, h1, w1, pad_b, 1, True)                # (B*h1*w1, 128)

    # ---- fused head: last 1x1 conv + ReLU6 -> adaptive_avg_pool2d((1,1)) + flatten
    #      -> projector + F.normalize(dim=1)  and  classifier MLP (lane-dense logits)
    yl = jnp.dot(x, lw_ref[...], preferred_element_type=f32) + lb_ref[...]
    yl = jnp.clip(yl, 0.0, 6.0)                             # (B*h1*w1, LAST)
    pooled = jnp.mean(yl.reshape(bsz, h1 * w1, yl.shape[-1]), axis=1)   # (B, LAST) f32
    pooled_bf = pooled.astype(bf16)

    emb = jnp.dot(pooled_bf, prw_ref[...], preferred_element_type=f32) + prb_ref[...]
    ss = jnp.sum(emb * emb, axis=1, keepdims=True)
    emb = emb * jax.lax.rsqrt(jnp.maximum(ss, 1e-24))       # == x / max(||x||, 1e-12)

    hid = jnp.dot(pooled_bf, c1w_ref[...], preferred_element_type=f32) + c1b_ref[...]
    hid = jnp.maximum(hid, 0.0)
    logits = jnp.dot(hid.astype(bf16), c2w_ref[...],
                     preferred_element_type=f32) + c2b_ref[...]

    logits_ref[...] = logits                                # (B, 128) lane-dense
    emb_ref[...] = emb                                      # (B, EMBED)


def _full_spec(shape):
    nd = len(shape)

    def imap(i):
        return (0,) * nd

    return pl.BlockSpec(shape, imap)


def _fused_call(xs, sel, params, *, bsz, h0, w0):
    h1, w1 = h0 // 2, w0 // 2
    cexp = params["exp_w"].shape[-1]
    in_arrays = [
        xs, params["stem_w"], params["stem_b"],
        params["exp_w"], params["exp_b"], params["dw_w"], params["dw_b"],
        params["prj_w"], params["prj_b"], sel,
        params["last_w"], params["last_b"], params["proj_w"], params["proj_b"],
        params["cls1_w"], params["cls1_b"], params["cls2_w"], params["cls2_b"],
    ]
    return pl.pallas_call(
        functools.partial(_fused_kernel, bsz=bsz, h0=h0, w0=w0, h1=h1, w1=w1),
        out_shape=(jax.ShapeDtypeStruct((bsz, LOGITS_PAD), jnp.float32),
                   jax.ShapeDtypeStruct((bsz, EMBED), jnp.float32)),
        grid=(1,),
        in_specs=[_full_spec(a.shape) for a in in_arrays],
        out_specs=(_full_spec((bsz, LOGITS_PAD)), _full_spec((bsz, EMBED))),
        scratch_shapes=[
            # TODO(synk): keep these scratches bf16 on v6e/v7x (halves vst/vld traffic);
            # stay f32 here so the same kernel is also optimal on v5e (no bf16 VPU).
            pltpu.VMEM((bsz, h0 + 2, w0 + 2, cexp), jnp.float32),
            pltpu.VMEM((bsz, h1 + 2, w1 + 2, cexp), jnp.float32),
        ],
        compiler_params=pltpu.CompilerParams(
            dimension_semantics=("arbitrary",),
            vmem_limit_bytes=32 * 1024 * 1024),
    )(*in_arrays)


# ---------------------------------------------------------------------------
# Parameters (synthetic, deterministic; BN folded into conv weight + bias)
# ---------------------------------------------------------------------------
def init_params(key):
    keys = iter(jax.random.split(key, 64))

    def dense(shape, fan_in):
        w = jax.random.normal(next(keys), shape, dtype=jnp.float32)
        return (w / jnp.sqrt(float(fan_in))).astype(jnp.bfloat16)

    def bias(shape):
        return 0.05 * jax.random.normal(next(keys), shape, dtype=jnp.float32)

    params = {}
    # stem 3x3/s2 conv weight, pre-transformed for the fused space-to-depth matmul
    w3 = jax.random.normal(next(keys), (3, 3, C_IN_PAD, STEM), dtype=jnp.float32)
    w3 = w3 / jnp.sqrt(9.0 * C_IN)
    w3 = w3.at[:, :, C_IN:, :].set(0.0)                      # padded input channels = 0
    params["stem_w"] = _stem_weight_fused(w3).astype(jnp.bfloat16)   # (128, STEM)
    params["stem_b"] = bias((1, STEM))

    exp_w, exp_b, dw_w, dw_b, prj_w, prj_b = [], [], [], [], [], []
    for cin, cexp, cout, _, _ in BLOCKS:
        exp_w.append(dense((cin, cexp), cin))
        exp_b.append(bias((1, cexp)))
        dw_w.append(jax.random.normal(next(keys), (9, 1, cexp), jnp.float32) / 3.0)
        dw_b.append(bias((1, 1, cexp)))
        prj_w.append(dense((cexp, cout), cexp))
        prj_b.append(bias((1, cout)))
    # all blocks share shapes at this reduced scale -> stack so the fused kernel can
    # index them with a static block id
    params["exp_w"] = jnp.stack(exp_w)          # (3, 128, 256) bf16
    params["exp_b"] = jnp.stack(exp_b)          # (3, 1, 256)   f32
    params["dw_w"] = jnp.stack(dw_w)            # (3, 9, 1, 256) f32
    params["dw_b"] = jnp.stack(dw_b)            # (3, 1, 1, 256) f32
    params["prj_w"] = jnp.stack(prj_w)          # (3, 256, 128) bf16
    params["prj_b"] = jnp.stack(prj_b)          # (3, 1, 128)   f32

    params["last_w"] = dense((BLOCKS[-1][2], LAST), BLOCKS[-1][2])
    params["last_b"] = bias((1, LAST))
    params["proj_w"] = dense((LAST, EMBED), LAST)
    params["proj_b"] = bias((1, EMBED))
    params["cls1_w"] = dense((EMBED, EMBED), EMBED)
    params["cls1_b"] = bias((1, EMBED))
    # lane-dense (128-wide) classifier output; real logits are columns [:N_CLASSES]
    w2 = jax.random.normal(next(keys), (EMBED, N_CLASSES), jnp.float32) / jnp.sqrt(EMBED)
    b2 = 0.05 * jax.random.normal(next(keys), (1, N_CLASSES), jnp.float32)
    params["cls2_w"] = jnp.pad(w2, ((0, 0), (0, LOGITS_PAD - N_CLASSES))).astype(jnp.bfloat16)
    params["cls2_b"] = jnp.pad(b2, ((0, 0), (0, LOGITS_PAD - N_CLASSES)))
    return params


# ---------------------------------------------------------------------------
# Forward
# ---------------------------------------------------------------------------
def sr_detector_forward(params, images):
    """images: [B, n_channels, H, W] (NCHW as in PyTorch). Returns (logits, embeddings)."""
    assert images.shape[-3] == C_IN
    bsz, _, h, w = images.shape
    h0, w0 = h // 2, w // 2                    # resolution after the stride-2 stem
    xs = _stem_preprocess(images)              # (B, h0*w0, 128) bf16
    sel = _make_stride2_sel(bsz, h0, w0)       # stride-2 block subsample selector
    logits_pad, emb = _fused_call(xs, sel, params, bsz=bsz, h0=h0, w0=w0)
    return logits_pad[:, :N_CLASSES], emb


# ---------------------------------------------------------------------------
if __name__ == "__main__":
    key = jax.random.PRNGKey(0)
    pkey, xkey = jax.random.split(key)
    params = init_params(pkey)

    B = 2
    images = jax.random.normal(xkey, (B, C_IN, IMG, IMG), dtype=jnp.float32)

    logits, emb = jax.jit(sr_detector_forward)(params, images)
    jax.block_until_ready((logits, emb))

    assert logits.shape == (B, N_CLASSES)
    assert emb.shape == (B, EMBED)
    assert bool(jnp.all(jnp.isfinite(logits))) and bool(jnp.all(jnp.isfinite(emb)))
    print("KERNEL_OK")
</pallas_src>

<mosaic_0001>
module attributes {stable_mosaic.version = 11 : i64} {
  func.func @_fused_kernel(%arg0: i32, %arg1: memref<2x64x128xbf16, #tpu.memory_space<vmem>>, %arg2: memref<128x128xbf16, #tpu.memory_space<vmem>>, %arg3: memref<1x128xf32, #tpu.memory_space<vmem>>, %arg4: memref<3x128x256xbf16, #tpu.memory_space<vmem>>, %arg5: memref<3x1x256xf32, #tpu.memory_space<vmem>>, %arg6: memref<3x9x1x256xf32, #tpu.memory_space<vmem>>, %arg7: memref<3x1x1x256xf32, #tpu.memory_space<vmem>>, %arg8: memref<3x256x128xbf16, #tpu.memory_space<vmem>>, %arg9: memref<3x1x128xf32, #tpu.memory_space<vmem>>, %arg10: memref<32x128xbf16, #tpu.memory_space<vmem>>, %arg11: memref<128x128xbf16, #tpu.memory_space<vmem>>, %arg12: memref<1x128xf32, #tpu.memory_space<vmem>>, %arg13: memref<128x128xbf16, #tpu.memory_space<vmem>>, %arg14: memref<1x128xf32, #tpu.memory_space<vmem>>, %arg15: memref<128x128xbf16, #tpu.memory_space<vmem>>, %arg16: memref<1x128xf32, #tpu.memory_space<vmem>>, %arg17: memref<128x128xbf16, #tpu.memory_space<vmem>>, %arg18: memref<1x128xf32, #tpu.memory_space<vmem>>, %arg19: memref<2x128xf32, #tpu.memory_space<vmem>>, %arg20: memref<2x128xf32, #tpu.memory_space<vmem>>, %arg21: memref<2x10x10x256xf32, #tpu.memory_space<vmem>>, %arg22: memref<2x6x6x256xf32, #tpu.memory_space<vmem>>) attributes {dimension_semantics = [#tpu.dimension_semantics<arbitrary>], iteration_bounds = array<i64: 1>, scalar_prefetch = 0 : i64, scratch_operands = 2 : i64, tpu.core_type = #tpu.core_type<tc>, window_params = [{pipeline_mode = #tpu.pipeline_mode<synchronous>, transform_indices = @transform_0, window_bounds = array<i64: 2, 64, 128>}, {pipeline_mode = #tpu.pipeline_mode<synchronous>, transform_indices = @transform_1, window_bounds = array<i64: 128, 128>}, {pipeline_mode = #tpu.pipeline_mode<synchronous>, transform_indices = @transform_2, window_bounds = array<i64: 1, 128>}, {pipeline_mode = #tpu.pipeline_mode<synchronous>, transform_indices = @transform_3, window_bounds = array<i64: 3, 128, 256>}, {pipeline_mode = #tpu.pipeline_mode<synchronous>, transform_indices = @transform_4, window_bounds = array<i64: 3, 1, 256>}, {pipeline_mode = #tpu.pipeline_mode<synchronous>, transform_indices = @transform_5, window_bounds = array<i64: 3, 9, 1, 256>}, {pipeline_mode = #tpu.pipeline_mode<synchronous>, transform_indices = @transform_6, window_bounds = array<i64: 3, 1, 1, 256>}, {pipeline_mode = #tpu.pipeline_mode<synchronous>, transform_indices = @transform_7, window_bounds = array<i64: 3, 256, 128>}, {pipeline_mode = #tpu.pipeline_mode<synchronous>, transform_indices = @transform_8, window_bounds = array<i64: 3, 1, 128>}, {pipeline_mode = #tpu.pipeline_mode<synchronous>, transform_indices = @transform_9, window_bounds = array<i64: 32, 128>}, {pipeline_mode = #tpu.pipeline_mode<synchronous>, transform_indices = @transform_10, window_bounds = array<i64: 128, 128>}, {pipeline_mode = #tpu.pipeline_mode<synchronous>, transform_indices = @transform_11, window_bounds = array<i64: 1, 128>}, {pipeline_mode = #tpu.pipeline_mode<synchronous>, transform_indices = @transform_12, window_bounds = array<i64: 128, 128>}, {pipeline_mode = #tpu.pipeline_mode<synchronous>, transform_indices = @transform_13, window_bounds = array<i64: 1, 128>}, {pipeline_mode = #tpu.pipeline_mode<synchronous>, transform_indices = @transform_14, window_bounds = array<i64: 128, 128>}, {pipeline_mode = #tpu.pipeline_mode<synchronous>, transform_indices = @transform_15, window_bounds = array<i64: 1, 128>}, {pipeline_mode = #tpu.pipeline_mode<synchronous>, transform_indices = @transform_16, window_bounds = array<i64: 128, 128>}, {pipeline_mode = #tpu.pipeline_mode<synchronous>, transform_indices = @transform_17, window_bounds = array<i64: 1, 128>}, {pipeline_mode = #tpu.pipeline_mode<synchronous>, transform_indices = @transform_18, window_bounds = array<i64: 2, 128>}, {pipeline_mode = #tpu.pipeline_mode<synchronous>, transform_indices = @transform_19, window_bounds = array<i64: 2, 128>}]} {
    %c0 = arith.constant 0 : index
    %c0_0 = arith.constant 0 : index
    %c0_1 = arith.constant 0 : index
    %0 = vector.load %arg1[%c0, %c0_0, %c0_1] : memref<2x64x128xbf16, #tpu.memory_space<vmem>>, vector<2x64x128xbf16>
    %1 = vector.shape_cast %0 : vector<2x64x128xbf16> to vector<128x128xbf16>
    %c0_2 = arith.constant 0 : index
    %c0_3 = arith.constant 0 : index
    %2 = vector.load %arg2[%c0_2, %c0_3] : memref<128x128xbf16, #tpu.memory_space<vmem>>, vector<128x128xbf16>
    %cst = arith.constant dense<0.000000e+00> : vector<128x128xf32>
    %3 = tpu.matmul %1, %2, %cst {dimension_numbers = #tpu.dot_dimension_numbers<[1], [0], [0], [1], [0, 0, 1, 1], [], []>} : vector<128x128xbf16>, vector<128x128xbf16>, vector<128x128xf32> -> vector<128x128xf32>
    %c0_4 = arith.constant 0 : index
    %c0_5 = arith.constant 0 : index
    %4 = vector.load %arg3[%c0_4, %c0_5] : memref<1x128xf32, #tpu.memory_space<vmem>>, vector<1x128xf32>
    %5 = vector.broadcast %4 : vector<1x128xf32> to vector<128x128xf32>
    %6 = arith.addf %3, %5 : vector<128x128xf32>
    %cst_6 = arith.constant 0.000000e+00 : f32
    %cst_7 = arith.constant 6.000000e+00 : f32
    %7 = vector.broadcast %cst_6 : f32 to vector<128x128xf32>
    %8 = arith.maximumf %7, %6 : vector<128x128xf32>
    %9 = vector.broadcast %cst_7 : f32 to vector<128x128xf32>
    %10 = arith.minimumf %9, %8 : vector<128x128xf32>
    %11 = arith.truncf %10 : vector<128x128xf32> to vector<128x128xbf16>
    %cst_8 = arith.constant 0.000000e+00 : f32
    %12 = vector.broadcast %cst_8 : f32 to vector<2x1x10x256xf32>
    %c0_9 = arith.constant 0 : index
    %c0_10 = arith.constant 0 : index
    %c0_11 = arith.constant 0 : index
    %c0_12 = arith.constant 0 : index
    %13 = vector.load %arg21[%c0_9, %c0_10, %c0_11, %c0_12] : memref<2x10x10x256xf32, #tpu.memory_space<vmem>>, vector<2x1x10x256xf32>
    tpu.vector_store %arg21[%c0_9, %c0_10, %c0_11, %c0_12], %12 {strides = array<i32>} : memref<2x10x10x256xf32, #tpu.memory_space<vmem>>, vector<2x1x10x256xf32>,
    %cst_13 = arith.constant 0.000000e+00 : f32
    %14 = vector.broadcast %cst_13 : f32 to vector<2x1x10x256xf32>
    %c0_14 = arith.constant 0 : index
    %c9 = arith.constant 9 : index
    %c0_15 = arith.constant 0 : index
    %c0_16 = arith.constant 0 : index
    %15 = vector.load %arg21[%c0_14, %c9, %c0_15, %c0_16] : memref<2x10x10x256xf32, #tpu.memory_space<vmem>>, vector<2x1x10x256xf32>
    tpu.vector_store %arg21[%c0_14, %c9, %c0_15, %c0_16], %14 {strides = array<i32>} : memref<2x10x10x256xf32, #tpu.memory_space<vmem>>, vector<2x1x10x256xf32>,
    %cst_17 = arith.constant 0.000000e+00 : f32
    %16 = vector.broadcast %cst_17 : f32 to vector<2x8x1x256xf32>
    %c0_18 = arith.constant 0 : index
    %c1 = arith.constant 1 : index
    %c0_19 = arith.constant 0 : index
    %c0_20 = arith.constant 0 : index
    %17 = vector.load %arg21[%c0_18, %c1, %c0_19, %c0_20] : memref<2x10x10x256xf32, #tpu.memory_space<vmem>>, vector<2x8x1x256xf32>
    tpu.vector_store %arg21[%c0_18, %c1, %c0_19, %c0_20], %16 {strides = array<i32>} : memref<2x10x10x256xf32, #tpu.memory_space<vmem>>, vector<2x8x1x256xf32>,
    %cst_21 = arith.constant 0.000000e+00 : f32
    %18 = vector.broadcast %cst_21 : f32 to vector<2x8x1x256xf32>
    %c0_22 = arith.constant 0 : index
    %c1_23 = arith.constant 1 : index
    %c9_24 = arith.constant 9 : index
    %c0_25 = arith.constant 0 : index
    %19 = vector.load %arg21[%c0_22, %c1_23, %c9_24, %c0_25] : memref<2x10x10x256xf32, #tpu.memory_space<vmem>>, vector<2x8x1x256xf32>
    tpu.vector_store %arg21[%c0_22, %c1_23, %c9_24, %c0_25], %18 {strides = array<i32>} : memref<2x10x10x256xf32, #tpu.memory_space<vmem>>, vector<2x8x1x256xf32>,
    %cst_26 = arith.constant 0.000000e+00 : f32
    %20 = vector.broadcast %cst_26 : f32 to vector<2x1x6x256xf32>
    %c0_27 = arith.constant 0 : index
    %c0_28 = arith.constant 0 : index
    %c0_29 = arith.constant 0 : index
    %c0_30 = arith.constant 0 : index
    %21 = vector.load %arg22[%c0_27, %c0_28, %c0_29, %c0_30] : memref<2x6x6x256xf32, #tpu.memory_space<vmem>>, vector<2x1x6x256xf32>
    tpu.vector_store %arg22[%c0_27, %c0_28, %c0_29, %c0_30], %20 {strides = array<i32>} : memref<2x6x6x256xf32, #tpu.memory_space<vmem>>, vector<2x1x6x256xf32>,
    %cst_31 = arith.constant 0.000000e+00 : f32
    %22 = vector.broadcast %cst_31 : f32 to vector<2x1x6x256xf32>
    %c0_32 = arith.constant 0 : index
    %c5 = arith.constant 5 : index
    %c0_33 = arith.constant 0 : index
    %c0_34 = arith.constant 0 : index
    %23 = vector.load %arg22[%c0_32, %c5, %c0_33, %c0_34] : memref<2x6x6x256xf32, #tpu.memory_space<vmem>>, vector<2x1x6x256xf32>
    tpu.vector_store %arg22[%c0_32, %c5, %c0_33, %c0_34], %22 {strides = array<i32>} : memref<2x6x6x256xf32, #tpu.memory_space<vmem>>, vector<2x1x6x256xf32>,
    %cst_35 = arith.constant 0.000000e+00 : f32
    %24 = vector.broadcast %cst_35 : f32 to vector<2x4x1x256xf32>
    %c0_36 = arith.constant 0 : index
    %c1_37 = arith.constant 1 : index
    %c0_38 = arith.constant 0 : index
    %c0_39 = arith.constant 0 : index
    %25 = vector.load %arg22[%c0_36, %c1_37, %c0_38, %c0_39] : memref<2x6x6x256xf32, #tpu.memory_space<vmem>>, vector<2x4x1x256xf32>
    tpu.vector_store %arg22[%c0_36, %c1_37, %c0_38, %c0_39], %24 {strides = array<i32>} : memref<2x6x6x256xf32, #tpu.memory_space<vmem>>, vector<2x4x1x256xf32>,
    %cst_40 = arith.constant 0.000000e+00 : f32
    %26 = vector.broadcast %cst_40 : f32 to vector<2x4x1x256xf32>
    %c0_41 = arith.constant 0 : index
    %c1_42 = arith.constant 1 : index
    %c5_43 = arith.constant 5 : index
    %c0_44 = arith.constant 0 : index
    %27 = vector.load %arg22[%c0_41, %c1_42, %c5_43, %c0_44] : memref<2x6x6x256xf32, #tpu.memory_space<vmem>>, vector<2x4x1x256xf32>
    tpu.vector_store %arg22[%c0_41, %c1_42, %c5_43, %c0_44], %26 {strides = array<i32>} : memref<2x6x6x256xf32, #tpu.memory_space<vmem>>, vector<2x4x1x256xf32>,
    %c0_45 = arith.constant 0 : index
    %c0_46 = arith.constant 0 : index
    %c0_47 = arith.constant 0 : index
    %28 = vector.load %arg4[%c0_45, %c0_46, %c0_47] : memref<3x128x256xbf16, #tpu.memory_space<vmem>>, vector<1x128x256xbf16>
    %29 = vector.shape_cast %28 : vector<1x128x256xbf16> to vector<128x256xbf16>
    %cst_48 = arith.constant dense<0.000000e+00> : vector<128x256xf32>
    %30 = tpu.matmul %11, %29, %cst_48 {dimension_numbers = #tpu.dot_dimension_numbers<[1], [0], [0], [1], [0, 0, 1, 1], [], []>} : vector<128x128xbf16>, vector<128x256xbf16>, vector<128x256xf32> -> vector<128x256xf32>
    %c0_49 = arith.constant 0 : index
    %c0_50 = arith.constant 0 : index
    %c0_51 = arith.constant 0 : index
    %31 = vector.load %arg5[%c0_49, %c0_50, %c0_51] : memref<3x1x256xf32, #tpu.memory_space<vmem>>, vector<1x1x256xf32>
    %32 = vector.shape_cast %31 : vector<1x1x256xf32> to vector<1x256xf32>
    %33 = vector.broadcast %32 : vector<1x256xf32> to vector<128x256xf32>
    %34 = arith.addf %30, %33 : vector<128x256xf32>
    %cst_52 = arith.constant 0.000000e+00 : f32
    %cst_53 = arith.constant 6.000000e+00 : f32
    %35 = vector.broadcast %cst_52 : f32 to vector<128x256xf32>
    %36 = arith.maximumf %35, %34 : vector<128x256xf32>
    %37 = vector.broadcast %cst_53 : f32 to vector<128x256xf32>
    %38 = arith.minimumf %37, %36 : vector<128x256xf32>
    %39 = vector.shape_cast %38 : vector<128x256xf32> to vector<2x8x8x256xf32>
    %c0_54 = arith.constant 0 : index
    %c1_55 = arith.constant 1 : index
    %c1_56 = arith.constant 1 : index
    %c0_57 = arith.constant 0 : index
    %40 = vector.load %arg21[%c0_54, %c1_55, %c1_56, %c0_57] : memref<2x10x10x256xf32, #tpu.memory_space<vmem>>, vector<2x8x8x256xf32>
    tpu.vector_store %arg21[%c0_54, %c1_55, %c1_56, %c0_57], %39 {strides = array<i32>} : memref<2x10x10x256xf32, #tpu.memory_space<vmem>>, vector<2x8x8x256xf32>,
    %c0_58 = arith.constant 0 : index
    %c0_59 = arith.constant 0 : index
    %c0_60 = arith.constant 0 : index
    %c0_61 = arith.constant 0 : index
    %41 = vector.load %arg6[%c0_58, %c0_59, %c0_60, %c0_61] : memref<3x9x1x256xf32, #tpu.memory_space<vmem>>, vector<1x9x1x256xf32>
    %42 = vector.shape_cast %41 : vector<1x9x1x256xf32> to vector<9x1x256xf32>
    %cst_62 = arith.constant 0.000000e+00 : f32
    %43 = vector.broadcast %cst_62 : f32 to vector<2x8x8x256xf32>
    %c0_63 = arith.constant 0 : index
    %c0_64 = arith.constant 0 : index
    %c0_65 = arith.constant 0 : index
    %c0_66 = arith.constant 0 : index
    %44 = vector.load %arg21[%c0_63, %c0_64, %c0_65, %c0_66] : memref<2x10x10x256xf32, #tpu.memory_space<vmem>>, vector<2x8x8x256xf32>
    %45 = vector.extract_strided_slice %42 {offsets = [0, 0, 0], sizes = [1, 1, 256], strides = [1, 1, 1]} : vector<9x1x256xf32> to vector<1x1x256xf32>
    %46 = vector.shape_cast %45 : vector<1x1x256xf32> to vector<1x1x1x256xf32>
    %47 = vector.broadcast %46 : vector<1x1x1x256xf32> to vector<2x8x8x256xf32>
    %48 = arith.mulf %44, %47 : vector<2x8x8x256xf32>
    %49 = arith.addf %43, %48 : vector<2x8x8x256xf32>
    %c0_67 = arith.constant 0 : index
    %c0_68 = arith.constant 0 : index
    %c1_69 = arith.constant 1 : index
    %c0_70 = arith.constant 0 : index
    %50 = vector.load %arg21[%c0_67, %c0_68, %c1_69, %c0_70] : memref<2x10x10x256xf32, #tpu.memory_space<vmem>>, vector<2x8x8x256xf32>
    %51 = vector.extract_strided_slice %42 {offsets = [1, 0, 0], sizes = [1, 1, 256], strides = [1, 1, 1]} : vector<9x1x256xf32> to vector<1x1x256xf32>
    %52 = vector.shape_cast %51 : vector<1x1x256xf32> to vector<1x1x1x256xf32>
    %53 = vector.broadcast %52 : vector<1x1x1x256xf32> to vector<2x8x8x256xf32>
    %54 = arith.mulf %50, %53 : vector<2x8x8x256xf32>
    %55 = arith.addf %49, %54 : vector<2x8x8x256xf32>
    %c0_71 = arith.constant 0 : index
    %c0_72 = arith.constant 0 : index
    %c2 = arith.constant 2 : index
    %c0_73 = arith.constant 0 : index
    %56 = vector.load %arg21[%c0_71, %c0_72, %c2, %c0_73] : memref<2x10x10x256xf32, #tpu.memory_space<vmem>>, vector<2x8x8x256xf32>
    %57 = vector.extract_strided_slice %42 {offsets = [2, 0, 0], sizes = [1, 1, 256], strides = [1, 1, 1]} : vector<9x1x256xf32> to vector<1x1x256xf32>
    %58 = vector.shape_cast %57 : vector<1x1x256xf32> to vector<1x1x1x256xf32>
    %59 = vector.broadcast %58 : vector<1x1x1x256xf32> to vector<2x8x8x256xf32>
    %60 = arith.mulf %56, %59 : vector<2x8x8x256xf32>
    %61 = arith.addf %55, %60 : vector<2x8x8x256xf32>
    %c0_74 = arith.constant 0 : index
    %c1_75 = arith.constant 1 : index
    %c0_76 = arith.constant 0 : index
    %c0_77 = arith.constant 0 : index
    %62 = vector.load %arg21[%c0_74, %c1_75, %c0_76, %c0_77] : memref<2x10x10x256xf32, #tpu.memory_space<vmem>>, vector<2x8x8x256xf32>
    %63 = vector.extract_strided_slice %42 {offsets = [3, 0, 0], sizes = [1, 1, 256], strides = [1, 1, 1]} : vector<9x1x256xf32> to vector<1x1x256xf32>
    %64 = vector.shape_cast %63 : vector<1x1x256xf32> to vector<1x1x1x256xf32>
    %65 = vector.broadcast %64 : vector<1x1x1x256xf32> to vector<2x8x8x256xf32>
    %66 = arith.mulf %62, %65 : vector<2x8x8x256xf32>
    %67 = arith.addf %61, %66 : vector<2x8x8x256xf32>
    %c0_78 = arith.constant 0 : index
    %c1_79 = arith.constant 1 : index
    %c1_80 = arith.constant 1 : index
    %c0_81 = arith.constant 0 : index
    %68 = vector.load %arg21[%c0_78, %c1_79, %c1_80, %c0_81] : memref<2x10x10x256xf32, #tpu.memory_space<vmem>>, vector<2x8x8x256xf32>
    %69 = vector.extract_strided_slice %42 {offsets = [4, 0, 0], sizes = [1, 1, 256], strides = [1, 1, 1]} : vector<9x1x256xf32> to vector<1x1x256xf32>
    %70 = vector.shape_cast %69 : vector<1x1x256xf32> to vector<1x1x1x256xf32>
    %71 = vector.broadcast %70 : vector<1x1x1x256xf32> to vector<2x8x8x256xf32>
    %72 = arith.mulf %68, %71 : vector<2x8x8x256xf32>
    %73 = arith.addf %67, %72 : vector<2x8x8x256xf32>
    %c0_82 = arith.constant 0 : index
    %c1_83 = arith.constant 1 : index
    %c2_84 = arith.constant 2 : index
    %c0_85 = arith.constant 0 : index
    %74 = vector.load %arg21[%c0_82, %c1_83, %c2_84, %c0_85] : memref<2x10x10x256xf32, #tpu.memory_space<vmem>>, vector<2x8x8x256xf32>
    %75 = vector.extract_strided_slice %42 {offsets = [5, 0, 0], sizes = [1, 1, 256], strides = [1, 1, 1]} : vector<9x1x256xf32> to vector<1x1x256xf32>
    %76 = vector.shape_cast %75 : vector<1x1x256xf32> to vector<1x1x1x256xf32>
    %77 = vector.broadcast %76 : vector<1x1x1x256xf32> to vector<2x8x8x256xf32>
    %78 = arith.mulf %74, %77 : vector<2x8x8x256xf32>
    %79 = arith.addf %73, %78 : vector<2x8x8x256xf32>
    %c0_86 = arith.constant 0 : index
    %c2_87 = arith.constant 2 : index
    %c0_88 = arith.constant 0 : index
    %c0_89 = arith.constant 0 : index
    %80 = vector.load %arg21[%c0_86, %c2_87, %c0_88, %c0_89] : memref<2x10x10x256xf32, #tpu.memory_space<vmem>>, vector<2x8x8x256xf32>
    %81 = vector.extract_strided_slice %42 {offsets = [6, 0, 0], sizes = [1, 1, 256], strides = [1, 1, 1]} : vector<9x1x256xf32> to vector<1x1x256xf32>
    %82 = vector.shape_cast %81 : vector<1x1x256xf32> to vector<1x1x1x256xf32>
    %83 = vector.broadcast %82 : vector<1x1x1x256xf32> to vector<2x8x8x256xf32>
    %84 = arith.mulf %80, %83 : vector<2x8x8x256xf32>
    %85 = arith.addf %79, %84 : vector<2x8x8x256xf32>
    %c0_90 = arith.constant 0 : index
    %c2_91 = arith.constant 2 : index
    %c1_92 = arith.constant 1 : index
    %c0_93 = arith.constant 0 : index
    %86 = vector.load %arg21[%c0_90, %c2_91, %c1_92, %c0_93] : memref<2x10x10x256xf32, #tpu.memory_space<vmem>>, vector<2x8x8x256xf32>
    %87 = vector.extract_strided_slice %42 {offsets = [7, 0, 0], sizes = [1, 1, 256], strides = [1, 1, 1]} : vector<9x1x256xf32> to vector<1x1x256xf32>
    %88 = vector.shape_cast %87 : vector<1x1x256xf32> to vector<1x1x1x256xf32>
    %89 = vector.broadcast %88 : vector<1x1x1x256xf32> to vector<2x8x8x256xf32>
    %90 = arith.mulf %86, %89 : vector<2x8x8x256xf32>
    %91 = arith.addf %85, %90 : vector<2x8x8x256xf32>
    %c0_94 = arith.constant 0 : index
    %c2_95 = arith.constant 2 : index
    %c2_96 = arith.constant 2 : index
    %c0_97 = arith.constant 0 : index
    %92 = vector.load %arg21[%c0_94, %c2_95, %c2_96, %c0_97] : memref<2x10x10x256xf32, #tpu.memory_space<vmem>>, vector<2x8x8x256xf32>
    %93 = vector.extract_strided_slice %42 {offsets = [8, 0, 0], sizes = [1, 1, 256], strides = [1, 1, 1]} : vector<9x1x256xf32> to vector<1x1x256xf32>
    %94 = vector.shape_cast %93 : vector<1x1x256xf32> to vector<1x1x1x256xf32>
    %95 = vector.broadcast %94 : vector<1x1x1x256xf32> to vector<2x8x8x256xf32>
    %96 = arith.mulf %92, %95 : vector<2x8x8x256xf32>
    %97 = arith.addf %91, %96 : vector<2x8x8x256xf32>
    %c0_98 = arith.constant 0 : index
    %c0_99 = arith.constant 0 : index
    %c0_100 = arith.constant 0 : index
    %c0_101 = arith.constant 0 : index
    %98 = vector.load %arg7[%c0_98, %c0_99, %c0_100, %c0_101] : memref<3x1x1x256xf32, #tpu.memory_space<vmem>>, vector<1x1x1x256xf32>
    %99 = vector.shape_cast %98 : vector<1x1x1x256xf32> to vector<1x1x256xf32>
    %100 = vector.shape_cast %99 : vector<1x1x256xf32> to vector<1x1x1x256xf32>
    %101 = vector.broadcast %100 : vector<1x1x1x256xf32> to vector<2x8x8x256xf32>
    %102 = arith.addf %97, %101 : vector<2x8x8x256xf32>
    %cst_102 = arith.constant 0.000000e+00 : f32
    %cst_103 = arith.constant 6.000000e+00 : f32
    %103 = vector.broadcast %cst_102 : f32 to vector<2x8x8x256xf32>
    %104 = arith.maximumf %103, %102 : vector<2x8x8x256xf32>
    %105 = vector.broadcast %cst_103 : f32 to vector<2x8x8x256xf32>
    %106 = arith.minimumf %105, %104 : vector<2x8x8x256xf32>
    %107 = vector.shape_cast %106 : vector<2x8x8x256xf32> to vector<128x256xf32>
    %108 = arith.truncf %107 : vector<128x256xf32> to vector<128x256xbf16>
    %c0_104 = arith.constant 0 : index
    %c0_105 = arith.constant 0 : index
    %c0_106 = arith.constant 0 : index
    %109 = vector.load %arg8[%c0_104, %c0_105, %c0_106] : memref<3x256x128xbf16, #tpu.memory_space<vmem>>, vector<1x256x128xbf16>
    %110 = vector.shape_cast %109 : vector<1x256x128xbf16> to vector<256x128xbf16>
    %cst_107 = arith.constant dense<0.000000e+00> : vector<128x128xf32>
    %111 = tpu.matmul %108, %110, %cst_107 {dimension_numbers = #tpu.dot_dimension_numbers<[1], [0], [0], [1], [0, 0, 1, 1], [], []>} : vector<128x256xbf16>, vector<256x128xbf16>, vector<128x128xf32> -> vector<128x128xf32>
    %c0_108 = arith.constant 0 : index
    %c0_109 = arith.constant 0 : index
    %c0_110 = arith.constant 0 : index
    %112 = vector.load %arg9[%c0_108, %c0_109, %c0_110] : memref<3x1x128xf32, #tpu.memory_space<vmem>>, vector<1x1x128xf32>
    %113 = vector.shape_cast %112 : vector<1x1x128xf32> to vector<1x128xf32>
    %114 = vector.broadcast %113 : vector<1x128xf32> to vector<128x128xf32>
    %115 = arith.addf %111, %114 : vector<128x128xf32>
    %116 = arith.truncf %115 : vector<128x128xf32> to vector<128x128xbf16>
    %c1_111 = arith.constant 1 : index
    %c0_112 = arith.constant 0 : index
    %c0_113 = arith.constant 0 : index
    %117 = vector.load %arg4[%c1_111, %c0_112, %c0_113] : memref<3x128x256xbf16, #tpu.memory_space<vmem>>, vector<1x128x256xbf16>
    %118 = vector.shape_cast %117 : vector<1x128x256xbf16> to vector<128x256xbf16>
    %cst_114 = arith.constant dense<0.000000e+00> : vector<128x256xf32>
    %119 = tpu.matmul %116, %118, %cst_114 {dimension_numbers = #tpu.dot_dimension_numbers<[1], [0], [0], [1], [0, 0, 1, 1], [], []>} : vector<128x128xbf16>, vector<128x256xbf16>, vector<128x256xf32> -> vector<128x256xf32>
    %c1_115 = arith.constant 1 : index
    %c0_116 = arith.constant 0 : index
    %c0_117 = arith.constant 0 : index
    %120 = vector.load %arg5[%c1_115, %c0_116, %c0_117] : memref<3x1x256xf32, #tpu.memory_space<vmem>>, vector<1x1x256xf32>
    %121 = vector.shape_cast %120 : vector<1x1x256xf32> to vector<1x256xf32>
    %122 = vector.broadcast %121 : vector<1x256xf32> to vector<128x256xf32>
    %123 = arith.addf %119, %122 : vector<128x256xf32>
    %cst_118 = arith.constant 0.000000e+00 : f32
    %cst_119 = arith.constant 6.000000e+00 : f32
    %124 = vector.broadcast %cst_118 : f32 to vector<128x256xf32>
    %125 = arith.maximumf %124, %123 : vector<128x256xf32>
    %126 = vector.broadcast %cst_119 : f32 to vector<128x256xf32>
    %127 = arith.minimumf %126, %125 : vector<128x256xf32>
    %128 = vector.shape_cast %127 : vector<128x256xf32> to vector<2x8x8x256xf32>
    %c0_120 = arith.constant 0 : index
    %c1_121 = arith.constant 1 : index
    %c1_122 = arith.constant 1 : index
    %c0_123 = arith.constant 0 : index
    %129 = vector.load %arg21[%c0_120, %c1_121, %c1_122, %c0_123] : memref<2x10x10x256xf32, #tpu.memory_space<vmem>>, vector<2x8x8x256xf32>
    tpu.vector_store %arg21[%c0_120, %c1_121, %c1_122, %c0_123], %128 {strides = array<i32>} : memref<2x10x10x256xf32, #tpu.memory_space<vmem>>, vector<2x8x8x256xf32>,
    %c1_124 = arith.constant 1 : index
    %c0_125 = arith.constant 0 : index
    %c0_126 = arith.constant 0 : index
    %c0_127 = arith.constant 0 : index
    %130 = vector.load %arg6[%c1_124, %c0_125, %c0_126, %c0_127] : memref<3x9x1x256xf32, #tpu.memory_space<vmem>>, vector<1x9x1x256xf32>
    %131 = vector.shape_cast %130 : vector<1x9x1x256xf32> to vector<9x1x256xf32>
    %cst_128 = arith.constant 0.000000e+00 : f32
    %132 = vector.broadcast %cst_128 : f32 to vector<2x8x8x256xf32>
    %c0_129 = arith.constant 0 : index
    %c0_130 = arith.constant 0 : index
    %c0_131 = arith.constant 0 : index
    %c0_132 = arith.constant 0 : index
    %133 = vector.load %arg21[%c0_129, %c0_130, %c0_131, %c0_132] : memref<2x10x10x256xf32, #tpu.memory_space<vmem>>, vector<2x8x8x256xf32>
    %134 = vector.extract_strided_slice %131 {offsets = [0, 0, 0], sizes = [1, 1, 256], strides = [1, 1, 1]} : vector<9x1x256xf32> to vector<1x1x256xf32>
    %135 = vector.shape_cast %134 : vector<1x1x256xf32> to vector<1x1x1x256xf32>
    %136 = vector.broadcast %135 : vector<1x1x1x256xf32> to vector<2x8x8x256xf32>
    %137 = arith.mulf %133, %136 : vector<2x8x8x256xf32>
    %138 = arith.addf %132, %137 : vector<2x8x8x256xf32>
    %c0_133 = arith.constant 0 : index
    %c0_134 = arith.constant 0 : index
    %c1_135 = arith.constant 1 : index
    %c0_136 = arith.constant 0 : index
    %139 = vector.load %arg21[%c0_133, %c0_134, %c1_135, %c0_136] : memref<2x10x10x256xf32, #tpu.memory_space<vmem>>, vector<2x8x8x256xf32>
    %140 = vector.extract_strided_slice %131 {offsets = [1, 0, 0], sizes = [1, 1, 256], strides = [1, 1, 1]} : vector<9x1x256xf32> to vector<1x1x256xf32>
    %141 = vector.shape_cast %140 : vector<1x1x256xf32> to vector<1x1x1x256xf32>
    %142 = vector.broadcast %141 : vector<1x1x1x256xf32> to vector<2x8x8x256xf32>
    %143 = arith.mulf %139, %142 : vector<2x8x8x256xf32>
    %144 = arith.addf %138, %143 : vector<2x8x8x256xf32>
    %c0_137 = arith.constant 0 : index
    %c0_138 = arith.constant 0 : index
    %c2_139 = arith.constant 2 : index
    %c0_140 = arith.constant 0 : index
    %145 = vector.load %arg21[%c0_137, %c0_138, %c2_139, %c0_140] : memref<2x10x10x256xf32, #tpu.memory_space<vmem>>, vector<2x8x8x256xf32>
    %146 = vector.extract_strided_slice %131 {offsets = [2, 0, 0], sizes = [1, 1, 256], strides = [1, 1, 1]} : vector<9x1x256xf32> to vector<1x1x256xf32>
    %147 = vector.shape_cast %146 : vector<1x1x256xf32> to vector<1x1x1x256xf32>
    %148 = vector.broadcast %147 : vector<1x1x1x256xf32> to vector<2x8x8x256xf32>
    %149 = arith.mulf %145, %148 : vector<2x8x8x256xf32>
    %150 = arith.addf %144, %149 : vector<2x8x8x256xf32>
    %c0_141 = arith.constant 0 : index
    %c1_142 = arith.constant 1 : index
    %c0_143 = arith.constant 0 : index
    %c0_144 = arith.constant 0 : index
    %151 = vector.load %arg21[%c0_141, %c1_142, %c0_143, %c0_144] : memref<2x10x10x256xf32, #tpu.memory_space<vmem>>, vector<2x8x8x256xf32>
    %152 = vector.extract_strided_slice %131 {offsets = [3, 0, 0], sizes = [1, 1, 256], strides = [1, 1, 1]} : vector<9x1x256xf32> to vector<1x1x256xf32>
    %153 = vector.shape_cast %152 : vector<1x1x256xf32> to vector<1x1x1x256xf32>
    %154 = vector.broadcast %153 : vector<1x1x1x256xf32> to vector<2x8x8x256xf32>
    %155 = arith.mulf %151, %154 : vector<2x8x8x256xf32>
    %156 = arith.addf %150, %155 : vector<2x8x8x256xf32>
    %c0_145 = arith.constant 0 : index
    %c1_146 = arith.constant 1 : index
    %c1_147 = arith.constant 1 : index
    %c0_148 = arith.constant 0 : index
    %157 = vector.load %arg21[%c0_145, %c1_146, %c1_147, %c0_148] : memref<2x10x10x256xf32, #tpu.memory_space<vmem>>, vector<2x8x8x256xf32>
    %158 = vector.extract_strided_slice %131 {offsets = [4, 0, 0], sizes = [1, 1, 256], strides = [1, 1, 1]} : vector<9x1x256xf32> to vector<1x1x256xf32>
    %159 = vector.shape_cast %158 : vector<1x1x256xf32> to vector<1x1x1x256xf32>
    %160 = vector.broadcast %159 : vector<1x1x1x256xf32> to vector<2x8x8x256xf32>
    %161 = arith.mulf %157, %160 : vector<2x8x8x256xf32>
    %162 = arith.addf %156, %161 : vector<2x8x8x256xf32>
    %c0_149 = arith.constant 0 : index
    %c1_150 = arith.constant 1 : index
    %c2_151 = arith.constant 2 : index
    %c0_152 = arith.constant 0 : index
    %163 = vector.load %arg21[%c0_149, %c1_150, %c2_151, %c0_152] : memref<2x10x10x256xf32, #tpu.memory_space<vmem>>, vector<2x8x8x256xf32>
    %164 = vector.extract_strided_slice %131 {offsets = [5, 0, 0], sizes = [1, 1, 256], strides = [1, 1, 1]} : vector<9x1x256xf32> to vector<1x1x256xf32>
    %165 = vector.shape_cast %164 : vector<1x1x256xf32> to vector<1x1x1x256xf32>
    %166 = vector.broadcast %165 : vector<1x1x1x256xf32> to vector<2x8x8x256xf32>
    %167 = arith.mulf %163, %166 : vector<2x8x8x256xf32>
    %168 = arith.addf %162, %167 : vector<2x8x8x256xf32>
    %c0_153 = arith.constant 0 : index
    %c2_154 = arith.constant 2 : index
    %c0_155 = arith.constant 0 : index
    %c0_156 = arith.constant 0 : index
    %169 = vector.load %arg21[%c0_153, %c2_154, %c0_155, %c0_156] : memref<2x10x10x256xf32, #tpu.memory_space<vmem>>, vector<2x8x8x256xf32>
    %170 = vector.extract_strided_slice %131 {offsets = [6, 0, 0], sizes = [1, 1, 256], strides = [1, 1, 1]} : vector<9x1x256xf32> to vector<1x1x256xf32>
    %171 = vector.shape_cast %170 : vector<1x1x256xf32> to vector<1x1x1x256xf32>
    %172 = vector.broadcast %171 : vector<1x1x1x256xf32> to vector<2x8x8x256xf32>
    %173 = arith.mulf %169, %172 : vector<2x8x8x256xf32>
    %174 = arith.addf %168, %173 : vector<2x8x8x256xf32>
    %c0_157 = arith.constant 0 : index
    %c2_158 = arith.constant 2 : index
    %c1_159 = arith.constant 1 : index
    %c0_160 = arith.constant 0 : index
    %175 = vector.load %arg21[%c0_157, %c2_158, %c1_159, %c0_160] : memref<2x10x10x256xf32, #tpu.memory_space<vmem>>, vector<2x8x8x256xf32>
    %176 = vector.extract_strided_slice %131 {offsets = [7, 0, 0], sizes = [1, 1, 256], strides = [1, 1, 1]} : vector<9x1x256xf32> to vector<1x1x256xf32>
    %177 = vector.shape_cast %176 : vector<1x1x256xf32> to vector<1x1x1x256xf32>
    %178 = vector.broadcast %177 : vector<1x1x1x256xf32> to vector<2x8x8x256xf32>
    %179 = arith.mulf %175, %178 : vector<2x8x8x256xf32>
    %180 = arith.addf %174, %179 : vector<2x8x8x256xf32>
    %c0_161 = arith.constant 0 : index
    %c2_162 = arith.constant 2 : index
    %c2_163 = arith.constant 2 : index
    %c0_164 = arith.constant 0 : index
    %181 = vector.load %arg21[%c0_161, %c2_162, %c2_163, %c0_164] : memref<2x10x10x256xf32, #tpu.memory_space<vmem>>, vector<2x8x8x256xf32>
    %182 = vector.extract_strided_slice %131 {offsets = [8, 0, 0], sizes = [1, 1, 256], strides = [1, 1, 1]} : vector<9x1x256xf32> to vector<1x1x256xf32>
    %183 = vector.shape_cast %182 : vector<1x1x256xf32> to vector<1x1x1x256xf32>
    %184 = vector.broadcast %183 : vector<1x1x1x256xf32> to vector<2x8x8x256xf32>
    %185 = arith.mulf %181, %184 : vector<2x8x8x256xf32>
    %186 = arith.addf %180, %185 : vector<2x8x8x256xf32>
    %c1_165 = arith.constant 1 : index
    %c0_166 = arith.constant 0 : index
    %c0_167 = arith.constant 0 : index
    %c0_168 = arith.constant 0 : index
    %187 = vector.load %arg7[%c1_165, %c0_166, %c0_167, %c0_168] : memref<3x1x1x256xf32, #tpu.memory_space<vmem>>, vector<1x1x1x256xf32>
    %188 = vector.shape_cast %187 : vector<1x1x1x256xf32> to vector<1x1x256xf32>
    %189 = vector.shape_cast %188 : vector<1x1x256xf32> to vector<1x1x1x256xf32>
    %190 = vector.broadcast %189 : vector<1x1x1x256xf32> to vector<2x8x8x256xf32>
    %191 = arith.addf %186, %190 : vector<2x8x8x256xf32>
    %cst_169 = arith.constant 0.000000e+00 : f32
    %cst_170 = arith.constant 6.000000e+00 : f32
    %192 = vector.broadcast %cst_169 : f32 to vector<2x8x8x256xf32>
    %193 = arith.maximumf %192, %191 : vector<2x8x8x256xf32>
    %194 = vector.broadcast %cst_170 : f32 to vector<2x8x8x256xf32>
    %195 = arith.minimumf %194, %193 : vector<2x8x8x256xf32>
    %196 = vector.shape_cast %195 : vector<2x8x8x256xf32> to vector<128x256xf32>
    %197 = arith.truncf %196 : vector<128x256xf32> to vector<128x256xbf16>
    %c0_171 = arith.constant 0 : index
    %c0_172 = arith.constant 0 : index
    %198 = vector.load %arg10[%c0_171, %c0_172] : memref<32x128xbf16, #tpu.memory_space<vmem>>, vector<32x128xbf16>
    %cst_173 = arith.constant dense<0.000000e+00> : vector<32x256xf32>
    %199 = tpu.matmul %198, %197, %cst_173 {dimension_numbers = #tpu.dot_dimension_numbers<[1], [0], [0], [1], [0, 0, 1, 1], [], []>} : vector<32x128xbf16>, vector<128x256xbf16>, vector<32x256xf32> -> vector<32x256xf32>
    %200 = arith.truncf %199 : vector<32x256xf32> to vector<32x256xbf16>
    %c1_174 = arith.constant 1 : index
    %c0_175 = arith.constant 0 : index
    %c0_176 = arith.constant 0 : index
    %201 = vector.load %arg8[%c1_174, %c0_175, %c0_176] : memref<3x256x128xbf16, #tpu.memory_space<vmem>>, vector<1x256x128xbf16>
    %202 = vector.shape_cast %201 : vector<1x256x128xbf16> to vector<256x128xbf16>
    %cst_177 = arith.constant dense<0.000000e+00> : vector<32x128xf32>
    %203 = tpu.matmul %200, %202, %cst_177 {dimension_numbers = #tpu.dot_dimension_numbers<[1], [0], [0], [1], [0, 0, 1, 1], [], []>} : vector<32x256xbf16>, vector<256x128xbf16>, vector<32x128xf32> -> vector<32x128xf32>
    %c1_178 = arith.constant 1 : index
    %c0_179 = arith.constant 0 : index
    %c0_180 = arith.constant 0 : index
    %204 = vector.load %arg9[%c1_178, %c0_179, %c0_180] : memref<3x1x128xf32, #tpu.memory_space<vmem>>, vector<1x1x128xf32>
    %205 = vector.shape_cast %204 : vector<1x1x128xf32> to vector<1x128xf32>
    %206 = vector.broadcast %205 : vector<1x128xf32> to vector<32x128xf32>
    %207 = arith.addf %203, %206 : vector<32x128xf32>
    %208 = arith.truncf %207 : vector<32x128xf32> to vector<32x128xbf16>
    %c2_181 = arith.constant 2 : index
    %c0_182 = arith.constant 0 : index
    %c0_183 = arith.constant 0 : index
    %209 = vector.load %arg4[%c2_181, %c0_182, %c0_183] : memref<3x128x256xbf16, #tpu.memory_space<vmem>>, vector<1x128x256xbf16>
    %210 = vector.shape_cast %209 : vector<1x128x256xbf16> to vector<128x256xbf16>
    %cst_184 = arith.constant dense<0.000000e+00> : vector<32x256xf32>
    %211 = tpu.matmul %208, %210, %cst_184 {dimension_numbers = #tpu.dot_dimension_numbers<[1], [0], [0], [1], [0, 0, 1, 1], [], []>} : vector<32x128xbf16>, vector<128x256xbf16>, vector<32x256xf32> -> vector<32x256xf32>
    %c2_185 = arith.constant 2 : index
    %c0_186 = arith.constant 0 : index
    %c0_187 = arith.constant 0 : index
    %212 = vector.load %arg5[%c2_185, %c0_186, %c0_187] : memref<3x1x256xf32, #tpu.memory_space<vmem>>, vector<1x1x256xf32>
    %213 = vector.shape_cast %212 : vector<1x1x256xf32> to vector<1x256xf32>
    %214 = vector.broadcast %213 : vector<1x256xf32> to vector<32x256xf32>
    %215 = arith.addf %211, %214 : vector<32x256xf32>
    %cst_188 = arith.constant 0.000000e+00 : f32
    %cst_189 = arith.constant 6.000000e+00 : f32
    %216 = vector.broadcast %cst_188 : f32 to vector<32x256xf32>
    %217 = arith.maximumf %216, %215 : vector<32x256xf32>
    %218 = vector.broadcast %cst_189 : f32 to vector<32x256xf32>
    %219 = arith.minimumf %218, %217 : vector<32x256xf32>
    %220 = vector.shape_cast %219 : vector<32x256xf32> to vector<2x4x4x256xf32>
    %c0_190 = arith.constant 0 : index
    %c1_191 = arith.constant 1 : index
    %c1_192 = arith.constant 1 : index
    %c0_193 = arith.constant 0 : index
    %221 = vector.load %arg22[%c0_190, %c1_191, %c1_192, %c0_193] : memref<2x6x6x256xf32, #tpu.memory_space<vmem>>, vector<2x4x4x256xf32>
    tpu.vector_store %arg22[%c0_190, %c1_191, %c1_192, %c0_193], %220 {strides = array<i32>} : memref<2x6x6x256xf32, #tpu.memory_space<vmem>>, vector<2x4x4x256xf32>,
    %c2_194 = arith.constant 2 : index
    %c0_195 = arith.constant 0 : index
    %c0_196 = arith.constant 0 : index
    %c0_197 = arith.constant 0 : index
    %222 = vector.load %arg6[%c2_194, %c0_195, %c0_196, %c0_197] : memref<3x9x1x256xf32, #tpu.memory_space<vmem>>, vector<1x9x1x256xf32>
    %223 = vector.shape_cast %222 : vector<1x9x1x256xf32> to vector<9x1x256xf32>
    %cst_198 = arith.constant 0.000000e+00 : f32
    %224 = vector.broadcast %cst_198 : f32 to vector<2x4x4x256xf32>
    %c0_199 = arith.constant 0 : index
    %c0_200 = arith.constant 0 : index
    %c0_201 = arith.constant 0 : index
    %c0_202 = arith.constant 0 : index
    %225 = vector.load %arg22[%c0_199, %c0_200, %c0_201, %c0_202] : memref<2x6x6x256xf32, #tpu.memory_space<vmem>>, vector<2x4x4x256xf32>
    %226 = vector.extract_strided_slice %223 {offsets = [0, 0, 0], sizes = [1, 1, 256], strides = [1, 1, 1]} : vector<9x1x256xf32> to vector<1x1x256xf32>
    %227 = vector.shape_cast %226 : vector<1x1x256xf32> to vector<1x1x1x256xf32>
    %228 = vector.broadcast %227 : vector<1x1x1x256xf32> to vector<2x4x4x256xf32>
    %229 = arith.mulf %225, %228 : vector<2x4x4x256xf32>
    %230 = arith.addf %224, %229 : vector<2x4x4x256xf32>
    %c0_203 = arith.constant 0 : index
    %c0_204 = arith.constant 0 : index
    %c1_205 = arith.constant 1 : index
    %c0_206 = arith.constant 0 : index
    %231 = vector.load %arg22[%c0_203, %c0_204, %c1_205, %c0_206] : memref<2x6x6x256xf32, #tpu.memory_space<vmem>>, vector<2x4x4x256xf32>
    %232 = vector.extract_strided_slice %223 {offsets = [1, 0, 0], sizes = [1, 1, 256], strides = [1, 1, 1]} : vector<9x1x256xf32> to vector<1x1x256xf32>
    %233 = vector.shape_cast %232 : vector<1x1x256xf32> to vector<1x1x1x256xf32>
    %234 = vector.broadcast %233 : vector<1x1x1x256xf32> to vector<2x4x4x256xf32>
    %235 = arith.mulf %231, %234 : vector<2x4x4x256xf32>
    %236 = arith.addf %230, %235 : vector<2x4x4x256xf32>
    %c0_207 = arith.constant 0 : index
    %c0_208 = arith.constant 0 : index
    %c2_209 = arith.constant 2 : index
    %c0_210 = arith.constant 0 : index
    %237 = vector.load %arg22[%c0_207, %c0_208, %c2_209, %c0_210] : memref<2x6x6x256xf32, #tpu.memory_space<vmem>>, vector<2x4x4x256xf32>
    %238 = vector.extract_strided_slice %223 {offsets = [2, 0, 0], sizes = [1, 1, 256], strides = [1, 1, 1]} : vector<9x1x256xf32> to vector<1x1x256xf32>
    %239 = vector.shape_cast %238 : vector<1x1x256xf32> to vector<1x1x1x256xf32>
    %240 = vector.broadcast %239 : vector<1x1x1x256xf32> to vector<2x4x4x256xf32>
    %241 = arith.mulf %237, %240 : vector<2x4x4x256xf32>
    %242 = arith.addf %236, %241 : vector<2x4x4x256xf32>
    %c0_211 = arith.constant 0 : index
    %c1_212 = arith.constant 1 : index
    %c0_213 = arith.constant 0 : index
    %c0_214 = arith.constant 0 : index
    %243 = vector.load %arg22[%c0_211, %c1_212, %c0_213, %c0_214] : memref<2x6x6x256xf32, #tpu.memory_space<vmem>>, vector<2x4x4x256xf32>
    %244 = vector.extract_strided_slice %223 {offsets = [3, 0, 0], sizes = [1, 1, 256], strides = [1, 1, 1]} : vector<9x1x256xf32> to vector<1x1x256xf32>
    %245 = vector.shape_cast %244 : vector<1x1x256xf32> to vector<1x1x1x256xf32>
    %246 = vector.broadcast %245 : vector<1x1x1x256xf32> to vector<2x4x4x256xf32>
    %247 = arith.mulf %243, %246 : vector<2x4x4x256xf32>
    %248 = arith.addf %242, %247 : vector<2x4x4x256xf32>
    %c0_215 = arith.constant 0 : index
    %c1_216 = arith.constant 1 : index
    %c1_217 = arith.constant 1 : index
    %c0_218 = arith.constant 0 : index
    %249 = vector.load %arg22[%c0_215, %c1_216, %c1_217, %c0_218] : memref<2x6x6x256xf32, #tpu.memory_space<vmem>>, vector<2x4x4x256xf32>
    %250 = vector.extract_strided_slice %223 {offsets = [4, 0, 0], sizes = [1, 1, 256], strides = [1, 1, 1]} : vector<9x1x256xf32> to vector<1x1x256xf32>
    %251 = vector.shape_cast %250 : vector<1x1x256xf32> to vector<1x1x1x256xf32>
    %252 = vector.broadcast %251 : vector<1x1x1x256xf32> to vector<2x4x4x256xf32>
    %253 = arith.mulf %249, %252 : vector<2x4x4x256xf32>
    %254 = arith.addf %248, %253 : vector<2x4x4x256xf32>
    %c0_219 = arith.constant 0 : index
    %c1_220 = arith.constant 1 : index
    %c2_221 = arith.constant 2 : index
    %c0_222 = arith.constant 0 : index
    %255 = vector.load %arg22[%c0_219, %c1_220, %c2_221, %c0_222] : memref<2x6x6x256xf32, #tpu.memory_space<vmem>>, vector<2x4x4x256xf32>
    %256 = vector.extract_strided_slice %223 {offsets = [5, 0, 0], sizes = [1, 1, 256], strides = [1, 1, 1]} : vector<9x1x256xf32> to vector<1x1x256xf32>
    %257 = vector.shape_cast %256 : vector<1x1x256xf32> to vector<1x1x1x256xf32>
    %258 = vector.broadcast %257 : vector<1x1x1x256xf32> to vector<2x4x4x256xf32>
    %259 = arith.mulf %255, %258 : vector<2x4x4x256xf32>
    %260 = arith.addf %254, %259 : vector<2x4x4x256xf32>
    %c0_223 = arith.constant 0 : index
    %c2_224 = arith.constant 2 : index
    %c0_225 = arith.constant 0 : index
    %c0_226 = arith.constant 0 : index
    %261 = vector.load %arg22[%c0_223, %c2_224, %c0_225, %c0_226] : memref<2x6x6x256xf32, #tpu.memory_space<vmem>>, vector<2x4x4x256xf32>
    %262 = vector.extract_strided_slice %223 {offsets = [6, 0, 0], sizes = [1, 1, 256], strides = [1, 1, 1]} : vector<9x1x256xf32> to vector<1x1x256xf32>
    %263 = vector.shape_cast %262 : vector<1x1x256xf32> to vector<1x1x1x256xf32>
    %264 = vector.broadcast %263 : vector<1x1x1x256xf32> to vector<2x4x4x256xf32>
    %265 = arith.mulf %261, %264 : vector<2x4x4x256xf32>
    %266 = arith.addf %260, %265 : vector<2x4x4x256xf32>
    %c0_227 = arith.constant 0 : index
    %c2_228 = arith.constant 2 : index
    %c1_229 = arith.constant 1 : index
    %c0_230 = arith.constant 0 : index
    %267 = vector.load %arg22[%c0_227, %c2_228, %c1_229, %c0_230] : memref<2x6x6x256xf32, #tpu.memory_space<vmem>>, vector<2x4x4x256xf32>
    %268 = vector.extract_strided_slice %223 {offsets = [7, 0, 0], sizes = [1, 1, 256], strides = [1, 1, 1]} : vector<9x1x256xf32> to vector<1x1x256xf32>
    %269 = vector.shape_cast %268 : vector<1x1x256xf32> to vector<1x1x1x256xf32>
    %270 = vector.broadcast %269 : vector<1x1x1x256xf32> to vector<2x4x4x256xf32>
    %271 = arith.mulf %267, %270 : vector<2x4x4x256xf32>
    %272 = arith.addf %266, %271 : vector<2x4x4x256xf32>
    %c0_231 = arith.constant 0 : index
    %c2_232 = arith.constant 2 : index
    %c2_233 = arith.constant 2 : index
    %c0_234 = arith.constant 0 : index
    %273 = vector.load %arg22[%c0_231, %c2_232, %c2_233, %c0_234] : memref<2x6x6x256xf32, #tpu.memory_space<vmem>>, vector<2x4x4x256xf32>
    %274 = vector.extract_strided_slice %223 {offsets = [8, 0, 0], sizes = [1, 1, 256], strides = [1, 1, 1]} : vector<9x1x256xf32> to vector<1x1x256xf32>
    %275 = vector.shape_cast %274 : vector<1x1x256xf32> to vector<1x1x1x256xf32>
    %276 = vector.broadcast %275 : vector<1x1x1x256xf32> to vector<2x4x4x256xf32>
    %277 = arith.mulf %273, %276 : vector<2x4x4x256xf32>
    %278 = arith.addf %272, %277 : vector<2x4x4x256xf32>
    %c2_235 = arith.constant 2 : index
    %c0_236 = arith.constant 0 : index
    %c0_237 = arith.constant 0 : index
    %c0_238 = arith.constant 0 : index
    %279 = vector.load %arg7[%c2_235, %c0_236, %c0_237, %c0_238] : memref<3x1x1x256xf32, #tpu.memory_space<vmem>>, vector<1x1x1x256xf32>
    %280 = vector.shape_cast %279 : vector<1x1x1x256xf32> to vector<1x1x256xf32>
    %281 = vector.shape_cast %280 : vector<1x1x256xf32> to vector<1x1x1x256xf32>
    %282 = vector.broadcast %281 : vector<1x1x1x256xf32> to vector<2x4x4x256xf32>
    %283 = arith.addf %278, %282 : vector<2x4x4x256xf32>
    %cst_239 = arith.constant 0.000000e+00 : f32
    %cst_240 = arith.constant 6.000000e+00 : f32
    %284 = vector.broadcast %cst_239 : f32 to vector<2x4x4x256xf32>
    %285 = arith.maximumf %284, %283 : vector<2x4x4x256xf32>
    %286 = vector.broadcast %cst_240 : f32 to vector<2x4x4x256xf32>
    %287 = arith.minimumf %286, %285 : vector<2x4x4x256xf32>
    %288 = vector.shape_cast %287 : vector<2x4x4x256xf32> to vector<32x256xf32>
    %289 = arith.truncf %288 : vector<32x256xf32> to vector<32x256xbf16>
    %c2_241 = arith.constant 2 : index
    %c0_242 = arith.constant 0 : index
    %c0_243 = arith.constant 0 : index
    %290 = vector.load %arg8[%c2_241, %c0_242, %c0_243] : memref<3x256x128xbf16, #tpu.memory_space<vmem>>, vector<1x256x128xbf16>
    %291 = vector.shape_cast %290 : vector<1x256x128xbf16> to vector<256x128xbf16>
    %cst_244 = arith.constant dense<0.000000e+00> : vector<32x128xf32>
    %292 = tpu.matmul %289, %291, %cst_244 {dimension_numbers = #tpu.dot_dimension_numbers<[1], [0], [0], [1], [0, 0, 1, 1], [], []>} : vector<32x256xbf16>, vector<256x128xbf16>, vector<32x128xf32> -> vector<32x128xf32>
    %c2_245 = arith.constant 2 : index
    %c0_246 = arith.constant 0 : index
    %c0_247 = arith.constant 0 : index
    %293 = vector.load %arg9[%c2_245, %c0_246, %c0_247] : memref<3x1x128xf32, #tpu.memory_space<vmem>>, vector<1x1x128xf32>
    %294 = vector.shape_cast %293 : vector<1x1x128xf32> to vector<1x128xf32>
    %295 = vector.broadcast %294 : vector<1x128xf32> to vector<32x128xf32>
    %296 = arith.addf %292, %295 : vector<32x128xf32>
    %297 = arith.extf %208 : vector<32x128xbf16> to vector<32x128xf32>
    %298 = arith.addf %296, %297 : vector<32x128xf32>
    %299 = arith.truncf %298 : vector<32x128xf32> to vector<32x128xbf16>
    %c0_248 = arith.constant 0 : index
    %c0_249 = arith.constant 0 : index
    %300 = vector.load %arg11[%c0_248, %c0_249] : memref<128x128xbf16, #tpu.memory_space<vmem>>, vector<128x128xbf16>
    %cst_250 = arith.constant dense<0.000000e+00> : vector<32x128xf32>
    %301 = tpu.matmul %299, %300, %cst_250 {dimension_numbers = #tpu.dot_dimension_numbers<[1], [0], [0], [1], [0, 0, 1, 1], [], []>} : vector<32x128xbf16>, vector<128x128xbf16>, vector<32x128xf32> -> vector<32x128xf32>
    %c0_251 = arith.constant 0 : index
    %c0_252 = arith.constant 0 : index
    %302 = vector.load %arg12[%c0_251, %c0_252] : memref<1x128xf32, #tpu.memory_space<vmem>>, vector<1x128xf32>
    %303 = vector.broadcast %302 : vector<1x128xf32> to vector<32x128xf32>
    %304 = arith.addf %301, %303 : vector<32x128xf32>
    %cst_253 = arith.constant 0.000000e+00 : f32
    %cst_254 = arith.constant 6.000000e+00 : f32
    %305 = vector.broadcast %cst_253 : f32 to vector<32x128xf32>
    %306 = arith.maximumf %305, %304 : vector<32x128xf32>
    %307 = vector.broadcast %cst_254 : f32 to vector<32x128xf32>
    %308 = arith.minimumf %307, %306 : vector<32x128xf32>
    %309 = vector.shape_cast %308 : vector<32x128xf32> to vector<2x16x128xf32>
    %cst_255 = arith.constant dense<0.000000e+00> : vector<2x128xf32>
    %310 = vector.multi_reduction <add>, %309, %cst_255 [1] : vector<2x16x128xf32> to vector<2x128xf32>
    %cst_256 = arith.constant 1.600000e+01 : f32
    %311 = vector.broadcast %cst_256 : f32 to vector<2x128xf32>
    %312 = arith.divf %310, %311 : vector<2x128xf32>
    %313 = arith.truncf %312 : vector<2x128xf32> to vector<2x128xbf16>
    %c0_257 = arith.constant 0 : index
    %c0_258 = arith.constant 0 : index
    %314 = vector.load %arg13[%c0_257, %c0_258] : memref<128x128xbf16, #tpu.memory_space<vmem>>, vector<128x128xbf16>
    %cst_259 = arith.constant dense<0.000000e+00> : vector<2x128xf32>
    %315 = tpu.matmul %313, %314, %cst_259 {dimension_numbers = #tpu.dot_dimension_numbers<[1], [0], [0], [1], [0, 0, 1, 1], [], []>} : vector<2x128xbf16>, vector<128x128xbf16>, vector<2x128xf32> -> vector<2x128xf32>
    %c0_260 = arith.constant 0 : index
    %c0_261 = arith.constant 0 : index
    %316 = vector.load %arg14[%c0_260, %c0_261] : memref<1x128xf32, #tpu.memory_space<vmem>>, vector<1x128xf32>
    %317 = vector.broadcast %316 : vector<1x128xf32> to vector<2x128xf32>
    %318 = arith.addf %315, %317 : vector<2x128xf32>
    %319 = arith.mulf %318, %318 : vector<2x128xf32>
    %cst_262 = arith.constant dense<0.000000e+00> : vector<2xf32>
    %320 = vector.multi_reduction <add>, %319, %cst_262 [1] : vector<2x128xf32> to vector<2xf32>
    %321 = vector.shape_cast %320 : vector<2xf32> to vector<2x1xf32>
    %cst_263 = arith.constant 1.000000e-24 : f32
    %322 = vector.broadcast %cst_263 : f32 to vector<2x1xf32>
    %323 = arith.maximumf %321, %322 : vector<2x1xf32>
    %324 = math.rsqrt %323 : vector<2x1xf32>
    %325 = vector.broadcast %324 : vector<2x1xf32> to vector<2x128xf32>
    %326 = arith.mulf %318, %325 : vector<2x128xf32>
    %c0_264 = arith.constant 0 : index
    %c0_265 = arith.constant 0 : index
    %327 = vector.load %arg15[%c0_264, %c0_265] : memref<128x128xbf16, #tpu.memory_space<vmem>>, vector<128x128xbf16>
    %cst_266 = arith.constant dense<0.000000e+00> : vector<2x128xf32>
    %328 = tpu.matmul %313, %327, %cst_266 {dimension_numbers = #tpu.dot_dimension_numbers<[1], [0], [0], [1], [0, 0, 1, 1], [], []>} : vector<2x128xbf16>, vector<128x128xbf16>, vector<2x128xf32> -> vector<2x128xf32>
    %c0_267 = arith.constant 0 : index
    %c0_268 = arith.constant 0 : index
    %329 = vector.load %arg16[%c0_267, %c0_268] : memref<1x128xf32, #tpu.memory_space<vmem>>, vector<1x128xf32>
    %330 = vector.broadcast %329 : vector<1x128xf32> to vector<2x128xf32>
    %331 = arith.addf %328, %330 : vector<2x128xf32>
    %cst_269 = arith.constant 0.000000e+00 : f32
    %332 = vector.broadcast %cst_269 : f32 to vector<2x128xf32>
    %333 = arith.maximumf %331, %332 : vector<2x128xf32>
    %334 = arith.truncf %333 : vector<2x128xf32> to vector<2x128xbf16>
    %c0_270 = arith.constant 0 : index
    %c0_271 = arith.constant 0 : index
    %335 = vector.load %arg17[%c0_270, %c0_271] : memref<128x128xbf16, #tpu.memory_space<vmem>>, vector<128x128xbf16>
    %cst_272 = arith.constant dense<0.000000e+00> : vector<2x128xf32>
    %336 = tpu.matmul %334, %335, %cst_272 {dimension_numbers = #tpu.dot_dimension_numbers<[1], [0], [0], [1], [0, 0, 1, 1], [], []>} : vector<2x128xbf16>, vector<128x128xbf16>, vector<2x128xf32> -> vector<2x128xf32>
    %c0_273 = arith.constant 0 : index
    %c0_274 = arith.constant 0 : index
    %337 = vector.load %arg18[%c0_273, %c0_274] : memref<1x128xf32, #tpu.memory_space<vmem>>, vector<1x128xf32>
    %338 = vector.broadcast %337 : vector<1x128xf32> to vector<2x128xf32>
    %339 = arith.addf %336, %338 : vector<2x128xf32>
    %c0_275 = arith.constant 0 : index
    %c0_276 = arith.constant 0 : index
    %340 = vector.load %arg19[%c0_275, %c0_276] : memref<2x128xf32, #tpu.memory_space<vmem>>, vector<2x128xf32>
    tpu.vector_store %arg19[%c0_275, %c0_276], %339 {strides = array<i32>} : memref<2x128xf32, #tpu.memory_space<vmem>>, vector<2x128xf32>,
    %c0_277 = arith.constant 0 : index
    %c0_278 = arith.constant 0 : index
    %341 = vector.load %arg20[%c0_277, %c0_278] : memref<2x128xf32, #tpu.memory_space<vmem>>, vector<2x128xf32>
    tpu.vector_store %arg20[%c0_277, %c0_278], %326 {strides = array<i32>} : memref<2x128xf32, #tpu.memory_space<vmem>>, vector<2x128xf32>,
    return
  }
  func.func @transform_0(%arg0: i32) -> (i32, i32, i32) {
    %c0_i32 = arith.constant 0 : i32
    %c0_i32_0 = arith.constant 0 : i32
    %c0_i32_1 = arith.constant 0 : i32
    %c0_i32_2 = arith.constant 0 : i32
    return %c0_i32, %c0_i32_0, %c0_i32_1 : i32, i32, i32
  }
  func.func @transform_1(%arg0: i32) -> (i32, i32) {
    %c0_i32 = arith.constant 0 : i32
    %c0_i32_0 = arith.constant 0 : i32
    %c0_i32_1 = arith.constant 0 : i32
    return %c0_i32, %c0_i32_0 : i32, i32
  }
  func.func @transform_2(%arg0: i32) -> (i32, i32) {
    %c0_i32 = arith.constant 0 : i32
    %c0_i32_0 = arith.constant 0 : i32
    %c0_i32_1 = arith.constant 0 : i32
    return %c0_i32, %c0_i32_0 : i32, i32
  }
  func.func @transform_3(%arg0: i32) -> (i32, i32, i32) {
    %c0_i32 = arith.constant 0 : i32
    %c0_i32_0 = arith.constant 0 : i32
    %c0_i32_1 = arith.constant 0 : i32
    %c0_i32_2 = arith.constant 0 : i32
    return %c0_i32, %c0_i32_0, %c0_i32_1 : i32, i32, i32
  }
  func.func @transform_4(%arg0: i32) -> (i32, i32, i32) {
    %c0_i32 = arith.constant 0 : i32
    %c0_i32_0 = arith.constant 0 : i32
    %c0_i32_1 = arith.constant 0 : i32
    %c0_i32_2 = arith.constant 0 : i32
    return %c0_i32, %c0_i32_0, %c0_i32_1 : i32, i32, i32
  }
  func.func @transform_5(%arg0: i32) -> (i32, i32, i32, i32) {
    %c0_i32 = arith.constant 0 : i32
    %c0_i32_0 = arith.constant 0 : i32
    %c0_i32_1 = arith.constant 0 : i32
    %c0_i32_2 = arith.constant 0 : i32
    %c0_i32_3 = arith.constant 0 : i32
    return %c0_i32, %c0_i32_0, %c0_i32_1, %c0_i32_2 : i32, i32, i32, i32
  }
  func.func @transform_6(%arg0: i32) -> (i32, i32, i32, i32) {
    %c0_i32 = arith.constant 0 : i32
    %c0_i32_0 = arith.constant 0 : i32
    %c0_i32_1 = arith.constant 0 : i32
    %c0_i32_2 = arith.constant 0 : i32
    %c0_i32_3 = arith.constant 0 : i32
    return %c0_i32, %c0_i32_0, %c0_i32_1, %c0_i32_2 : i32, i32, i32, i32
  }
  func.func @transform_7(%arg0: i32) -> (i32, i32, i32) {
    %c0_i32 = arith.constant 0 : i32
    %c0_i32_0 = arith.constant 0 : i32
    %c0_i32_1 = arith.constant 0 : i32
    %c0_i32_2 = arith.constant 0 : i32
    return %c0_i32, %c0_i32_0, %c0_i32_1 : i32, i32, i32
  }
  func.func @transform_8(%arg0: i32) -> (i32, i32, i32) {
    %c0_i32 = arith.constant 0 : i32
    %c0_i32_0 = arith.constant 0 : i32
    %c0_i32_1 = arith.constant 0 : i32
    %c0_i32_2 = arith.constant 0 : i32
    return %c0_i32, %c0_i32_0, %c0_i32_1 : i32, i32, i32
  }
  func.func @transform_9(%arg0: i32) -> (i32, i32) {
    %c0_i32 = arith.constant 0 : i32
    %c0_i32_0 = arith.constant 0 : i32
    %c0_i32_1 = arith.constant 0 : i32
    return %c0_i32, %c0_i32_0 : i32, i32
  }
  func.func @transform_10(%arg0: i32) -> (i32, i32) {
    %c0_i32 = arith.constant 0 : i32
    %c0_i32_0 = arith.constant 0 : i32
    %c0_i32_1 = arith.constant 0 : i32
    return %c0_i32, %c0_i32_0 : i32, i32
  }
  func.func @transform_11(%arg0: i32) -> (i32, i32) {
    %c0_i32 = arith.constant 0 : i32
    %c0_i32_0 = arith.constant 0 : i32
    %c0_i32_1 = arith.constant 0 : i32
    return %c0_i32, %c0_i32_0 : i32, i32
  }
  func.func @transform_12(%arg0: i32) -> (i32, i32) {
    %c0_i32 = arith.constant 0 : i32
    %c0_i32_0 = arith.constant 0 : i32
    %c0_i32_1 = arith.constant 0 : i32
    return %c0_i32, %c0_i32_0 : i32, i32
  }
  func.func @transform_13(%arg0: i32) -> (i32, i32) {
    %c0_i32 = arith.constant 0 : i32
    %c0_i32_0 = arith.constant 0 : i32
    %c0_i32_1 = arith.constant 0 : i32
    return %c0_i32, %c0_i32_0 : i32, i32
  }
  func.func @transform_14(%arg0: i32) -> (i32, i32) {
    %c0_i32 = arith.constant 0 : i32
    %c0_i32_0 = arith.constant 0 : i32
    %c0_i32_1 = arith.constant 0 : i32
    return %c0_i32, %c0_i32_0 : i32, i32
  }
  func.func @transform_15(%arg0: i32) -> (i32, i32) {
    %c0_i32 = arith.constant 0 : i32
    %c0_i32_0 = arith.constant 0 : i32
    %c0_i32_1 = arith.constant 0 : i32
    return %c0_i32, %c0_i32_0 : i32, i32
  }
  func.func @transform_16(%arg0: i32) -> (i32, i32) {
    %c0_i32 = arith.constant 0 : i32
    %c0_i32_0 = arith.constant 0 : i32
    %c0_i32_1 = arith.constant 0 : i32
    return %c0_i32, %c0_i32_0 : i32, i32
  }
  func.func @transform_17(%arg0: i32) -> (i32, i32) {
    %c0_i32 = arith.constant 0 : i32
    %c0_i32_0 = arith.constant 0 : i32
    %c0_i32_1 = arith.constant 0 : i32
    return %c0_i32, %c0_i32_0 : i32, i32
  }
  func.func @transform_18(%arg0: i32) -> (i32, i32) {
    %c0_i32 = arith.constant 0 : i32
    %c0_i32_0 = arith.constant 0 : i32
    %c0_i32_1 = arith.constant 0 : i32
    return %c0_i32, %c0_i32_0 : i32, i32
  }
  func.func @transform_19(%arg0: i32) -> (i32, i32) {
    %c0_i32 = arith.constant 0 : i32
    %c0_i32_0 = arith.constant 0 : i32
    %c0_i32_1 = arith.constant 0 : i32
    return %c0_i32, %c0_i32_0 : i32, i32
  }
}

</mosaic_0001>

<llo_original>
// kernel: sr_detector_forward.1
$region0: #{sr_detector_forward.1}
  #allocation0 [shape = 'u32[]', space=smem, size = 0x4, offset = 0x4, fixed_abs, tag = 'smem constant byte address 0x4 - core index']
  #allocation1 [shape = 'u32[144,128]{1,0:T(1,128)}', space=vmem, size = 0x12000, scoped, tag = 'internal scratch']
  #allocation2 [shape = 'f32[2,10,10,256]{3,2,1,0:T(8,128)}', space=vmem, size = 0x50000, scoped, tag = 'scratch operand']
  #allocation3 [shape = 'f32[2,6,6,256]{3,2,1,0:T(8,128)}', space=vmem, size = 0x18000, scoped, tag = 'scratch operand']
  %s0 = inlined_call_operand.vmem [shape: bf16[2,64,128], index: 0, kind: input, shape index: {}]
  %s1 = inlined_call_operand.vmem [shape: bf16[128,128], index: 1, kind: input, shape index: {}]
  %s2 = inlined_call_operand.vmem [shape: f32[1,128], index: 2, kind: input, shape index: {}]
  %s3 = inlined_call_operand.vmem [shape: bf16[3,128,256], index: 3, kind: input, shape index: {}]
  %s4 = inlined_call_operand.vmem [shape: f32[3,1,256], index: 4, kind: input, shape index: {}]
  %s5 = inlined_call_operand.vmem [shape: f32[3,9,1,256], index: 5, kind: input, shape index: {}]
  %s6 = inlined_call_operand.vmem [shape: f32[3,1,1,256], index: 6, kind: input, shape index: {}]
  %s7 = inlined_call_operand.vmem [shape: bf16[3,256,128], index: 7, kind: input, shape index: {}]
  %s8 = inlined_call_operand.vmem [shape: f32[3,1,128], index: 8, kind: input, shape index: {}]
  %s9 = inlined_call_operand.vmem [shape: bf16[32,128], index: 9, kind: input, shape index: {}]
  %s10 = inlined_call_operand.vmem [shape: bf16[128,128], index: 10, kind: input, shape index: {}]
  %s11 = inlined_call_operand.vmem [shape: f32[1,128], index: 11, kind: input, shape index: {}]
  %s12 = inlined_call_operand.vmem [shape: bf16[128,128], index: 12, kind: input, shape index: {}]
  %s13 = inlined_call_operand.vmem [shape: f32[1,128], index: 13, kind: input, shape index: {}]
  %s14 = inlined_call_operand.vmem [shape: bf16[128,128], index: 14, kind: input, shape index: {}]
  %s15 = inlined_call_operand.vmem [shape: f32[1,128], index: 15, kind: input, shape index: {}]
  %s16 = inlined_call_operand.vmem [shape: bf16[128,128], index: 16, kind: input, shape index: {}]
  %s17 = inlined_call_operand.vmem [shape: f32[1,128], index: 17, kind: input, shape index: {}]
  %s18 = inlined_call_operand.hbm [shape: f32[2,128], index: 18, kind: output, shape index: {0}]
  %s19 = inlined_call_operand.hbm [shape: f32[2,128], index: 19, kind: output, shape index: {1}]
  %20 = xla_tuple %s18, %s19
  %s21 = sld [smem:[#allocation0]]
  $region90: #{sr_detector_forward.1} parent=0
    _
  %s23 = ssub.s32 1, %s21
  %s24 = scalar_select 0, %s23, %s21
  $region1: #{sr_detector_forward.1} parent=0
    #allocation4 [shape = 'u8[1024]{0}', space=vmem, size = 0x400, scoped, tag = 'output window, operand 0, single buffered']
    #allocation5 [shape = 's32[1]{0}', space=sflag, size = 0x4, scoped, tag = 'scoped memory for sr_detector_forward.1']
    #allocation6 [shape = 'u8[1024]{0}', space=vmem, size = 0x400, scoped, tag = 'output window, operand 1, single buffered']
    #allocation7 [shape = 's32[1]{0}', space=sflag, size = 0x4, scoped, tag = 'scoped memory for sr_detector_forward.1']
    %25 = vsyncpa [#allocation5], 0
    %26 = vsyncpa [#allocation7], 0
    // Predicated region
    $region2: #{sr_detector_forward.1} parent=1 // pred_check
      _
    $region3: #{sr_detector_forward.1} parent=1 // pred_check_branch
      %28 = sbr.rel (0) target = $region5
    $region4: #{sr_detector_forward.1} parent=1 // pred_region
      _
    $region5: #{sr_detector_forward.1} parent=1 // pred_fallthru
      _
    // Predicated region
    $region6: #{sr_detector_forward.1} parent=1 // pred_check
      _
    $region7: #{sr_detector_forward.1} parent=1 // pred_check_branch
      %30 = sbr.rel (0) target = $region9
    $region8: #{sr_detector_forward.1} parent=1 // pred_region
      _
    $region9: #{sr_detector_forward.1} parent=1 // pred_fallthru
      _
    // Predicated region
    $region10: #{sr_detector_forward.1} parent=1 // pred_check
      _
    $region11: #{sr_detector_forward.1} parent=1 // pred_check_branch
      %32 = sbr.rel (0) target = $region13
    $region12: #{sr_detector_forward.1} parent=1 // pred_region
      _
    $region13: #{sr_detector_forward.1} parent=1 // pred_fallthru
      _
    // Predicated region
    $region14: #{sr_detector_forward.1} parent=1 // pred_check
      _
    $region15: #{sr_detector_forward.1} parent=1 // pred_check_branch
      %34 = sbr.rel (0) target = $region17
    $region16: #{sr_detector_forward.1} parent=1 // pred_region
      _
    $region17: #{sr_detector_forward.1} parent=1 // pred_fallthru
      _
    // Predicated region
    $region18: #{sr_detector_forward.1} parent=1 // pred_check
      _
    $region19: #{sr_detector_forward.1} parent=1 // pred_check_branch
      %36 = sbr.rel (0) target = $region21
    $region20: #{sr_detector_forward.1} parent=1 // pred_region
      _
    $region21: #{sr_detector_forward.1} parent=1 // pred_fallthru
      _
    // Predicated region
    $region22: #{sr_detector_forward.1} parent=1 // pred_check
      _
    $region23: #{sr_detector_forward.1} parent=1 // pred_check_branch
      %38 = sbr.rel (0) target = $region25
    $region24: #{sr_detector_forward.1} parent=1 // pred_region
      _
    $region25: #{sr_detector_forward.1} parent=1 // pred_fallthru
      _
    // Predicated region
    $region26: #{sr_detector_forward.1} parent=1 // pred_check
      _
    $region27: #{sr_detector_forward.1} parent=1 // pred_check_branch
      %40 = sbr.rel (0) target = $region29
    $region28: #{sr_detector_forward.1} parent=1 // pred_region
      _
    $region29: #{sr_detector_forward.1} parent=1 // pred_fallthru
      _
    // Predicated region
    $region30: #{sr_detector_forward.1} parent=1 // pred_check
      _
    $region31: #{sr_detector_forward.1} parent=1 // pred_check_branch
      %42 = sbr.rel (0) target = $region33
    $region32: #{sr_detector_forward.1} parent=1 // pred_region
      _
    $region33: #{sr_detector_forward.1} parent=1 // pred_fallthru
      _
    // Predicated region
    $region34: #{sr_detector_forward.1} parent=1 // pred_check
      _
    $region35: #{sr_detector_forward.1} parent=1 // pred_check_branch
      %44 = sbr.rel (0) target = $region37
    $region36: #{sr_detector_forward.1} parent=1 // pred_region
      _
    $region37: #{sr_detector_forward.1} parent=1 // pred_fallthru
      _
    // Predicated region
    $region38: #{sr_detector_forward.1} parent=1 // pred_check
      _
    $region39: #{sr_detector_forward.1} parent=1 // pred_check_branch
      %46 = sbr.rel (0) target = $region41
    $region40: #{sr_detector_forward.1} parent=1 // pred_region
      _
    $region41: #{sr_detector_forward.1} parent=1 // pred_fallthru
      _
    // Predicated region
    $region42: #{sr_detector_forward.1} parent=1 // pred_check
      _
    $region43: #{sr_detector_forward.1} parent=1 // pred_check_branch
      %48 = sbr.rel (0) target = $region45
    $region44: #{sr_detector_forward.1} parent=1 // pred_region
      _
    $region45: #{sr_detector_forward.1} parent=1 // pred_fallthru
      _
    // Predicated region
    $region46: #{sr_detector_forward.1} parent=1 // pred_check
      _
    $region47: #{sr_detector_forward.1} parent=1 // pred_check_branch
      %50 = sbr.rel (0) target = $region49
    $region48: #{sr_detector_forward.1} parent=1 // pred_region
      _
    $region49: #{sr_detector_forward.1} parent=1 // pred_fallthru
      _
    // Predicated region
    $region50: #{sr_detector_forward.1} parent=1 // pred_check
      _
    $region51: #{sr_detector_forward.1} parent=1 // pred_check_branch
      %52 = sbr.rel (0) target = $region53
    $region52: #{sr_detector_forward.1} parent=1 // pred_region
      _
    $region53: #{sr_detector_forward.1} parent=1 // pred_fallthru
      _
    // Predicated region
    $region54: #{sr_detector_forward.1} parent=1 // pred_check
      _
    $region55: #{sr_detector_forward.1} parent=1 // pred_check_branch
      %54 = sbr.rel (0) target = $region57
    $region56: #{sr_detector_forward.1} parent=1 // pred_region
      _
    $region57: #{sr_detector_forward.1} parent=1 // pred_fallthru
      _
    // Predicated region
    $region58: #{sr_detector_forward.1} parent=1 // pred_check
      _
    $region59: #{sr_detector_forward.1} parent=1 // pred_check_branch
      %56 = sbr.rel (0) target = $region61
    $region60: #{sr_detector_forward.1} parent=1 // pred_region
      _
    $region61: #{sr_detector_forward.1} parent=1 // pred_fallthru
      _
    // Predicated region
    $region62: #{sr_detector_forward.1} parent=1 // pred_check
      _
    $region63: #{sr_detector_forward.1} parent=1 // pred_check_branch
      %58 = sbr.rel (0) target = $region65
    $region64: #{sr_detector_forward.1} parent=1 // pred_region
      _
    $region65: #{sr_detector_forward.1} parent=1 // pred_fallthru
      _
    // Predicated region
    $region66: #{sr_detector_forward.1} parent=1 // pred_check
      _
    $region67: #{sr_detector_forward.1} parent=1 // pred_check_branch
      %60 = sbr.rel (0) target = $region69
    $region68: #{sr_detector_forward.1} parent=1 // pred_region
      _
    $region69: #{sr_detector_forward.1} parent=1 // pred_fallthru
      _
    // Predicated region
    $region70: #{sr_detector_forward.1} parent=1 // pred_check
      _
    $region71: #{sr_detector_forward.1} parent=1 // pred_check_branch
      %62 = sbr.rel (0) target = $region73
    $region72: #{sr_detector_forward.1} parent=1 // pred_region
      _
    $region73: #{sr_detector_forward.1} parent=1 // pred_fallthru
      _
    %v64 = vld [vmem:[%s0] sm:$0xf]
    %v65 = vld [vmem:[%s0 + $0x4] sm:$0xf]
    %v66 = vld [vmem:[%s0 + $0x8] sm:$0xf]
    %v67 = vld [vmem:[%s0 + $0xc] sm:$0xf]
    %v68 = vld [vmem:[%s0 + $0x10] sm:$0xf]
    %v69 = vld [vmem:[%s0 + $0x14] sm:$0xf]
    %v70 = vld [vmem:[%s0 + $0x18] sm:$0xf]
    %v71 = vld [vmem:[%s0 + $0x1c] sm:$0xf]
    %v72 = vld [vmem:[%s0 + $0x20] sm:$0xf]
    %v73 = vld [vmem:[%s0 + $0x24] sm:$0xf]
    %v74 = vld [vmem:[%s0 + $0x28] sm:$0xf]
    %v75 = vld [vmem:[%s0 + $0x2c] sm:$0xf]
    %v76 = vld [vmem:[%s0 + $0x30] sm:$0xf]
    %v77 = vld [vmem:[%s0 + $0x34] sm:$0xf]
    %v78 = vld [vmem:[%s0 + $0x38] sm:$0xf]
    %v79 = vld [vmem:[%s0 + $0x3c] sm:$0xf]
    %v80 = vld [vmem:[%s1] sm:$0xf]
    %v81 = vld [vmem:[%s1 + $0x4] sm:$0xf]
    %v82 = vld [vmem:[%s1 + $0x8] sm:$0xf]
    %v83 = vld [vmem:[%s1 + $0xc] sm:$0xf]
    %v84 = vld [vmem:[%s1 + $0x10] sm:$0xf]
    %v85 = vld [vmem:[%s1 + $0x14] sm:$0xf]
    %v86 = vld [vmem:[%s1 + $0x18] sm:$0xf]
    %v87 = vld [vmem:[%s1 + $0x1c] sm:$0xf]
    %v88 = vld [vmem:[%s1 + $0x20] sm:$0xf]
    %v89 = vld [vmem:[%s1 + $0x24] sm:$0xf]
    %v90 = vld [vmem:[%s1 + $0x28] sm:$0xf]
    %v91 = vld [vmem:[%s1 + $0x2c] sm:$0xf]
    %v92 = vld [vmem:[%s1 + $0x30] sm:$0xf]
    %v93 = vld [vmem:[%s1 + $0x34] sm:$0xf]
    %v94 = vld [vmem:[%s1 + $0x38] sm:$0xf]
    %v95 = vld [vmem:[%s1 + $0x3c] sm:$0xf]
    %v96 = vld [vmem:[%s2] sm:$0x1]
    %v98 = vlaneseq
    %v99 = vshrl.u32 %v98, 7
    %v100 = vsub.s32 0, %v99
    %v101 = vrot.slane %v96, %v100
    %v119 = vunpack.c.l.b16 %v64
    %v120 = vunpack.c.l.b16 %v65
    %v121 = vunpack.c.l.b16 %v66
    %v122 = vunpack.c.l.b16 %v67
    %v123 = vunpack.c.l.b16 %v68
    %v124 = vunpack.c.l.b16 %v69
    %v125 = vunpack.c.l.b16 %v70
    %v126 = vunpack.c.l.b16 %v71
    %v127 = vunpack.c.l.b16 %v72
    %v128 = vunpack.c.l.b16 %v73
    %v129 = vunpack.c.l.b16 %v74
    %v130 = vunpack.c.l.b16 %v75
    %v131 = vunpack.c.l.b16 %v76
    %v132 = vunpack.c.l.b16 %v77
    %v133 = vunpack.c.l.b16 %v78
    %v134 = vunpack.c.l.b16 %v79
    %v135 = vpack.c.b16 %v120, %v119
    %v136 = vpack.c.b16 %v122, %v121
    %v137 = vpack.c.b16 %v124, %v123
    %v138 = vpack.c.b16 %v126, %v125
    %v139 = vpack.c.b16 %v128, %v127
    %v140 = vpack.c.b16 %v130, %v129
    %v141 = vpack.c.b16 %v132, %v131
    %v142 = vpack.c.b16 %v134, %v133
    %v167 = vunpack.c.l.b16 %v80
    %v168 = vunpack.c.l.b16 %v81
    %v169 = vunpack.c.l.b16 %v82
    %v170 = vunpack.c.l.b16 %v83
    %v171 = vunpack.c.l.b16 %v84
    %v172 = vunpack.c.l.b16 %v85
    %v173 = vunpack.c.l.b16 %v86
    %v174 = vunpack.c.l.b16 %v87
    %v175 = vunpack.c.l.b16 %v88
    %v176 = vunpack.c.l.b16 %v89
    %v177 = vunpack.c.l.b16 %v90
    %v178 = vunpack.c.l.b16 %v91
    %v179 = vunpack.c.l.b16 %v92
    %v180 = vunpack.c.l.b16 %v93
    %v181 = vunpack.c.l.b16 %v94
    %v182 = vunpack.c.l.b16 %v95
    %v183 = vpack.c.b16 %v168, %v167
    %v184 = vpack.c.b16 %v170, %v169
    %v185 = vpack.c.b16 %v172, %v171
    %v186 = vpack.c.b16 %v174, %v173
    %v187 = vpack.c.b16 %v176, %v175
    %v188 = vpack.c.b16 %v178, %v177
    %v189 = vpack.c.b16 %v180, %v179
    %v190 = vpack.c.b16 %v182, %v181
    %199 = vmatprep.subr.bf16.mxu0 0
    %200 = vmatpush1.bf16.msra.mxu0 %v190
    %201 = vmatprep.subr.bf16.mxu0 0
    %202 = vmatpush1.bf16.msra.mxu0 %v189
    %203 = vmatprep.subr.bf16.mxu0 0
    %204 = vmatpush1.bf16.msra.mxu0 %v188
    %205 = vmatprep.subr.bf16.mxu0 0
    %206 = vmatpush1.bf16.msra.mxu0 %v187
    %207 = vmatprep.subr.bf16.mxu0 0
    %208 = vmatpush1.bf16.msra.mxu0 %v186
    %209 = vmatprep.subr.bf16.mxu0 0
    %210 = vmatpush1.bf16.msra.mxu0 %v185
    %211 = vmatprep.subr.bf16.mxu0 0
    %212 = vmatpush1.bf16.msra.mxu0 %v184
    %213 = vmatprep.subr.bf16.mxu0 0
    %214 = vmatpush1.bf16.msra.mxu0 %v183
    %215 = vmatprep.subr.bf16.mxu0 0
    %216 = vmatpush2.bf16.msra.mxu0 0
    %217 = vmatprep.subr.bf16.mxu0 0
    %218 = vmatpush2.bf16.msra.mxu0 0
    %219 = vmatprep.subr.bf16.mxu0 0
    %220 = vmatpush2.bf16.msra.mxu0 0
    %221 = vmatprep.subr.bf16.mxu0 0
    %222 = vmatpush2.bf16.msra.mxu0 0
    %223 = vmatprep.subr.bf16.mxu0 0
    %224 = vmatpush2.bf16.msra.mxu0 0
    %225 = vmatprep.subr.bf16.mxu0 0
    %226 = vmatpush2.bf16.msra.mxu0 0
    %227 = vmatprep.subr.bf16.mxu0 0
    %228 = vmatpush2.bf16.msra.mxu0 0
    %229 = vmatprep.subr.bf16.mxu0 0
    %230 = vmatpush2.bf16.msra.mxu0 0
    %231 = vmatprep.mubr.bf16.mxu0 0
    %232 = vmatmul.mubr.bf16.gmra.mxu0 %v135
    %v233 = vpop.f32.mrf.mxu0
    %v234 = vadd.f32 %v101, %v233
    %v235 = vpop.f32.mrf.mxu0
    %v236 = vpop.f32.mrf.mxu0
    %v237 = vadd.f32 %v101, %v236
    %v238 = vpop.f32.mrf.mxu0
    %239 = vmatprep.mubr.bf16.mxu0 0
    %240 = vmatmul.mubr.bf16.gmra.mxu0 %v136
    %v241 = vpop.f32.mrf.mxu0
    %v242 = vadd.f32 %v101, %v241
    %v243 = vpop.f32.mrf.mxu0
    %v244 = vpop.f32.mrf.mxu0
    %v245 = vadd.f32 %v101, %v244
    %v246 = vpop.f32.mrf.mxu0
    %247 = vmatprep.mubr.bf16.mxu0 0
    %248 = vmatmul.mubr.bf16.gmra.mxu0 %v137
    %v249 = vpop.f32.mrf.mxu0
    %v250 = vadd.f32 %v101, %v249
    %v251 = vpop.f32.mrf.mxu0
    %v252 = vpop.f32.mrf.mxu0
    %v253 = vadd.f32 %v101, %v252
    %v254 = vpop.f32.mrf.mxu0
    %255 = vmatprep.mubr.bf16.mxu0 0
    %256 = vmatmul.mubr.bf16.gmra.mxu0 %v138
    %v257 = vpop.f32.mrf.mxu0
    %v258 = vadd.f32 %v101, %v257
    %v259 = vpop.f32.mrf.mxu0
    %v260 = vpop.f32.mrf.mxu0
    %v261 = vadd.f32 %v101, %v260
    %v262 = vpop.f32.mrf.mxu0
    %263 = vmatprep.mubr.bf16.mxu0 0
    %264 = vmatmul.mubr.bf16.gmra.mxu0 %v139
    %v265 = vpop.f32.mrf.mxu0
    %v266 = vadd.f32 %v101, %v265
    %v267 = vpop.f32.mrf.mxu0
    %v268 = vpop.f32.mrf.mxu0
    %v269 = vadd.f32 %v101, %v268
    %v270 = vpop.f32.mrf.mxu0
    %271 = vmatprep.mubr.bf16.mxu0 0
    %272 = vmatmul.mubr.bf16.gmra.mxu0 %v140
    %v273 = vpop.f32.mrf.mxu0
    %v274 = vadd.f32 %v101, %v273
    %v275 = vpop.f32.mrf.mxu0
    %v276 = vpop.f32.mrf.mxu0
    %v277 = vadd.f32 %v101, %v276
    %v278 = vpop.f32.mrf.mxu0
    %279 = vmatprep.mubr.bf16.mxu0 0
    %280 = vmatmul.mubr.bf16.gmra.mxu0 %v141
    %v281 = vpop.f32.mrf.mxu0
    %v282 = vadd.f32 %v101, %v281
    %v283 = vpop.f32.mrf.mxu0
    %v284 = vpop.f32.mrf.mxu0
    %v285 = vadd.f32 %v101, %v284
    %v286 = vpop.f32.mrf.mxu0
    %287 = vmatprep.mubr.bf16.mxu0 0
    %288 = vmatmul.mubr.bf16.gmra.mxu0 %v142
    %v289 = vpop.f32.mrf.mxu0
    %v290 = vadd.f32 %v101, %v289
    %v291 = vpop.f32.mrf.mxu0
    %v292 = vpop.f32.mrf.mxu0
    %v293 = vadd.f32 %v101, %v292
    %v294 = vpop.f32.mrf.mxu0
    %295 = vdwg.mxu0
    %v296 = vmax.f32 %v234, 0.0
    %v297 = vmax.f32 %v237, 0.0
    %v298 = vmax.f32 %v242, 0.0
    %v299 = vmax.f32 %v245, 0.0
    %v300 = vmax.f32 %v250, 0.0
    %v301 = vmax.f32 %v253, 0.0
    %v302 = vmax.f32 %v258, 0.0
    %v303 = vmax.f32 %v261, 0.0
    %v304 = vmax.f32 %v266, 0.0
    %v305 = vmax.f32 %v269, 0.0
    %v306 = vmax.f32 %v274, 0.0
    %v307 = vmax.f32 %v277, 0.0
    %v308 = vmax.f32 %v282, 0.0
    %v309 = vmax.f32 %v285, 0.0
    %v310 = vmax.f32 %v290, 0.0
    %v311 = vmax.f32 %v293, 0.0
    %v312 = vmin.f32 %v296, 6.0
    %v313 = vmin.f32 %v297, 6.0
    %v314 = vmin.f32 %v298, 6.0
    %v315 = vmin.f32 %v299, 6.0
    %v316 = vmin.f32 %v300, 6.0
    %v317 = vmin.f32 %v301, 6.0
    %v318 = vmin.f32 %v302, 6.0
    %v319 = vmin.f32 %v303, 6.0
    %v320 = vmin.f32 %v304, 6.0
    %v321 = vmin.f32 %v305, 6.0
    %v322 = vmin.f32 %v306, 6.0
    %v323 = vmin.f32 %v307, 6.0
    %v324 = vmin.f32 %v308, 6.0
    %v325 = vmin.f32 %v309, 6.0
    %v326 = vmin.f32 %v310, 6.0
    %v327 = vmin.f32 %v311, 6.0
    %v328 = vpack.c.bf16 %v313, %v312
    %v329 = vpack.c.bf16 %v315, %v314
    %v330 = vpack.c.bf16 %v317, %v316
    %v331 = vpack.c.bf16 %v319, %v318
    %v332 = vpack.c.bf16 %v321, %v320
    %v333 = vpack.c.bf16 %v323, %v322
    %v334 = vpack.c.bf16 %v325, %v324
    %v335 = vpack.c.bf16 %v327, %v326
    %336 = vst [vmem:[#allocation2] sm:$0xff] 0.0
    %337 = vst [vmem:[#allocation2 + $0x8] sm:$0xff] 0.0
    %338 = vst [vmem:[#allocation2 + $0x10] sm:$0x3] 0.0
    %339 = vst [vmem:[#allocation2 + $0x18] sm:$0x3] 0.0
    %340 = vst [vmem:[#allocation2 + $0x140] sm:$0xff] 0.0
    %341 = vst [vmem:[#allocation2 + $0x148] sm:$0xff] 0.0
    %342 = vst [vmem:[#allocation2 + $0x150] sm:$0x3] 0.0
    %343 = vst [vmem:[#allocation2 + $0x158] sm:$0x3] 0.0
    %s344 = scalar_lea.vmem [#allocation2], 288
    %345 = vst [vmem:[%s344] sm:$0xff] 0.0
    %346 = vst [vmem:[%s344 + $0x8] sm:$0xff] 0.0
    %347 = vst [vmem:[%s344 + $0x10] sm:$0x3] 0.0
    %348 = vst [vmem:[%s344 + $0x18] sm:$0x3] 0.0
    %349 = vst [vmem:[%s344 + $0x140] sm:$0xff] 0.0
    %350 = vst [vmem:[%s344 + $0x148] sm:$0xff] 0.0
    %351 = vst [vmem:[%s344 + $0x150] sm:$0x3] 0.0
    %352 = vst [vmem:[%s344 + $0x158] sm:$0x3] 0.0
    %s353 = scalar_lea.vmem [#allocation2], 32
    %v354 = vlaneseq
    %vm355 = vcmp.ge.s32.totalorder %v354, 0
    %vm356 = vcmp.lt.s32.totalorder %v354, 256
    %vm357 = vmand %vm355, %vm356
    %358 = vst.msk [vmem:[%s353] ss:$8 sm:$0x3] %vm357, 0.0
    %359 = vst.msk [vmem:[%s353] ss:$8 sm:$0x0] %vm357, 0.0
    %s360 = scalar_lea.vmem %s353, 32 [#allocation2]
    %361 = vst.msk [vmem:[%s360] ss:$8 sm:$0x3] %vm357, 0.0
    %362 = vst.msk [vmem:[%s360] ss:$8 sm:$0x0] %vm357, 0.0
    %s363 = scalar_lea.vmem %s353, 64 [#allocation2]
    %364 = vst.msk [vmem:[%s363] ss:$8 sm:$0x3] %vm357, 0.0
    %365 = vst.msk [vmem:[%s363] ss:$8 sm:$0x0] %vm357, 0.0
    %s366 = scalar_lea.vmem %s353, 96 [#allocation2]
    %367 = vst.msk [vmem:[%s366] ss:$8 sm:$0x3] %vm357, 0.0
    %368 = vst.msk [vmem:[%s366] ss:$8 sm:$0x0] %vm357, 0.0
    %s369 = scalar_lea.vmem %s353, 128 [#allocation2]
    %370 = vst.msk [vmem:[%s369] ss:$8 sm:$0x3] %vm357, 0.0
    %371 = vst.msk [vmem:[%s369] ss:$8 sm:$0x0] %vm357, 0.0
    %s372 = scalar_lea.vmem %s353, 160 [#allocation2]
    %373 = vst.msk [vmem:[%s372] ss:$8 sm:$0x3] %vm357, 0.0
    %374 = vst.msk [vmem:[%s372] ss:$8 sm:$0x0] %vm357, 0.0
    %s375 = scalar_lea.vmem %s353, 192 [#allocation2]
    %376 = vst.msk [vmem:[%s375] ss:$8 sm:$0x3] %vm357, 0.0
    %377 = vst.msk [vmem:[%s375] ss:$8 sm:$0x0] %vm357, 0.0
    %s378 = scalar_lea.vmem %s353, 224 [#allocation2]
    %379 = vst.msk [vmem:[%s378] ss:$8 sm:$0x3] %vm357, 0.0
    %380 = vst.msk [vmem:[%s378] ss:$8 sm:$0x0] %vm357, 0.0
    %s381 = scalar_lea.vmem %s353, 320 [#allocation2]
    %382 = vst.msk [vmem:[%s381] ss:$8 sm:$0x3] %vm357, 0.0
    %383 = vst.msk [vmem:[%s381] ss:$8 sm:$0x0] %vm357, 0.0
    %s384 = scalar_lea.vmem %s353, 352 [#allocation2]
    %385 = vst.msk [vmem:[%s384] ss:$8 sm:$0x3] %vm357, 0.0
    %386 = vst.msk [vmem:[%s384] ss:$8 sm:$0x0] %vm357, 0.0
    %s387 = scalar_lea.vmem %s353, 384 [#allocation2]
    %388 = vst.msk [vmem:[%s387] ss:$8 sm:$0x3] %vm357, 0.0
    %389 = vst.msk [vmem:[%s387] ss:$8 sm:$0x0] %vm357, 0.0
    %s390 = scalar_lea.vmem %s353, 416 [#allocation2]
    %391 = vst.msk [vmem:[%s390] ss:$8 sm:$0x3] %vm357, 0.0
    %392 = vst.msk [vmem:[%s390] ss:$8 sm:$0x0] %vm357, 0.0
    %s393 = scalar_lea.vmem %s353, 448 [#allocation2]
    %394 = vst.msk [vmem:[%s393] ss:$8 sm:$0x3] %vm357, 0.0
    %395 = vst.msk [vmem:[%s393] ss:$8 sm:$0x0] %vm357, 0.0
    %s396 = scalar_lea.vmem %s353, 480 [#allocation2]
    %397 = vst.msk [vmem:[%s396] ss:$8 sm:$0x3] %vm357, 0.0
    %398 = vst.msk [vmem:[%s396] ss:$8 sm:$0x0] %vm357, 0.0
    %s399 = scalar_lea.vmem %s353, 512 [#allocation2]
    %400 = vst.msk [vmem:[%s399] ss:$8 sm:$0x3] %vm357, 0.0
    %401 = vst.msk [vmem:[%s399] ss:$8 sm:$0x0] %vm357, 0.0
    %s402 = scalar_lea.vmem %s353, 544 [#allocation2]
    %403 = vst.msk [vmem:[%s402] ss:$8 sm:$0x3] %vm357, 0.0
    %404 = vst.msk [vmem:[%s402] ss:$8 sm:$0x0] %vm357, 0.0
    %s405 = scalar_lea.vmem %s353, 17 [#allocation2]
    %406 = vst.msk [vmem:[%s405] ss:$8 sm:$0x3] %vm357, 0.0
    %407 = vst.msk [vmem:[%s405] ss:$8 sm:$0x0] %vm357, 0.0
    %s408 = scalar_lea.vmem %s353, 49 [#allocation2]
    %409 = vst.msk [vmem:[%s408] ss:$8 sm:$0x3] %vm357, 0.0
    %410 = vst.msk [vmem:[%s408] ss:$8 sm:$0x0] %vm357, 0.0
    %s411 = scalar_lea.vmem %s353, 81 [#allocation2]
    %412 = vst.msk [vmem:[%s411] ss:$8 sm:$0x3] %vm357, 0.0
    %413 = vst.msk [vmem:[%s411] ss:$8 sm:$0x0] %vm357, 0.0
    %s414 = scalar_lea.vmem %s353, 113 [#allocation2]
    %415 = vst.msk [vmem:[%s414] ss:$8 sm:$0x3] %vm357, 0.0
    %416 = vst.msk [vmem:[%s414] ss:$8 sm:$0x0] %vm357, 0.0
    %s417 = scalar_lea.vmem %s353, 145 [#allocation2]
    %418 = vst.msk [vmem:[%s417] ss:$8 sm:$0x3] %vm357, 0.0
    %419 = vst.msk [vmem:[%s417] ss:$8 sm:$0x0] %vm357, 0.0
    %s420 = scalar_lea.vmem %s353, 177 [#allocation2]
    %421 = vst.msk [vmem:[%s420] ss:$8 sm:$0x3] %vm357, 0.0
    %422 = vst.msk [vmem:[%s420] ss:$8 sm:$0x0] %vm357, 0.0
    %s423 = scalar_lea.vmem %s353, 209 [#allocation2]
    %424 = vst.msk [vmem:[%s423] ss:$8 sm:$0x3] %vm357, 0.0
    %425 = vst.msk [vmem:[%s423] ss:$8 sm:$0x0] %vm357, 0.0
    %s426 = scalar_lea.vmem %s353, 241 [#allocation2]
    %427 = vst.msk [vmem:[%s426] ss:$8 sm:$0x3] %vm357, 0.0
    %428 = vst.msk [vmem:[%s426] ss:$8 sm:$0x0] %vm357, 0.0
    %s429 = scalar_lea.vmem %s353, 337 [#allocation2]
    %430 = vst.msk [vmem:[%s429] ss:$8 sm:$0x3] %vm357, 0.0
    %431 = vst.msk [vmem:[%s429] ss:$8 sm:$0x0] %vm357, 0.0
    %s432 = scalar_lea.vmem %s353, 369 [#allocation2]
    %433 = vst.msk [vmem:[%s432] ss:$8 sm:$0x3] %vm357, 0.0
    %434 = vst.msk [vmem:[%s432] ss:$8 sm:$0x0] %vm357, 0.0
    %s435 = scalar_lea.vmem %s353, 401 [#allocation2]
    %436 = vst.msk [vmem:[%s435] ss:$8 sm:$0x3] %vm357, 0.0
    %437 = vst.msk [vmem:[%s435] ss:$8 sm:$0x0] %vm357, 0.0
    %s438 = scalar_lea.vmem %s353, 433 [#allocation2]
    %439 = vst.msk [vmem:[%s438] ss:$8 sm:$0x3] %vm357, 0.0
    %440 = vst.msk [vmem:[%s438] ss:$8 sm:$0x0] %vm357, 0.0
    %s441 = scalar_lea.vmem %s353, 465 [#allocation2]
    %442 = vst.msk [vmem:[%s441] ss:$8 sm:$0x3] %vm357, 0.0
    %443 = vst.msk [vmem:[%s441] ss:$8 sm:$0x0] %vm357, 0.0
    %s444 = scalar_lea.vmem %s353, 497 [#allocation2]
    %445 = vst.msk [vmem:[%s444] ss:$8 sm:$0x3] %vm357, 0.0
    %446 = vst.msk [vmem:[%s444] ss:$8 sm:$0x0] %vm357, 0.0
    %s447 = scalar_lea.vmem %s353, 529 [#allocation2]
    %448 = vst.msk [vmem:[%s447] ss:$8 sm:$0x3] %vm357, 0.0
    %449 = vst.msk [vmem:[%s447] ss:$8 sm:$0x0] %vm357, 0.0
    %s450 = scalar_lea.vmem %s353, 561 [#allocation2]
    %451 = vst.msk [vmem:[%s450] ss:$8 sm:$0x3] %vm357, 0.0
    %452 = vst.msk [vmem:[%s450] ss:$8 sm:$0x0] %vm357, 0.0
    %453 = vst [vmem:[#allocation3] sm:$0x3f] 0.0
    %454 = vst [vmem:[#allocation3 + $0x8] sm:$0x3f] 0.0
    %455 = vst [vmem:[#allocation3 + $0x60] sm:$0x3f] 0.0
    %456 = vst [vmem:[#allocation3 + $0x68] sm:$0x3f] 0.0
    %s457 = scalar_lea.vmem [#allocation3], 80
    %458 = vst [vmem:[%s457] sm:$0x3f] 0.0
    %459 = vst [vmem:[%s457 + $0x8] sm:$0x3f] 0.0
    %460 = vst [vmem:[%s457 + $0x60] sm:$0x3f] 0.0
    %461 = vst [vmem:[%s457 + $0x68] sm:$0x3f] 0.0
    %s462 = scalar_lea.vmem [#allocation3], 16
    %463 = vst.msk [vmem:[%s462] ss:$8 sm:$0x3] %vm357, 0.0
    %464 = vst.msk [vmem:[%s462] ss:$8 sm:$0x0] %vm357, 0.0
    %s465 = scalar_lea.vmem %s462, 16 [#allocation3]
    %466 = vst.msk [vmem:[%s465] ss:$8 sm:$0x3] %vm357, 0.0
    %467 = vst.msk [vmem:[%s465] ss:$8 sm:$0x0] %vm357, 0.0
    %s468 = scalar_lea.vmem %s462, 32 [#allocation3]
    %469 = vst.msk [vmem:[%s468] ss:$8 sm:$0x3] %vm357, 0.0
    %470 = vst.msk [vmem:[%s468] ss:$8 sm:$0x0] %vm357, 0.0
    %s471 = scalar_lea.vmem %s462, 48 [#allocation3]
    %472 = vst.msk [vmem:[%s471] ss:$8 sm:$0x3] %vm357, 0.0
    %473 = vst.msk [vmem:[%s471] ss:$8 sm:$0x0] %vm357, 0.0
    %s474 = scalar_lea.vmem %s462, 96 [#allocation3]
    %475 = vst.msk [vmem:[%s474] ss:$8 sm:$0x3] %vm357, 0.0
    %476 = vst.msk [vmem:[%s474] ss:$8 sm:$0x0] %vm357, 0.0
    %s477 = scalar_lea.vmem %s462, 112 [#allocation3]
    %478 = vst.msk [vmem:[%s477] ss:$8 sm:$0x3] %vm357, 0.0
    %479 = vst.msk [vmem:[%s477] ss:$8 sm:$0x0] %vm357, 0.0
    %s480 = scalar_lea.vmem %s462, 128 [#allocation3]
    %481 = vst.msk [vmem:[%s480] ss:$8 sm:$0x3] %vm357, 0.0
    %482 = vst.msk [vmem:[%s480] ss:$8 sm:$0x0] %vm357, 0.0
    %s483 = scalar_lea.vmem %s462, 144 [#allocation3]
    %484 = vst.msk [vmem:[%s483] ss:$8 sm:$0x3] %vm357, 0.0
    %485 = vst.msk [vmem:[%s483] ss:$8 sm:$0x0] %vm357, 0.0
    %s486 = scalar_lea.vmem %s462, 5 [#allocation3]
    %487 = vst.msk [vmem:[%s486] ss:$8 sm:$0x3] %vm357, 0.0
    %488 = vst.msk [vmem:[%s486] ss:$8 sm:$0x0] %vm357, 0.0
    %s489 = scalar_lea.vmem %s462, 21 [#allocation3]
    %490 = vst.msk [vmem:[%s489] ss:$8 sm:$0x3] %vm357, 0.0
    %491 = vst.msk [vmem:[%s489] ss:$8 sm:$0x0] %vm357, 0.0
    %s492 = scalar_lea.vmem %s462, 37 [#allocation3]
    %493 = vst.msk [vmem:[%s492] ss:$8 sm:$0x3] %vm357, 0.0
    %494 = vst.msk [vmem:[%s492] ss:$8 sm:$0x0] %vm357, 0.0
    %s495 = scalar_lea.vmem %s462, 53 [#allocation3]
    %496 = vst.msk [vmem:[%s495] ss:$8 sm:$0x3] %vm357, 0.0
    %497 = vst.msk [vmem:[%s495] ss:$8 sm:$0x0] %vm357, 0.0
    %s498 = scalar_lea.vmem %s462, 101 [#allocation3]
    %499 = vst.msk [vmem:[%s498] ss:$8 sm:$0x3] %vm357, 0.0
    %500 = vst.msk [vmem:[%s498] ss:$8 sm:$0x0] %vm357, 0.0
    %s501 = scalar_lea.vmem %s462, 117 [#allocation3]
    %502 = vst.msk [vmem:[%s501] ss:$8 sm:$0x3] %vm357, 0.0
    %503 = vst.msk [vmem:[%s501] ss:$8 sm:$0x0] %vm357, 0.0
    %s504 = scalar_lea.vmem %s462, 133 [#allocation3]
    %505 = vst.msk [vmem:[%s504] ss:$8 sm:$0x3] %vm357, 0.0
    %506 = vst.msk [vmem:[%s504] ss:$8 sm:$0x0] %vm357, 0.0
    %s507 = scalar_lea.vmem %s462, 149 [#allocation3]
    %508 = vst.msk [vmem:[%s507] ss:$8 sm:$0x3] %vm357, 0.0
    %509 = vst.msk [vmem:[%s507] ss:$8 sm:$0x0] %vm357, 0.0
    %v510 = vld [vmem:[%s3] sm:$0xff]
    %v511 = vld [vmem:[%s3 + $0x8] sm:$0xff]
    %v512 = vld [vmem:[%s3 + $0x10] sm:$0xff]
    %v513 = vld [vmem:[%s3 + $0x18] sm:$0xff]
    %v514 = vld [vmem:[%s3 + $0x20] sm:$0xff]
    %v515 = vld [vmem:[%s3 + $0x28] sm:$0xff]
    %v516 = vld [vmem:[%s3 + $0x30] sm:$0xff]
    %v517 = vld [vmem:[%s3 + $0x38] sm:$0xff]
    %v518 = vld [vmem:[%s3 + $0x40] sm:$0xff]
    %v519 = vld [vmem:[%s3 + $0x48] sm:$0xff]
    %v520 = vld [vmem:[%s3 + $0x50] sm:$0xff]
    %v521 = vld [vmem:[%s3 + $0x58] sm:$0xff]
    %v522 = vld [vmem:[%s3 + $0x60] sm:$0xff]
    %v523 = vld [vmem:[%s3 + $0x68] sm:$0xff]
    %v524 = vld [vmem:[%s3 + $0x70] sm:$0xff]
    %v525 = vld [vmem:[%s3 + $0x78] sm:$0xff]
    %v526 = vld [vmem:[%s4] sm:$0x3]
    %v528 = vlaneseq
    %v529 = vshrl.u32 %v528, 7
    %v530 = vsub.s32 0, %v529
    %v531 = vrot.slane %v526, %v530
    %v532 = vlaneseq
    %v533 = vshrl.u32 %v532, 7
    %v534 = vsub.s32 1, %v533
    %v535 = vrot.slane %v526, %v534
    %v554 = vunpack.c.l.b16 %v510
    %v555 = vunpack.c.h.b16 %v510
    %v556 = vunpack.c.l.b16 %v511
    %v557 = vunpack.c.h.b16 %v511
    %v558 = vunpack.c.l.b16 %v512
    %v559 = vunpack.c.h.b16 %v512
    %v560 = vunpack.c.l.b16 %v513
    %v561 = vunpack.c.h.b16 %v513
    %v562 = vunpack.c.l.b16 %v514
    %v563 = vunpack.c.h.b16 %v514
    %v564 = vunpack.c.l.b16 %v515
    %v565 = vunpack.c.h.b16 %v515
    %v566 = vunpack.c.l.b16 %v516
    %v567 = vunpack.c.h.b16 %v516
    %v568 = vunpack.c.l.b16 %v517
    %v569 = vunpack.c.h.b16 %v517
    %v570 = vunpack.c.l.b16 %v518
    %v571 = vunpack.c.h.b16 %v518
    %v572 = vunpack.c.l.b16 %v519
    %v573 = vunpack.c.h.b16 %v519
    %v574 = vunpack.c.l.b16 %v520
    %v575 = vunpack.c.h.b16 %v520
    %v576 = vunpack.c.l.b16 %v521
    %v577 = vunpack.c.h.b16 %v521
    %v578 = vunpack.c.l.b16 %v522
    %v579 = vunpack.c.h.b16 %v522
    %v580 = vunpack.c.l.b16 %v523
    %v581 = vunpack.c.h.b16 %v523
    %v582 = vunpack.c.l.b16 %v524
    %v583 = vunpack.c.h.b16 %v524
    %v584 = vunpack.c.l.b16 %v525
    %v585 = vunpack.c.h.b16 %v525
    %v586 = vpack.c.b16 %v556, %v554
    %v587 = vpack.c.b16 %v557, %v555
    %v588 = vpack.c.b16 %v560, %v558
    %v589 = vpack.c.b16 %v561, %v559
    %v590 = vpack.c.b16 %v564, %v562
    %v591 = vpack.c.b16 %v565, %v563
    %v592 = vpack.c.b16 %v568, %v566
    %v593 = vpack.c.b16 %v569, %v567
    %v594 = vpack.c.b16 %v572, %v570
    %v595 = vpack.c.b16 %v573, %v571
    %v596 = vpack.c.b16 %v576, %v574
    %v597 = vpack.c.b16 %v577, %v575
    %v598 = vpack.c.b16 %v580, %v578
    %v599 = vpack.c.b16 %v581, %v579
    %v600 = vpack.c.b16 %v584, %v582
    %v601 = vpack.c.b16 %v585, %v583
    %618 = vmatprep.subr.bf16.mxu0 %v601
    %619 = vmatpush1.bf16.msra.mxu0 %v600
    %620 = vmatprep.subr.bf16.mxu0 %v599
    %621 = vmatpush1.bf16.msra.mxu0 %v598
    %622 = vmatprep.subr.bf16.mxu0 %v597
    %623 = vmatpush1.bf16.msra.mxu0 %v596
    %624 = vmatprep.subr.bf16.mxu0 %v595
    %625 = vmatpush1.bf16.msra.mxu0 %v594
    %626 = vmatprep.subr.bf16.mxu0 %v593
    %627 = vmatpush1.bf16.msra.mxu0 %v592
    %628 = vmatprep.subr.bf16.mxu0 %v591
    %629 = vmatpush1.bf16.msra.mxu0 %v590
    %630 = vmatprep.subr.bf16.mxu0 %v589
    %631 = vmatpush1.bf16.msra.mxu0 %v588
    %632 = vmatprep.subr.bf16.mxu0 %v587
    %633 = vmatpush1.bf16.msra.mxu0 %v586
    %634 = vmatprep.subr.bf16.mxu0 0
    %635 = vmatpush2.bf16.msra.mxu0 0
    %636 = vmatprep.subr.bf16.mxu0 0
    %637 = vmatpush2.bf16.msra.mxu0 0
    %638 = vmatprep.subr.bf16.mxu0 0
    %639 = vmatpush2.bf16.msra.mxu0 0
    %640 = vmatprep.subr.bf16.mxu0 0
    %641 = vmatpush2.bf16.msra.mxu0 0
    %642 = vmatprep.subr.bf16.mxu0 0
    %643 = vmatpush2.bf16.msra.mxu0 0
    %644 = vmatprep.subr.bf16.mxu0 0
    %645 = vmatpush2.bf16.msra.mxu0 0
    %646 = vmatprep.subr.bf16.mxu0 0
    %647 = vmatpush2.bf16.msra.mxu0 0
    %648 = vmatprep.subr.bf16.mxu0 0
    %649 = vmatpush2.bf16.msra.mxu0 0
    %650 = vmatprep.mubr.bf16.mxu0 0
    %651 = vmatmul.mubr.bf16.gmra.mxu0 %v328
    %v652 = vpop.f32.mrf.mxu0
    %v653 = vadd.f32 %v531, %v652
    %v654 = vpop.f32.mrf.mxu0
    %v655 = vadd.f32 %v535, %v654
    %v656 = vpop.f32.mrf.mxu0
    %v657 = vadd.f32 %v531, %v656
    %v658 = vpop.f32.mrf.mxu0
    %v659 = vadd.f32 %v535, %v658
    %660 = vmatprep.mubr.bf16.mxu0 0
    %661 = vmatmul.mubr.bf16.gmra.mxu0 %v329
    %v662 = vpop.f32.mrf.mxu0
    %v663 = vadd.f32 %v531, %v662
    %v664 = vpop.f32.mrf.mxu0
    %v665 = vadd.f32 %v535, %v664
    %v666 = vpop.f32.mrf.mxu0
    %v667 = vadd.f32 %v531, %v666
    %v668 = vpop.f32.mrf.mxu0
    %v669 = vadd.f32 %v535, %v668
    %670 = vmatprep.mubr.bf16.mxu0 0
    %671 = vmatmul.mubr.bf16.gmra.mxu0 %v330
    %v672 = vpop.f32.mrf.mxu0
    %v673 = vadd.f32 %v531, %v672
    %v674 = vpop.f32.mrf.mxu0
    %v675 = vadd.f32 %v535, %v674
    %v676 = vpop.f32.mrf.mxu0
    %v677 = vadd.f32 %v531, %v676
    %v678 = vpop.f32.mrf.mxu0
    %v679 = vadd.f32 %v535, %v678
    %680 = vmatprep.mubr.bf16.mxu0 0
    %681 = vmatmul.mubr.bf16.gmra.mxu0 %v331
    %v682 = vpop.f32.mrf.mxu0
    %v683 = vadd.f32 %v531, %v682
    %v684 = vpop.f32.mrf.mxu0
    %v685 = vadd.f32 %v535, %v684
    %v686 = vpop.f32.mrf.mxu0
    %v687 = vadd.f32 %v531, %v686
    %v688 = vpop.f32.mrf.mxu0
    %v689 = vadd.f32 %v535, %v688
    %690 = vmatprep.mubr.bf16.mxu0 0
    %691 = vmatmul.mubr.bf16.gmra.mxu0 %v332
    %v692 = vpop.f32.mrf.mxu0
    %v693 = vadd.f32 %v531, %v692
    %v694 = vpop.f32.mrf.mxu0
    %v695 = vadd.f32 %v535, %v694
    %v696 = vpop.f32.mrf.mxu0
    %v697 = vadd.f32 %v531, %v696
    %v698 = vpop.f32.mrf.mxu0
    %v699 = vadd.f32 %v535, %v698
    %700 = vmatprep.mubr.bf16.mxu0 0
    %701 = vmatmul.mubr.bf16.gmra.mxu0 %v333
    %v702 = vpop.f32.mrf.mxu0
    %v703 = vadd.f32 %v531, %v702
    %v704 = vpop.f32.mrf.mxu0
    %v705 = vadd.f32 %v535, %v704
    %v706 = vpop.f32.mrf.mxu0
    %v707 = vadd.f32 %v531, %v706
    %v708 = vpop.f32.mrf.mxu0
    %v709 = vadd.f32 %v535, %v708
    %710 = vmatprep.mubr.bf16.mxu0 0
    %711 = vmatmul.mubr.bf16.gmra.mxu0 %v334
    %v712 = vpop.f32.mrf.mxu0
    %v713 = vadd.f32 %v531, %v712
    %v714 = vpop.f32.mrf.mxu0
    %v715 = vadd.f32 %v535, %v714
    %v716 = vpop.f32.mrf.mxu0
    %v717 = vadd.f32 %v531, %v716
    %v718 = vpop.f32.mrf.mxu0
    %v719 = vadd.f32 %v535, %v718
    %720 = vmatprep.mubr.bf16.mxu0 0
    %721 = vmatmul.mubr.bf16.gmra.mxu0 %v335
    %v722 = vpop.f32.mrf.mxu0
    %v723 = vadd.f32 %v531, %v722
    %v724 = vpop.f32.mrf.mxu0
    %v725 = vadd.f32 %v535, %v724
    %v726 = vpop.f32.mrf.mxu0
    %v727 = vadd.f32 %v531, %v726
    %v728 = vpop.f32.mrf.mxu0
    %v729 = vadd.f32 %v535, %v728
    %730 = vdwg.mxu0
    %v731 = vmax.f32 %v653, 0.0
    %v732 = vmax.f32 %v655, 0.0
    %v733 = vmax.f32 %v657, 0.0
    %v734 = vmax.f32 %v659, 0.0
    %v735 = vmax.f32 %v663, 0.0
    %v736 = vmax.f32 %v665, 0.0
    %v737 = vmax.f32 %v667, 0.0
    %v738 = vmax.f32 %v669, 0.0
    %v739 = vmax.f32 %v673, 0.0
    %v740 = vmax.f32 %v675, 0.0
    %v741 = vmax.f32 %v677, 0.0
    %v742 = vmax.f32 %v679, 0.0
    %v743 = vmax.f32 %v683, 0.0
    %v744 = vmax.f32 %v685, 0.0
    %v745 = vmax.f32 %v687, 0.0
    %v746 = vmax.f32 %v689, 0.0
    %v747 = vmax.f32 %v693, 0.0
    %v748 = vmax.f32 %v695, 0.0
    %v749 = vmax.f32 %v697, 0.0
    %v750 = vmax.f32 %v699, 0.0
    %v751 = vmax.f32 %v703, 0.0
    %v752 = vmax.f32 %v705, 0.0
    %v753 = vmax.f32 %v707, 0.0
    %v754 = vmax.f32 %v709, 0.0
    %v755 = vmax.f32 %v713, 0.0
    %v756 = vmax.f32 %v715, 0.0
    %v757 = vmax.f32 %v717, 0.0
    %v758 = vmax.f32 %v719, 0.0
    %v759 = vmax.f32 %v723, 0.0
    %v760 = vmax.f32 %v725, 0.0
    %v761 = vmax.f32 %v727, 0.0
    %v762 = vmax.f32 %v729, 0.0
    %v763 = vmin.f32 %v731, 6.0
    %v764 = vmin.f32 %v732, 6.0
    %v765 = vmin.f32 %v733, 6.0
    %v766 = vmin.f32 %v734, 6.0
    %v767 = vmin.f32 %v735, 6.0
    %v768 = vmin.f32 %v736, 6.0
    %v769 = vmin.f32 %v737, 6.0
    %v770 = vmin.f32 %v738, 6.0
    %v771 = vmin.f32 %v739, 6.0
    %v772 = vmin.f32 %v740, 6.0
    %v773 = vmin.f32 %v741, 6.0
    %v774 = vmin.f32 %v742, 6.0
    %v775 = vmin.f32 %v743, 6.0
    %v776 = vmin.f32 %v744, 6.0
    %v777 = vmin.f32 %v745, 6.0
    %v778 = vmin.f32 %v746, 6.0
    %v779 = vmin.f32 %v747, 6.0
    %v780 = vmin.f32 %v748, 6.0
    %v781 = vmin.f32 %v749, 6.0
    %v782 = vmin.f32 %v750, 6.0
    %v783 = vmin.f32 %v751, 6.0
    %v784 = vmin.f32 %v752, 6.0
    %v785 = vmin.f32 %v753, 6.0
    %v786 = vmin.f32 %v754, 6.0
    %v787 = vmin.f32 %v755, 6.0
    %v788 = vmin.f32 %v756, 6.0
    %v789 = vmin.f32 %v757, 6.0
    %v790 = vmin.f32 %v758, 6.0
    %v791 = vmin.f32 %v759, 6.0
    %v792 = vmin.f32 %v760, 6.0
    %v793 = vmin.f32 %v761, 6.0
    %v794 = vmin.f32 %v762, 6.0
    %v827 = vrot.slane %v763, 7
    %v828 = vrot.slane %v764, 7
    %v829 = vrot.slane %v765, 7
    %v830 = vrot.slane %v766, 7
    %v831 = vrot.slane %v767, 7
    %v832 = vrot.slane %v768, 7
    %v833 = vrot.slane %v769, 7
    %v834 = vrot.slane %v770, 7
    %v835 = vrot.slane %v771, 7
    %v836 = vrot.slane %v772, 7
    %v837 = vrot.slane %v773, 7
    %v838 = vrot.slane %v774, 7
    %v839 = vrot.slane %v775, 7
    %v840 = vrot.slane %v776, 7
    %v841 = vrot.slane %v777, 7
    %v842 = vrot.slane %v778, 7
    %v843 = vrot.slane %v779, 7
    %v844 = vrot.slane %v780, 7
    %v845 = vrot.slane %v781, 7
    %v846 = vrot.slane %v782, 7
    %v847 = vrot.slane %v783, 7
    %v848 = vrot.slane %v784, 7
    %v849 = vrot.slane %v785, 7
    %v850 = vrot.slane %v786, 7
    %v851 = vrot.slane %v787, 7
    %v852 = vrot.slane %v788, 7
    %v853 = vrot.slane %v789, 7
    %v854 = vrot.slane %v790, 7
    %v855 = vrot.slane %v791, 7
    %v856 = vrot.slane %v792, 7
    %v857 = vrot.slane %v793, 7
    %v858 = vrot.slane %v794, 7
    %891 = vst [vmem:[%s353] sm:$0xfe] %v827
    %892 = vst [vmem:[%s353 + $0x8] sm:$0xfe] %v828
    %893 = vst [vmem:[%s353 + $0x10] sm:$0x1] %v827
    %894 = vst [vmem:[%s353 + $0x18] sm:$0x1] %v828
    %895 = vst [vmem:[%s353 + $0x20] sm:$0xfe] %v829
    %896 = vst [vmem:[%s353 + $0x28] sm:$0xfe] %v830
    %897 = vst [vmem:[%s353 + $0x30] sm:$0x1] %v829
    %898 = vst [vmem:[%s353 + $0x38] sm:$0x1] %v830
    %899 = vst [vmem:[%s353 + $0x40] sm:$0xfe] %v831
    %900 = vst [vmem:[%s353 + $0x48] sm:$0xfe] %v832
    %901 = vst [vmem:[%s353 + $0x50] sm:$0x1] %v831
    %902 = vst [vmem:[%s353 + $0x58] sm:$0x1] %v832
    %903 = vst [vmem:[%s353 + $0x60] sm:$0xfe] %v833
    %904 = vst [vmem:[%s353 + $0x68] sm:$0xfe] %v834
    %905 = vst [vmem:[%s353 + $0x70] sm:$0x1] %v833
    %906 = vst [vmem:[%s353 + $0x78] sm:$0x1] %v834
    %907 = vst [vmem:[%s353 + $0x80] sm:$0xfe] %v835
    %908 = vst [vmem:[%s353 + $0x88] sm:$0xfe] %v836
    %909 = vst [vmem:[%s353 + $0x90] sm:$0x1] %v835
    %910 = vst [vmem:[%s353 + $0x98] sm:$0x1] %v836
    %911 = vst [vmem:[%s353 + $0xa0] sm:$0xfe] %v837
    %912 = vst [vmem:[%s353 + $0xa8] sm:$0xfe] %v838
    %913 = vst [vmem:[%s353 + $0xb0] sm:$0x1] %v837
    %914 = vst [vmem:[%s353 + $0xb8] sm:$0x1] %v838
    %915 = vst [vmem:[%s353 + $0xc0] sm:$0xfe] %v839
    %916 = vst [vmem:[%s353 + $0xc8] sm:$0xfe] %v840
    %917 = vst [vmem:[%s353 + $0xd0] sm:$0x1] %v839
    %918 = vst [vmem:[%s353 + $0xd8] sm:$0x1] %v840
    %919 = vst [vmem:[%s353 + $0xe0] sm:$0xfe] %v841
    %920 = vst [vmem:[%s353 + $0xe8] sm:$0xfe] %v842
    %921 = vst [vmem:[%s353 + $0xf0] sm:$0x1] %v841
    %922 = vst [vmem:[%s353 + $0xf8] sm:$0x1] %v842
    %923 = vst [vmem:[%s353 + $0x140] sm:$0xfe] %v843
    %924 = vst [vmem:[%s353 + $0x148] sm:$0xfe] %v844
    %925 = vst [vmem:[%s353 + $0x150] sm:$0x1] %v843
    %926 = vst [vmem:[%s353 + $0x158] sm:$0x1] %v844
    %927 = vst [vmem:[%s353 + $0x160] sm:$0xfe] %v845
    %928 = vst [vmem:[%s353 + $0x168] sm:$0xfe] %v846
    %929 = vst [vmem:[%s353 + $0x170] sm:$0x1] %v845
    %930 = vst [vmem:[%s353 + $0x178] sm:$0x1] %v846
    %931 = vst [vmem:[%s353 + $0x180] sm:$0xfe] %v847
    %932 = vst [vmem:[%s353 + $0x188] sm:$0xfe] %v848
    %933 = vst [vmem:[%s353 + $0x190] sm:$0x1] %v847
    %934 = vst [vmem:[%s353 + $0x198] sm:$0x1] %v848
    %935 = vst [vmem:[%s353 + $0x1a0] sm:$0xfe] %v849
    %936 = vst [vmem:[%s353 + $0x1a8] sm:$0xfe] %v850
    %937 = vst [vmem:[%s353 + $0x1b0] sm:$0x1] %v849
    %938 = vst [vmem:[%s353 + $0x1b8] sm:$0x1] %v850
    %939 = vst [vmem:[%s353 + $0x1c0] sm:$0xfe] %v851
    %940 = vst [vmem:[%s353 + $0x1c8] sm:$0xfe] %v852
    %941 = vst [vmem:[%s353 + $0x1d0] sm:$0x1] %v851
    %942 = vst [vmem:[%s353 + $0x1d8] sm:$0x1] %v852
    %943 = vst [vmem:[%s353 + $0x1e0] sm:$0xfe] %v853
    %944 = vst [vmem:[%s353 + $0x1e8] sm:$0xfe] %v854
    %945 = vst [vmem:[%s353 + $0x1f0] sm:$0x1] %v853
    %946 = vst [vmem:[%s353 + $0x1f8] sm:$0x1] %v854
    %947 = vst [vmem:[%s353 + $0x200] sm:$0xfe] %v855
    %948 = vst [vmem:[%s353 + $0x208] sm:$0xfe] %v856
    %949 = vst [vmem:[%s353 + $0x210] sm:$0x1] %v855
    %950 = vst [vmem:[%s353 + $0x218] sm:$0x1] %v856
    %951 = vst [vmem:[%s353 + $0x220] sm:$0xfe] %v857
    %952 = vst [vmem:[%s353 + $0x228] sm:$0xfe] %v858
    %953 = vst [vmem:[%s353 + $0x230] sm:$0x1] %v857
    %954 = vst [vmem:[%s353 + $0x238] sm:$0x1] %v858
    %v955 = vld [vmem:[%s5] sm:$0x3]
    %v956 = vld [vmem:[%s5 + $0x2] sm:$0x3]
    %v957 = vld [vmem:[%s5 + $0x4] sm:$0x3]
    %v958 = vld [vmem:[%s5 + $0x6] sm:$0x3]
    %v959 = vld [vmem:[%s5 + $0x8] sm:$0x3]
    %v960 = vld [vmem:[%s5 + $0xa] sm:$0x3]
    %v961 = vld [vmem:[%s5 + $0xc] sm:$0x3]
    %v962 = vld [vmem:[%s5 + $0xe] sm:$0x3]
    %v963 = vld [vmem:[%s5 + $0x10] sm:$0x3]
    %v964 = vld [vmem:[#allocation2] sm:$0xff]
    %v965 = vld [vmem:[#allocation2 + $0x8] sm:$0xff]
    %v966 = vld [vmem:[#allocation2 + $0x20] sm:$0xff]
    %v967 = vld [vmem:[#allocation2 + $0x28] sm:$0xff]
    %v968 = vld [vmem:[#allocation2 + $0x40] sm:$0xff]
    %v969 = vld [vmem:[#allocation2 + $0x48] sm:$0xff]
    %v970 = vld [vmem:[#allocation2 + $0x60] sm:$0xff]
    %v971 = vld [vmem:[#allocation2 + $0x68] sm:$0xff]
    %v972 = vld [vmem:[#allocation2 + $0x80] sm:$0xff]
    %v973 = vld [vmem:[#allocation2 + $0x88] sm:$0xff]
    %v974 = vld [vmem:[#allocation2 + $0xa0] sm:$0xff]
    %v975 = vld [vmem:[#allocation2 + $0xa8] sm:$0xff]
    %v976 = vld [vmem:[#allocation2 + $0xc0] sm:$0xff]
    %v977 = vld [vmem:[#allocation2 + $0xc8] sm:$0xff]
    %v978 = vld [vmem:[#allocation2 + $0xe0] sm:$0xff]
    %v979 = vld [vmem:[#allocation2 + $0xe8] sm:$0xff]
    %v980 = vld [vmem:[#allocation2 + $0x140] sm:$0xff]
    %v981 = vld [vmem:[#allocation2 + $0x148] sm:$0xff]
    %v982 = vld [vmem:[#allocation2 + $0x160] sm:$0xff]
    %v983 = vld [vmem:[#allocation2 + $0x168] sm:$0xff]
    %v984 = vld [vmem:[#allocation2 + $0x180] sm:$0xff]
    %v985 = vld [vmem:[#allocation2 + $0x188] sm:$0xff]
    %v986 = vld [vmem:[#allocation2 + $0x1a0] sm:$0xff]
    %v987 = vld [vmem:[#allocation2 + $0x1a8] sm:$0xff]
    %v988 = vld [vmem:[#allocation2 + $0x1c0] sm:$0xff]
    %v989 = vld [vmem:[#allocation2 + $0x1c8] sm:$0xff]
    %v990 = vld [vmem:[#allocation2 + $0x1e0] sm:$0xff]
    %v991 = vld [vmem:[#allocation2 + $0x1e8] sm:$0xff]
    %v992 = vld [vmem:[#allocation2 + $0x200] sm:$0xff]
    %v993 = vld [vmem:[#allocation2 + $0x208] sm:$0xff]
    %v994 = vld [vmem:[#allocation2 + $0x220] sm:$0xff]
    %v995 = vld [vmem:[#allocation2 + $0x228] sm:$0xff]
    %v997 = vlaneseq
    %v998 = vshrl.u32 %v997, 7
    %v999 = vsub.s32 0, %v998
    %v1000 = vrot.slane %v955, %v999
    %v1001 = vlaneseq
    %v1002 = vshrl.u32 %v1001, 7
    %v1003 = vsub.s32 1, %v1002
    %v1004 = vrot.slane %v955, %v1003
    %v1007 = vmul.f32 %v964, %v1000
    %v1008 = vmul.f32 %v965, %v1004
    %v1009 = vmul.f32 %v966, %v1000
    %v1010 = vmul.f32 %v967, %v1004
    %v1011 = vmul.f32 %v968, %v1000
    %v1012 = vmul.f32 %v969, %v1004
    %v1013 = vmul.f32 %v970, %v1000
    %v1014 = vmul.f32 %v971, %v1004
    %v1015 = vmul.f32 %v972, %v1000
    %v1016 = vmul.f32 %v973, %v1004
    %v1017 = vmul.f32 %v974, %v1000
    %v1018 = vmul.f32 %v975, %v1004
    %v1019 = vmul.f32 %v976, %v1000
    %v1020 = vmul.f32 %v977, %v1004
    %v1021 = vmul.f32 %v978, %v1000
    %v1022 = vmul.f32 %v979, %v1004
    %v1023 = vmul.f32 %v980, %v1000
    %v1024 = vmul.f32 %v981, %v1004
    %v1025 = vmul.f32 %v982, %v1000
    %v1026 = vmul.f32 %v983, %v1004
    %v1027 = vmul.f32 %v984, %v1000
    %v1028 = vmul.f32 %v985, %v1004
    %v1029 = vmul.f32 %v986, %v1000
    %v1030 = vmul.f32 %v987, %v1004
    %v1031 = vmul.f32 %v988, %v1000
    %v1032 = vmul.f32 %v989, %v1004
    %v1033 = vmul.f32 %v990, %v1000
    %v1034 = vmul.f32 %v991, %v1004
    %v1035 = vmul.f32 %v992, %v1000
    %v1036 = vmul.f32 %v993, %v1004
    %v1037 = vmul.f32 %v994, %v1000
    %v1038 = vmul.f32 %v995, %v1004
    %v1039 = vadd.f32 %v1007, 0.0
    %v1040 = vadd.f32 %v1008, 0.0
    %v1041 = vadd.f32 %v1009, 0.0
    %v1042 = vadd.f32 %v1010, 0.0
    %v1043 = vadd.f32 %v1011, 0.0
    %v1044 = vadd.f32 %v1012, 0.0
    %v1045 = vadd.f32 %v1013, 0.0
    %v1046 = vadd.f32 %v1014, 0.0
    %v1047 = vadd.f32 %v1015, 0.0
    %v1048 = vadd.f32 %v1016, 0.0
    %v1049 = vadd.f32 %v1017, 0.0
    %v1050 = vadd.f32 %v1018, 0.0
    %v1051 = vadd.f32 %v1019, 0.0
    %v1052 = vadd.f32 %v1020, 0.0
    %v1053 = vadd.f32 %v1021, 0.0
    %v1054 = vadd.f32 %v1022, 0.0
    %v1055 = vadd.f32 %v1023, 0.0
    %v1056 = vadd.f32 %v1024, 0.0
    %v1057 = vadd.f32 %v1025, 0.0
    %v1058 = vadd.f32 %v1026, 0.0
    %v1059 = vadd.f32 %v1027, 0.0
    %v1060 = vadd.f32 %v1028, 0.0
    %v1061 = vadd.f32 %v1029, 0.0
    %v1062 = vadd.f32 %v1030, 0.0
    %v1063 = vadd.f32 %v1031, 0.0
    %v1064 = vadd.f32 %v1032, 0.0
    %v1065 = vadd.f32 %v1033, 0.0
    %v1066 = vadd.f32 %v1034, 0.0
    %v1067 = vadd.f32 %v1035, 0.0
    %v1068 = vadd.f32 %v1036, 0.0
    %v1069 = vadd.f32 %v1037, 0.0
    %v1070 = vadd.f32 %v1038, 0.0
    %v1071 = vld [vmem:[#allocation2] sm:$0xfe]
    %v1072 = vld [vmem:[#allocation2 + $0x8] sm:$0xfe]
    %v1073 = vld [vmem:[#allocation2 + $0x10] sm:$0x1]
    %v1074 = vld [vmem:[#allocation2 + $0x18] sm:$0x1]
    %v1075 = vld [vmem:[#allocation2 + $0x20] sm:$0xfe]
    %v1076 = vld [vmem:[#allocation2 + $0x28] sm:$0xfe]
    %v1077 = vld [vmem:[#allocation2 + $0x30] sm:$0x1]
    %v1078 = vld [vmem:[#allocation2 + $0x38] sm:$0x1]
    %v1079 = vld [vmem:[#allocation2 + $0x40] sm:$0xfe]
    %v1080 = vld [vmem:[#allocation2 + $0x48] sm:$0xfe]
    %v1081 = vld [vmem:[#allocation2 + $0x50] sm:$0x1]
    %v1082 = vld [vmem:[#allocation2 + $0x58] sm:$0x1]
    %v1083 = vld [vmem:[#allocation2 + $0x60] sm:$0xfe]
    %v1084 = vld [vmem:[#allocation2 + $0x68] sm:$0xfe]
    %v1085 = vld [vmem:[#allocation2 + $0x70] sm:$0x1]
    %v1086 = vld [vmem:[#allocation2 + $0x78] sm:$0x1]
    %v1087 = vld [vmem:[#allocation2 + $0x80] sm:$0xfe]
    %v1088 = vld [vmem:[#allocation2 + $0x88] sm:$0xfe]
    %v1089 = vld [vmem:[#allocation2 + $0x90] sm:$0x1]
    %v1090 = vld [vmem:[#allocation2 + $0x98] sm:$0x1]
    %v1091 = vld [vmem:[#allocation2 + $0xa0] sm:$0xfe]
    %v1092 = vld [vmem:[#allocation2 + $0xa8] sm:$0xfe]
    %v1093 = vld [vmem:[#allocation2 + $0xb0] sm:$0x1]
    %v1094 = vld [vmem:[#allocation2 + $0xb8] sm:$0x1]
    %v1095 = vld [vmem:[#allocation2 + $0xc0] sm:$0xfe]
    %v1096 = vld [vmem:[#allocation2 + $0xc8] sm:$0xfe]
    %v1097 = vld [vmem:[#allocation2 + $0xd0] sm:$0x1]
    %v1098 = vld [vmem:[#allocation2 + $0xd8] sm:$0x1]
    %v1099 = vld [vmem:[#allocation2 + $0xe0] sm:$0xfe]
    %v1100 = vld [vmem:[#allocation2 + $0xe8] sm:$0xfe]
    %v1101 = vld [vmem:[#allocation2 + $0xf0] sm:$0x1]
    %v1102 = vld [vmem:[#allocation2 + $0xf8] sm:$0x1]
    %v1103 = vld [vmem:[#allocation2 + $0x140] sm:$0xfe]
    %v1104 = vld [vmem:[#allocation2 + $0x148] sm:$0xfe]
    %v1105 = vld [vmem:[#allocation2 + $0x150] sm:$0x1]
    %v1106 = vld [vmem:[#allocation2 + $0x158] sm:$0x1]
    %v1107 = vld [vmem:[#allocation2 + $0x160] sm:$0xfe]
    %v1108 = vld [vmem:[#allocation2 + $0x168] sm:$0xfe]
    %v1109 = vld [vmem:[#allocation2 + $0x170] sm:$0x1]
    %v1110 = vld [vmem:[#allocation2 + $0x178] sm:$0x1]
    %v1111 = vld [vmem:[#allocation2 + $0x180] sm:$0xfe]
    %v1112 = vld [vmem:[#allocation2 + $0x188] sm:$0xfe]
    %v1113 = vld [vmem:[#allocation2 + $0x190] sm:$0x1]
    %v1114 = vld [vmem:[#allocation2 + $0x198] sm:$0x1]
    %v1115 = vld [vmem:[#allocation2 + $0x1a0] sm:$0xfe]
    %v1116 = vld [vmem:[#allocation2 + $0x1a8] sm:$0xfe]
    %v1117 = vld [vmem:[#allocation2 + $0x1b0] sm:$0x1]
    %v1118 = vld [vmem:[#allocation2 + $0x1b8] sm:$0x1]
    %v1119 = vld [vmem:[#allocation2 + $0x1c0] sm:$0xfe]
    %v1120 = vld [vmem:[#allocation2 + $0x1c8] sm:$0xfe]
    %v1121 = vld [vmem:[#allocation2 + $0x1d0] sm:$0x1]
    %v1122 = vld [vmem:[#allocation2 + $0x1d8] sm:$0x1]
    %v1123 = vld [vmem:[#allocation2 + $0x1e0] sm:$0xfe]
    %v1124 = vld [vmem:[#allocation2 + $0x1e8] sm:$0xfe]
    %v1125 = vld [vmem:[#allocation2 + $0x1f0] sm:$0x1]
    %v1126 = vld [vmem:[#allocation2 + $0x1f8] sm:$0x1]
    %v1127 = vld [vmem:[#allocation2 + $0x200] sm:$0xfe]
    %v1128 = vld [vmem:[#allocation2 + $0x208] sm:$0xfe]
    %v1129 = vld [vmem:[#allocation2 + $0x210] sm:$0x1]
    %v1130 = vld [vmem:[#allocation2 + $0x218] sm:$0x1]
    %v1131 = vld [vmem:[#allocation2 + $0x220] sm:$0xfe]
    %v1132 = vld [vmem:[#allocation2 + $0x228] sm:$0xfe]
    %v1133 = vld [vmem:[#allocation2 + $0x230] sm:$0x1]
    %v1134 = vld [vmem:[#allocation2 + $0x238] sm:$0x1]
    %v1136 = vlaneseq
    %v1137 = vshrl.u32 %v1136, 7
    %v1138 = vsub.s32 0, %v1137
    %v1139 = vrot.slane %v956, %v1138
    %v1140 = vlaneseq
    %v1141 = vshrl.u32 %v1140, 7
    %v1142 = vsub.s32 1, %v1141
    %v1143 = vrot.slane %v956, %v1142
    %v1146 = vmul.f32 %v1071, %v1139
    %v1147 = vmul.f32 %v1072, %v1143
    %v1148 = vmul.f32 %v1073, %v1139
    %v1149 = vmul.f32 %v1074, %v1143
    %v1150 = vmul.f32 %v1075, %v1139
    %v1151 = vmul.f32 %v1076, %v1143
    %v1152 = vmul.f32 %v1077, %v1139
    %v1153 = vmul.f32 %v1078, %v1143
    %v1154 = vmul.f32 %v1079, %v1139
    %v1155 = vmul.f32 %v1080, %v1143
    %v1156 = vmul.f32 %v1081, %v1139
    %v1157 = vmul.f32 %v1082, %v1143
    %v1158 = vmul.f32 %v1083, %v1139
    %v1159 = vmul.f32 %v1084, %v1143
    %v1160 = vmul.f32 %v1085, %v1139
    %v1161 = vmul.f32 %v1086, %v1143
    %v1162 = vmul.f32 %v1087, %v1139
    %v1163 = vmul.f32 %v1088, %v1143
    %v1164 = vmul.f32 %v1089, %v1139
    %v1165 = vmul.f32 %v1090, %v1143
    %v1166 = vmul.f32 %v1091, %v1139
    %v1167 = vmul.f32 %v1092, %v1143
    %v1168 = vmul.f32 %v1093, %v1139
    %v1169 = vmul.f32 %v1094, %v1143
    %v1170 = vmul.f32 %v1095, %v1139
    %v1171 = vmul.f32 %v1096, %v1143
    %v1172 = vmul.f32 %v1097, %v1139
    %v1173 = vmul.f32 %v1098, %v1143
    %v1174 = vmul.f32 %v1099, %v1139
    %v1175 = vmul.f32 %v1100, %v1143
    %v1176 = vmul.f32 %v1101, %v1139
    %v1177 = vmul.f32 %v1102, %v1143
    %v1178 = vmul.f32 %v1103, %v1139
    %v1179 = vmul.f32 %v1104, %v1143
    %v1180 = vmul.f32 %v1105, %v1139
    %v1181 = vmul.f32 %v1106, %v1143
    %v1182 = vmul.f32 %v1107, %v1139
    %v1183 = vmul.f32 %v1108, %v1143
    %v1184 = vmul.f32 %v1109, %v1139
    %v1185 = vmul.f32 %v1110, %v1143
    %v1186 = vmul.f32 %v1111, %v1139
    %v1187 = vmul.f32 %v1112, %v1143
    %v1188 = vmul.f32 %v1113, %v1139
    %v1189 = vmul.f32 %v1114, %v1143
    %v1190 = vmul.f32 %v1115, %v1139
    %v1191 = vmul.f32 %v1116, %v1143
    %v1192 = vmul.f32 %v1117, %v1139
    %v1193 = vmul.f32 %v1118, %v1143
    %v1194 = vmul.f32 %v1119, %v1139
    %v1195 = vmul.f32 %v1120, %v1143
    %v1196 = vmul.f32 %v1121, %v1139
    %v1197 = vmul.f32 %v1122, %v1143
    %v1198 = vmul.f32 %v1123, %v1139
    %v1199 = vmul.f32 %v1124, %v1143
    %v1200 = vmul.f32 %v1125, %v1139
    %v1201 = vmul.f32 %v1126, %v1143
    %v1202 = vmul.f32 %v1127, %v1139
    %v1203 = vmul.f32 %v1128, %v1143
    %v1204 = vmul.f32 %v1129, %v1139
    %v1205 = vmul.f32 %v1130, %v1143
    %v1206 = vmul.f32 %v1131, %v1139
    %v1207 = vmul.f32 %v1132, %v1143
    %v1208 = vmul.f32 %v1133, %v1139
    %v1209 = vmul.f32 %v1134, %v1143
    %vm1274 = vcmask 1046528
    %v1275 = vrot.slane %v1146, 1
    %v1276 = vrot.slane %v1148, 1
    %v1277 = vsel %vm1274, %v1275, %v1276
    %v1278 = vrot.slane %v1147, 1
    %v1279 = vrot.slane %v1149, 1
    %v1280 = vsel %vm1274, %v1278, %v1279
    %v1281 = vrot.slane %v1150, 1
    %v1282 = vrot.slane %v1152, 1
    %v1283 = vsel %vm1274, %v1281, %v1282
    %v1284 = vrot.slane %v1151, 1
    %v1285 = vrot.slane %v1153, 1
    %v1286 = vsel %vm1274, %v1284, %v1285
    %v1287 = vrot.slane %v1154, 1
    %v1288 = vrot.slane %v1156, 1
    %v1289 = vsel %vm1274, %v1287, %v1288
    %v1290 = vrot.slane %v1155, 1
    %v1291 = vrot.slane %v1157, 1
    %v1292 = vsel %vm1274, %v1290, %v1291
    %v1293 = vrot.slane %v1158, 1
    %v1294 = vrot.slane %v1160, 1
    %v1295 = vsel %vm1274, %v1293, %v1294
    %v1296 = vrot.slane %v1159, 1
    %v1297 = vrot.slane %v1161, 1
    %v1298 = vsel %vm1274, %v1296, %v1297
    %v1299 = vrot.slane %v1162, 1
    %v1300 = vrot.slane %v1164, 1
    %v1301 = vsel %vm1274, %v1299, %v1300
    %v1302 = vrot.slane %v1163, 1
    %v1303 = vrot.slane %v1165, 1
    %v1304 = vsel %vm1274, %v1302, %v1303
    %v1305 = vrot.slane %v1166, 1
    %v1306 = vrot.slane %v1168, 1
    %v1307 = vsel %vm1274, %v1305, %v1306
    %v1308 = vrot.slane %v1167, 1
    %v1309 = vrot.slane %v1169, 1
    %v1310 = vsel %vm1274, %v1308, %v1309
    %v1311 = vrot.slane %v1170, 1
    %v1312 = vrot.slane %v1172, 1
    %v1313 = vsel %vm1274, %v1311, %v1312
    %v1314 = vrot.slane %v1171, 1
    %v1315 = vrot.slane %v1173, 1
    %v1316 = vsel %vm1274, %v1314, %v1315
    %v1317 = vrot.slane %v1174, 1
    %v1318 = vrot.slane %v1176, 1
    %v1319 = vsel %vm1274, %v1317, %v1318
    %v1320 = vrot.slane %v1175, 1
    %v1321 = vrot.slane %v1177, 1
    %v1322 = vsel %vm1274, %v1320, %v1321
    %v1323 = vrot.slane %v1178, 1
    %v1324 = vrot.slane %v1180, 1
    %v1325 = vsel %vm1274, %v1323, %v1324
    %v1326 = vrot.slane %v1179, 1
    %v1327 = vrot.slane %v1181, 1
    %v1328 = vsel %vm1274, %v1326, %v1327
    %v1329 = vrot.slane %v1182, 1
    %v1330 = vrot.slane %v1184, 1
    %v1331 = vsel %vm1274, %v1329, %v1330
    %v1332 = vrot.slane %v1183, 1
    %v1333 = vrot.slane %v1185, 1
    %v1334 = vsel %vm1274, %v1332, %v1333
    %v1335 = vrot.slane %v1186, 1
    %v1336 = vrot.slane %v1188, 1
    %v1337 = vsel %vm1274, %v1335, %v1336
    %v1338 = vrot.slane %v1187, 1
    %v1339 = vrot.slane %v1189, 1
    %v1340 = vsel %vm1274, %v1338, %v1339
    %v1341 = vrot.slane %v1190, 1
    %v1342 = vrot.slane %v1192, 1
    %v1343 = vsel %vm1274, %v1341, %v1342
    %v1344 = vrot.slane %v1191, 1
    %v1345 = vrot.slane %v1193, 1
    %v1346 = vsel %vm1274, %v1344, %v1345
    %v1347 = vrot.slane %v1194, 1
    %v1348 = vrot.slane %v1196, 1
    %v1349 = vsel %vm1274, %v1347, %v1348
    %v1350 = vrot.slane %v1195, 1
    %v1351 = vrot.slane %v1197, 1
    %v1352 = vsel %vm1274, %v1350, %v1351
    %v1353 = vrot.slane %v1198, 1
    %v1354 = vrot.slane %v1200, 1
    %v1355 = vsel %vm1274, %v1353, %v1354
    %v1356 = vrot.slane %v1199, 1
    %v1357 = vrot.slane %v1201, 1
    %v1358 = vsel %vm1274, %v1356, %v1357
    %v1359 = vrot.slane %v1202, 1
    %v1360 = vrot.slane %v1204, 1
    %v1361 = vsel %vm1274, %v1359, %v1360
    %v1362 = vrot.slane %v1203, 1
    %v1363 = vrot.slane %v1205, 1
    %v1364 = vsel %vm1274, %v1362, %v1363
    %v1365 = vrot.slane %v1206, 1
    %v1366 = vrot.slane %v1208, 1
    %v1367 = vsel %vm1274, %v1365, %v1366
    %v1368 = vrot.slane %v1207, 1
    %v1369 = vrot.slane %v1209, 1
    %v1370 = vsel %vm1274, %v1368, %v1369
    %v1403 = vadd.f32 %v1039, %v1277
    %v1404 = vadd.f32 %v1040, %v1280
    %v1405 = vadd.f32 %v1041, %v1283
    %v1406 = vadd.f32 %v1042, %v1286
    %v1407 = vadd.f32 %v1043, %v1289
    %v1408 = vadd.f32 %v1044, %v1292
    %v1409 = vadd.f32 %v1045, %v1295
    %v1410 = vadd.f32 %v1046, %v1298
    %v1411 = vadd.f32 %v1047, %v1301
    %v1412 = vadd.f32 %v1048, %v1304
    %v1413 = vadd.f32 %v1049, %v1307
    %v1414 = vadd.f32 %v1050, %v1310
    %v1415 = vadd.f32 %v1051, %v1313
    %v1416 = vadd.f32 %v1052, %v1316
    %v1417 = vadd.f32 %v1053, %v1319
    %v1418 = vadd.f32 %v1054, %v1322
    %v1419 = vadd.f32 %v1055, %v1325
    %v1420 = vadd.f32 %v1056, %v1328
    %v1421 = vadd.f32 %v1057, %v1331
    %v1422 = vadd.f32 %v1058, %v1334
    %v1423 = vadd.f32 %v1059, %v1337
    %v1424 = vadd.f32 %v1060, %v1340
    %v1425 = vadd.f32 %v1061, %v1343
    %v1426 = vadd.f32 %v1062, %v1346
    %v1427 = vadd.f32 %v1063, %v1349
    %v1428 = vadd.f32 %v1064, %v1352
    %v1429 = vadd.f32 %v1065, %v1355
    %v1430 = vadd.f32 %v1066, %v1358
    %v1431 = vadd.f32 %v1067, %v1361
    %v1432 = vadd.f32 %v1068, %v1364
    %v1433 = vadd.f32 %v1069, %v1367
    %v1434 = vadd.f32 %v1070, %v1370
    %v1435 = vld [vmem:[#allocation2] sm:$0xfc]
    %v1436 = vld [vmem:[#allocation2 + $0x8] sm:$0xfc]
    %v1437 = vld [vmem:[#allocation2 + $0x10] sm:$0x3]
    %v1438 = vld [vmem:[#allocation2 + $0x18] sm:$0x3]
    %v1439 = vld [vmem:[#allocation2 + $0x20] sm:$0xfc]
    %v1440 = vld [vmem:[#allocation2 + $0x28] sm:$0xfc]
    %v1441 = vld [vmem:[#allocation2 + $0x30] sm:$0x3]
    %v1442 = vld [vmem:[#allocation2 + $0x38] sm:$0x3]
    %v1443 = vld [vmem:[#allocation2 + $0x40] sm:$0xfc]
    %v1444 = vld [vmem:[#allocation2 + $0x48] sm:$0xfc]
    %v1445 = vld [vmem:[#allocation2 + $0x50] sm:$0x3]
    %v1446 = vld [vmem:[#allocation2 + $0x58] sm:$0x3]
    %v1447 = vld [vmem:[#allocation2 + $0x60] sm:$0xfc]
    %v1448 = vld [vmem:[#allocation2 + $0x68] sm:$0xfc]
    %v1449 = vld [vmem:[#allocation2 + $0x70] sm:$0x3]
    %v1450 = vld [vmem:[#allocation2 + $0x78] sm:$0x3]
    %v1451 = vld [vmem:[#allocation2 + $0x80] sm:$0xfc]
    %v1452 = vld [vmem:[#allocation2 + $0x88] sm:$0xfc]
    %v1453 = vld [vmem:[#allocation2 + $0x90] sm:$0x3]
    %v1454 = vld [vmem:[#allocation2 + $0x98] sm:$0x3]
    %v1455 = vld [vmem:[#allocation2 + $0xa0] sm:$0xfc]
    %v1456 = vld [vmem:[#allocation2 + $0xa8] sm:$0xfc]
    %v1457 = vld [vmem:[#allocation2 + $0xb0] sm:$0x3]
    %v1458 = vld [vmem:[#allocation2 + $0xb8] sm:$0x3]
    %v1459 = vld [vmem:[#allocation2 + $0xc0] sm:$0xfc]
    %v1460 = vld [vmem:[#allocation2 + $0xc8] sm:$0xfc]
    %v1461 = vld [vmem:[#allocation2 + $0xd0] sm:$0x3]
    %v1462 = vld [vmem:[#allocation2 + $0xd8] sm:$0x3]
    %v1463 = vld [vmem:[#allocation2 + $0xe0] sm:$0xfc]
    %v1464 = vld [vmem:[#allocation2 + $0xe8] sm:$0xfc]
    %v1465 = vld [vmem:[#allocation2 + $0xf0] sm:$0x3]
    %v1466 = vld [vmem:[#allocation2 + $0xf8] sm:$0x3]
    %v1467 = vld [vmem:[#allocation2 + $0x140] sm:$0xfc]
    %v1468 = vld [vmem:[#allocation2 + $0x148] sm:$0xfc]
    %v1469 = vld [vmem:[#allocation2 + $0x150] sm:$0x3]
    %v1470 = vld [vmem:[#allocation2 + $0x158] sm:$0x3]
    %v1471 = vld [vmem:[#allocation2 + $0x160] sm:$0xfc]
    %v1472 = vld [vmem:[#allocation2 + $0x168] sm:$0xfc]
    %v1473 = vld [vmem:[#allocation2 + $0x170] sm:$0x3]
    %v1474 = vld [vmem:[#allocation2 + $0x178] sm:$0x3]
    %v1475 = vld [vmem:[#allocation2 + $0x180] sm:$0xfc]
    %v1476 = vld [vmem:[#allocation2 + $0x188] sm:$0xfc]
    %v1477 = vld [vmem:[#allocation2 + $0x190] sm:$0x3]
    %v1478 = vld [vmem:[#allocation2 + $0x198] sm:$0x3]
    %v1479 = vld [vmem:[#allocation2 + $0x1a0] sm:$0xfc]
    %v1480 = vld [vmem:[#allocation2 + $0x1a8] sm:$0xfc]
    %v1481 = vld [vmem:[#allocation2 + $0x1b0] sm:$0x3]
    %v1482 = vld [vmem:[#allocation2 + $0x1b8] sm:$0x3]
    %v1483 = vld [vmem:[#allocation2 + $0x1c0] sm:$0xfc]
    %v1484 = vld [vmem:[#allocation2 + $0x1c8] sm:$0xfc]
    %v1485 = vld [vmem:[#allocation2 + $0x1d0] sm:$0x3]
    %v1486 = vld [vmem:[#allocation2 + $0x1d8] sm:$0x3]
    %v1487 = vld [vmem:[#allocation2 + $0x1e0] sm:$0xfc]
    %v1488 = vld [vmem:[#allocation2 + $0x1e8] sm:$0xfc]
    %v1489 = vld [vmem:[#allocation2 + $0x1f0] sm:$0x3]
    %v1490 = vld [vmem:[#allocation2 + $0x1f8] sm:$0x3]
    %v1491 = vld [vmem:[#allocation2 + $0x200] sm:$0xfc]
    %v1492 = vld [vmem:[#allocation2 + $0x208] sm:$0xfc]
    %v1493 = vld [vmem:[#allocation2 + $0x210] sm:$0x3]
    %v1494 = vld [vmem:[#allocation2 + $0x218] sm:$0x3]
    %v1495 = vld [vmem:[#allocation2 + $0x220] sm:$0xfc]
    %v1496 = vld [vmem:[#allocation2 + $0x228] sm:$0xfc]
    %v1497 = vld [vmem:[#allocation2 + $0x230] sm:$0x3]
    %v1498 = vld [vmem:[#allocation2 + $0x238] sm:$0x3]
    %v1500 = vlaneseq
    %v1501 = vshrl.u32 %v1500, 7
    %v1502 = vsub.s32 0, %v1501
    %v1503 = vrot.slane %v957, %v1502
    %v1504 = vlaneseq
    %v1505 = vshrl.u32 %v1504, 7
    %v1506 = vsub.s32 1, %v1505
    %v1507 = vrot.slane %v957, %v1506
    %v1510 = vmul.f32 %v1435, %v1503
    %v1511 = vmul.f32 %v1436, %v1507
    %v1512 = vmul.f32 %v1437, %v1503
    %v1513 = vmul.f32 %v1438, %v1507
    %v1514 = vmul.f32 %v1439, %v1503
    %v1515 = vmul.f32 %v1440, %v1507
    %v1516 = vmul.f32 %v1441, %v1503
    %v1517 = vmul.f32 %v1442, %v1507
    %v1518 = vmul.f32 %v1443, %v1503
    %v1519 = vmul.f32 %v1444, %v1507
    %v1520 = vmul.f32 %v1445, %v1503
    %v1521 = vmul.f32 %v1446, %v1507
    %v1522 = vmul.f32 %v1447, %v1503
    %v1523 = vmul.f32 %v1448, %v1507
    %v1524 = vmul.f32 %v1449, %v1503
    %v1525 = vmul.f32 %v1450, %v1507
    %v1526 = vmul.f32 %v1451, %v1503
    %v1527 = vmul.f32 %v1452, %v1507
    %v1528 = vmul.f32 %v1453, %v1503
    %v1529 = vmul.f32 %v1454, %v1507
    %v1530 = vmul.f32 %v1455, %v1503
    %v1531 = vmul.f32 %v1456, %v1507
    %v1532 = vmul.f32 %v1457, %v1503
    %v1533 = vmul.f32 %v1458, %v1507
    %v1534 = vmul.f32 %v1459, %v1503
    %v1535 = vmul.f32 %v1460, %v1507
    %v1536 = vmul.f32 %v1461, %v1503
    %v1537 = vmul.f32 %v1462, %v1507
    %v1538 = vmul.f32 %v1463, %v1503
    %v1539 = vmul.f32 %v1464, %v1507
    %v1540 = vmul.f32 %v1465, %v1503
    %v1541 = vmul.f32 %v1466, %v1507
    %v1542 = vmul.f32 %v1467, %v1503
    %v1543 = vmul.f32 %v1468, %v1507
    %v1544 = vmul.f32 %v1469, %v1503
    %v1545 = vmul.f32 %v1470, %v1507
    %v1546 = vmul.f32 %v1471, %v1503
    %v1547 = vmul.f32 %v1472, %v1507
    %v1548 = vmul.f32 %v1473, %v1503
    %v1549 = vmul.f32 %v1474, %v1507
    %v1550 = vmul.f32 %v1475, %v1503
    %v1551 = vmul.f32 %v1476, %v1507
    %v1552 = vmul.f32 %v1477, %v1503
    %v1553 = vmul.f32 %v1478, %v1507
    %v1554 = vmul.f32 %v1479, %v1503
    %v1555 = vmul.f32 %v1480, %v1507
    %v1556 = vmul.f32 %v1481, %v1503
    %v1557 = vmul.f32 %v1482, %v1507
    %v1558 = vmul.f32 %v1483, %v1503
    %v1559 = vmul.f32 %v1484, %v1507
    %v1560 = vmul.f32 %v1485, %v1503
    %v1561 = vmul.f32 %v1486, %v1507
    %v1562 = vmul.f32 %v1487, %v1503
    %v1563 = vmul.f32 %v1488, %v1507
    %v1564 = vmul.f32 %v1489, %v1503
    %v1565 = vmul.f32 %v1490, %v1507
    %v1566 = vmul.f32 %v1491, %v1503
    %v1567 = vmul.f32 %v1492, %v1507
    %v1568 = vmul.f32 %v1493, %v1503
    %v1569 = vmul.f32 %v1494, %v1507
    %v1570 = vmul.f32 %v1495, %v1503
    %v1571 = vmul.f32 %v1496, %v1507
    %v1572 = vmul.f32 %v1497, %v1503
    %v1573 = vmul.f32 %v1498, %v1507
    %vm1638 = vcmask 1045504
    %v1639 = vrot.slane %v1510, 2
    %v1640 = vrot.slane %v1512, 2
    %v1641 = vsel %vm1638, %v1639, %v1640
    %v1642 = vrot.slane %v1511, 2
    %v1643 = vrot.slane %v1513, 2
    %v1644 = vsel %vm1638, %v1642, %v1643
    %v1645 = vrot.slane %v1514, 2
    %v1646 = vrot.slane %v1516, 2
    %v1647 = vsel %vm1638, %v1645, %v1646
    %v1648 = vrot.slane %v1515, 2
    %v1649 = vrot.slane %v1517, 2
    %v1650 = vsel %vm1638, %v1648, %v1649
    %v1651 = vrot.slane %v1518, 2
    %v1652 = vrot.slane %v1520, 2
    %v1653 = vsel %vm1638, %v1651, %v1652
    %v1654 = vrot.slane %v1519, 2
    %v1655 = vrot.slane %v1521, 2
    %v1656 = vsel %vm1638, %v1654, %v1655
    %v1657 = vrot.slane %v1522, 2
    %v1658 = vrot.slane %v1524, 2
    %v1659 = vsel %vm1638, %v1657, %v1658
    %v1660 = vrot.slane %v1523, 2
    %v1661 = vrot.slane %v1525, 2
    %v1662 = vsel %vm1638, %v1660, %v1661
    %v1663 = vrot.slane %v1526, 2
    %v1664 = vrot.slane %v1528, 2
    %v1665 = vsel %vm1638, %v1663, %v1664
    %v1666 = vrot.slane %v1527, 2
    %v1667 = vrot.slane %v1529, 2
    %v1668 = vsel %vm1638, %v1666, %v1667
    %v1669 = vrot.slane %v1530, 2
    %v1670 = vrot.slane %v1532, 2
    %v1671 = vsel %vm1638, %v1669, %v1670
    %v1672 = vrot.slane %v1531, 2
    %v1673 = vrot.slane %v1533, 2
    %v1674 = vsel %vm1638, %v1672, %v1673
    %v1675 = vrot.slane %v1534, 2
    %v1676 = vrot.slane %v1536, 2
    %v1677 = vsel %vm1638, %v1675, %v1676
    %v1678 = vrot.slane %v1535, 2
    %v1679 = vrot.slane %v1537, 2
    %v1680 = vsel %vm1638, %v1678, %v1679
    %v1681 = vrot.slane %v1538, 2
    %v1682 = vrot.slane %v1540, 2
    %v1683 = vsel %vm1638, %v1681, %v1682
    %v1684 = vrot.slane %v1539, 2
    %v1685 = vrot.slane %v1541, 2
    %v1686 = vsel %vm1638, %v1684, %v1685
    %v1687 = vrot.slane %v1542, 2
    %v1688 = vrot.slane %v1544, 2
    %v1689 = vsel %vm1638, %v1687, %v1688
    %v1690 = vrot.slane %v1543, 2
    %v1691 = vrot.slane %v1545, 2
    %v1692 = vsel %vm1638, %v1690, %v1691
    %v1693 = vrot.slane %v1546, 2
    %v1694 = vrot.slane %v1548, 2
    %v1695 = vsel %vm1638, %v1693, %v1694
    %v1696 = vrot.slane %v1547, 2
    %v1697 = vrot.slane %v1549, 2
    %v1698 = vsel %vm1638, %v1696, %v1697
    %v1699 = vrot.slane %v1550, 2
    %v1700 = vrot.slane %v1552, 2
    %v1701 = vsel %vm1638, %v1699, %v1700
    %v1702 = vrot.slane %v1551, 2
    %v1703 = vrot.slane %v1553, 2
    %v1704 = vsel %vm1638, %v1702, %v1703
    %v1705 = vrot.slane %v1554, 2
    %v1706 = vrot.slane %v1556, 2
    %v1707 = vsel %vm1638, %v1705, %v1706
    %v1708 = vrot.slane %v1555, 2
    %v1709 = vrot.slane %v1557, 2
    %v1710 = vsel %vm1638, %v1708, %v1709
    %v1711 = vrot.slane %v1558, 2
    %v1712 = vrot.slane %v1560, 2
    %v1713 = vsel %vm1638, %v1711, %v1712
    %v1714 = vrot.slane %v1559, 2
    %v1715 = vrot.slane %v1561, 2
    %v1716 = vsel %vm1638, %v1714, %v1715
    %v1717 = vrot.slane %v1562, 2
    %v1718 = vrot.slane %v1564, 2
    %v1719 = vsel %vm1638, %v1717, %v1718
    %v1720 = vrot.slane %v1563, 2
    %v1721 = vrot.slane %v1565, 2
    %v1722 = vsel %vm1638, %v1720, %v1721
    %v1723 = vrot.slane %v1566, 2
    %v1724 = vrot.slane %v1568, 2
    %v1725 = vsel %vm1638, %v1723, %v1724
    %v1726 = vrot.slane %v1567, 2
    %v1727 = vrot.slane %v1569, 2
    %v1728 = vsel %vm1638, %v1726, %v1727
    %v1729 = vrot.slane %v1570, 2
    %v1730 = vrot.slane %v1572, 2
    %v1731 = vsel %vm1638, %v1729, %v1730
    %v1732 = vrot.slane %v1571, 2
    %v1733 = vrot.slane %v1573, 2
    %v1734 = vsel %vm1638, %v1732, %v1733
    %v1767 = vadd.f32 %v1403, %v1641
    %v1768 = vadd.f32 %v1404, %v1644
    %v1769 = vadd.f32 %v1405, %v1647
    %v1770 = vadd.f32 %v1406, %v1650
    %v1771 = vadd.f32 %v1407, %v1653
    %v1772 = vadd.f32 %v1408, %v1656
    %v1773 = vadd.f32 %v1409, %v1659
    %v1774 = vadd.f32 %v1410, %v1662
    %v1775 = vadd.f32 %v1411, %v1665
    %v1776 = vadd.f32 %v1412, %v1668
    %v1777 = vadd.f32 %v1413, %v1671
    %v1778 = vadd.f32 %v1414, %v1674
    %v1779 = vadd.f32 %v1415, %v1677
    %v1780 = vadd.f32 %v1416, %v1680
    %v1781 = vadd.f32 %v1417, %v1683
    %v1782 = vadd.f32 %v1418, %v1686
    %v1783 = vadd.f32 %v1419, %v1689
    %v1784 = vadd.f32 %v1420, %v1692
    %v1785 = vadd.f32 %v1421, %v1695
    %v1786 = vadd.f32 %v1422, %v1698
    %v1787 = vadd.f32 %v1423, %v1701
    %v1788 = vadd.f32 %v1424, %v1704
    %v1789 = vadd.f32 %v1425, %v1707
    %v1790 = vadd.f32 %v1426, %v1710
    %v1791 = vadd.f32 %v1427, %v1713
    %v1792 = vadd.f32 %v1428, %v1716
    %v1793 = vadd.f32 %v1429, %v1719
    %v1794 = vadd.f32 %v1430, %v1722
    %v1795 = vadd.f32 %v1431, %v1725
    %v1796 = vadd.f32 %v1432, %v1728
    %v1797 = vadd.f32 %v1433, %v1731
    %v1798 = vadd.f32 %v1434, %v1734
    %v1799 = vld [vmem:[%s353] sm:$0xff]
    %v1800 = vld [vmem:[%s353 + $0x8] sm:$0xff]
    %v1801 = vld [vmem:[%s353 + $0x20] sm:$0xff]
    %v1802 = vld [vmem:[%s353 + $0x28] sm:$0xff]
    %v1803 = vld [vmem:[%s353 + $0x40] sm:$0xff]
    %v1804 = vld [vmem:[%s353 + $0x48] sm:$0xff]
    %v1805 = vld [vmem:[%s353 + $0x60] sm:$0xff]
    %v1806 = vld [vmem:[%s353 + $0x68] sm:$0xff]
    %v1807 = vld [vmem:[%s353 + $0x80] sm:$0xff]
    %v1808 = vld [vmem:[%s353 + $0x88] sm:$0xff]
    %v1809 = vld [vmem:[%s353 + $0xa0] sm:$0xff]
    %v1810 = vld [vmem:[%s353 + $0xa8] sm:$0xff]
    %v1811 = vld [vmem:[%s353 + $0xc0] sm:$0xff]
    %v1812 = vld [vmem:[%s353 + $0xc8] sm:$0xff]
    %v1813 = vld [vmem:[%s353 + $0xe0] sm:$0xff]
    %v1814 = vld [vmem:[%s353 + $0xe8] sm:$0xff]
    %v1815 = vld [vmem:[%s353 + $0x140] sm:$0xff]
    %v1816 = vld [vmem:[%s353 + $0x148] sm:$0xff]
    %v1817 = vld [vmem:[%s353 + $0x160] sm:$0xff]
    %v1818 = vld [vmem:[%s353 + $0x168] sm:$0xff]
    %v1819 = vld [vmem:[%s353 + $0x180] sm:$0xff]
    %v1820 = vld [vmem:[%s353 + $0x188] sm:$0xff]
    %v1821 = vld [vmem:[%s353 + $0x1a0] sm:$0xff]
    %v1822 = vld [vmem:[%s353 + $0x1a8] sm:$0xff]
    %v1823 = vld [vmem:[%s353 + $0x1c0] sm:$0xff]
    %v1824 = vld [vmem:[%s353 + $0x1c8] sm:$0xff]
    %v1825 = vld [vmem:[%s353 + $0x1e0] sm:$0xff]
    %v1826 = vld [vmem:[%s353 + $0x1e8] sm:$0xff]
    %v1827 = vld [vmem:[%s353 + $0x200] sm:$0xff]
    %v1828 = vld [vmem:[%s353 + $0x208] sm:$0xff]
    %v1829 = vld [vmem:[%s353 + $0x220] sm:$0xff]
    %v1830 = vld [vmem:[%s353 + $0x228] sm:$0xff]
    %v1832 = vlaneseq
    %v1833 = vshrl.u32 %v1832, 7
    %v1834 = vsub.s32 0, %v1833
    %v1835 = vrot.slane %v958, %v1834
    %v1836 = vlaneseq
    %v1837 = vshrl.u32 %v1836, 7
    %v1838 = vsub.s32 1, %v1837
    %v1839 = vrot.slane %v958, %v1838
    %v1842 = vmul.f32 %v1799, %v1835
    %v1843 = vmul.f32 %v1800, %v1839
    %v1844 = vmul.f32 %v1801, %v1835
    %v1845 = vmul.f32 %v1802, %v1839
    %v1846 = vmul.f32 %v1803, %v1835
    %v1847 = vmul.f32 %v1804, %v1839
    %v1848 = vmul.f32 %v1805, %v1835
    %v1849 = vmul.f32 %v1806, %v1839
    %v1850 = vmul.f32 %v1807, %v1835
    %v1851 = vmul.f32 %v1808, %v1839
    %v1852 = vmul.f32 %v1809, %v1835
    %v1853 = vmul.f32 %v1810, %v1839
    %v1854 = vmul.f32 %v1811, %v1835
    %v1855 = vmul.f32 %v1812, %v1839
    %v1856 = vmul.f32 %v1813, %v1835
    %v1857 = vmul.f32 %v1814, %v1839
    %v1858 = vmul.f32 %v1815, %v1835
    %v1859 = vmul.f32 %v1816, %v1839
    %v1860 = vmul.f32 %v1817, %v1835
    %v1861 = vmul.f32 %v1818, %v1839
    %v1862 = vmul.f32 %v1819, %v1835
    %v1863 = vmul.f32 %v1820, %v1839
    %v1864 = vmul.f32 %v1821, %v1835
    %v1865 = vmul.f32 %v1822, %v1839
    %v1866 = vmul.f32 %v1823, %v1835
    %v1867 = vmul.f32 %v1824, %v1839
    %v1868 = vmul.f32 %v1825, %v1835
    %v1869 = vmul.f32 %v1826, %v1839
    %v1870 = vmul.f32 %v1827, %v1835
    %v1871 = vmul.f32 %v1828, %v1839
    %v1872 = vmul.f32 %v1829, %v1835
    %v1873 = vmul.f32 %v1830, %v1839
    %v1874 = vadd.f32 %v1767, %v1842
    %v1875 = vadd.f32 %v1768, %v1843
    %v1876 = vadd.f32 %v1769, %v1844
    %v1877 = vadd.f32 %v1770, %v1845
    %v1878 = vadd.f32 %v1771, %v1846
    %v1879 = vadd.f32 %v1772, %v1847
    %v1880 = vadd.f32 %v1773, %v1848
    %v1881 = vadd.f32 %v1774, %v1849
    %v1882 = vadd.f32 %v1775, %v1850
    %v1883 = vadd.f32 %v1776, %v1851
    %v1884 = vadd.f32 %v1777, %v1852
    %v1885 = vadd.f32 %v1778, %v1853
    %v1886 = vadd.f32 %v1779, %v1854
    %v1887 = vadd.f32 %v1780, %v1855
    %v1888 = vadd.f32 %v1781, %v1856
    %v1889 = vadd.f32 %v1782, %v1857
    %v1890 = vadd.f32 %v1783, %v1858
    %v1891 = vadd.f32 %v1784, %v1859
    %v1892 = vadd.f32 %v1785, %v1860
    %v1893 = vadd.f32 %v1786, %v1861
    %v1894 = vadd.f32 %v1787, %v1862
    %v1895 = vadd.f32 %v1788, %v1863
    %v1896 = vadd.f32 %v1789, %v1864
    %v1897 = vadd.f32 %v1790, %v1865
    %v1898 = vadd.f32 %v1791, %v1866
    %v1899 = vadd.f32 %v1792, %v1867
    %v1900 = vadd.f32 %v1793, %v1868
    %v1901 = vadd.f32 %v1794, %v1869
    %v1902 = vadd.f32 %v1795, %v1870
    %v1903 = vadd.f32 %v1796, %v1871
    %v1904 = vadd.f32 %v1797, %v1872
    %v1905 = vadd.f32 %v1798, %v1873
    %v1906 = vld [vmem:[%s353] sm:$0xfe]
    %v1907 = vld [vmem:[%s353 + $0x8] sm:$0xfe]
    %v1908 = vld [vmem:[%s353 + $0x10] sm:$0x1]
    %v1909 = vld [vmem:[%s353 + $0x18] sm:$0x1]
    %v1910 = vld [vmem:[%s353 + $0x20] sm:$0xfe]
    %v1911 = vld [vmem:[%s353 + $0x28] sm:$0xfe]
    %v1912 = vld [vmem:[%s353 + $0x30] sm:$0x1]
    %v1913 = vld [vmem:[%s353 + $0x38] sm:$0x1]
    %v1914 = vld [vmem:[%s353 + $0x40] sm:$0xfe]
    %v1915 = vld [vmem:[%s353 + $0x48] sm:$0xfe]
    %v1916 = vld [vmem:[%s353 + $0x50] sm:$0x1]
    %v1917 = vld [vmem:[%s353 + $0x58] sm:$0x1]
    %v1918 = vld [vmem:[%s353 + $0x60] sm:$0xfe]
    %v1919 = vld [vmem:[%s353 + $0x68] sm:$0xfe]
    %v1920 = vld [vmem:[%s353 + $0x70] sm:$0x1]
    %v1921 = vld [vmem:[%s353 + $0x78] sm:$0x1]
    %v1922 = vld [vmem:[%s353 + $0x80] sm:$0xfe]
    %v1923 = vld [vmem:[%s353 + $0x88] sm:$0xfe]
    %v1924 = vld [vmem:[%s353 + $0x90] sm:$0x1]
    %v1925 = vld [vmem:[%s353 + $0x98] sm:$0x1]
    %v1926 = vld [vmem:[%s353 + $0xa0] sm:$0xfe]
    %v1927 = vld [vmem:[%s353 + $0xa8] sm:$0xfe]
    %v1928 = vld [vmem:[%s353 + $0xb0] sm:$0x1]
    %v1929 = vld [vmem:[%s353 + $0xb8] sm:$0x1]
    %v1930 = vld [vmem:[%s353 + $0xc0] sm:$0xfe]
    %v1931 = vld [vmem:[%s353 + $0xc8] sm:$0xfe]
    %v1932 = vld [vmem:[%s353 + $0xd0] sm:$0x1]
    %v1933 = vld [vmem:[%s353 + $0xd8] sm:$0x1]
    %v1934 = vld [vmem:[%s353 + $0xe0] sm:$0xfe]
    %v1935 = vld [vmem:[%s353 + $0xe8] sm:$0xfe]
    %v1936 = vld [vmem:[%s353 + $0xf0] sm:$0x1]
    %v1937 = vld [vmem:[%s353 + $0xf8] sm:$0x1]
    %v1938 = vld [vmem:[%s353 + $0x140] sm:$0xfe]
    %v1939 = vld [vmem:[%s353 + $0x148] sm:$0xfe]
    %v1940 = vld [vmem:[%s353 + $0x150] sm:$0x1]
    %v1941 = vld [vmem:[%s353 + $0x158] sm:$0x1]
    %v1942 = vld [vmem:[%s353 + $0x160] sm:$0xfe]
    %v1943 = vld [vmem:[%s353 + $0x168] sm:$0xfe]
    %v1944 = vld [vmem:[%s353 + $0x170] sm:$0x1]
    %v1945 = vld [vmem:[%s353 + $0x178] sm:$0x1]
    %v1946 = vld [vmem:[%s353 + $0x180] sm:$0xfe]
    %v1947 = vld [vmem:[%s353 + $0x188] sm:$0xfe]
    %v1948 = vld [vmem:[%s353 + $0x190] sm:$0x1]
    %v1949 = vld [vmem:[%s353 + $0x198] sm:$0x1]
    %v1950 = vld [vmem:[%s353 + $0x1a0] sm:$0xfe]
    %v1951 = vld [vmem:[%s353 + $0x1a8] sm:$0xfe]
    %v1952 = vld [vmem:[%s353 + $0x1b0] sm:$0x1]
    %v1953 = vld [vmem:[%s353 + $0x1b8] sm:$0x1]
    %v1954 = vld [vmem:[%s353 + $0x1c0] sm:$0xfe]
    %v1955 = vld [vmem:[%s353 + $0x1c8] sm:$0xfe]
    %v1956 = vld [vmem:[%s353 + $0x1d0] sm:$0x1]
    %v1957 = vld [vmem:[%s353 + $0x1d8] sm:$0x1]
    %v1958 = vld [vmem:[%s353 + $0x1e0] sm:$0xfe]
    %v1959 = vld [vmem:[%s353 + $0x1e8] sm:$0xfe]
    %v1960 = vld [vmem:[%s353 + $0x1f0] sm:$0x1]
    %v1961 = vld [vmem:[%s353 + $0x1f8] sm:$0x1]
    %v1962 = vld [vmem:[%s353 + $0x200] sm:$0xfe]
    %v1963 = vld [vmem:[%s353 + $0x208] sm:$0xfe]
    %v1964 = vld [vmem:[%s353 + $0x210] sm:$0x1]
    %v1965 = vld [vmem:[%s353 + $0x218] sm:$0x1]
    %v1966 = vld [vmem:[%s353 + $0x220] sm:$0xfe]
    %v1967 = vld [vmem:[%s353 + $0x228] sm:$0xfe]
    %v1968 = vld [vmem:[%s353 + $0x230] sm:$0x1]
    %v1969 = vld [vmem:[%s353 + $0x238] sm:$0x1]
    %v1971 = vlaneseq
    %v1972 = vshrl.u32 %v1971, 7
    %v1973 = vsub.s32 0, %v1972
    %v1974 = vrot.slane %v959, %v1973
    %v1975 = vlaneseq
    %v1976 = vshrl.u32 %v1975, 7
    %v1977 = vsub.s32 1, %v1976
    %v1978 = vrot.slane %v959, %v1977
    %v1981 = vmul.f32 %v1906, %v1974
    %v1982 = vmul.f32 %v1907, %v1978
    %v1983 = vmul.f32 %v1908, %v1974
    %v1984 = vmul.f32 %v1909, %v1978
    %v1985 = vmul.f32 %v1910, %v1974
    %v1986 = vmul.f32 %v1911, %v1978
    %v1987 = vmul.f32 %v1912, %v1974
    %v1988 = vmul.f32 %v1913, %v1978
    %v1989 = vmul.f32 %v1914, %v1974
    %v1990 = vmul.f32 %v1915, %v1978
    %v1991 = vmul.f32 %v1916, %v1974
    %v1992 = vmul.f32 %v1917, %v1978
    %v1993 = vmul.f32 %v1918, %v1974
    %v1994 = vmul.f32 %v1919, %v1978
    %v1995 = vmul.f32 %v1920, %v1974
    %v1996 = vmul.f32 %v1921, %v1978
    %v1997 = vmul.f32 %v1922, %v1974
    %v1998 = vmul.f32 %v1923, %v1978
    %v1999 = vmul.f32 %v1924, %v1974
    %v2000 = vmul.f32 %v1925, %v1978
    %v2001 = vmul.f32 %v1926, %v1974
    %v2002 = vmul.f32 %v1927, %v1978
    %v2003 = vmul.f32 %v1928, %v1974
    %v2004 = vmul.f32 %v1929, %v1978
    %v2005 = vmul.f32 %v1930, %v1974
    %v2006 = vmul.f32 %v1931, %v1978
    %v2007 = vmul.f32 %v1932, %v1974
    %v2008 = vmul.f32 %v1933, %v1978
    %v2009 = vmul.f32 %v1934, %v1974
    %v2010 = vmul.f32 %v1935, %v1978
    %v2011 = vmul.f32 %v1936, %v1974
    %v2012 = vmul.f32 %v1937, %v1978
    %v2013 = vmul.f32 %v1938, %v1974
    %v2014 = vmul.f32 %v1939, %v1978
    %v2015 = vmul.f32 %v1940, %v1974
    %v2016 = vmul.f32 %v1941, %v1978
    %v2017 = vmul.f32 %v1942, %v1974
    %v2018 = vmul.f32 %v1943, %v1978
    %v2019 = vmul.f32 %v1944, %v1974
    %v2020 = vmul.f32 %v1945, %v1978
    %v2021 = vmul.f32 %v1946, %v1974
    %v2022 = vmul.f32 %v1947, %v1978
    %v2023 = vmul.f32 %v1948, %v1974
    %v2024 = vmul.f32 %v1949, %v1978
    %v2025 = vmul.f32 %v1950, %v1974
    %v2026 = vmul.f32 %v1951, %v1978
    %v2027 = vmul.f32 %v1952, %v1974
    %v2028 = vmul.f32 %v1953, %v1978
    %v2029 = vmul.f32 %v1954, %v1974
    %v2030 = vmul.f32 %v1955, %v1978
    %v2031 = vmul.f32 %v1956, %v1974
    %v2032 = vmul.f32 %v1957, %v1978
    %v2033 = vmul.f32 %v1958, %v1974
    %v2034 = vmul.f32 %v1959, %v1978
    %v2035 = vmul.f32 %v1960, %v1974
    %v2036 = vmul.f32 %v1961, %v1978
    %v2037 = vmul.f32 %v1962, %v1974
    %v2038 = vmul.f32 %v1963, %v1978
    %v2039 = vmul.f32 %v1964, %v1974
    %v2040 = vmul.f32 %v1965, %v1978
    %v2041 = vmul.f32 %v1966, %v1974
    %v2042 = vmul.f32 %v1967, %v1978
    %v2043 = vmul.f32 %v1968, %v1974
    %v2044 = vmul.f32 %v1969, %v1978
    %v2109 = vrot.slane %v1981, 1
    %v2110 = vrot.slane %v1983, 1
    %v2111 = vsel %vm1274, %v2109, %v2110
    %v2112 = vrot.slane %v1982, 1
    %v2113 = vrot.slane %v1984, 1
    %v2114 = vsel %vm1274, %v2112, %v2113
    %v2115 = vrot.slane %v1985, 1
    %v2116 = vrot.slane %v1987, 1
    %v2117 = vsel %vm1274, %v2115, %v2116
    %v2118 = vrot.slane %v1986, 1
    %v2119 = vrot.slane %v1988, 1
    %v2120 = vsel %vm1274, %v2118, %v2119
    %v2121 = vrot.slane %v1989, 1
    %v2122 = vrot.slane %v1991, 1
    %v2123 = vsel %vm1274, %v2121, %v2122
    %v2124 = vrot.slane %v1990, 1
    %v2125 = vrot.slane %v1992, 1
    %v2126 = vsel %vm1274, %v2124, %v2125
    %v2127 = vrot.slane %v1993, 1
    %v2128 = vrot.slane %v1995, 1
    %v2129 = vsel %vm1274, %v2127, %v2128
    %v2130 = vrot.slane %v1994, 1
    %v2131 = vrot.slane %v1996, 1
    %v2132 = vsel %vm1274, %v2130, %v2131
    %v2133 = vrot.slane %v1997, 1
    %v2134 = vrot.slane %v1999, 1
    %v2135 = vsel %vm1274, %v2133, %v2134
    %v2136 = vrot.slane %v1998, 1
    %v2137 = vrot.slane %v2000, 1
    %v2138 = vsel %vm1274, %v2136, %v2137
    %v2139 = vrot.slane %v2001, 1
    %v2140 = vrot.slane %v2003, 1
    %v2141 = vsel %vm1274, %v2139, %v2140
    %v2142 = vrot.slane %v2002, 1
    %v2143 = vrot.slane %v2004, 1
    %v2144 = vsel %vm1274, %v2142, %v2143
    %v2145 = vrot.slane %v2005, 1
    %v2146 = vrot.slane %v2007, 1
    %v2147 = vsel %vm1274, %v2145, %v2146
    %v2148 = vrot.slane %v2006, 1
    %v2149 = vrot.slane %v2008, 1
    %v2150 = vsel %vm1274, %v2148, %v2149
    %v2151 = vrot.slane %v2009, 1
    %v2152 = vrot.slane %v2011, 1
    %v2153 = vsel %vm1274, %v2151, %v2152
    %v2154 = vrot.slane %v2010, 1
    %v2155 = vrot.slane %v2012, 1
    %v2156 = vsel %vm1274, %v2154, %v2155
    %v2157 = vrot.slane %v2013, 1
    %v2158 = vrot.slane %v2015, 1
    %v2159 = vsel %vm1274, %v2157, %v2158
    %v2160 = vrot.slane %v2014, 1
    %v2161 = vrot.slane %v2016, 1
    %v2162 = vsel %vm1274, %v2160, %v2161
    %v2163 = vrot.slane %v2017, 1
    %v2164 = vrot.slane %v2019, 1
    %v2165 = vsel %vm1274, %v2163, %v2164
    %v2166 = vrot.slane %v2018, 1
    %v2167 = vrot.slane %v2020, 1
    %v2168 = vsel %vm1274, %v2166, %v2167
    %v2169 = vrot.slane %v2021, 1
    %v2170 = vrot.slane %v2023, 1
    %v2171 = vsel %vm1274, %v2169, %v2170
    %v2172 = vrot.slane %v2022, 1
    %v2173 = vrot.slane %v2024, 1
    %v2174 = vsel %vm1274, %v2172, %v2173
    %v2175 = vrot.slane %v2025, 1
    %v2176 = vrot.slane %v2027, 1
    %v2177 = vsel %vm1274, %v2175, %v2176
    %v2178 = vrot.slane %v2026, 1
    %v2179 = vrot.slane %v2028, 1
    %v2180 = vsel %vm1274, %v2178, %v2179
    %v2181 = vrot.slane %v2029, 1
    %v2182 = vrot.slane %v2031, 1
    %v2183 = vsel %vm1274, %v2181, %v2182
    %v2184 = vrot.slane %v2030, 1
    %v2185 = vrot.slane %v2032, 1
    %v2186 = vsel %vm1274, %v2184, %v2185
    %v2187 = vrot.slane %v2033, 1
    %v2188 = vrot.slane %v2035, 1
    %v2189 = vsel %vm1274, %v2187, %v2188
    %v2190 = vrot.slane %v2034, 1
    %v2191 = vrot.slane %v2036, 1
    %v2192 = vsel %vm1274, %v2190, %v2191
    %v2193 = vrot.slane %v2037, 1
    %v2194 = vrot.slane %v2039, 1
    %v2195 = vsel %vm1274, %v2193, %v2194
    %v2196 = vrot.slane %v2038, 1
    %v2197 = vrot.slane %v2040, 1
    %v2198 = vsel %vm1274, %v2196, %v2197
    %v2199 = vrot.slane %v2041, 1
    %v2200 = vrot.slane %v2043, 1
    %v2201 = vsel %vm1274, %v2199, %v2200
    %v2202 = vrot.slane %v2042, 1
    %v2203 = vrot.slane %v2044, 1
    %v2204 = vsel %vm1274, %v2202, %v2203
    %v2237 = vadd.f32 %v1874, %v2111
    %v2238 = vadd.f32 %v1875, %v2114
    %v2239 = vadd.f32 %v1876, %v2117
    %v2240 = vadd.f32 %v1877, %v2120
    %v2241 = vadd.f32 %v1878, %v2123
    %v2242 = vadd.f32 %v1879, %v2126
    %v2243 = vadd.f32 %v1880, %v2129
    %v2244 = vadd.f32 %v1881, %v2132
    %v2245 = vadd.f32 %v1882, %v2135
    %v2246 = vadd.f32 %v1883, %v2138
    %v2247 = vadd.f32 %v1884, %v2141
    %v2248 = vadd.f32 %v1885, %v2144
    %v2249 = vadd.f32 %v1886, %v2147
    %v2250 = vadd.f32 %v1887, %v2150
    %v2251 = vadd.f32 %v1888, %v2153
    %v2252 = vadd.f32 %v1889, %v2156
    %v2253 = vadd.f32 %v1890, %v2159
    %v2254 = vadd.f32 %v1891, %v2162
    %v2255 = vadd.f32 %v1892, %v2165
    %v2256 = vadd.f32 %v1893, %v2168
    %v2257 = vadd.f32 %v1894, %v2171
    %v2258 = vadd.f32 %v1895, %v2174
    %v2259 = vadd.f32 %v1896, %v2177
    %v2260 = vadd.f32 %v1897, %v2180
    %v2261 = vadd.f32 %v1898, %v2183
    %v2262 = vadd.f32 %v1899, %v2186
    %v2263 = vadd.f32 %v1900, %v2189
    %v2264 = vadd.f32 %v1901, %v2192
    %v2265 = vadd.f32 %v1902, %v2195
    %v2266 = vadd.f32 %v1903, %v2198
    %v2267 = vadd.f32 %v1904, %v2201
    %v2268 = vadd.f32 %v1905, %v2204
    %v2269 = vld [vmem:[%s353] sm:$0xfc]
    %v2270 = vld [vmem:[%s353 + $0x8] sm:$0xfc]
    %v2271 = vld [vmem:[%s353 + $0x10] sm:$0x3]
    %v2272 = vld [vmem:[%s353 + $0x18] sm:$0x3]
    %v2273 = vld [vmem:[%s353 + $0x20] sm:$0xfc]
    %v2274 = vld [vmem:[%s353 + $0x28] sm:$0xfc]
    %v2275 = vld [vmem:[%s353 + $0x30] sm:$0x3]
    %v2276 = vld [vmem:[%s353 + $0x38] sm:$0x3]
    %v2277 = vld [vmem:[%s353 + $0x40] sm:$0xfc]
    %v2278 = vld [vmem:[%s353 + $0x48] sm:$0xfc]
    %v2279 = vld [vmem:[%s353 + $0x50] sm:$0x3]
    %v2280 = vld [vmem:[%s353 + $0x58] sm:$0x3]
    %v2281 = vld [vmem:[%s353 + $0x60] sm:$0xfc]
    %v2282 = vld [vmem:[%s353 + $0x68] sm:$0xfc]
    %v2283 = vld [vmem:[%s353 + $0x70] sm:$0x3]
    %v2284 = vld [vmem:[%s353 + $0x78] sm:$0x3]
    %v2285 = vld [vmem:[%s353 + $0x80] sm:$0xfc]
    %v2286 = vld [vmem:[%s353 + $0x88] sm:$0xfc]
    %v2287 = vld [vmem:[%s353 + $0x90] sm:$0x3]
    %v2288 = vld [vmem:[%s353 + $0x98] sm:$0x3]
    %v2289 = vld [vmem:[%s353 + $0xa0] sm:$0xfc]
    %v2290 = vld [vmem:[%s353 + $0xa8] sm:$0xfc]
    %v2291 = vld [vmem:[%s353 + $0xb0] sm:$0x3]
    %v2292 = vld [vmem:[%s353 + $0xb8] sm:$0x3]
    %v2293 = vld [vmem:[%s353 + $0xc0] sm:$0xfc]
    %v2294 = vld [vmem:[%s353 + $0xc8] sm:$0xfc]
    %v2295 = vld [vmem:[%s353 + $0xd0] sm:$0x3]
    %v2296 = vld [vmem:[%s353 + $0xd8] sm:$0x3]
    %v2297 = vld [vmem:[%s353 + $0xe0] sm:$0xfc]
    %v2298 = vld [vmem:[%s353 + $0xe8] sm:$0xfc]
    %v2299 = vld [vmem:[%s353 + $0xf0] sm:$0x3]
    %v2300 = vld [vmem:[%s353 + $0xf8] sm:$0x3]
    %v2301 = vld [vmem:[%s353 + $0x140] sm:$0xfc]
    %v2302 = vld [vmem:[%s353 + $0x148] sm:$0xfc]
    %v2303 = vld [vmem:[%s353 + $0x150] sm:$0x3]
    %v2304 = vld [vmem:[%s353 + $0x158] sm:$0x3]
    %v2305 = vld [vmem:[%s353 + $0x160] sm:$0xfc]
    %v2306 = vld [vmem:[%s353 + $0x168] sm:$0xfc]
    %v2307 = vld [vmem:[%s353 + $0x170] sm:$0x3]
    %v2308 = vld [vmem:[%s353 + $0x178] sm:$0x3]
    %v2309 = vld [vmem:[%s353 + $0x180] sm:$0xfc]
    %v2310 = vld [vmem:[%s353 + $0x188] sm:$0xfc]
    %v2311 = vld [vmem:[%s353 + $0x190] sm:$0x3]
    %v2312 = vld [vmem:[%s353 + $0x198] sm:$0x3]
    %v2313 = vld [vmem:[%s353 + $0x1a0] sm:$0xfc]
    %v2314 = vld [vmem:[%s353 + $0x1a8] sm:$0xfc]
    %v2315 = vld [vmem:[%s353 + $0x1b0] sm:$0x3]
    %v2316 = vld [vmem:[%s353 + $0x1b8] sm:$0x3]
    %v2317 = vld [vmem:[%s353 + $0x1c0] sm:$0xfc]
    %v2318 = vld [vmem:[%s353 + $0x1c8] sm:$0xfc]
    %v2319 = vld [vmem:[%s353 + $0x1d0] sm:$0x3]
    %v2320 = vld [vmem:[%s353 + $0x1d8] sm:$0x3]
    %v2321 = vld [vmem:[%s353 + $0x1e0] sm:$0xfc]
    %v2322 = vld [vmem:[%s353 + $0x1e8] sm:$0xfc]
    %v2323 = vld [vmem:[%s353 + $0x1f0] sm:$0x3]
    %v2324 = vld [vmem:[%s353 + $0x1f8] sm:$0x3]
    %v2325 = vld [vmem:[%s353 + $0x200] sm:$0xfc]
    %v2326 = vld [vmem:[%s353 + $0x208] sm:$0xfc]
    %v2327 = vld [vmem:[%s353 + $0x210] sm:$0x3]
    %v2328 = vld [vmem:[%s353 + $0x218] sm:$0x3]
    %v2329 = vld [vmem:[%s353 + $0x220] sm:$0xfc]
    %v2330 = vld [vmem:[%s353 + $0x228] sm:$0xfc]
    %v2331 = vld [vmem:[%s353 + $0x230] sm:$0x3]
    %v2332 = vld [vmem:[%s353 + $0x238] sm:$0x3]
    %v2334 = vlaneseq
    %v2335 = vshrl.u32 %v2334, 7
    %v2336 = vsub.s32 0, %v2335
    %v2337 = vrot.slane %v960, %v2336
    %v2338 = vlaneseq
    %v2339 = vshrl.u32 %v2338, 7
    %v2340 = vsub.s32 1, %v2339
    %v2341 = vrot.slane %v960, %v2340
    %v2344 = vmul.f32 %v2269, %v2337
    %v2345 = vmul.f32 %v2270, %v2341
    %v2346 = vmul.f32 %v2271, %v2337
    %v2347 = vmul.f32 %v2272, %v2341
    %v2348 = vmul.f32 %v2273, %v2337
    %v2349 = vmul.f32 %v2274, %v2341
    %v2350 = vmul.f32 %v2275, %v2337
    %v2351 = vmul.f32 %v2276, %v2341
    %v2352 = vmul.f32 %v2277, %v2337
    %v2353 = vmul.f32 %v2278, %v2341
    %v2354 = vmul.f32 %v2279, %v2337
    %v2355 = vmul.f32 %v2280, %v2341
    %v2356 = vmul.f32 %v2281, %v2337
    %v2357 = vmul.f32 %v2282, %v2341
    %v2358 = vmul.f32 %v2283, %v2337
    %v2359 = vmul.f32 %v2284, %v2341
    %v2360 = vmul.f32 %v2285, %v2337
    %v2361 = vmul.f32 %v2286, %v2341
    %v2362 = vmul.f32 %v2287, %v2337
    %v2363 = vmul.f32 %v2288, %v2341
    %v2364 = vmul.f32 %v2289, %v2337
    %v2365 = vmul.f32 %v2290, %v2341
    %v2366 = vmul.f32 %v2291, %v2337
    %v2367 = vmul.f32 %v2292, %v2341
    %v2368 = vmul.f32 %v2293, %v2337
    %v2369 = vmul.f32 %v2294, %v2341
    %v2370 = vmul.f32 %v2295, %v2337
    %v2371 = vmul.f32 %v2296, %v2341
    %v2372 = vmul.f32 %v2297, %v2337
    %v2373 = vmul.f32 %v2298, %v2341
    %v2374 = vmul.f32 %v2299, %v2337
    %v2375 = vmul.f32 %v2300, %v2341
    %v2376 = vmul.f32 %v2301, %v2337
    %v2377 = vmul.f32 %v2302, %v2341
    %v2378 = vmul.f32 %v2303, %v2337
    %v2379 = vmul.f32 %v2304, %v2341
    %v2380 = vmul.f32 %v2305, %v2337
    %v2381 = vmul.f32 %v2306, %v2341
    %v2382 = vmul.f32 %v2307, %v2337
    %v2383 = vmul.f32 %v2308, %v2341
    %v2384 = vmul.f32 %v2309, %v2337
    %v2385 = vmul.f32 %v2310, %v2341
    %v2386 = vmul.f32 %v2311, %v2337
    %v2387 = vmul.f32 %v2312, %v2341
    %v2388 = vmul.f32 %v2313, %v2337
    %v2389 = vmul.f32 %v2314, %v2341
    %v2390 = vmul.f32 %v2315, %v2337
    %v2391 = vmul.f32 %v2316, %v2341
    %v2392 = vmul.f32 %v2317, %v2337
    %v2393 = vmul.f32 %v2318, %v2341
    %v2394 = vmul.f32 %v2319, %v2337
    %v2395 = vmul.f32 %v2320, %v2341
    %v2396 = vmul.f32 %v2321, %v2337
    %v2397 = vmul.f32 %v2322, %v2341
    %v2398 = vmul.f32 %v2323, %v2337
    %v2399 = vmul.f32 %v2324, %v2341
    %v2400 = vmul.f32 %v2325, %v2337
    %v2401 = vmul.f32 %v2326, %v2341
    %v2402 = vmul.f32 %v2327, %v2337
    %v2403 = vmul.f32 %v2328, %v2341
    %v2404 = vmul.f32 %v2329, %v2337
    %v2405 = vmul.f32 %v2330, %v2341
    %v2406 = vmul.f32 %v2331, %v2337
    %v2407 = vmul.f32 %v2332, %v2341
    %v2472 = vrot.slane %v2344, 2
    %v2473 = vrot.slane %v2346, 2
    %v2474 = vsel %vm1638, %v2472, %v2473
    %v2475 = vrot.slane %v2345, 2
    %v2476 = vrot.slane %v2347, 2
    %v2477 = vsel %vm1638, %v2475, %v2476
    %v2478 = vrot.slane %v2348, 2
    %v2479 = vrot.slane %v2350, 2
    %v2480 = vsel %vm1638, %v2478, %v2479
    %v2481 = vrot.slane %v2349, 2
    %v2482 = vrot.slane %v2351, 2
    %v2483 = vsel %vm1638, %v2481, %v2482
    %v2484 = vrot.slane %v2352, 2
    %v2485 = vrot.slane %v2354, 2
    %v2486 = vsel %vm1638, %v2484, %v2485
    %v2487 = vrot.slane %v2353, 2
    %v2488 = vrot.slane %v2355, 2
    %v2489 = vsel %vm1638, %v2487, %v2488
    %v2490 = vrot.slane %v2356, 2
    %v2491 = vrot.slane %v2358, 2
    %v2492 = vsel %vm1638, %v2490, %v2491
    %v2493 = vrot.slane %v2357, 2
    %v2494 = vrot.slane %v2359, 2
    %v2495 = vsel %vm1638, %v2493, %v2494
    %v2496 = vrot.slane %v2360, 2
    %v2497 = vrot.slane %v2362, 2
    %v2498 = vsel %vm1638, %v2496, %v2497
    %v2499 = vrot.slane %v2361, 2
    %v2500 = vrot.slane %v2363, 2
    %v2501 = vsel %vm1638, %v2499, %v2500
    %v2502 = vrot.slane %v2364, 2
    %v2503 = vrot.slane %v2366, 2
    %v2504 = vsel %vm1638, %v2502, %v2503
    %v2505 = vrot.slane %v2365, 2
    %v2506 = vrot.slane %v2367, 2
    %v2507 = vsel %vm1638, %v2505, %v2506
    %v2508 = vrot.slane %v2368, 2
    %v2509 = vrot.slane %v2370, 2
    %v2510 = vsel %vm1638, %v2508, %v2509
    %v2511 = vrot.slane %v2369, 2
    %v2512 = vrot.slane %v2371, 2
    %v2513 = vsel %vm1638, %v2511, %v2512
    %v2514 = vrot.slane %v2372, 2
    %v2515 = vrot.slane %v2374, 2
    %v2516 = vsel %vm1638, %v2514, %v2515
    %v2517 = vrot.slane %v2373, 2
    %v2518 = vrot.slane %v2375, 2
    %v2519 = vsel %vm1638, %v2517, %v2518
    %v2520 = vrot.slane %v2376, 2
    %v2521 = vrot.slane %v2378, 2
    %v2522 = vsel %vm1638, %v2520, %v2521
    %v2523 = vrot.slane %v2377, 2
    %v2524 = vrot.slane %v2379, 2
    %v2525 = vsel %vm1638, %v2523, %v2524
    %v2526 = vrot.slane %v2380, 2
    %v2527 = vrot.slane %v2382, 2
    %v2528 = vsel %vm1638, %v2526, %v2527
    %v2529 = vrot.slane %v2381, 2
    %v2530 = vrot.slane %v2383, 2
    %v2531 = vsel %vm1638, %v2529, %v2530
    %v2532 = vrot.slane %v2384, 2
    %v2533 = vrot.slane %v2386, 2
    %v2534 = vsel %vm1638, %v2532, %v2533
    %v2535 = vrot.slane %v2385, 2
    %v2536 = vrot.slane %v2387, 2
    %v2537 = vsel %vm1638, %v2535, %v2536
    %v2538 = vrot.slane %v2388, 2
    %v2539 = vrot.slane %v2390, 2
    %v2540 = vsel %vm1638, %v2538, %v2539
    %v2541 = vrot.slane %v2389, 2
    %v2542 = vrot.slane %v2391, 2
    %v2543 = vsel %vm1638, %v2541, %v2542
    %v2544 = vrot.slane %v2392, 2
    %v2545 = vrot.slane %v2394, 2
    %v2546 = vsel %vm1638, %v2544, %v2545
    %v2547 = vrot.slane %v2393, 2
    %v2548 = vrot.slane %v2395, 2
    %v2549 = vsel %vm1638, %v2547, %v2548
    %v2550 = vrot.slane %v2396, 2
    %v2551 = vrot.slane %v2398, 2
    %v2552 = vsel %vm1638, %v2550, %v2551
    %v2553 = vrot.slane %v2397, 2
    %v2554 = vrot.slane %v2399, 2
    %v2555 = vsel %vm1638, %v2553, %v2554
    %v2556 = vrot.slane %v2400, 2
    %v2557 = vrot.slane %v2402, 2
    %v2558 = vsel %vm1638, %v2556, %v2557
    %v2559 = vrot.slane %v2401, 2
    %v2560 = vrot.slane %v2403, 2
    %v2561 = vsel %vm1638, %v2559, %v2560
    %v2562 = vrot.slane %v2404, 2
    %v2563 = vrot.slane %v2406, 2
    %v2564 = vsel %vm1638, %v2562, %v2563
    %v2565 = vrot.slane %v2405, 2
    %v2566 = vrot.slane %v2407, 2
    %v2567 = vsel %vm1638, %v2565, %v2566
    %v2600 = vadd.f32 %v2237, %v2474
    %v2601 = vadd.f32 %v2238, %v2477
    %v2602 = vadd.f32 %v2239, %v2480
    %v2603 = vadd.f32 %v2240, %v2483
    %v2604 = vadd.f32 %v2241, %v2486
    %v2605 = vadd.f32 %v2242, %v2489
    %v2606 = vadd.f32 %v2243, %v2492
    %v2607 = vadd.f32 %v2244, %v2495
    %v2608 = vadd.f32 %v2245, %v2498
    %v2609 = vadd.f32 %v2246, %v2501
    %v2610 = vadd.f32 %v2247, %v2504
    %v2611 = vadd.f32 %v2248, %v2507
    %v2612 = vadd.f32 %v2249, %v2510
    %v2613 = vadd.f32 %v2250, %v2513
    %v2614 = vadd.f32 %v2251, %v2516
    %v2615 = vadd.f32 %v2252, %v2519
    %v2616 = vadd.f32 %v2253, %v2522
    %v2617 = vadd.f32 %v2254, %v2525
    %v2618 = vadd.f32 %v2255, %v2528
    %v2619 = vadd.f32 %v2256, %v2531
    %v2620 = vadd.f32 %v2257, %v2534
    %v2621 = vadd.f32 %v2258, %v2537
    %v2622 = vadd.f32 %v2259, %v2540
    %v2623 = vadd.f32 %v2260, %v2543
    %v2624 = vadd.f32 %v2261, %v2546
    %v2625 = vadd.f32 %v2262, %v2549
    %v2626 = vadd.f32 %v2263, %v2552
    %v2627 = vadd.f32 %v2264, %v2555
    %v2628 = vadd.f32 %v2265, %v2558
    %v2629 = vadd.f32 %v2266, %v2561
    %v2630 = vadd.f32 %v2267, %v2564
    %v2631 = vadd.f32 %v2268, %v2567
    %s2632 = scalar_lea.vmem [#allocation2], 64
    %v2633 = vld [vmem:[%s2632] sm:$0xff]
    %v2634 = vld [vmem:[%s2632 + $0x8] sm:$0xff]
    %v2635 = vld [vmem:[%s2632 + $0x20] sm:$0xff]
    %v2636 = vld [vmem:[%s2632 + $0x28] sm:$0xff]
    %v2637 = vld [vmem:[%s2632 + $0x40] sm:$0xff]
    %v2638 = vld [vmem:[%s2632 + $0x48] sm:$0xff]
    %v2639 = vld [vmem:[%s2632 + $0x60] sm:$0xff]
    %v2640 = vld [vmem:[%s2632 + $0x68] sm:$0xff]
    %v2641 = vld [vmem:[%s2632 + $0x80] sm:$0xff]
    %v2642 = vld [vmem:[%s2632 + $0x88] sm:$0xff]
    %v2643 = vld [vmem:[%s2632 + $0xa0] sm:$0xff]
    %v2644 = vld [vmem:[%s2632 + $0xa8] sm:$0xff]
    %v2645 = vld [vmem:[%s2632 + $0xc0] sm:$0xff]
    %v2646 = vld [vmem:[%s2632 + $0xc8] sm:$0xff]
    %v2647 = vld [vmem:[%s2632 + $0xe0] sm:$0xff]
    %v2648 = vld [vmem:[%s2632 + $0xe8] sm:$0xff]
    %v2649 = vld [vmem:[%s2632 + $0x140] sm:$0xff]
    %v2650 = vld [vmem:[%s2632 + $0x148] sm:$0xff]
    %v2651 = vld [vmem:[%s2632 + $0x160] sm:$0xff]
    %v2652 = vld [vmem:[%s2632 + $0x168] sm:$0xff]
    %v2653 = vld [vmem:[%s2632 + $0x180] sm:$0xff]
    %v2654 = vld [vmem:[%s2632 + $0x188] sm:$0xff]
    %v2655 = vld [vmem:[%s2632 + $0x1a0] sm:$0xff]
    %v2656 = vld [vmem:[%s2632 + $0x1a8] sm:$0xff]
    %v2657 = vld [vmem:[%s2632 + $0x1c0] sm:$0xff]
    %v2658 = vld [vmem:[%s2632 + $0x1c8] sm:$0xff]
    %v2659 = vld [vmem:[%s2632 + $0x1e0] sm:$0xff]
    %v2660 = vld [vmem:[%s2632 + $0x1e8] sm:$0xff]
    %v2661 = vld [vmem:[%s2632 + $0x200] sm:$0xff]
    %v2662 = vld [vmem:[%s2632 + $0x208] sm:$0xff]
    %v2663 = vld [vmem:[%s2632 + $0x220] sm:$0xff]
    %v2664 = vld [vmem:[%s2632 + $0x228] sm:$0xff]
    %v2666 = vlaneseq
    %v2667 = vshrl.u32 %v2666, 7
    %v2668 = vsub.s32 0, %v2667
    %v2669 = vrot.slane %v961, %v2668
    %v2670 = vlaneseq
    %v2671 = vshrl.u32 %v2670, 7
    %v2672 = vsub.s32 1, %v2671
    %v2673 = vrot.slane %v961, %v2672
    %v2676 = vmul.f32 %v2633, %v2669
    %v2677 = vmul.f32 %v2634, %v2673
    %v2678 = vmul.f32 %v2635, %v2669
    %v2679 = vmul.f32 %v2636, %v2673
    %v2680 = vmul.f32 %v2637, %v2669
    %v2681 = vmul.f32 %v2638, %v2673
    %v2682 = vmul.f32 %v2639, %v2669
    %v2683 = vmul.f32 %v2640, %v2673
    %v2684 = vmul.f32 %v2641, %v2669
    %v2685 = vmul.f32 %v2642, %v2673
    %v2686 = vmul.f32 %v2643, %v2669
    %v2687 = vmul.f32 %v2644, %v2673
    %v2688 = vmul.f32 %v2645, %v2669
    %v2689 = vmul.f32 %v2646, %v2673
    %v2690 = vmul.f32 %v2647, %v2669
    %v2691 = vmul.f32 %v2648, %v2673
    %v2692 = vmul.f32 %v2649, %v2669
    %v2693 = vmul.f32 %v2650, %v2673
    %v2694 = vmul.f32 %v2651, %v2669
    %v2695 = vmul.f32 %v2652, %v2673
    %v2696 = vmul.f32 %v2653, %v2669
    %v2697 = vmul.f32 %v2654, %v2673
    %v2698 = vmul.f32 %v2655, %v2669
    %v2699 = vmul.f32 %v2656, %v2673
    %v2700 = vmul.f32 %v2657, %v2669
    %v2701 = vmul.f32 %v2658, %v2673
    %v2702 = vmul.f32 %v2659, %v2669
    %v2703 = vmul.f32 %v2660, %v2673
    %v2704 = vmul.f32 %v2661, %v2669
    %v2705 = vmul.f32 %v2662, %v2673
    %v2706 = vmul.f32 %v2663, %v2669
    %v2707 = vmul.f32 %v2664, %v2673
    %v2708 = vadd.f32 %v2600, %v2676
    %v2709 = vadd.f32 %v2601, %v2677
    %v2710 = vadd.f32 %v2602, %v2678
    %v2711 = vadd.f32 %v2603, %v2679
    %v2712 = vadd.f32 %v2604, %v2680
    %v2713 = vadd.f32 %v2605, %v2681
    %v2714 = vadd.f32 %v2606, %v2682
    %v2715 = vadd.f32 %v2607, %v2683
    %v2716 = vadd.f32 %v2608, %v2684
    %v2717 = vadd.f32 %v2609, %v2685
    %v2718 = vadd.f32 %v2610, %v2686
    %v2719 = vadd.f32 %v2611, %v2687
    %v2720 = vadd.f32 %v2612, %v2688
    %v2721 = vadd.f32 %v2613, %v2689
    %v2722 = vadd.f32 %v2614, %v2690
    %v2723 = vadd.f32 %v2615, %v2691
    %v2724 = vadd.f32 %v2616, %v2692
    %v2725 = vadd.f32 %v2617, %v2693
    %v2726 = vadd.f32 %v2618, %v2694
    %v2727 = vadd.f32 %v2619, %v2695
    %v2728 = vadd.f32 %v2620, %v2696
    %v2729 = vadd.f32 %v2621, %v2697
    %v2730 = vadd.f32 %v2622, %v2698
    %v2731 = vadd.f32 %v2623, %v2699
    %v2732 = vadd.f32 %v2624, %v2700
    %v2733 = vadd.f32 %v2625, %v2701
    %v2734 = vadd.f32 %v2626, %v2702
    %v2735 = vadd.f32 %v2627, %v2703
    %v2736 = vadd.f32 %v2628, %v2704
    %v2737 = vadd.f32 %v2629, %v2705
    %v2738 = vadd.f32 %v2630, %v2706
    %v2739 = vadd.f32 %v2631, %v2707
    %v2740 = vld [vmem:[%s2632] sm:$0xfe]
    %v2741 = vld [vmem:[%s2632 + $0x8] sm:$0xfe]
    %v2742 = vld [vmem:[%s2632 + $0x10] sm:$0x1]
    %v2743 = vld [vmem:[%s2632 + $0x18] sm:$0x1]
    %v2744 = vld [vmem:[%s2632 + $0x20] sm:$0xfe]
    %v2745 = vld [vmem:[%s2632 + $0x28] sm:$0xfe]
    %v2746 = vld [vmem:[%s2632 + $0x30] sm:$0x1]
    %v2747 = vld [vmem:[%s2632 + $0x38] sm:$0x1]
    %v2748 = vld [vmem:[%s2632 + $0x40] sm:$0xfe]
    %v2749 = vld [vmem:[%s2632 + $0x48] sm:$0xfe]
    %v2750 = vld [vmem:[%s2632 + $0x50] sm:$0x1]
    %v2751 = vld [vmem:[%s2632 + $0x58] sm:$0x1]
    %v2752 = vld [vmem:[%s2632 + $0x60] sm:$0xfe]
    %v2753 = vld [vmem:[%s2632 + $0x68] sm:$0xfe]
    %v2754 = vld [vmem:[%s2632 + $0x70] sm:$0x1]
    %v2755 = vld [vmem:[%s2632 + $0x78] sm:$0x1]
    %v2756 = vld [vmem:[%s2632 + $0x80] sm:$0xfe]
    %v2757 = vld [vmem:[%s2632 + $0x88] sm:$0xfe]
    %v2758 = vld [vmem:[%s2632 + $0x90] sm:$0x1]
    %v2759 = vld [vmem:[%s2632 + $0x98] sm:$0x1]
    %v2760 = vld [vmem:[%s2632 + $0xa0] sm:$0xfe]
    %v2761 = vld [vmem:[%s2632 + $0xa8] sm:$0xfe]
    %v2762 = vld [vmem:[%s2632 + $0xb0] sm:$0x1]
    %v2763 = vld [vmem:[%s2632 + $0xb8] sm:$0x1]
    %v2764 = vld [vmem:[%s2632 + $0xc0] sm:$0xfe]
    %v2765 = vld [vmem:[%s2632 + $0xc8] sm:$0xfe]
    %v2766 = vld [vmem:[%s2632 + $0xd0] sm:$0x1]
    %v2767 = vld [vmem:[%s2632 + $0xd8] sm:$0x1]
    %v2768 = vld [vmem:[%s2632 + $0xe0] sm:$0xfe]
    %v2769 = vld [vmem:[%s2632 + $0xe8] sm:$0xfe]
    %v2770 = vld [vmem:[%s2632 + $0xf0] sm:$0x1]
    %v2771 = vld [vmem:[%s2632 + $0xf8] sm:$0x1]
    %v2772 = vld [vmem:[%s2632 + $0x140] sm:$0xfe]
    %v2773 = vld [vmem:[%s2632 + $0x148] sm:$0xfe]
    %v2774 = vld [vmem:[%s2632 + $0x150] sm:$0x1]
    %v2775 = vld [vmem:[%s2632 + $0x158] sm:$0x1]
    %v2776 = vld [vmem:[%s2632 + $0x160] sm:$0xfe]
    %v2777 = vld [vmem:[%s2632 + $0x168] sm:$0xfe]
    %v2778 = vld [vmem:[%s2632 + $0x170] sm:$0x1]
    %v2779 = vld [vmem:[%s2632 + $0x178] sm:$0x1]
    %v2780 = vld [vmem:[%s2632 + $0x180] sm:$0xfe]
    %v2781 = vld [vmem:[%s2632 + $0x188] sm:$0xfe]
    %v2782 = vld [vmem:[%s2632 + $0x190] sm:$0x1]
    %v2783 = vld [vmem:[%s2632 + $0x198] sm:$0x1]
    %v2784 = vld [vmem:[%s2632 + $0x1a0] sm:$0xfe]
    %v2785 = vld [vmem:[%s2632 + $0x1a8] sm:$0xfe]
    %v2786 = vld [vmem:[%s2632 + $0x1b0] sm:$0x1]
    %v2787 = vld [vmem:[%s2632 + $0x1b8] sm:$0x1]
    %v2788 = vld [vmem:[%s2632 + $0x1c0] sm:$0xfe]
    %v2789 = vld [vmem:[%s2632 + $0x1c8] sm:$0xfe]
    %v2790 = vld [vmem:[%s2632 + $0x1d0] sm:$0x1]
    %v2791 = vld [vmem:[%s2632 + $0x1d8] sm:$0x1]
    %v2792 = vld [vmem:[%s2632 + $0x1e0] sm:$0xfe]
    %v2793 = vld [vmem:[%s2632 + $0x1e8] sm:$0xfe]
    %v2794 = vld [vmem:[%s2632 + $0x1f0] sm:$0x1]
    %v2795 = vld [vmem:[%s2632 + $0x1f8] sm:$0x1]
    %v2796 = vld [vmem:[%s2632 + $0x200] sm:$0xfe]
    %v2797 = vld [vmem:[%s2632 + $0x208] sm:$0xfe]
    %v2798 = vld [vmem:[%s2632 + $0x210] sm:$0x1]
    %v2799 = vld [vmem:[%s2632 + $0x218] sm:$0x1]
    %v2800 = vld [vmem:[%s2632 + $0x220] sm:$0xfe]
    %v2801 = vld [vmem:[%s2632 + $0x228] sm:$0xfe]
    %v2802 = vld [vmem:[%s2632 + $0x230] sm:$0x1]
    %v2803 = vld [vmem:[%s2632 + $0x238] sm:$0x1]
    %v2805 = vlaneseq
    %v2806 = vshrl.u32 %v2805, 7
    %v2807 = vsub.s32 0, %v2806
    %v2808 = vrot.slane %v962, %v2807
    %v2809 = vlaneseq
    %v2810 = vshrl.u32 %v2809, 7
    %v2811 = vsub.s32 1, %v2810
    %v2812 = vrot.slane %v962, %v2811
    %v2815 = vmul.f32 %v2740, %v2808
    %v2816 = vmul.f32 %v2741, %v2812
    %v2817 = vmul.f32 %v2742, %v2808
    %v2818 = vmul.f32 %v2743, %v2812
    %v2819 = vmul.f32 %v2744, %v2808
    %v2820 = vmul.f32 %v2745, %v2812
    %v2821 = vmul.f32 %v2746, %v2808
    %v2822 = vmul.f32 %v2747, %v2812
    %v2823 = vmul.f32 %v2748, %v2808
    %v2824 = vmul.f32 %v2749, %v2812
    %v2825 = vmul.f32 %v2750, %v2808
    %v2826 = vmul.f32 %v2751, %v2812
    %v2827 = vmul.f32 %v2752, %v2808
    %v2828 = vmul.f32 %v2753, %v2812
    %v2829 = vmul.f32 %v2754, %v2808
    %v2830 = vmul.f32 %v2755, %v2812
    %v2831 = vmul.f32 %v2756, %v2808
    %v2832 = vmul.f32 %v2757, %v2812
    %v2833 = vmul.f32 %v2758, %v2808
    %v2834 = vmul.f32 %v2759, %v2812
    %v2835 = vmul.f32 %v2760, %v2808
    %v2836 = vmul.f32 %v2761, %v2812
    %v2837 = vmul.f32 %v2762, %v2808
    %v2838 = vmul.f32 %v2763, %v2812
    %v2839 = vmul.f32 %v2764, %v2808
    %v2840 = vmul.f32 %v2765, %v2812
    %v2841 = vmul.f32 %v2766, %v2808
    %v2842 = vmul.f32 %v2767, %v2812
    %v2843 = vmul.f32 %v2768, %v2808
    %v2844 = vmul.f32 %v2769, %v2812
    %v2845 = vmul.f32 %v2770, %v2808
    %v2846 = vmul.f32 %v2771, %v2812
    %v2847 = vmul.f32 %v2772, %v2808
    %v2848 = vmul.f32 %v2773, %v2812
    %v2849 = vmul.f32 %v2774, %v2808
    %v2850 = vmul.f32 %v2775, %v2812
    %v2851 = vmul.f32 %v2776, %v2808
    %v2852 = vmul.f32 %v2777, %v2812
    %v2853 = vmul.f32 %v2778, %v2808
    %v2854 = vmul.f32 %v2779, %v2812
    %v2855 = vmul.f32 %v2780, %v2808
    %v2856 = vmul.f32 %v2781, %v2812
    %v2857 = vmul.f32 %v2782, %v2808
    %v2858 = vmul.f32 %v2783, %v2812
    %v2859 = vmul.f32 %v2784, %v2808
    %v2860 = vmul.f32 %v2785, %v2812
    %v2861 = vmul.f32 %v2786, %v2808
    %v2862 = vmul.f32 %v2787, %v2812
    %v2863 = vmul.f32 %v2788, %v2808
    %v2864 = vmul.f32 %v2789, %v2812
    %v2865 = vmul.f32 %v2790, %v2808
    %v2866 = vmul.f32 %v2791, %v2812
    %v2867 = vmul.f32 %v2792, %v2808
    %v2868 = vmul.f32 %v2793, %v2812
    %v2869 = vmul.f32 %v2794, %v2808
    %v2870 = vmul.f32 %v2795, %v2812
    %v2871 = vmul.f32 %v2796, %v2808
    %v2872 = vmul.f32 %v2797, %v2812
    %v2873 = vmul.f32 %v2798, %v2808
    %v2874 = vmul.f32 %v2799, %v2812
    %v2875 = vmul.f32 %v2800, %v2808
    %v2876 = vmul.f32 %v2801, %v2812
    %v2877 = vmul.f32 %v2802, %v2808
    %v2878 = vmul.f32 %v2803, %v2812
    %v2943 = vrot.slane %v2815, 1
    %v2944 = vrot.slane %v2817, 1
    %v2945 = vsel %vm1274, %v2943, %v2944
    %v2946 = vrot.slane %v2816, 1
    %v2947 = vrot.slane %v2818, 1
    %v2948 = vsel %vm1274, %v2946, %v2947
    %v2949 = vrot.slane %v2819, 1
    %v2950 = vrot.slane %v2821, 1
    %v2951 = vsel %vm1274, %v2949, %v2950
    %v2952 = vrot.slane %v2820, 1
    %v2953 = vrot.slane %v2822, 1
    %v2954 = vsel %vm1274, %v2952, %v2953
    %v2955 = vrot.slane %v2823, 1
    %v2956 = vrot.slane %v2825, 1
    %v2957 = vsel %vm1274, %v2955, %v2956
    %v2958 = vrot.slane %v2824, 1
    %v2959 = vrot.slane %v2826, 1
    %v2960 = vsel %vm1274, %v2958, %v2959
    %v2961 = vrot.slane %v2827, 1
    %v2962 = vrot.slane %v2829, 1
    %v2963 = vsel %vm1274, %v2961, %v2962
    %v2964 = vrot.slane %v2828, 1
    %v2965 = vrot.slane %v2830, 1
    %v2966 = vsel %vm1274, %v2964, %v2965
    %v2967 = vrot.slane %v2831, 1
    %v2968 = vrot.slane %v2833, 1
    %v2969 = vsel %vm1274, %v2967, %v2968
    %v2970 = vrot.slane %v2832, 1
    %v2971 = vrot.slane %v2834, 1
    %v2972 = vsel %vm1274, %v2970, %v2971
    %v2973 = vrot.slane %v2835, 1
    %v2974 = vrot.slane %v2837, 1
    %v2975 = vsel %vm1274, %v2973, %v2974
    %v2976 = vrot.slane %v2836, 1
    %v2977 = vrot.slane %v2838, 1
    %v2978 = vsel %vm1274, %v2976, %v2977
    %v2979 = vrot.slane %v2839, 1
    %v2980 = vrot.slane %v2841, 1
    %v2981 = vsel %vm1274, %v2979, %v2980
    %v2982 = vrot.slane %v2840, 1
    %v2983 = vrot.slane %v2842, 1
    %v2984 = vsel %vm1274, %v2982, %v2983
    %v2985 = vrot.slane %v2843, 1
    %v2986 = vrot.slane %v2845, 1
    %v2987 = vsel %vm1274, %v2985, %v2986
    %v2988 = vrot.slane %v2844, 1
    %v2989 = vrot.slane %v2846, 1
    %v2990 = vsel %vm1274, %v2988, %v2989
    %v2991 = vrot.slane %v2847, 1
    %v2992 = vrot.slane %v2849, 1
    %v2993 = vsel %vm1274, %v2991, %v2992
    %v2994 = vrot.slane %v2848, 1
    %v2995 = vrot.slane %v2850, 1
    %v2996 = vsel %vm1274, %v2994, %v2995
    %v2997 = vrot.slane %v2851, 1
    %v2998 = vrot.slane %v2853, 1
    %v2999 = vsel %vm1274, %v2997, %v2998
    %v3000 = vrot.slane %v2852, 1
    %v3001 = vrot.slane %v2854, 1
    %v3002 = vsel %vm1274, %v3000, %v3001
    %v3003 = vrot.slane %v2855, 1
    %v3004 = vrot.slane %v2857, 1
    %v3005 = vsel %vm1274, %v3003, %v3004
    %v3006 = vrot.slane %v2856, 1
    %v3007 = vrot.slane %v2858, 1
    %v3008 = vsel %vm1274, %v3006, %v3007
    %v3009 = vrot.slane %v2859, 1
    %v3010 = vrot.slane %v2861, 1
    %v3011 = vsel %vm1274, %v3009, %v3010
    %v3012 = vrot.slane %v2860, 1
    %v3013 = vrot.slane %v2862, 1
    %v3014 = vsel %vm1274, %v3012, %v3013
    %v3015 = vrot.slane %v2863, 1
    %v3016 = vrot.slane %v2865, 1
    %v3017 = vsel %vm1274, %v3015, %v3016
    %v3018 = vrot.slane %v2864, 1
    %v3019 = vrot.slane %v2866, 1
    %v3020 = vsel %vm1274, %v3018, %v3019
    %v3021 = vrot.slane %v2867, 1
    %v3022 = vrot.slane %v2869, 1
    %v3023 = vsel %vm1274, %v3021, %v3022
    %v3024 = vrot.slane %v2868, 1
    %v3025 = vrot.slane %v2870, 1
    %v3026 = vsel %vm1274, %v3024, %v3025
    %v3027 = vrot.slane %v2871, 1
    %v3028 = vrot.slane %v2873, 1
    %v3029 = vsel %vm1274, %v3027, %v3028
    %v3030 = vrot.slane %v2872, 1
    %v3031 = vrot.slane %v2874, 1
    %v3032 = vsel %vm1274, %v3030, %v3031
    %v3033 = vrot.slane %v2875, 1
    %v3034 = vrot.slane %v2877, 1
    %v3035 = vsel %vm1274, %v3033, %v3034
    %v3036 = vrot.slane %v2876, 1
    %v3037 = vrot.slane %v2878, 1
    %v3038 = vsel %vm1274, %v3036, %v3037
    %v3071 = vadd.f32 %v2708, %v2945
    %v3072 = vadd.f32 %v2709, %v2948
    %v3073 = vadd.f32 %v2710, %v2951
    %v3074 = vadd.f32 %v2711, %v2954
    %v3075 = vadd.f32 %v2712, %v2957
    %v3076 = vadd.f32 %v2713, %v2960
    %v3077 = vadd.f32 %v2714, %v2963
    %v3078 = vadd.f32 %v2715, %v2966
    %v3079 = vadd.f32 %v2716, %v2969
    %v3080 = vadd.f32 %v2717, %v2972
    %v3081 = vadd.f32 %v2718, %v2975
    %v3082 = vadd.f32 %v2719, %v2978
    %v3083 = vadd.f32 %v2720, %v2981
    %v3084 = vadd.f32 %v2721, %v2984
    %v3085 = vadd.f32 %v2722, %v2987
    %v3086 = vadd.f32 %v2723, %v2990
    %v3087 = vadd.f32 %v2724, %v2993
    %v3088 = vadd.f32 %v2725, %v2996
    %v3089 = vadd.f32 %v2726, %v2999
    %v3090 = vadd.f32 %v2727, %v3002
    %v3091 = vadd.f32 %v2728, %v3005
    %v3092 = vadd.f32 %v2729, %v3008
    %v3093 = vadd.f32 %v2730, %v3011
    %v3094 = vadd.f32 %v2731, %v3014
    %v3095 = vadd.f32 %v2732, %v3017
    %v3096 = vadd.f32 %v2733, %v3020
    %v3097 = vadd.f32 %v2734, %v3023
    %v3098 = vadd.f32 %v2735, %v3026
    %v3099 = vadd.f32 %v2736, %v3029
    %v3100 = vadd.f32 %v2737, %v3032
    %v3101 = vadd.f32 %v2738, %v3035
    %v3102 = vadd.f32 %v2739, %v3038
    %v3103 = vld [vmem:[%s2632] sm:$0xfc]
    %v3104 = vld [vmem:[%s2632 + $0x8] sm:$0xfc]
    %v3105 = vld [vmem:[%s2632 + $0x10] sm:$0x3]
    %v3106 = vld [vmem:[%s2632 + $0x18] sm:$0x3]
    %v3107 = vld [vmem:[%s2632 + $0x20] sm:$0xfc]
    %v3108 = vld [vmem:[%s2632 + $0x28] sm:$0xfc]
    %v3109 = vld [vmem:[%s2632 + $0x30] sm:$0x3]
    %v3110 = vld [vmem:[%s2632 + $0x38] sm:$0x3]
    %v3111 = vld [vmem:[%s2632 + $0x40] sm:$0xfc]
    %v3112 = vld [vmem:[%s2632 + $0x48] sm:$0xfc]
    %v3113 = vld [vmem:[%s2632 + $0x50] sm:$0x3]
    %v3114 = vld [vmem:[%s2632 + $0x58] sm:$0x3]
    %v3115 = vld [vmem:[%s2632 + $0x60] sm:$0xfc]
    %v3116 = vld [vmem:[%s2632 + $0x68] sm:$0xfc]
    %v3117 = vld [vmem:[%s2632 + $0x70] sm:$0x3]
    %v3118 = vld [vmem:[%s2632 + $0x78] sm:$0x3]
    %v3119 = vld [vmem:[%s2632 + $0x80] sm:$0xfc]
    %v3120 = vld [vmem:[%s2632 + $0x88] sm:$0xfc]
    %v3121 = vld [vmem:[%s2632 + $0x90] sm:$0x3]
    %v3122 = vld [vmem:[%s2632 + $0x98] sm:$0x3]
    %v3123 = vld [vmem:[%s2632 + $0xa0] sm:$0xfc]
    %v3124 = vld [vmem:[%s2632 + $0xa8] sm:$0xfc]
    %v3125 = vld [vmem:[%s2632 + $0xb0] sm:$0x3]
    %v3126 = vld [vmem:[%s2632 + $0xb8] sm:$0x3]
    %v3127 = vld [vmem:[%s2632 + $0xc0] sm:$0xfc]
    %v3128 = vld [vmem:[%s2632 + $0xc8] sm:$0xfc]
    %v3129 = vld [vmem:[%s2632 + $0xd0] sm:$0x3]
    %v3130 = vld [vmem:[%s2632 + $0xd8] sm:$0x3]
    %v3131 = vld [vmem:[%s2632 + $0xe0] sm:$0xfc]
    %v3132 = vld [vmem:[%s2632 + $0xe8] sm:$0xfc]
    %v3133 = vld [vmem:[%s2632 + $0xf0] sm:$0x3]
    %v3134 = vld [vmem:[%s2632 + $0xf8] sm:$0x3]
    %v3135 = vld [vmem:[%s2632 + $0x140] sm:$0xfc]
    %v3136 = vld [vmem:[%s2632 + $0x148] sm:$0xfc]
    %v3137 = vld [vmem:[%s2632 + $0x150] sm:$0x3]
    %v3138 = vld [vmem:[%s2632 + $0x158] sm:$0x3]
    %v3139 = vld [vmem:[%s2632 + $0x160] sm:$0xfc]
    %v3140 = vld [vmem:[%s2632 + $0x168] sm:$0xfc]
    %v3141 = vld [vmem:[%s2632 + $0x170] sm:$0x3]
    %v3142 = vld [vmem:[%s2632 + $0x178] sm:$0x3]
    %v3143 = vld [vmem:[%s2632 + $0x180] sm:$0xfc]
    %v3144 = vld [vmem:[%s2632 + $0x188] sm:$0xfc]
    %v3145 = vld [vmem:[%s2632 + $0x190] sm:$0x3]
    %v3146 = vld [vmem:[%s2632 + $0x198] sm:$0x3]
    %v3147 = vld [vmem:[%s2632 + $0x1a0] sm:$0xfc]
    %v3148 = vld [vmem:[%s2632 + $0x1a8] sm:$0xfc]
    %v3149 = vld [vmem:[%s2632 + $0x1b0] sm:$0x3]
    %v3150 = vld [vmem:[%s2632 + $0x1b8] sm:$0x3]
    %v3151 = vld [vmem:[%s2632 + $0x1c0] sm:$0xfc]
    %v3152 = vld [vmem:[%s2632 + $0x1c8] sm:$0xfc]
    %v3153 = vld [vmem:[%s2632 + $0x1d0] sm:$0x3]
    %v3154 = vld [vmem:[%s2632 + $0x1d8] sm:$0x3]
    %v3155 = vld [vmem:[%s2632 + $0x1e0] sm:$0xfc]
    %v3156 = vld [vmem:[%s2632 + $0x1e8] sm:$0xfc]
    %v3157 = vld [vmem:[%s2632 + $0x1f0] sm:$0x3]
    %v3158 = vld [vmem:[%s2632 + $0x1f8] sm:$0x3]
    %v3159 = vld [vmem:[%s2632 + $0x200] sm:$0xfc]
    %v3160 = vld [vmem:[%s2632 + $0x208] sm:$0xfc]
    %v3161 = vld [vmem:[%s2632 + $0x210] sm:$0x3]
    %v3162 = vld [vmem:[%s2632 + $0x218] sm:$0x3]
    %v3163 = vld [vmem:[%s2632 + $0x220] sm:$0xfc]
    %v3164 = vld [vmem:[%s2632 + $0x228] sm:$0xfc]
    %v3165 = vld [vmem:[%s2632 + $0x230] sm:$0x3]
    %v3166 = vld [vmem:[%s2632 + $0x238] sm:$0x3]
    %v3168 = vlaneseq
    %v3169 = vshrl.u32 %v3168, 7
    %v3170 = vsub.s32 0, %v3169
    %v3171 = vrot.slane %v963, %v3170
    %v3172 = vlaneseq
    %v3173 = vshrl.u32 %v3172, 7
    %v3174 = vsub.s32 1, %v3173
    %v3175 = vrot.slane %v963, %v3174
    %v3178 = vmul.f32 %v3103, %v3171
    %v3179 = vmul.f32 %v3104, %v3175
    %v3180 = vmul.f32 %v3105, %v3171
    %v3181 = vmul.f32 %v3106, %v3175
    %v3182 = vmul.f32 %v3107, %v3171
    %v3183 = vmul.f32 %v3108, %v3175
    %v3184 = vmul.f32 %v3109, %v3171
    %v3185 = vmul.f32 %v3110, %v3175
    %v3186 = vmul.f32 %v3111, %v3171
    %v3187 = vmul.f32 %v3112, %v3175
    %v3188 = vmul.f32 %v3113, %v3171
    %v3189 = vmul.f32 %v3114, %v3175
    %v3190 = vmul.f32 %v3115, %v3171
    %v3191 = vmul.f32 %v3116, %v3175
    %v3192 = vmul.f32 %v3117, %v3171
    %v3193 = vmul.f32 %v3118, %v3175
    %v3194 = vmul.f32 %v3119, %v3171
    %v3195 = vmul.f32 %v3120, %v3175
    %v3196 = vmul.f32 %v3121, %v3171
    %v3197 = vmul.f32 %v3122, %v3175
    %v3198 = vmul.f32 %v3123, %v3171
    %v3199 = vmul.f32 %v3124, %v3175
    %v3200 = vmul.f32 %v3125, %v3171
    %v3201 = vmul.f32 %v3126, %v3175
    %v3202 = vmul.f32 %v3127, %v3171
    %v3203 = vmul.f32 %v3128, %v3175
    %v3204 = vmul.f32 %v3129, %v3171
    %v3205 = vmul.f32 %v3130, %v3175
    %v3206 = vmul.f32 %v3131, %v3171
    %v3207 = vmul.f32 %v3132, %v3175
    %v3208 = vmul.f32 %v3133, %v3171
    %v3209 = vmul.f32 %v3134, %v3175
    %v3210 = vmul.f32 %v3135, %v3171
    %v3211 = vmul.f32 %v3136, %v3175
    %v3212 = vmul.f32 %v3137, %v3171
    %v3213 = vmul.f32 %v3138, %v3175
    %v3214 = vmul.f32 %v3139, %v3171
    %v3215 = vmul.f32 %v3140, %v3175
    %v3216 = vmul.f32 %v3141, %v3171
    %v3217 = vmul.f32 %v3142, %v3175
    %v3218 = vmul.f32 %v3143, %v3171
    %v3219 = vmul.f32 %v3144, %v3175
    %v3220 = vmul.f32 %v3145, %v3171
    %v3221 = vmul.f32 %v3146, %v3175
    %v3222 = vmul.f32 %v3147, %v3171
    %v3223 = vmul.f32 %v3148, %v3175
    %v3224 = vmul.f32 %v3149, %v3171
    %v3225 = vmul.f32 %v3150, %v3175
    %v3226 = vmul.f32 %v3151, %v3171
    %v3227 = vmul.f32 %v3152, %v3175
    %v3228 = vmul.f32 %v3153, %v3171
    %v3229 = vmul.f32 %v3154, %v3175
    %v3230 = vmul.f32 %v3155, %v3171
    %v3231 = vmul.f32 %v3156, %v3175
    %v3232 = vmul.f32 %v3157, %v3171
    %v3233 = vmul.f32 %v3158, %v3175
    %v3234 = vmul.f32 %v3159, %v3171
    %v3235 = vmul.f32 %v3160, %v3175
    %v3236 = vmul.f32 %v3161, %v3171
    %v3237 = vmul.f32 %v3162, %v3175
    %v3238 = vmul.f32 %v3163, %v3171
    %v3239 = vmul.f32 %v3164, %v3175
    %v3240 = vmul.f32 %v3165, %v3171
    %v3241 = vmul.f32 %v3166, %v3175
    %v3306 = vrot.slane %v3178, 2
    %v3307 = vrot.slane %v3180, 2
    %v3308 = vsel %vm1638, %v3306, %v3307
    %v3309 = vrot.slane %v3179, 2
    %v3310 = vrot.slane %v3181, 2
    %v3311 = vsel %vm1638, %v3309, %v3310
    %v3312 = vrot.slane %v3182, 2
    %v3313 = vrot.slane %v3184, 2
    %v3314 = vsel %vm1638, %v3312, %v3313
    %v3315 = vrot.slane %v3183, 2
    %v3316 = vrot.slane %v3185, 2
    %v3317 = vsel %vm1638, %v3315, %v3316
    %v3318 = vrot.slane %v3186, 2
    %v3319 = vrot.slane %v3188, 2
    %v3320 = vsel %vm1638, %v3318, %v3319
    %v3321 = vrot.slane %v3187, 2
    %v3322 = vrot.slane %v3189, 2
    %v3323 = vsel %vm1638, %v3321, %v3322
    %v3324 = vrot.slane %v3190, 2
    %v3325 = vrot.slane %v3192, 2
    %v3326 = vsel %vm1638, %v3324, %v3325
    %v3327 = vrot.slane %v3191, 2
    %v3328 = vrot.slane %v3193, 2
    %v3329 = vsel %vm1638, %v3327, %v3328
    %v3330 = vrot.slane %v3194, 2
    %v3331 = vrot.slane %v3196, 2
    %v3332 = vsel %vm1638, %v3330, %v3331
    %v3333 = vrot.slane %v3195, 2
    %v3334 = vrot.slane %v3197, 2
    %v3335 = vsel %vm1638, %v3333, %v3334
    %v3336 = vrot.slane %v3198, 2
    %v3337 = vrot.slane %v3200, 2
    %v3338 = vsel %vm1638, %v3336, %v3337
    %v3339 = vrot.slane %v3199, 2
    %v3340 = vrot.slane %v3201, 2
    %v3341 = vsel %vm1638, %v3339, %v3340
    %v3342 = vrot.slane %v3202, 2
    %v3343 = vrot.slane %v3204, 2
    %v3344 = vsel %vm1638, %v3342, %v3343
    %v3345 = vrot.slane %v3203, 2
    %v3346 = vrot.slane %v3205, 2
    %v3347 = vsel %vm1638, %v3345, %v3346
    %v3348 = vrot.slane %v3206, 2
    %v3349 = vrot.slane %v3208, 2
    %v3350 = vsel %vm1638, %v3348, %v3349
    %v3351 = vrot.slane %v3207, 2
    %v3352 = vrot.slane %v3209, 2
    %v3353 = vsel %vm1638, %v3351, %v3352
    %v3354 = vrot.slane %v3210, 2
    %v3355 = vrot.slane %v3212, 2
    %v3356 = vsel %vm1638, %v3354, %v3355
    %v3357 = vrot.slane %v3211, 2
    %v3358 = vrot.slane %v3213, 2
    %v3359 = vsel %vm1638, %v3357, %v3358
    %v3360 = vrot.slane %v3214, 2
    %v3361 = vrot.slane %v3216, 2
    %v3362 = vsel %vm1638, %v3360, %v3361
    %v3363 = vrot.slane %v3215, 2
    %v3364 = vrot.slane %v3217, 2
    %v3365 = vsel %vm1638, %v3363, %v3364
    %v3366 = vrot.slane %v3218, 2
    %v3367 = vrot.slane %v3220, 2
    %v3368 = vsel %vm1638, %v3366, %v3367
    %v3369 = vrot.slane %v3219, 2
    %v3370 = vrot.slane %v3221, 2
    %v3371 = vsel %vm1638, %v3369, %v3370
    %v3372 = vrot.slane %v3222, 2
    %v3373 = vrot.slane %v3224, 2
    %v3374 = vsel %vm1638, %v3372, %v3373
    %v3375 = vrot.slane %v3223, 2
    %v3376 = vrot.slane %v3225, 2
    %v3377 = vsel %vm1638, %v3375, %v3376
    %v3378 = vrot.slane %v3226, 2
    %v3379 = vrot.slane %v3228, 2
    %v3380 = vsel %vm1638, %v3378, %v3379
    %v3381 = vrot.slane %v3227, 2
    %v3382 = vrot.slane %v3229, 2
    %v3383 = vsel %vm1638, %v3381, %v3382
    %v3384 = vrot.slane %v3230, 2
    %v3385 = vrot.slane %v3232, 2
    %v3386 = vsel %vm1638, %v3384, %v3385
    %v3387 = vrot.slane %v3231, 2
    %v3388 = vrot.slane %v3233, 2
    %v3389 = vsel %vm1638, %v3387, %v3388
    %v3390 = vrot.slane %v3234, 2
    %v3391 = vrot.slane %v3236, 2
    %v3392 = vsel %vm1638, %v3390, %v3391
    %v3393 = vrot.slane %v3235, 2
    %v3394 = vrot.slane %v3237, 2
    %v3395 = vsel %vm1638, %v3393, %v3394
    %v3396 = vrot.slane %v3238, 2
    %v3397 = vrot.slane %v3240, 2
    %v3398 = vsel %vm1638, %v3396, %v3397
    %v3399 = vrot.slane %v3239, 2
    %v3400 = vrot.slane %v3241, 2
    %v3401 = vsel %vm1638, %v3399, %v3400
    %v3434 = vadd.f32 %v3071, %v3308
    %v3435 = vadd.f32 %v3072, %v3311
    %v3436 = vadd.f32 %v3073, %v3314
    %v3437 = vadd.f32 %v3074, %v3317
    %v3438 = vadd.f32 %v3075, %v3320
    %v3439 = vadd.f32 %v3076, %v3323
    %v3440 = vadd.f32 %v3077, %v3326
    %v3441 = vadd.f32 %v3078, %v3329
    %v3442 = vadd.f32 %v3079, %v3332
    %v3443 = vadd.f32 %v3080, %v3335
    %v3444 = vadd.f32 %v3081, %v3338
    %v3445 = vadd.f32 %v3082, %v3341
    %v3446 = vadd.f32 %v3083, %v3344
    %v3447 = vadd.f32 %v3084, %v3347
    %v3448 = vadd.f32 %v3085, %v3350
    %v3449 = vadd.f32 %v3086, %v3353
    %v3450 = vadd.f32 %v3087, %v3356
    %v3451 = vadd.f32 %v3088, %v3359
    %v3452 = vadd.f32 %v3089, %v3362
    %v3453 = vadd.f32 %v3090, %v3365
    %v3454 = vadd.f32 %v3091, %v3368
    %v3455 = vadd.f32 %v3092, %v3371
    %v3456 = vadd.f32 %v3093, %v3374
    %v3457 = vadd.f32 %v3094, %v3377
    %v3458 = vadd.f32 %v3095, %v3380
    %v3459 = vadd.f32 %v3096, %v3383
    %v3460 = vadd.f32 %v3097, %v3386
    %v3461 = vadd.f32 %v3098, %v3389
    %v3462 = vadd.f32 %v3099, %v3392
    %v3463 = vadd.f32 %v3100, %v3395
    %v3464 = vadd.f32 %v3101, %v3398
    %v3465 = vadd.f32 %v3102, %v3401
    %v3466 = vld [vmem:[%s6] sm:$0x3]
    %v3468 = vlaneseq
    %v3469 = vshrl.u32 %v3468, 7
    %v3470 = vsub.s32 0, %v3469
    %v3471 = vrot.slane %v3466, %v3470
    %v3472 = vlaneseq
    %v3473 = vshrl.u32 %v3472, 7
    %v3474 = vsub.s32 1, %v3473
    %v3475 = vrot.slane %v3466, %v3474
    %v3478 = vadd.f32 %v3434, %v3471
    %v3479 = vadd.f32 %v3435, %v3475
    %v3480 = vadd.f32 %v3436, %v3471
    %v3481 = vadd.f32 %v3437, %v3475
    %v3482 = vadd.f32 %v3438, %v3471
    %v3483 = vadd.f32 %v3439, %v3475
    %v3484 = vadd.f32 %v3440, %v3471
    %v3485 = vadd.f32 %v3441, %v3475
    %v3486 = vadd.f32 %v3442, %v3471
    %v3487 = vadd.f32 %v3443, %v3475
    %v3488 = vadd.f32 %v3444, %v3471
    %v3489 = vadd.f32 %v3445, %v3475
    %v3490 = vadd.f32 %v3446, %v3471
    %v3491 = vadd.f32 %v3447, %v3475
    %v3492 = vadd.f32 %v3448, %v3471
    %v3493 = vadd.f32 %v3449, %v3475
    %v3494 = vadd.f32 %v3450, %v3471
    %v3495 = vadd.f32 %v3451, %v3475
    %v3496 = vadd.f32 %v3452, %v3471
    %v3497 = vadd.f32 %v3453, %v3475
    %v3498 = vadd.f32 %v3454, %v3471
    %v3499 = vadd.f32 %v3455, %v3475
    %v3500 = vadd.f32 %v3456, %v3471
    %v3501 = vadd.f32 %v3457, %v3475
    %v3502 = vadd.f32 %v3458, %v3471
    %v3503 = vadd.f32 %v3459, %v3475
    %v3504 = vadd.f32 %v3460, %v3471
    %v3505 = vadd.f32 %v3461, %v3475
    %v3506 = vadd.f32 %v3462, %v3471
    %v3507 = vadd.f32 %v3463, %v3475
    %v3508 = vadd.f32 %v3464, %v3471
    %v3509 = vadd.f32 %v3465, %v3475
    %v3510 = vmax.f32 %v3478, 0.0
    %v3511 = vmax.f32 %v3479, 0.0
    %v3512 = vmax.f32 %v3480, 0.0
    %v3513 = vmax.f32 %v3481, 0.0
    %v3514 = vmax.f32 %v3482, 0.0
    %v3515 = vmax.f32 %v3483, 0.0
    %v3516 = vmax.f32 %v3484, 0.0
    %v3517 = vmax.f32 %v3485, 0.0
    %v3518 = vmax.f32 %v3486, 0.0
    %v3519 = vmax.f32 %v3487, 0.0
    %v3520 = vmax.f32 %v3488, 0.0
    %v3521 = vmax.f32 %v3489, 0.0
    %v3522 = vmax.f32 %v3490, 0.0
    %v3523 = vmax.f32 %v3491, 0.0
    %v3524 = vmax.f32 %v3492, 0.0
    %v3525 = vmax.f32 %v3493, 0.0
    %v3526 = vmax.f32 %v3494, 0.0
    %v3527 = vmax.f32 %v3495, 0.0
    %v3528 = vmax.f32 %v3496, 0.0
    %v3529 = vmax.f32 %v3497, 0.0
    %v3530 = vmax.f32 %v3498, 0.0
    %v3531 = vmax.f32 %v3499, 0.0
    %v3532 = vmax.f32 %v3500, 0.0
    %v3533 = vmax.f32 %v3501, 0.0
    %v3534 = vmax.f32 %v3502, 0.0
    %v3535 = vmax.f32 %v3503, 0.0
    %v3536 = vmax.f32 %v3504, 0.0
    %v3537 = vmax.f32 %v3505, 0.0
    %v3538 = vmax.f32 %v3506, 0.0
    %v3539 = vmax.f32 %v3507, 0.0
    %v3540 = vmax.f32 %v3508, 0.0
    %v3541 = vmax.f32 %v3509, 0.0
    %v3542 = vmin.f32 %v3510, 6.0
    %v3543 = vmin.f32 %v3511, 6.0
    %v3544 = vmin.f32 %v3512, 6.0
    %v3545 = vmin.f32 %v3513, 6.0
    %v3546 = vmin.f32 %v3514, 6.0
    %v3547 = vmin.f32 %v3515, 6.0
    %v3548 = vmin.f32 %v3516, 6.0
    %v3549 = vmin.f32 %v3517, 6.0
    %v3550 = vmin.f32 %v3518, 6.0
    %v3551 = vmin.f32 %v3519, 6.0
    %v3552 = vmin.f32 %v3520, 6.0
    %v3553 = vmin.f32 %v3521, 6.0
    %v3554 = vmin.f32 %v3522, 6.0
    %v3555 = vmin.f32 %v3523, 6.0
    %v3556 = vmin.f32 %v3524, 6.0
    %v3557 = vmin.f32 %v3525, 6.0
    %v3558 = vmin.f32 %v3526, 6.0
    %v3559 = vmin.f32 %v3527, 6.0
    %v3560 = vmin.f32 %v3528, 6.0
    %v3561 = vmin.f32 %v3529, 6.0
    %v3562 = vmin.f32 %v3530, 6.0
    %v3563 = vmin.f32 %v3531, 6.0
    %v3564 = vmin.f32 %v3532, 6.0
    %v3565 = vmin.f32 %v3533, 6.0
    %v3566 = vmin.f32 %v3534, 6.0
    %v3567 = vmin.f32 %v3535, 6.0
    %v3568 = vmin.f32 %v3536, 6.0
    %v3569 = vmin.f32 %v3537, 6.0
    %v3570 = vmin.f32 %v3538, 6.0
    %v3571 = vmin.f32 %v3539, 6.0
    %v3572 = vmin.f32 %v3540, 6.0
    %v3573 = vmin.f32 %v3541, 6.0
    %v3574 = vpack.c.bf16 %v3544, %v3542
    %v3575 = vpack.c.bf16 %v3545, %v3543
    %v3576 = vpack.c.bf16 %v3548, %v3546
    %v3577 = vpack.c.bf16 %v3549, %v3547
    %v3578 = vpack.c.bf16 %v3552, %v3550
    %v3579 = vpack.c.bf16 %v3553, %v3551
    %v3580 = vpack.c.bf16 %v3556, %v3554
    %v3581 = vpack.c.bf16 %v3557, %v3555
    %v3582 = vpack.c.bf16 %v3560, %v3558
    %v3583 = vpack.c.bf16 %v3561, %v3559
    %v3584 = vpack.c.bf16 %v3564, %v3562
    %v3585 = vpack.c.bf16 %v3565, %v3563
    %v3586 = vpack.c.bf16 %v3568, %v3566
    %v3587 = vpack.c.bf16 %v3569, %v3567
    %v3588 = vpack.c.bf16 %v3572, %v3570
    %v3589 = vpack.c.bf16 %v3573, %v3571
    %v3590 = vld [vmem:[%s7] sm:$0xf]
    %v3591 = vld [vmem:[%s7 + $0x4] sm:$0xf]
    %v3592 = vld [vmem:[%s7 + $0x8] sm:$0xf]
    %v3593 = vld [vmem:[%s7 + $0xc] sm:$0xf]
    %v3594 = vld [vmem:[%s7 + $0x10] sm:$0xf]
    %v3595 = vld [vmem:[%s7 + $0x14] sm:$0xf]
    %v3596 = vld [vmem:[%s7 + $0x18] sm:$0xf]
    %v3597 = vld [vmem:[%s7 + $0x1c] sm:$0xf]
    %v3598 = vld [vmem:[%s7 + $0x20] sm:$0xf]
    %v3599 = vld [vmem:[%s7 + $0x24] sm:$0xf]
    %v3600 = vld [vmem:[%s7 + $0x28] sm:$0xf]
    %v3601 = vld [vmem:[%s7 + $0x2c] sm:$0xf]
    %v3602 = vld [vmem:[%s7 + $0x30] sm:$0xf]
    %v3603 = vld [vmem:[%s7 + $0x34] sm:$0xf]
    %v3604 = vld [vmem:[%s7 + $0x38] sm:$0xf]
    %v3605 = vld [vmem:[%s7 + $0x3c] sm:$0xf]
    %v3606 = vld [vmem:[%s7 + $0x40] sm:$0xf]
    %v3607 = vld [vmem:[%s7 + $0x44] sm:$0xf]
    %v3608 = vld [vmem:[%s7 + $0x48] sm:$0xf]
    %v3609 = vld [vmem:[%s7 + $0x4c] sm:$0xf]
    %v3610 = vld [vmem:[%s7 + $0x50] sm:$0xf]
    %v3611 = vld [vmem:[%s7 + $0x54] sm:$0xf]
    %v3612 = vld [vmem:[%s7 + $0x58] sm:$0xf]
    %v3613 = vld [vmem:[%s7 + $0x5c] sm:$0xf]
    %v3614 = vld [vmem:[%s7 + $0x60] sm:$0xf]
    %v3615 = vld [vmem:[%s7 + $0x64] sm:$0xf]
    %v3616 = vld [vmem:[%s7 + $0x68] sm:$0xf]
    %v3617 = vld [vmem:[%s7 + $0x6c] sm:$0xf]
    %v3618 = vld [vmem:[%s7 + $0x70] sm:$0xf]
    %v3619 = vld [vmem:[%s7 + $0x74] sm:$0xf]
    %v3620 = vld [vmem:[%s7 + $0x78] sm:$0xf]
    %v3621 = vld [vmem:[%s7 + $0x7c] sm:$0xf]
    %v3622 = vld [vmem:[%s8] sm:$0x1]
    %v3624 = vlaneseq
    %v3625 = vshrl.u32 %v3624, 7
    %v3626 = vsub.s32 0, %v3625
    %v3627 = vrot.slane %v3622, %v3626
    %v3661 = vunpack.c.l.b16 %v3590
    %v3662 = vunpack.c.l.b16 %v3591
    %v3663 = vunpack.c.l.b16 %v3592
    %v3664 = vunpack.c.l.b16 %v3593
    %v3665 = vunpack.c.l.b16 %v3594
    %v3666 = vunpack.c.l.b16 %v3595
    %v3667 = vunpack.c.l.b16 %v3596
    %v3668 = vunpack.c.l.b16 %v3597
    %v3669 = vunpack.c.l.b16 %v3598
    %v3670 = vunpack.c.l.b16 %v3599
    %v3671 = vunpack.c.l.b16 %v3600
    %v3672 = vunpack.c.l.b16 %v3601
    %v3673 = vunpack.c.l.b16 %v3602
    %v3674 = vunpack.c.l.b16 %v3603
    %v3675 = vunpack.c.l.b16 %v3604
    %v3676 = vunpack.c.l.b16 %v3605
    %v3677 = vunpack.c.l.b16 %v3606
    %v3678 = vunpack.c.l.b16 %v3607
    %v3679 = vunpack.c.l.b16 %v3608
    %v3680 = vunpack.c.l.b16 %v3609
    %v3681 = vunpack.c.l.b16 %v3610
    %v3682 = vunpack.c.l.b16 %v3611
    %v3683 = vunpack.c.l.b16 %v3612
    %v3684 = vunpack.c.l.b16 %v3613
    %v3685 = vunpack.c.l.b16 %v3614
    %v3686 = vunpack.c.l.b16 %v3615
    %v3687 = vunpack.c.l.b16 %v3616
    %v3688 = vunpack.c.l.b16 %v3617
    %v3689 = vunpack.c.l.b16 %v3618
    %v3690 = vunpack.c.l.b16 %v3619
    %v3691 = vunpack.c.l.b16 %v3620
    %v3692 = vunpack.c.l.b16 %v3621
    %v3693 = vpack.c.b16 %v3662, %v3661
    %v3694 = vpack.c.b16 %v3664, %v3663
    %v3695 = vpack.c.b16 %v3666, %v3665
    %v3696 = vpack.c.b16 %v3668, %v3667
    %v3697 = vpack.c.b16 %v3670, %v3669
    %v3698 = vpack.c.b16 %v3672, %v3671
    %v3699 = vpack.c.b16 %v3674, %v3673
    %v3700 = vpack.c.b16 %v3676, %v3675
    %v3701 = vpack.c.b16 %v3678, %v3677
    %v3702 = vpack.c.b16 %v3680, %v3679
    %v3703 = vpack.c.b16 %v3682, %v3681
    %v3704 = vpack.c.b16 %v3684, %v3683
    %v3705 = vpack.c.b16 %v3686, %v3685
    %v3706 = vpack.c.b16 %v3688, %v3687
    %v3707 = vpack.c.b16 %v3690, %v3689
    %v3708 = vpack.c.b16 %v3692, %v3691
    %3725 = vmatprep.subr.bf16.mxu0 0
    %3726 = vmatpush1.bf16.msra.mxu0 %v3700
    %3727 = vmatprep.subr.bf16.mxu0 0
    %3728 = vmatpush1.bf16.msra.mxu0 %v3699
    %3729 = vmatprep.subr.bf16.mxu0 0
    %3730 = vmatpush1.bf16.msra.mxu0 %v3698
    %3731 = vmatprep.subr.bf16.mxu0 0
    %3732 = vmatpush1.bf16.msra.mxu0 %v3697
    %3733 = vmatprep.subr.bf16.mxu0 0
    %3734 = vmatpush1.bf16.msra.mxu0 %v3696
    %3735 = vmatprep.subr.bf16.mxu0 0
    %3736 = vmatpush1.bf16.msra.mxu0 %v3695
    %3737 = vmatprep.subr.bf16.mxu0 0
    %3738 = vmatpush1.bf16.msra.mxu0 %v3694
    %3739 = vmatprep.subr.bf16.mxu0 0
    %3740 = vmatpush1.bf16.msra.mxu0 %v3693
    %3741 = vmatprep.subr.bf16.mxu0 0
    %3742 = vmatpush2.bf16.msra.mxu0 %v3708
    %3743 = vmatprep.subr.bf16.mxu0 0
    %3744 = vmatpush2.bf16.msra.mxu0 %v3707
    %3745 = vmatprep.subr.bf16.mxu0 0
    %3746 = vmatpush2.bf16.msra.mxu0 %v3706
    %3747 = vmatprep.subr.bf16.mxu0 0
    %3748 = vmatpush2.bf16.msra.mxu0 %v3705
    %3749 = vmatprep.subr.bf16.mxu0 0
    %3750 = vmatpush2.bf16.msra.mxu0 %v3704
    %3751 = vmatprep.subr.bf16.mxu0 0
    %3752 = vmatpush2.bf16.msra.mxu0 %v3703
    %3753 = vmatprep.subr.bf16.mxu0 0
    %3754 = vmatpush2.bf16.msra.mxu0 %v3702
    %3755 = vmatprep.subr.bf16.mxu0 0
    %3756 = vmatpush2.bf16.msra.mxu0 %v3701
    %3757 = vmatprep.mubr.bf16.mxu0 %v3575
    %3758 = vmatmul.mubr.bf16.gmra.mxu0 %v3574
    %v3759 = vpop.f32.mrf.mxu0
    %v3760 = vadd.f32 %v3627, %v3759
    %v3761 = vpop.f32.mrf.mxu0
    %v3762 = vpop.f32.mrf.mxu0
    %v3763 = vadd.f32 %v3627, %v3762
    %v3764 = vpop.f32.mrf.mxu0
    %3765 = vmatprep.mubr.bf16.mxu0 %v3577
    %3766 = vmatmul.mubr.bf16.gmra.mxu0 %v3576
    %v3767 = vpop.f32.mrf.mxu0
    %v3768 = vadd.f32 %v3627, %v3767
    %v3769 = vpop.f32.mrf.mxu0
    %v3770 = vpop.f32.mrf.mxu0
    %v3771 = vadd.f32 %v3627, %v3770
    %v3772 = vpop.f32.mrf.mxu0
    %3773 = vmatprep.mubr.bf16.mxu0 %v3579
    %3774 = vmatmul.mubr.bf16.gmra.mxu0 %v3578
    %v3775 = vpop.f32.mrf.mxu0
    %v3776 = vadd.f32 %v3627, %v3775
    %v3777 = vpop.f32.mrf.mxu0
    %v3778 = vpop.f32.mrf.mxu0
    %v3779 = vadd.f32 %v3627, %v3778
    %v3780 = vpop.f32.mrf.mxu0
    %3781 = vmatprep.mubr.bf16.mxu0 %v3581
    %3782 = vmatmul.mubr.bf16.gmra.mxu0 %v3580
    %v3783 = vpop.f32.mrf.mxu0
    %v3784 = vadd.f32 %v3627, %v3783
    %v3785 = vpop.f32.mrf.mxu0
    %v3786 = vpop.f32.mrf.mxu0
    %v3787 = vadd.f32 %v3627, %v3786
    %v3788 = vpop.f32.mrf.mxu0
    %3789 = vmatprep.mubr.bf16.mxu0 %v3583
    %3790 = vmatmul.mubr.bf16.gmra.mxu0 %v3582
    %v3791 = vpop.f32.mrf.mxu0
    %v3792 = vadd.f32 %v3627, %v3791
    %v3793 = vpop.f32.mrf.mxu0
    %v3794 = vpop.f32.mrf.mxu0
    %v3795 = vadd.f32 %v3627, %v3794
    %v3796 = vpop.f32.mrf.mxu0
    %3797 = vmatprep.mubr.bf16.mxu0 %v3585
    %3798 = vmatmul.mubr.bf16.gmra.mxu0 %v3584
    %v3799 = vpop.f32.mrf.mxu0
    %v3800 = vadd.f32 %v3627, %v3799
    %v3801 = vpop.f32.mrf.mxu0
    %v3802 = vpop.f32.mrf.mxu0
    %v3803 = vadd.f32 %v3627, %v3802
    %v3804 = vpop.f32.mrf.mxu0
    %3805 = vmatprep.mubr.bf16.mxu0 %v3587
    %3806 = vmatmul.mubr.bf16.gmra.mxu0 %v3586
    %v3807 = vpop.f32.mrf.mxu0
    %v3808 = vadd.f32 %v3627, %v3807
    %v3809 = vpop.f32.mrf.mxu0
    %v3810 = vpop.f32.mrf.mxu0
    %v3811 = vadd.f32 %v3627, %v3810
    %v3812 = vpop.f32.mrf.mxu0
    %3813 = vmatprep.mubr.bf16.mxu0 %v3589
    %3814 = vmatmul.mubr.bf16.gmra.mxu0 %v3588
    %v3815 = vpop.f32.mrf.mxu0
    %v3816 = vadd.f32 %v3627, %v3815
    %v3817 = vpop.f32.mrf.mxu0
    %v3818 = vpop.f32.mrf.mxu0
    %v3819 = vadd.f32 %v3627, %v3818
    %v3820 = vpop.f32.mrf.mxu0
    %3821 = vdwg.mxu0
    %v3822 = vpack.c.bf16 %v3763, %v3760
    %v3823 = vpack.c.bf16 %v3771, %v3768
    %v3824 = vpack.c.bf16 %v3779, %v3776
    %v3825 = vpack.c.bf16 %v3787, %v3784
    %v3826 = vpack.c.bf16 %v3795, %v3792
    %v3827 = vpack.c.bf16 %v3803, %v3800
    %v3828 = vpack.c.bf16 %v3811, %v3808
    %v3829 = vpack.c.bf16 %v3819, %v3816
    %s3830 = scalar_lea.vmem %s3, 128
    %v3831 = vld [vmem:[%s3830] sm:$0xff]
    %v3832 = vld [vmem:[%s3830 + $0x8] sm:$0xff]
    %v3833 = vld [vmem:[%s3830 + $0x10] sm:$0xff]
    %v3834 = vld [vmem:[%s3830 + $0x18] sm:$0xff]
    %v3835 = vld [vmem:[%s3830 + $0x20] sm:$0xff]
    %v3836 = vld [vmem:[%s3830 + $0x28] sm:$0xff]
    %v3837 = vld [vmem:[%s3830 + $0x30] sm:$0xff]
    %v3838 = vld [vmem:[%s3830 + $0x38] sm:$0xff]
    %v3839 = vld [vmem:[%s3830 + $0x40] sm:$0xff]
    %v3840 = vld [vmem:[%s3830 + $0x48] sm:$0xff]
    %v3841 = vld [vmem:[%s3830 + $0x50] sm:$0xff]
    %v3842 = vld [vmem:[%s3830 + $0x58] sm:$0xff]
    %v3843 = vld [vmem:[%s3830 + $0x60] sm:$0xff]
    %v3844 = vld [vmem:[%s3830 + $0x68] sm:$0xff]
    %v3845 = vld [vmem:[%s3830 + $0x70] sm:$0xff]
    %v3846 = vld [vmem:[%s3830 + $0x78] sm:$0xff]
    %s3847 = scalar_lea.vmem %s4, 2
    %v3848 = vld [vmem:[%s3847] sm:$0x3]
    %v3850 = vlaneseq
    %v3851 = vshrl.u32 %v3850, 7
    %v3852 = vsub.s32 0, %v3851
    %v3853 = vrot.slane %v3848, %v3852
    %v3854 = vlaneseq
    %v3855 = vshrl.u32 %v3854, 7
    %v3856 = vsub.s32 1, %v3855
    %v3857 = vrot.slane %v3848, %v3856
    %v3876 = vunpack.c.l.b16 %v3831
    %v3877 = vunpack.c.h.b16 %v3831
    %v3878 = vunpack.c.l.b16 %v3832
    %v3879 = vunpack.c.h.b16 %v3832
    %v3880 = vunpack.c.l.b16 %v3833
    %v3881 = vunpack.c.h.b16 %v3833
    %v3882 = vunpack.c.l.b16 %v3834
    %v3883 = vunpack.c.h.b16 %v3834
    %v3884 = vunpack.c.l.b16 %v3835
    %v3885 = vunpack.c.h.b16 %v3835
    %v3886 = vunpack.c.l.b16 %v3836
    %v3887 = vunpack.c.h.b16 %v3836
    %v3888 = vunpack.c.l.b16 %v3837
    %v3889 = vunpack.c.h.b16 %v3837
    %v3890 = vunpack.c.l.b16 %v3838
    %v3891 = vunpack.c.h.b16 %v3838
    %v3892 = vunpack.c.l.b16 %v3839
    %v3893 = vunpack.c.h.b16 %v3839
    %v3894 = vunpack.c.l.b16 %v3840
    %v3895 = vunpack.c.h.b16 %v3840
    %v3896 = vunpack.c.l.b16 %v3841
    %v3897 = vunpack.c.h.b16 %v3841
    %v3898 = vunpack.c.l.b16 %v3842
    %v3899 = vunpack.c.h.b16 %v3842
    %v3900 = vunpack.c.l.b16 %v3843
    %v3901 = vunpack.c.h.b16 %v3843
    %v3902 = vunpack.c.l.b16 %v3844
    %v3903 = vunpack.c.h.b16 %v3844
    %v3904 = vunpack.c.l.b16 %v3845
    %v3905 = vunpack.c.h.b16 %v3845
    %v3906 = vunpack.c.l.b16 %v3846
    %v3907 = vunpack.c.h.b16 %v3846
    %v3908 = vpack.c.b16 %v3878, %v3876
    %v3909 = vpack.c.b16 %v3879, %v3877
    %v3910 = vpack.c.b16 %v3882, %v3880
    %v3911 = vpack.c.b16 %v3883, %v3881
    %v3912 = vpack.c.b16 %v3886, %v3884
    %v3913 = vpack.c.b16 %v3887, %v3885
    %v3914 = vpack.c.b16 %v3890, %v3888
    %v3915 = vpack.c.b16 %v3891, %v3889
    %v3916 = vpack.c.b16 %v3894, %v3892
    %v3917 = vpack.c.b16 %v3895, %v3893
    %v3918 = vpack.c.b16 %v3898, %v3896
    %v3919 = vpack.c.b16 %v3899, %v3897
    %v3920 = vpack.c.b16 %v3902, %v3900
    %v3921 = vpack.c.b16 %v3903, %v3901
    %v3922 = vpack.c.b16 %v3906, %v3904
    %v3923 = vpack.c.b16 %v3907, %v3905
    %3940 = vmatprep.subr.bf16.mxu0 %v3923
    %3941 = vmatpush1.bf16.msra.mxu0 %v3922
    %3942 = vmatprep.subr.bf16.mxu0 %v3921
    %3943 = vmatpush1.bf16.msra.mxu0 %v3920
    %3944 = vmatprep.subr.bf16.mxu0 %v3919
    %3945 = vmatpush1.bf16.msra.mxu0 %v3918
    %3946 = vmatprep.subr.bf16.mxu0 %v3917
    %3947 = vmatpush1.bf16.msra.mxu0 %v3916
    %3948 = vmatprep.subr.bf16.mxu0 %v3915
    %3949 = vmatpush1.bf16.msra.mxu0 %v3914
    %3950 = vmatprep.subr.bf16.mxu0 %v3913
    %3951 = vmatpush1.bf16.msra.mxu0 %v3912
    %3952 = vmatprep.subr.bf16.mxu0 %v3911
    %3953 = vmatpush1.bf16.msra.mxu0 %v3910
    %3954 = vmatprep.subr.bf16.mxu0 %v3909
    %3955 = vmatpush1.bf16.msra.mxu0 %v3908
    %3956 = vmatprep.subr.bf16.mxu0 0
    %3957 = vmatpush2.bf16.msra.mxu0 0
    %3958 = vmatprep.subr.bf16.mxu0 0
    %3959 = vmatpush2.bf16.msra.mxu0 0
    %3960 = vmatprep.subr.bf16.mxu0 0
    %3961 = vmatpush2.bf16.msra.mxu0 0
    %3962 = vmatprep.subr.bf16.mxu0 0
    %3963 = vmatpush2.bf16.msra.mxu0 0
    %3964 = vmatprep.subr.bf16.mxu0 0
    %3965 = vmatpush2.bf16.msra.mxu0 0
    %3966 = vmatprep.subr.bf16.mxu0 0
    %3967 = vmatpush2.bf16.msra.mxu0 0
    %3968 = vmatprep.subr.bf16.mxu0 0
    %3969 = vmatpush2.bf16.msra.mxu0 0
    %3970 = vmatprep.subr.bf16.mxu0 0
    %3971 = vmatpush2.bf16.msra.mxu0 0
    %3972 = vmatprep.mubr.bf16.mxu0 0
    %3973 = vmatmul.mubr.bf16.gmra.mxu0 %v3822
    %v3974 = vpop.f32.mrf.mxu0
    %v3975 = vadd.f32 %v3853, %v3974
    %v3976 = vpop.f32.mrf.mxu0
    %v3977 = vadd.f32 %v3857, %v3976
    %v3978 = vpop.f32.mrf.mxu0
    %v3979 = vadd.f32 %v3853, %v3978
    %v3980 = vpop.f32.mrf.mxu0
    %v3981 = vadd.f32 %v3857, %v3980
    %3982 = vmatprep.mubr.bf16.mxu0 0
    %3983 = vmatmul.mubr.bf16.gmra.mxu0 %v3823
    %v3984 = vpop.f32.mrf.mxu0
    %v3985 = vadd.f32 %v3853, %v3984
    %v3986 = vpop.f32.mrf.mxu0
    %v3987 = vadd.f32 %v3857, %v3986
    %v3988 = vpop.f32.mrf.mxu0
    %v3989 = vadd.f32 %v3853, %v3988
    %v3990 = vpop.f32.mrf.mxu0
    %v3991 = vadd.f32 %v3857, %v3990
    %3992 = vmatprep.mubr.bf16.mxu0 0
    %3993 = vmatmul.mubr.bf16.gmra.mxu0 %v3824
    %v3994 = vpop.f32.mrf.mxu0
    %v3995 = vadd.f32 %v3853, %v3994
    %v3996 = vpop.f32.mrf.mxu0
    %v3997 = vadd.f32 %v3857, %v3996
    %v3998 = vpop.f32.mrf.mxu0
    %v3999 = vadd.f32 %v3853, %v3998
    %v4000 = vpop.f32.mrf.mxu0
    %v4001 = vadd.f32 %v3857, %v4000
    %4002 = vmatprep.mubr.bf16.mxu0 0
    %4003 = vmatmul.mubr.bf16.gmra.mxu0 %v3825
    %v4004 = vpop.f32.mrf.mxu0
    %v4005 = vadd.f32 %v3853, %v4004
    %v4006 = vpop.f32.mrf.mxu0
    %v4007 = vadd.f32 %v3857, %v4006
    %v4008 = vpop.f32.mrf.mxu0
    %v4009 = vadd.f32 %v3853, %v4008
    %v4010 = vpop.f32.mrf.mxu0
    %v4011 = vadd.f32 %v3857, %v4010
    %4012 = vmatprep.mubr.bf16.mxu0 0
    %4013 = vmatmul.mubr.bf16.gmra.mxu0 %v3826
    %v4014 = vpop.f32.mrf.mxu0
    %v4015 = vadd.f32 %v3853, %v4014
    %v4016 = vpop.f32.mrf.mxu0
    %v4017 = vadd.f32 %v3857, %v4016
    %v4018 = vpop.f32.mrf.mxu0
    %v4019 = vadd.f32 %v3853, %v4018
    %v4020 = vpop.f32.mrf.mxu0
    %v4021 = vadd.f32 %v3857, %v4020
    %4022 = vmatprep.mubr.bf16.mxu0 0
    %4023 = vmatmul.mubr.bf16.gmra.mxu0 %v3827
    %v4024 = vpop.f32.mrf.mxu0
    %v4025 = vadd.f32 %v3853, %v4024
    %v4026 = vpop.f32.mrf.mxu0
    %v4027 = vadd.f32 %v3857, %v4026
    %v4028 = vpop.f32.mrf.mxu0
    %v4029 = vadd.f32 %v3853, %v4028
    %v4030 = vpop.f32.mrf.mxu0
    %v4031 = vadd.f32 %v3857, %v4030
    %4032 = vmatprep.mubr.bf16.mxu0 0
    %4033 = vmatmul.mubr.bf16.gmra.mxu0 %v3828
    %v4034 = vpop.f32.mrf.mxu0
    %v4035 = vadd.f32 %v3853, %v4034
    %v4036 = vpop.f32.mrf.mxu0
    %v4037 = vadd.f32 %v3857, %v4036
    %v4038 = vpop.f32.mrf.mxu0
    %v4039 = vadd.f32 %v3853, %v4038
    %v4040 = vpop.f32.mrf.mxu0
    %v4041 = vadd.f32 %v3857, %v4040
    %4042 = vmatprep.mubr.bf16.mxu0 0
    %4043 = vmatmul.mubr.bf16.gmra.mxu0 %v3829
    %v4044 = vpop.f32.mrf.mxu0
    %v4045 = vadd.f32 %v3853, %v4044
    %v4046 = vpop.f32.mrf.mxu0
    %v4047 = vadd.f32 %v3857, %v4046
    %v4048 = vpop.f32.mrf.mxu0
    %v4049 = vadd.f32 %v3853, %v4048
    %v4050 = vpop.f32.mrf.mxu0
    %v4051 = vadd.f32 %v3857, %v4050
    %4052 = vdwg.mxu0
    %v4053 = vmax.f32 %v3975, 0.0
    %v4054 = vmax.f32 %v3977, 0.0
    %v4055 = vmax.f32 %v3979, 0.0
    %v4056 = vmax.f32 %v3981, 0.0
    %v4057 = vmax.f32 %v3985, 0.0
    %v4058 = vmax.f32 %v3987, 0.0
    %v4059 = vmax.f32 %v3989, 0.0
    %v4060 = vmax.f32 %v3991, 0.0
    %v4061 = vmax.f32 %v3995, 0.0
    %v4062 = vmax.f32 %v3997, 0.0
    %v4063 = vmax.f32 %v3999, 0.0
    %v4064 = vmax.f32 %v4001, 0.0
    %v4065 = vmax.f32 %v4005, 0.0
    %v4066 = vmax.f32 %v4007, 0.0
    %v4067 = vmax.f32 %v4009, 0.0
    %v4068 = vmax.f32 %v4011, 0.0
    %v4069 = vmax.f32 %v4015, 0.0
    %v4070 = vmax.f32 %v4017, 0.0
    %v4071 = vmax.f32 %v4019, 0.0
    %v4072 = vmax.f32 %v4021, 0.0
    %v4073 = vmax.f32 %v4025, 0.0
    %v4074 = vmax.f32 %v4027, 0.0
    %v4075 = vmax.f32 %v4029, 0.0
    %v4076 = vmax.f32 %v4031, 0.0
    %v4077 = vmax.f32 %v4035, 0.0
    %v4078 = vmax.f32 %v4037, 0.0
    %v4079 = vmax.f32 %v4039, 0.0
    %v4080 = vmax.f32 %v4041, 0.0
    %v4081 = vmax.f32 %v4045, 0.0
    %v4082 = vmax.f32 %v4047, 0.0
    %v4083 = vmax.f32 %v4049, 0.0
    %v4084 = vmax.f32 %v4051, 0.0
    %v4085 = vmin.f32 %v4053, 6.0
    %v4086 = vmin.f32 %v4054, 6.0
    %v4087 = vmin.f32 %v4055, 6.0
    %v4088 = vmin.f32 %v4056, 6.0
    %v4089 = vmin.f32 %v4057, 6.0
    %v4090 = vmin.f32 %v4058, 6.0
    %v4091 = vmin.f32 %v4059, 6.0
    %v4092 = vmin.f32 %v4060, 6.0
    %v4093 = vmin.f32 %v4061, 6.0
    %v4094 = vmin.f32 %v4062, 6.0
    %v4095 = vmin.f32 %v4063, 6.0
    %v4096 = vmin.f32 %v4064, 6.0
    %v4097 = vmin.f32 %v4065, 6.0
    %v4098 = vmin.f32 %v4066, 6.0
    %v4099 = vmin.f32 %v4067, 6.0
    %v4100 = vmin.f32 %v4068, 6.0
    %v4101 = vmin.f32 %v4069, 6.0
    %v4102 = vmin.f32 %v4070, 6.0
    %v4103 = vmin.f32 %v4071, 6.0
    %v4104 = vmin.f32 %v4072, 6.0
    %v4105 = vmin.f32 %v4073, 6.0
    %v4106 = vmin.f32 %v4074, 6.0
    %v4107 = vmin.f32 %v4075, 6.0
    %v4108 = vmin.f32 %v4076, 6.0
    %v4109 = vmin.f32 %v4077, 6.0
    %v4110 = vmin.f32 %v4078, 6.0
    %v4111 = vmin.f32 %v4079, 6.0
    %v4112 = vmin.f32 %v4080, 6.0
    %v4113 = vmin.f32 %v4081, 6.0
    %v4114 = vmin.f32 %v4082, 6.0
    %v4115 = vmin.f32 %v4083, 6.0
    %v4116 = vmin.f32 %v4084, 6.0
    %v4149 = vrot.slane %v4085, 7
    %v4150 = vrot.slane %v4086, 7
    %v4151 = vrot.slane %v4087, 7
    %v4152 = vrot.slane %v4088, 7
    %v4153 = vrot.slane %v4089, 7
    %v4154 = vrot.slane %v4090, 7
    %v4155 = vrot.slane %v4091, 7
    %v4156 = vrot.slane %v4092, 7
    %v4157 = vrot.slane %v4093, 7
    %v4158 = vrot.slane %v4094, 7
    %v4159 = vrot.slane %v4095, 7
    %v4160 = vrot.slane %v4096, 7
    %v4161 = vrot.slane %v4097, 7
    %v4162 = vrot.slane %v4098, 7
    %v4163 = vrot.slane %v4099, 7
    %v4164 = vrot.slane %v4100, 7
    %v4165 = vrot.slane %v4101, 7
    %v4166 = vrot.slane %v4102, 7
    %v4167 = vrot.slane %v4103, 7
    %v4168 = vrot.slane %v4104, 7
    %v4169 = vrot.slane %v4105, 7
    %v4170 = vrot.slane %v4106, 7
    %v4171 = vrot.slane %v4107, 7
    %v4172 = vrot.slane %v4108, 7
    %v4173 = vrot.slane %v4109, 7
    %v4174 = vrot.slane %v4110, 7
    %v4175 = vrot.slane %v4111, 7
    %v4176 = vrot.slane %v4112, 7
    %v4177 = vrot.slane %v4113, 7
    %v4178 = vrot.slane %v4114, 7
    %v4179 = vrot.slane %v4115, 7
    %v4180 = vrot.slane %v4116, 7
    %4213 = vst [vmem:[%s353] sm:$0xfe] %v4149
    %4214 = vst [vmem:[%s353 + $0x8] sm:$0xfe] %v4150
    %4215 = vst [vmem:[%s353 + $0x10] sm:$0x1] %v4149
    %4216 = vst [vmem:[%s353 + $0x18] sm:$0x1] %v4150
    %4217 = vst [vmem:[%s353 + $0x20] sm:$0xfe] %v4151
    %4218 = vst [vmem:[%s353 + $0x28] sm:$0xfe] %v4152
    %4219 = vst [vmem:[%s353 + $0x30] sm:$0x1] %v4151
    %4220 = vst [vmem:[%s353 + $0x38] sm:$0x1] %v4152
    %4221 = vst [vmem:[%s353 + $0x40] sm:$0xfe] %v4153
    %4222 = vst [vmem:[%s353 + $0x48] sm:$0xfe] %v4154
    %4223 = vst [vmem:[%s353 + $0x50] sm:$0x1] %v4153
    %4224 = vst [vmem:[%s353 + $0x58] sm:$0x1] %v4154
    %4225 = vst [vmem:[%s353 + $0x60] sm:$0xfe] %v4155
    %4226 = vst [vmem:[%s353 + $0x68] sm:$0xfe] %v4156
    %4227 = vst [vmem:[%s353 + $0x70] sm:$0x1] %v4155
    %4228 = vst [vmem:[%s353 + $0x78] sm:$0x1] %v4156
    %4229 = vst [vmem:[%s353 + $0x80] sm:$0xfe] %v4157
    %4230 = vst [vmem:[%s353 + $0x88] sm:$0xfe] %v4158
    %4231 = vst [vmem:[%s353 + $0x90] sm:$0x1] %v4157
    %4232 = vst [vmem:[%s353 + $0x98] sm:$0x1] %v4158
    %4233 = vst [vmem:[%s353 + $0xa0] sm:$0xfe] %v4159
    %4234 = vst [vmem:[%s353 + $0xa8] sm:$0xfe] %v4160
    %4235 = vst [vmem:[%s353 + $0xb0] sm:$0x1] %v4159
    %4236 = vst [vmem:[%s353 + $0xb8] sm:$0x1] %v4160
    %4237 = vst [vmem:[%s353 + $0xc0] sm:$0xfe] %v4161
    %4238 = vst [vmem:[%s353 + $0xc8] sm:$0xfe] %v4162
    %4239 = vst [vmem:[%s353 + $0xd0] sm:$0x1] %v4161
    %4240 = vst [vmem:[%s353 + $0xd8] sm:$0x1] %v4162
    %4241 = vst [vmem:[%s353 + $0xe0] sm:$0xfe] %v4163
    %4242 = vst [vmem:[%s353 + $0xe8] sm:$0xfe] %v4164
    %4243 = vst [vmem:[%s353 + $0xf0] sm:$0x1] %v4163
    %4244 = vst [vmem:[%s353 + $0xf8] sm:$0x1] %v4164
    %4245 = vst [vmem:[%s353 + $0x140] sm:$0xfe] %v4165
    %4246 = vst [vmem:[%s353 + $0x148] sm:$0xfe] %v4166
    %4247 = vst [vmem:[%s353 + $0x150] sm:$0x1] %v4165
    %4248 = vst [vmem:[%s353 + $0x158] sm:$0x1] %v4166
    %4249 = vst [vmem:[%s353 + $0x160] sm:$0xfe] %v4167
    %4250 = vst [vmem:[%s353 + $0x168] sm:$0xfe] %v4168
    %4251 = vst [vmem:[%s353 + $0x170] sm:$0x1] %v4167
    %4252 = vst [vmem:[%s353 + $0x178] sm:$0x1] %v4168
    %4253 = vst [vmem:[%s353 + $0x180] sm:$0xfe] %v4169
    %4254 = vst [vmem:[%s353 + $0x188] sm:$0xfe] %v4170
    %4255 = vst [vmem:[%s353 + $0x190] sm:$0x1] %v4169
    %4256 = vst [vmem:[%s353 + $0x198] sm:$0x1] %v4170
    %4257 = vst [vmem:[%s353 + $0x1a0] sm:$0xfe] %v4171
    %4258 = vst [vmem:[%s353 + $0x1a8] sm:$0xfe] %v4172
    %4259 = vst [vmem:[%s353 + $0x1b0] sm:$0x1] %v4171
    %4260 = vst [vmem:[%s353 + $0x1b8] sm:$0x1] %v4172
    %4261 = vst [vmem:[%s353 + $0x1c0] sm:$0xfe] %v4173
    %4262 = vst [vmem:[%s353 + $0x1c8] sm:$0xfe] %v4174
    %4263 = vst [vmem:[%s353 + $0x1d0] sm:$0x1] %v4173
    %4264 = vst [vmem:[%s353 + $0x1d8] sm:$0x1] %v4174
    %4265 = vst [vmem:[%s353 + $0x1e0] sm:$0xfe] %v4175
    %4266 = vst [vmem:[%s353 + $0x1e8] sm:$0xfe] %v4176
    %4267 = vst [vmem:[%s353 + $0x1f0] sm:$0x1] %v4175
    %4268 = vst [vmem:[%s353 + $0x1f8] sm:$0x1] %v4176
    %4269 = vst [vmem:[%s353 + $0x200] sm:$0xfe] %v4177
    %4270 = vst [vmem:[%s353 + $0x208] sm:$0xfe] %v4178
    %4271 = vst [vmem:[%s353 + $0x210] sm:$0x1] %v4177
    %4272 = vst [vmem:[%s353 + $0x218] sm:$0x1] %v4178
    %4273 = vst [vmem:[%s353 + $0x220] sm:$0xfe] %v4179
    %4274 = vst [vmem:[%s353 + $0x228] sm:$0xfe] %v4180
    %4275 = vst [vmem:[%s353 + $0x230] sm:$0x1] %v4179
    %4276 = vst [vmem:[%s353 + $0x238] sm:$0x1] %v4180
    %s4277 = scalar_lea.vmem %s5, 18
    %v4278 = vld [vmem:[%s4277] sm:$0x3]
    %v4279 = vld [vmem:[%s4277 + $0x2] sm:$0x3]
    %v4280 = vld [vmem:[%s4277 + $0x4] sm:$0x3]
    %v4281 = vld [vmem:[%s4277 + $0x6] sm:$0x3]
    %v4282 = vld [vmem:[%s4277 + $0x8] sm:$0x3]
    %v4283 = vld [vmem:[%s4277 + $0xa] sm:$0x3]
    %v4284 = vld [vmem:[%s4277 + $0xc] sm:$0x3]
    %v4285 = vld [vmem:[%s4277 + $0xe] sm:$0x3]
    %v4286 = vld [vmem:[%s4277 + $0x10] sm:$0x3]
    %v4287 = vld [vmem:[#allocation2] sm:$0xff]
    %v4288 = vld [vmem:[#allocation2 + $0x8] sm:$0xff]
    %v4289 = vld [vmem:[#allocation2 + $0x20] sm:$0xff]
    %v4290 = vld [vmem:[#allocation2 + $0x28] sm:$0xff]
    %v4291 = vld [vmem:[#allocation2 + $0x40] sm:$0xff]
    %v4292 = vld [vmem:[#allocation2 + $0x48] sm:$0xff]
    %v4293 = vld [vmem:[#allocation2 + $0x60] sm:$0xff]
    %v4294 = vld [vmem:[#allocation2 + $0x68] sm:$0xff]
    %v4295 = vld [vmem:[#allocation2 + $0x80] sm:$0xff]
    %v4296 = vld [vmem:[#allocation2 + $0x88] sm:$0xff]
    %v4297 = vld [vmem:[#allocation2 + $0xa0] sm:$0xff]
    %v4298 = vld [vmem:[#allocation2 + $0xa8] sm:$0xff]
    %v4299 = vld [vmem:[#allocation2 + $0xc0] sm:$0xff]
    %v4300 = vld [vmem:[#allocation2 + $0xc8] sm:$0xff]
    %v4301 = vld [vmem:[#allocation2 + $0xe0] sm:$0xff]
    %v4302 = vld [vmem:[#allocation2 + $0xe8] sm:$0xff]
    %v4303 = vld [vmem:[#allocation2 + $0x140] sm:$0xff]
    %v4304 = vld [vmem:[#allocation2 + $0x148] sm:$0xff]
    %v4305 = vld [vmem:[#allocation2 + $0x160] sm:$0xff]
    %v4306 = vld [vmem:[#allocation2 + $0x168] sm:$0xff]
    %v4307 = vld [vmem:[#allocation2 + $0x180] sm:$0xff]
    %v4308 = vld [vmem:[#allocation2 + $0x188] sm:$0xff]
    %v4309 = vld [vmem:[#allocation2 + $0x1a0] sm:$0xff]
    %v4310 = vld [vmem:[#allocation2 + $0x1a8] sm:$0xff]
    %v4311 = vld [vmem:[#allocation2 + $0x1c0] sm:$0xff]
    %v4312 = vld [vmem:[#allocation2 + $0x1c8] sm:$0xff]
    %v4313 = vld [vmem:[#allocation2 + $0x1e0] sm:$0xff]
    %v4314 = vld [vmem:[#allocation2 + $0x1e8] sm:$0xff]
    %v4315 = vld [vmem:[#allocation2 + $0x200] sm:$0xff]
    %v4316 = vld [vmem:[#allocation2 + $0x208] sm:$0xff]
    %v4317 = vld [vmem:[#allocation2 + $0x220] sm:$0xff]
    %v4318 = vld [vmem:[#allocation2 + $0x228] sm:$0xff]
    %v4320 = vlaneseq
    %v4321 = vshrl.u32 %v4320, 7
    %v4322 = vsub.s32 0, %v4321
    %v4323 = vrot.slane %v4278, %v4322
    %v4324 = vlaneseq
    %v4325 = vshrl.u32 %v4324, 7
    %v4326 = vsub.s32 1, %v4325
    %v4327 = vrot.slane %v4278, %v4326
    %v4330 = vmul.f32 %v4287, %v4323
    %v4331 = vmul.f32 %v4288, %v4327
    %v4332 = vmul.f32 %v4289, %v4323
    %v4333 = vmul.f32 %v4290, %v4327
    %v4334 = vmul.f32 %v4291, %v4323
    %v4335 = vmul.f32 %v4292, %v4327
    %v4336 = vmul.f32 %v4293, %v4323
    %v4337 = vmul.f32 %v4294, %v4327
    %v4338 = vmul.f32 %v4295, %v4323
    %v4339 = vmul.f32 %v4296, %v4327
    %v4340 = vmul.f32 %v4297, %v4323
    %v4341 = vmul.f32 %v4298, %v4327
    %v4342 = vmul.f32 %v4299, %v4323
    %v4343 = vmul.f32 %v4300, %v4327
    %v4344 = vmul.f32 %v4301, %v4323
    %v4345 = vmul.f32 %v4302, %v4327
    %v4346 = vmul.f32 %v4303, %v4323
    %v4347 = vmul.f32 %v4304, %v4327
    %v4348 = vmul.f32 %v4305, %v4323
    %v4349 = vmul.f32 %v4306, %v4327
    %v4350 = vmul.f32 %v4307, %v4323
    %v4351 = vmul.f32 %v4308, %v4327
    %v4352 = vmul.f32 %v4309, %v4323
    %v4353 = vmul.f32 %v4310, %v4327
    %v4354 = vmul.f32 %v4311, %v4323
    %v4355 = vmul.f32 %v4312, %v4327
    %v4356 = vmul.f32 %v4313, %v4323
    %v4357 = vmul.f32 %v4314, %v4327
    %v4358 = vmul.f32 %v4315, %v4323
    %v4359 = vmul.f32 %v4316, %v4327
    %v4360 = vmul.f32 %v4317, %v4323
    %v4361 = vmul.f32 %v4318, %v4327
    %v4362 = vadd.f32 %v4330, 0.0
    %v4363 = vadd.f32 %v4331, 0.0
    %v4364 = vadd.f32 %v4332, 0.0
    %v4365 = vadd.f32 %v4333, 0.0
    %v4366 = vadd.f32 %v4334, 0.0
    %v4367 = vadd.f32 %v4335, 0.0
    %v4368 = vadd.f32 %v4336, 0.0
    %v4369 = vadd.f32 %v4337, 0.0
    %v4370 = vadd.f32 %v4338, 0.0
    %v4371 = vadd.f32 %v4339, 0.0
    %v4372 = vadd.f32 %v4340, 0.0
    %v4373 = vadd.f32 %v4341, 0.0
    %v4374 = vadd.f32 %v4342, 0.0
    %v4375 = vadd.f32 %v4343, 0.0
    %v4376 = vadd.f32 %v4344, 0.0
    %v4377 = vadd.f32 %v4345, 0.0
    %v4378 = vadd.f32 %v4346, 0.0
    %v4379 = vadd.f32 %v4347, 0.0
    %v4380 = vadd.f32 %v4348, 0.0
    %v4381 = vadd.f32 %v4349, 0.0
    %v4382 = vadd.f32 %v4350, 0.0
    %v4383 = vadd.f32 %v4351, 0.0
    %v4384 = vadd.f32 %v4352, 0.0
    %v4385 = vadd.f32 %v4353, 0.0
    %v4386 = vadd.f32 %v4354, 0.0
    %v4387 = vadd.f32 %v4355, 0.0
    %v4388 = vadd.f32 %v4356, 0.0
    %v4389 = vadd.f32 %v4357, 0.0
    %v4390 = vadd.f32 %v4358, 0.0
    %v4391 = vadd.f32 %v4359, 0.0
    %v4392 = vadd.f32 %v4360, 0.0
    %v4393 = vadd.f32 %v4361, 0.0
    %v4394 = vld [vmem:[#allocation2] sm:$0xfe]
    %v4395 = vld [vmem:[#allocation2 + $0x8] sm:$0xfe]
    %v4396 = vld [vmem:[#allocation2 + $0x10] sm:$0x1]
    %v4397 = vld [vmem:[#allocation2 + $0x18] sm:$0x1]
    %v4398 = vld [vmem:[#allocation2 + $0x20] sm:$0xfe]
    %v4399 = vld [vmem:[#allocation2 + $0x28] sm:$0xfe]
    %v4400 = vld [vmem:[#allocation2 + $0x30] sm:$0x1]
    %v4401 = vld [vmem:[#allocation2 + $0x38] sm:$0x1]
    %v4402 = vld [vmem:[#allocation2 + $0x40] sm:$0xfe]
    %v4403 = vld [vmem:[#allocation2 + $0x48] sm:$0xfe]
    %v4404 = vld [vmem:[#allocation2 + $0x50] sm:$0x1]
    %v4405 = vld [vmem:[#allocation2 + $0x58] sm:$0x1]
    %v4406 = vld [vmem:[#allocation2 + $0x60] sm:$0xfe]
    %v4407 = vld [vmem:[#allocation2 + $0x68] sm:$0xfe]
    %v4408 = vld [vmem:[#allocation2 + $0x70] sm:$0x1]
    %v4409 = vld [vmem:[#allocation2 + $0x78] sm:$0x1]
    %v4410 = vld [vmem:[#allocation2 + $0x80] sm:$0xfe]
    %v4411 = vld [vmem:[#allocation2 + $0x88] sm:$0xfe]
    %v4412 = vld [vmem:[#allocation2 + $0x90] sm:$0x1]
    %v4413 = vld [vmem:[#allocation2 + $0x98] sm:$0x1]
    %v4414 = vld [vmem:[#allocation2 + $0xa0] sm:$0xfe]
    %v4415 = vld [vmem:[#allocation2 + $0xa8] sm:$0xfe]
    %v4416 = vld [vmem:[#allocation2 + $0xb0] sm:$0x1]
    %v4417 = vld [vmem:[#allocation2 + $0xb8] sm:$0x1]
    %v4418 = vld [vmem:[#allocation2 + $0xc0] sm:$0xfe]
    %v4419 = vld [vmem:[#allocation2 + $0xc8] sm:$0xfe]
    %v4420 = vld [vmem:[#allocation2 + $0xd0] sm:$0x1]
    %v4421 = vld [vmem:[#allocation2 + $0xd8] sm:$0x1]
    %v4422 = vld [vmem:[#allocation2 + $0xe0] sm:$0xfe]
    %v4423 = vld [vmem:[#allocation2 + $0xe8] sm:$0xfe]
    %v4424 = vld [vmem:[#allocation2 + $0xf0] sm:$0x1]
    %v4425 = vld [vmem:[#allocation2 + $0xf8] sm:$0x1]
    %v4426 = vld [vmem:[#allocation2 + $0x140] sm:$0xfe]
    %v4427 = vld [vmem:[#allocation2 + $0x148] sm:$0xfe]
    %v4428 = vld [vmem:[#allocation2 + $0x150] sm:$0x1]
    %v4429 = vld [vmem:[#allocation2 + $0x158] sm:$0x1]
    %v4430 = vld [vmem:[#allocation2 + $0x160] sm:$0xfe]
    %v4431 = vld [vmem:[#allocation2 + $0x168] sm:$0xfe]
    %v4432 = vld [vmem:[#allocation2 + $0x170] sm:$0x1]
    %v4433 = vld [vmem:[#allocation2 + $0x178] sm:$0x1]
    %v4434 = vld [vmem:[#allocation2 + $0x180] sm:$0xfe]
    %v4435 = vld [vmem:[#allocation2 + $0x188] sm:$0xfe]
    %v4436 = vld [vmem:[#allocation2 + $0x190] sm:$0x1]
    %v4437 = vld [vmem:[#allocation2 + $0x198] sm:$0x1]
    %v4438 = vld [vmem:[#allocation2 + $0x1a0] sm:$0xfe]
    %v4439 = vld [vmem:[#allocation2 + $0x1a8] sm:$0xfe]
    %v4440 = vld [vmem:[#allocation2 + $0x1b0] sm:$0x1]
    %v4441 = vld [vmem:[#allocation2 + $0x1b8] sm:$0x1]
    %v4442 = vld [vmem:[#allocation2 + $0x1c0] sm:$0xfe]
    %v4443 = vld [vmem:[#allocation2 + $0x1c8] sm:$0xfe]
    %v4444 = vld [vmem:[#allocation2 + $0x1d0] sm:$0x1]
    %v4445 = vld [vmem:[#allocation2 + $0x1d8] sm:$0x1]
    %v4446 = vld [vmem:[#allocation2 + $0x1e0] sm:$0xfe]
    %v4447 = vld [vmem:[#allocation2 + $0x1e8] sm:$0xfe]
    %v4448 = vld [vmem:[#allocation2 + $0x1f0] sm:$0x1]
    %v4449 = vld [vmem:[#allocation2 + $0x1f8] sm:$0x1]
    %v4450 = vld [vmem:[#allocation2 + $0x200] sm:$0xfe]
    %v4451 = vld [vmem:[#allocation2 + $0x208] sm:$0xfe]
    %v4452 = vld [vmem:[#allocation2 + $0x210] sm:$0x1]
    %v4453 = vld [vmem:[#allocation2 + $0x218] sm:$0x1]
    %v4454 = vld [vmem:[#allocation2 + $0x220] sm:$0xfe]
    %v4455 = vld [vmem:[#allocation2 + $0x228] sm:$0xfe]
    %v4456 = vld [vmem:[#allocation2 + $0x230] sm:$0x1]
    %v4457 = vld [vmem:[#allocation2 + $0x238] sm:$0x1]
    %v4459 = vlaneseq
    %v4460 = vshrl.u32 %v4459, 7
    %v4461 = vsub.s32 0, %v4460
    %v4462 = vrot.slane %v4279, %v4461
    %v4463 = vlaneseq
    %v4464 = vshrl.u32 %v4463, 7
    %v4465 = vsub.s32 1, %v4464
    %v4466 = vrot.slane %v4279, %v4465
    %v4469 = vmul.f32 %v4394, %v4462
    %v4470 = vmul.f32 %v4395, %v4466
    %v4471 = vmul.f32 %v4396, %v4462
    %v4472 = vmul.f32 %v4397, %v4466
    %v4473 = vmul.f32 %v4398, %v4462
    %v4474 = vmul.f32 %v4399, %v4466
    %v4475 = vmul.f32 %v4400, %v4462
    %v4476 = vmul.f32 %v4401, %v4466
    %v4477 = vmul.f32 %v4402, %v4462
    %v4478 = vmul.f32 %v4403, %v4466
    %v4479 = vmul.f32 %v4404, %v4462
    %v4480 = vmul.f32 %v4405, %v4466
    %v4481 = vmul.f32 %v4406, %v4462
    %v4482 = vmul.f32 %v4407, %v4466
    %v4483 = vmul.f32 %v4408, %v4462
    %v4484 = vmul.f32 %v4409, %v4466
    %v4485 = vmul.f32 %v4410, %v4462
    %v4486 = vmul.f32 %v4411, %v4466
    %v4487 = vmul.f32 %v4412, %v4462
    %v4488 = vmul.f32 %v4413, %v4466
    %v4489 = vmul.f32 %v4414, %v4462
    %v4490 = vmul.f32 %v4415, %v4466
    %v4491 = vmul.f32 %v4416, %v4462
    %v4492 = vmul.f32 %v4417, %v4466
    %v4493 = vmul.f32 %v4418, %v4462
    %v4494 = vmul.f32 %v4419, %v4466
    %v4495 = vmul.f32 %v4420, %v4462
    %v4496 = vmul.f32 %v4421, %v4466
    %v4497 = vmul.f32 %v4422, %v4462
    %v4498 = vmul.f32 %v4423, %v4466
    %v4499 = vmul.f32 %v4424, %v4462
    %v4500 = vmul.f32 %v4425, %v4466
    %v4501 = vmul.f32 %v4426, %v4462
    %v4502 = vmul.f32 %v4427, %v4466
    %v4503 = vmul.f32 %v4428, %v4462
    %v4504 = vmul.f32 %v4429, %v4466
    %v4505 = vmul.f32 %v4430, %v4462
    %v4506 = vmul.f32 %v4431, %v4466
    %v4507 = vmul.f32 %v4432, %v4462
    %v4508 = vmul.f32 %v4433, %v4466
    %v4509 = vmul.f32 %v4434, %v4462
    %v4510 = vmul.f32 %v4435, %v4466
    %v4511 = vmul.f32 %v4436, %v4462
    %v4512 = vmul.f32 %v4437, %v4466
    %v4513 = vmul.f32 %v4438, %v4462
    %v4514 = vmul.f32 %v4439, %v4466
    %v4515 = vmul.f32 %v4440, %v4462
    %v4516 = vmul.f32 %v4441, %v4466
    %v4517 = vmul.f32 %v4442, %v4462
    %v4518 = vmul.f32 %v4443, %v4466
    %v4519 = vmul.f32 %v4444, %v4462
    %v4520 = vmul.f32 %v4445, %v4466
    %v4521 = vmul.f32 %v4446, %v4462
    %v4522 = vmul.f32 %v4447, %v4466
    %v4523 = vmul.f32 %v4448, %v4462
    %v4524 = vmul.f32 %v4449, %v4466
    %v4525 = vmul.f32 %v4450, %v4462
    %v4526 = vmul.f32 %v4451, %v4466
    %v4527 = vmul.f32 %v4452, %v4462
    %v4528 = vmul.f32 %v4453, %v4466
    %v4529 = vmul.f32 %v4454, %v4462
    %v4530 = vmul.f32 %v4455, %v4466
    %v4531 = vmul.f32 %v4456, %v4462
    %v4532 = vmul.f32 %v4457, %v4466
    %v4597 = vrot.slane %v4469, 1
    %v4598 = vrot.slane %v4471, 1
    %v4599 = vsel %vm1274, %v4597, %v4598
    %v4600 = vrot.slane %v4470, 1
    %v4601 = vrot.slane %v4472, 1
    %v4602 = vsel %vm1274, %v4600, %v4601
    %v4603 = vrot.slane %v4473, 1
    %v4604 = vrot.slane %v4475, 1
    %v4605 = vsel %vm1274, %v4603, %v4604
    %v4606 = vrot.slane %v4474, 1
    %v4607 = vrot.slane %v4476, 1
    %v4608 = vsel %vm1274, %v4606, %v4607
    %v4609 = vrot.slane %v4477, 1
    %v4610 = vrot.slane %v4479, 1
    %v4611 = vsel %vm1274, %v4609, %v4610
    %v4612 = vrot.slane %v4478, 1
    %v4613 = vrot.slane %v4480, 1
    %v4614 = vsel %vm1274, %v4612, %v4613
    %v4615 = vrot.slane %v4481, 1
    %v4616 = vrot.slane %v4483, 1
    %v4617 = vsel %vm1274, %v4615, %v4616
    %v4618 = vrot.slane %v4482, 1
    %v4619 = vrot.slane %v4484, 1
    %v4620 = vsel %vm1274, %v4618, %v4619
    %v4621 = vrot.slane %v4485, 1
    %v4622 = vrot.slane %v4487, 1
    %v4623 = vsel %vm1274, %v4621, %v4622
    %v4624 = vrot.slane %v4486, 1
    %v4625 = vrot.slane %v4488, 1
    %v4626 = vsel %vm1274, %v4624, %v4625
    %v4627 = vrot.slane %v4489, 1
    %v4628 = vrot.slane %v4491, 1
    %v4629 = vsel %vm1274, %v4627, %v4628
    %v4630 = vrot.slane %v4490, 1
    %v4631 = vrot.slane %v4492, 1
    %v4632 = vsel %vm1274, %v4630, %v4631
    %v4633 = vrot.slane %v4493, 1
    %v4634 = vrot.slane %v4495, 1
    %v4635 = vsel %vm1274, %v4633, %v4634
    %v4636 = vrot.slane %v4494, 1
    %v4637 = vrot.slane %v4496, 1
    %v4638 = vsel %vm1274, %v4636, %v4637
    %v4639 = vrot.slane %v4497, 1
    %v4640 = vrot.slane %v4499, 1
    %v4641 = vsel %vm1274, %v4639, %v4640
    %v4642 = vrot.slane %v4498, 1
    %v4643 = vrot.slane %v4500, 1
    %v4644 = vsel %vm1274, %v4642, %v4643
    %v4645 = vrot.slane %v4501, 1
    %v4646 = vrot.slane %v4503, 1
    %v4647 = vsel %vm1274, %v4645, %v4646
    %v4648 = vrot.slane %v4502, 1
    %v4649 = vrot.slane %v4504, 1
    %v4650 = vsel %vm1274, %v4648, %v4649
    %v4651 = vrot.slane %v4505, 1
    %v4652 = vrot.slane %v4507, 1
    %v4653 = vsel %vm1274, %v4651, %v4652
    %v4654 = vrot.slane %v4506, 1
    %v4655 = vrot.slane %v4508, 1
    %v4656 = vsel %vm1274, %v4654, %v4655
    %v4657 = vrot.slane %v4509, 1
    %v4658 = vrot.slane %v4511, 1
    %v4659 = vsel %vm1274, %v4657, %v4658
    %v4660 = vrot.slane %v4510, 1
    %v4661 = vrot.slane %v4512, 1
    %v4662 = vsel %vm1274, %v4660, %v4661
    %v4663 = vrot.slane %v4513, 1
    %v4664 = vrot.slane %v4515, 1
    %v4665 = vsel %vm1274, %v4663, %v4664
    %v4666 = vrot.slane %v4514, 1
    %v4667 = vrot.slane %v4516, 1
    %v4668 = vsel %vm1274, %v4666, %v4667
    %v4669 = vrot.slane %v4517, 1
    %v4670 = vrot.slane %v4519, 1
    %v4671 = vsel %vm1274, %v4669, %v4670
    %v4672 = vrot.slane %v4518, 1
    %v4673 = vrot.slane %v4520, 1
    %v4674 = vsel %vm1274, %v4672, %v4673
    %v4675 = vrot.slane %v4521, 1
    %v4676 = vrot.slane %v4523, 1
    %v4677 = vsel %vm1274, %v4675, %v4676
    %v4678 = vrot.slane %v4522, 1
    %v4679 = vrot.slane %v4524, 1
    %v4680 = vsel %vm1274, %v4678, %v4679
    %v4681 = vrot.slane %v4525, 1
    %v4682 = vrot.slane %v4527, 1
    %v4683 = vsel %vm1274, %v4681, %v4682
    %v4684 = vrot.slane %v4526, 1
    %v4685 = vrot.slane %v4528, 1
    %v4686 = vsel %vm1274, %v4684, %v4685
    %v4687 = vrot.slane %v4529, 1
    %v4688 = vrot.slane %v4531, 1
    %v4689 = vsel %vm1274, %v4687, %v4688
    %v4690 = vrot.slane %v4530, 1
    %v4691 = vrot.slane %v4532, 1
    %v4692 = vsel %vm1274, %v4690, %v4691
    %v4725 = vadd.f32 %v4362, %v4599
    %v4726 = vadd.f32 %v4363, %v4602
    %v4727 = vadd.f32 %v4364, %v4605
    %v4728 = vadd.f32 %v4365, %v4608
    %v4729 = vadd.f32 %v4366, %v4611
    %v4730 = vadd.f32 %v4367, %v4614
    %v4731 = vadd.f32 %v4368, %v4617
    %v4732 = vadd.f32 %v4369, %v4620
    %v4733 = vadd.f32 %v4370, %v4623
    %v4734 = vadd.f32 %v4371, %v4626
    %v4735 = vadd.f32 %v4372, %v4629
    %v4736 = vadd.f32 %v4373, %v4632
    %v4737 = vadd.f32 %v4374, %v4635
    %v4738 = vadd.f32 %v4375, %v4638
    %v4739 = vadd.f32 %v4376, %v4641
    %v4740 = vadd.f32 %v4377, %v4644
    %v4741 = vadd.f32 %v4378, %v4647
    %v4742 = vadd.f32 %v4379, %v4650
    %v4743 = vadd.f32 %v4380, %v4653
    %v4744 = vadd.f32 %v4381, %v4656
    %v4745 = vadd.f32 %v4382, %v4659
    %v4746 = vadd.f32 %v4383, %v4662
    %v4747 = vadd.f32 %v4384, %v4665
    %v4748 = vadd.f32 %v4385, %v4668
    %v4749 = vadd.f32 %v4386, %v4671
    %v4750 = vadd.f32 %v4387, %v4674
    %v4751 = vadd.f32 %v4388, %v4677
    %v4752 = vadd.f32 %v4389, %v4680
    %v4753 = vadd.f32 %v4390, %v4683
    %v4754 = vadd.f32 %v4391, %v4686
    %v4755 = vadd.f32 %v4392, %v4689
    %v4756 = vadd.f32 %v4393, %v4692
    %v4757 = vld [vmem:[#allocation2] sm:$0xfc]
    %v4758 = vld [vmem:[#allocation2 + $0x8] sm:$0xfc]
    %v4759 = vld [vmem:[#allocation2 + $0x10] sm:$0x3]
    %v4760 = vld [vmem:[#allocation2 + $0x18] sm:$0x3]
    %v4761 = vld [vmem:[#allocation2 + $0x20] sm:$0xfc]
    %v4762 = vld [vmem:[#allocation2 + $0x28] sm:$0xfc]
    %v4763 = vld [vmem:[#allocation2 + $0x30] sm:$0x3]
    %v4764 = vld [vmem:[#allocation2 + $0x38] sm:$0x3]
    %v4765 = vld [vmem:[#allocation2 + $0x40] sm:$0xfc]
    %v4766 = vld [vmem:[#allocation2 + $0x48] sm:$0xfc]
    %v4767 = vld [vmem:[#allocation2 + $0x50] sm:$0x3]
    %v4768 = vld [vmem:[#allocation2 + $0x58] sm:$0x3]
    %v4769 = vld [vmem:[#allocation2 + $0x60] sm:$0xfc]
    %v4770 = vld [vmem:[#allocation2 + $0x68] sm:$0xfc]
    %v4771 = vld [vmem:[#allocation2 + $0x70] sm:$0x3]
    %v4772 = vld [vmem:[#allocation2 + $0x78] sm:$0x3]
    %v4773 = vld [vmem:[#allocation2 + $0x80] sm:$0xfc]
    %v4774 = vld [vmem:[#allocation2 + $0x88] sm:$0xfc]
    %v4775 = vld [vmem:[#allocation2 + $0x90] sm:$0x3]
    %v4776 = vld [vmem:[#allocation2 + $0x98] sm:$0x3]
    %v4777 = vld [vmem:[#allocation2 + $0xa0] sm:$0xfc]
    %v4778 = vld [vmem:[#allocation2 + $0xa8] sm:$0xfc]
    %v4779 = vld [vmem:[#allocation2 + $0xb0] sm:$0x3]
    %v4780 = vld [vmem:[#allocation2 + $0xb8] sm:$0x3]
    %v4781 = vld [vmem:[#allocation2 + $0xc0] sm:$0xfc]
    %v4782 = vld [vmem:[#allocation2 + $0xc8] sm:$0xfc]
    %v4783 = vld [vmem:[#allocation2 + $0xd0] sm:$0x3]
    %v4784 = vld [vmem:[#allocation2 + $0xd8] sm:$0x3]
    %v4785 = vld [vmem:[#allocation2 + $0xe0] sm:$0xfc]
    %v4786 = vld [vmem:[#allocation2 + $0xe8] sm:$0xfc]
    %v4787 = vld [vmem:[#allocation2 + $0xf0] sm:$0x3]
    %v4788 = vld [vmem:[#allocation2 + $0xf8] sm:$0x3]
    %v4789 = vld [vmem:[#allocation2 + $0x140] sm:$0xfc]
    %v4790 = vld [vmem:[#allocation2 + $0x148] sm:$0xfc]
    %v4791 = vld [vmem:[#allocation2 + $0x150] sm:$0x3]
    %v4792 = vld [vmem:[#allocation2 + $0x158] sm:$0x3]
    %v4793 = vld [vmem:[#allocation2 + $0x160] sm:$0xfc]
    %v4794 = vld [vmem:[#allocation2 + $0x168] sm:$0xfc]
    %v4795 = vld [vmem:[#allocation2 + $0x170] sm:$0x3]
    %v4796 = vld [vmem:[#allocation2 + $0x178] sm:$0x3]
    %v4797 = vld [vmem:[#allocation2 + $0x180] sm:$0xfc]
    %v4798 = vld [vmem:[#allocation2 + $0x188] sm:$0xfc]
    %v4799 = vld [vmem:[#allocation2 + $0x190] sm:$0x3]
    %v4800 = vld [vmem:[#allocation2 + $0x198] sm:$0x3]
    %v4801 = vld [vmem:[#allocation2 + $0x1a0] sm:$0xfc]
    %v4802 = vld [vmem:[#allocation2 + $0x1a8] sm:$0xfc]
    %v4803 = vld [vmem:[#allocation2 + $0x1b0] sm:$0x3]
    %v4804 = vld [vmem:[#allocation2 + $0x1b8] sm:$0x3]
    %v4805 = vld [vmem:[#allocation2 + $0x1c0] sm:$0xfc]
    %v4806 = vld [vmem:[#allocation2 + $0x1c8] sm:$0xfc]
    %v4807 = vld [vmem:[#allocation2 + $0x1d0] sm:$0x3]
    %v4808 = vld [vmem:[#allocation2 + $0x1d8] sm:$0x3]
    %v4809 = vld [vmem:[#allocation2 + $0x1e0] sm:$0xfc]
    %v4810 = vld [vmem:[#allocation2 + $0x1e8] sm:$0xfc]
    %v4811 = vld [vmem:[#allocation2 + $0x1f0] sm:$0x3]
    %v4812 = vld [vmem:[#allocation2 + $0x1f8] sm:$0x3]
    %v4813 = vld [vmem:[#allocation2 + $0x200] sm:$0xfc]
    %v4814 = vld [vmem:[#allocation2 + $0x208] sm:$0xfc]
    %v4815 = vld [vmem:[#allocation2 + $0x210] sm:$0x3]
    %v4816 = vld [vmem:[#allocation2 + $0x218] sm:$0x3]
    %v4817 = vld [vmem:[#allocation2 + $0x220] sm:$0xfc]
    %v4818 = vld [vmem:[#allocation2 + $0x228] sm:$0xfc]
    %v4819 = vld [vmem:[#allocation2 + $0x230] sm:$0x3]
    %v4820 = vld [vmem:[#allocation2 + $0x238] sm:$0x3]
    %v4822 = vlaneseq
    %v4823 = vshrl.u32 %v4822, 7
    %v4824 = vsub.s32 0, %v4823
    %v4825 = vrot.slane %v4280, %v4824
    %v4826 = vlaneseq
    %v4827 = vshrl.u32 %v4826, 7
    %v4828 = vsub.s32 1, %v4827
    %v4829 = vrot.slane %v4280, %v4828
    %v4832 = vmul.f32 %v4757, %v4825
    %v4833 = vmul.f32 %v4758, %v4829
    %v4834 = vmul.f32 %v4759, %v4825
    %v4835 = vmul.f32 %v4760, %v4829
    %v4836 = vmul.f32 %v4761, %v4825
    %v4837 = vmul.f32 %v4762, %v4829
    %v4838 = vmul.f32 %v4763, %v4825
    %v4839 = vmul.f32 %v4764, %v4829
    %v4840 = vmul.f32 %v4765, %v4825
    %v4841 = vmul.f32 %v4766, %v4829
    %v4842 = vmul.f32 %v4767, %v4825
    %v4843 = vmul.f32 %v4768, %v4829
    %v4844 = vmul.f32 %v4769, %v4825
    %v4845 = vmul.f32 %v4770, %v4829
    %v4846 = vmul.f32 %v4771, %v4825
    %v4847 = vmul.f32 %v4772, %v4829
    %v4848 = vmul.f32 %v4773, %v4825
    %v4849 = vmul.f32 %v4774, %v4829
    %v4850 = vmul.f32 %v4775, %v4825
    %v4851 = vmul.f32 %v4776, %v4829
    %v4852 = vmul.f32 %v4777, %v4825
    %v4853 = vmul.f32 %v4778, %v4829
    %v4854 = vmul.f32 %v4779, %v4825
    %v4855 = vmul.f32 %v4780, %v4829
    %v4856 = vmul.f32 %v4781, %v4825
    %v4857 = vmul.f32 %v4782, %v4829
    %v4858 = vmul.f32 %v4783, %v4825
    %v4859 = vmul.f32 %v4784, %v4829
    %v4860 = vmul.f32 %v4785, %v4825
    %v4861 = vmul.f32 %v4786, %v4829
    %v4862 = vmul.f32 %v4787, %v4825
    %v4863 = vmul.f32 %v4788, %v4829
    %v4864 = vmul.f32 %v4789, %v4825
    %v4865 = vmul.f32 %v4790, %v4829
    %v4866 = vmul.f32 %v4791, %v4825
    %v4867 = vmul.f32 %v4792, %v4829
    %v4868 = vmul.f32 %v4793, %v4825
    %v4869 = vmul.f32 %v4794, %v4829
    %v4870 = vmul.f32 %v4795, %v4825
    %v4871 = vmul.f32 %v4796, %v4829
    %v4872 = vmul.f32 %v4797, %v4825
    %v4873 = vmul.f32 %v4798, %v4829
    %v4874 = vmul.f32 %v4799, %v4825
    %v4875 = vmul.f32 %v4800, %v4829
    %v4876 = vmul.f32 %v4801, %v4825
    %v4877 = vmul.f32 %v4802, %v4829
    %v4878 = vmul.f32 %v4803, %v4825
    %v4879 = vmul.f32 %v4804, %v4829
    %v4880 = vmul.f32 %v4805, %v4825
    %v4881 = vmul.f32 %v4806, %v4829
    %v4882 = vmul.f32 %v4807, %v4825
    %v4883 = vmul.f32 %v4808, %v4829
    %v4884 = vmul.f32 %v4809, %v4825
    %v4885 = vmul.f32 %v4810, %v4829
    %v4886 = vmul.f32 %v4811, %v4825
    %v4887 = vmul.f32 %v4812, %v4829
    %v4888 = vmul.f32 %v4813, %v4825
    %v4889 = vmul.f32 %v4814, %v4829
    %v4890 = vmul.f32 %v4815, %v4825
    %v4891 = vmul.f32 %v4816, %v4829
    %v4892 = vmul.f32 %v4817, %v4825
    %v4893 = vmul.f32 %v4818, %v4829
    %v4894 = vmul.f32 %v4819, %v4825
    %v4895 = vmul.f32 %v4820, %v4829
    %v4960 = vrot.slane %v4832, 2
    %v4961 = vrot.slane %v4834, 2
    %v4962 = vsel %vm1638, %v4960, %v4961
    %v4963 = vrot.slane %v4833, 2
    %v4964 = vrot.slane %v4835, 2
    %v4965 = vsel %vm1638, %v4963, %v4964
    %v4966 = vrot.slane %v4836, 2
    %v4967 = vrot.slane %v4838, 2
    %v4968 = vsel %vm1638, %v4966, %v4967
    %v4969 = vrot.slane %v4837, 2
    %v4970 = vrot.slane %v4839, 2
    %v4971 = vsel %vm1638, %v4969, %v4970
    %v4972 = vrot.slane %v4840, 2
    %v4973 = vrot.slane %v4842, 2
    %v4974 = vsel %vm1638, %v4972, %v4973
    %v4975 = vrot.slane %v4841, 2
    %v4976 = vrot.slane %v4843, 2
    %v4977 = vsel %vm1638, %v4975, %v4976
    %v4978 = vrot.slane %v4844, 2
    %v4979 = vrot.slane %v4846, 2
    %v4980 = vsel %vm1638, %v4978, %v4979
    %v4981 = vrot.slane %v4845, 2
    %v4982 = vrot.slane %v4847, 2
    %v4983 = vsel %vm1638, %v4981, %v4982
    %v4984 = vrot.slane %v4848, 2
    %v4985 = vrot.slane %v4850, 2
    %v4986 = vsel %vm1638, %v4984, %v4985
    %v4987 = vrot.slane %v4849, 2
    %v4988 = vrot.slane %v4851, 2
    %v4989 = vsel %vm1638, %v4987, %v4988
    %v4990 = vrot.slane %v4852, 2
    %v4991 = vrot.slane %v4854, 2
    %v4992 = vsel %vm1638, %v4990, %v4991
    %v4993 = vrot.slane %v4853, 2
    %v4994 = vrot.slane %v4855, 2
    %v4995 = vsel %vm1638, %v4993, %v4994
    %v4996 = vrot.slane %v4856, 2
    %v4997 = vrot.slane %v4858, 2
    %v4998 = vsel %vm1638, %v4996, %v4997
    %v4999 = vrot.slane %v4857, 2
    %v5000 = vrot.slane %v4859, 2
    %v5001 = vsel %vm1638, %v4999, %v5000
    %v5002 = vrot.slane %v4860, 2
    %v5003 = vrot.slane %v4862, 2
    %v5004 = vsel %vm1638, %v5002, %v5003
    %v5005 = vrot.slane %v4861, 2
    %v5006 = vrot.slane %v4863, 2
    %v5007 = vsel %vm1638, %v5005, %v5006
    %v5008 = vrot.slane %v4864, 2
    %v5009 = vrot.slane %v4866, 2
    %v5010 = vsel %vm1638, %v5008, %v5009
    %v5011 = vrot.slane %v4865, 2
    %v5012 = vrot.slane %v4867, 2
    %v5013 = vsel %vm1638, %v5011, %v5012
    %v5014 = vrot.slane %v4868, 2
    %v5015 = vrot.slane %v4870, 2
    %v5016 = vsel %vm1638, %v5014, %v5015
    %v5017 = vrot.slane %v4869, 2
    %v5018 = vrot.slane %v4871, 2
    %v5019 = vsel %vm1638, %v5017, %v5018
    %v5020 = vrot.slane %v4872, 2
    %v5021 = vrot.slane %v4874, 2
    %v5022 = vsel %vm1638, %v5020, %v5021
    %v5023 = vrot.slane %v4873, 2
    %v5024 = vrot.slane %v4875, 2
    %v5025 = vsel %vm1638, %v5023, %v5024
    %v5026 = vrot.slane %v4876, 2
    %v5027 = vrot.slane %v4878, 2
    %v5028 = vsel %vm1638, %v5026, %v5027
    %v5029 = vrot.slane %v4877, 2
    %v5030 = vrot.slane %v4879, 2
    %v5031 = vsel %vm1638, %v5029, %v5030
    %v5032 = vrot.slane %v4880, 2
    %v5033 = vrot.slane %v4882, 2
    %v5034 = vsel %vm1638, %v5032, %v5033
    %v5035 = vrot.slane %v4881, 2
    %v5036 = vrot.slane %v4883, 2
    %v5037 = vsel %vm1638, %v5035, %v5036
    %v5038 = vrot.slane %v4884, 2
    %v5039 = vrot.slane %v4886, 2
    %v5040 = vsel %vm1638, %v5038, %v5039
    %v5041 = vrot.slane %v4885, 2
    %v5042 = vrot.slane %v4887, 2
    %v5043 = vsel %vm1638, %v5041, %v5042
    %v5044 = vrot.slane %v4888, 2
    %v5045 = vrot.slane %v4890, 2
    %v5046 = vsel %vm1638, %v5044, %v5045
    %v5047 = vrot.slane %v4889, 2
    %v5048 = vrot.slane %v4891, 2
    %v5049 = vsel %vm1638, %v5047, %v5048
    %v5050 = vrot.slane %v4892, 2
    %v5051 = vrot.slane %v4894, 2
    %v5052 = vsel %vm1638, %v5050, %v5051
    %v5053 = vrot.slane %v4893, 2
    %v5054 = vrot.slane %v4895, 2
    %v5055 = vsel %vm1638, %v5053, %v5054
    %v5088 = vadd.f32 %v4725, %v4962
    %v5089 = vadd.f32 %v4726, %v4965
    %v5090 = vadd.f32 %v4727, %v4968
    %v5091 = vadd.f32 %v4728, %v4971
    %v5092 = vadd.f32 %v4729, %v4974
    %v5093 = vadd.f32 %v4730, %v4977
    %v5094 = vadd.f32 %v4731, %v4980
    %v5095 = vadd.f32 %v4732, %v4983
    %v5096 = vadd.f32 %v4733, %v4986
    %v5097 = vadd.f32 %v4734, %v4989
    %v5098 = vadd.f32 %v4735, %v4992
    %v5099 = vadd.f32 %v4736, %v4995
    %v5100 = vadd.f32 %v4737, %v4998
    %v5101 = vadd.f32 %v4738, %v5001
    %v5102 = vadd.f32 %v4739, %v5004
    %v5103 = vadd.f32 %v4740, %v5007
    %v5104 = vadd.f32 %v4741, %v5010
    %v5105 = vadd.f32 %v4742, %v5013
    %v5106 = vadd.f32 %v4743, %v5016
    %v5107 = vadd.f32 %v4744, %v5019
    %v5108 = vadd.f32 %v4745, %v5022
    %v5109 = vadd.f32 %v4746, %v5025
    %v5110 = vadd.f32 %v4747, %v5028
    %v5111 = vadd.f32 %v4748, %v5031
    %v5112 = vadd.f32 %v4749, %v5034
    %v5113 = vadd.f32 %v4750, %v5037
    %v5114 = vadd.f32 %v4751, %v5040
    %v5115 = vadd.f32 %v4752, %v5043
    %v5116 = vadd.f32 %v4753, %v5046
    %v5117 = vadd.f32 %v4754, %v5049
    %v5118 = vadd.f32 %v4755, %v5052
    %v5119 = vadd.f32 %v4756, %v5055
    %v5120 = vld [vmem:[%s353] sm:$0xff]
    %v5121 = vld [vmem:[%s353 + $0x8] sm:$0xff]
    %v5122 = vld [vmem:[%s353 + $0x20] sm:$0xff]
    %v5123 = vld [vmem:[%s353 + $0x28] sm:$0xff]
    %v5124 = vld [vmem:[%s353 + $0x40] sm:$0xff]
    %v5125 = vld [vmem:[%s353 + $0x48] sm:$0xff]
    %v5126 = vld [vmem:[%s353 + $0x60] sm:$0xff]
    %v5127 = vld [vmem:[%s353 + $0x68] sm:$0xff]
    %v5128 = vld [vmem:[%s353 + $0x80] sm:$0xff]
    %v5129 = vld [vmem:[%s353 + $0x88] sm:$0xff]
    %v5130 = vld [vmem:[%s353 + $0xa0] sm:$0xff]
    %v5131 = vld [vmem:[%s353 + $0xa8] sm:$0xff]
    %v5132 = vld [vmem:[%s353 + $0xc0] sm:$0xff]
    %v5133 = vld [vmem:[%s353 + $0xc8] sm:$0xff]
    %v5134 = vld [vmem:[%s353 + $0xe0] sm:$0xff]
    %v5135 = vld [vmem:[%s353 + $0xe8] sm:$0xff]
    %v5136 = vld [vmem:[%s353 + $0x140] sm:$0xff]
    %v5137 = vld [vmem:[%s353 + $0x148] sm:$0xff]
    %v5138 = vld [vmem:[%s353 + $0x160] sm:$0xff]
    %v5139 = vld [vmem:[%s353 + $0x168] sm:$0xff]
    %v5140 = vld [vmem:[%s353 + $0x180] sm:$0xff]
    %v5141 = vld [vmem:[%s353 + $0x188] sm:$0xff]
    %v5142 = vld [vmem:[%s353 + $0x1a0] sm:$0xff]
    %v5143 = vld [vmem:[%s353 + $0x1a8] sm:$0xff]
    %v5144 = vld [vmem:[%s353 + $0x1c0] sm:$0xff]
    %v5145 = vld [vmem:[%s353 + $0x1c8] sm:$0xff]
    %v5146 = vld [vmem:[%s353 + $0x1e0] sm:$0xff]
    %v5147 = vld [vmem:[%s353 + $0x1e8] sm:$0xff]
    %v5148 = vld [vmem:[%s353 + $0x200] sm:$0xff]
    %v5149 = vld [vmem:[%s353 + $0x208] sm:$0xff]
    %v5150 = vld [vmem:[%s353 + $0x220] sm:$0xff]
    %v5151 = vld [vmem:[%s353 + $0x228] sm:$0xff]
    %v5153 = vlaneseq
    %v5154 = vshrl.u32 %v5153, 7
    %v5155 = vsub.s32 0, %v5154
    %v5156 = vrot.slane %v4281, %v5155
    %v5157 = vlaneseq
    %v5158 = vshrl.u32 %v5157, 7
    %v5159 = vsub.s32 1, %v5158
    %v5160 = vrot.slane %v4281, %v5159
    %v5163 = vmul.f32 %v5120, %v5156
    %v5164 = vmul.f32 %v5121, %v5160
    %v5165 = vmul.f32 %v5122, %v5156
    %v5166 = vmul.f32 %v5123, %v5160
    %v5167 = vmul.f32 %v5124, %v5156
    %v5168 = vmul.f32 %v5125, %v5160
    %v5169 = vmul.f32 %v5126, %v5156
    %v5170 = vmul.f32 %v5127, %v5160
    %v5171 = vmul.f32 %v5128, %v5156
    %v5172 = vmul.f32 %v5129, %v5160
    %v5173 = vmul.f32 %v5130, %v5156
    %v5174 = vmul.f32 %v5131, %v5160
    %v5175 = vmul.f32 %v5132, %v5156
    %v5176 = vmul.f32 %v5133, %v5160
    %v5177 = vmul.f32 %v5134, %v5156
    %v5178 = vmul.f32 %v5135, %v5160
    %v5179 = vmul.f32 %v5136, %v5156
    %v5180 = vmul.f32 %v5137, %v5160
    %v5181 = vmul.f32 %v5138, %v5156
    %v5182 = vmul.f32 %v5139, %v5160
    %v5183 = vmul.f32 %v5140, %v5156
    %v5184 = vmul.f32 %v5141, %v5160
    %v5185 = vmul.f32 %v5142, %v5156
    %v5186 = vmul.f32 %v5143, %v5160
    %v5187 = vmul.f32 %v5144, %v5156
    %v5188 = vmul.f32 %v5145, %v5160
    %v5189 = vmul.f32 %v5146, %v5156
    %v5190 = vmul.f32 %v5147, %v5160
    %v5191 = vmul.f32 %v5148, %v5156
    %v5192 = vmul.f32 %v5149, %v5160
    %v5193 = vmul.f32 %v5150, %v5156
    %v5194 = vmul.f32 %v5151, %v5160
    %v5195 = vadd.f32 %v5088, %v5163
    %v5196 = vadd.f32 %v5089, %v5164
    %v5197 = vadd.f32 %v5090, %v5165
    %v5198 = vadd.f32 %v5091, %v5166
    %v5199 = vadd.f32 %v5092, %v5167
    %v5200 = vadd.f32 %v5093, %v5168
    %v5201 = vadd.f32 %v5094, %v5169
    %v5202 = vadd.f32 %v5095, %v5170
    %v5203 = vadd.f32 %v5096, %v5171
    %v5204 = vadd.f32 %v5097, %v5172
    %v5205 = vadd.f32 %v5098, %v5173
    %v5206 = vadd.f32 %v5099, %v5174
    %v5207 = vadd.f32 %v5100, %v5175
    %v5208 = vadd.f32 %v5101, %v5176
    %v5209 = vadd.f32 %v5102, %v5177
    %v5210 = vadd.f32 %v5103, %v5178
    %v5211 = vadd.f32 %v5104, %v5179
    %v5212 = vadd.f32 %v5105, %v5180
    %v5213 = vadd.f32 %v5106, %v5181
    %v5214 = vadd.f32 %v5107, %v5182
    %v5215 = vadd.f32 %v5108, %v5183
    %v5216 = vadd.f32 %v5109, %v5184
    %v5217 = vadd.f32 %v5110, %v5185
    %v5218 = vadd.f32 %v5111, %v5186
    %v5219 = vadd.f32 %v5112, %v5187
    %v5220 = vadd.f32 %v5113, %v5188
    %v5221 = vadd.f32 %v5114, %v5189
    %v5222 = vadd.f32 %v5115, %v5190
    %v5223 = vadd.f32 %v5116, %v5191
    %v5224 = vadd.f32 %v5117, %v5192
    %v5225 = vadd.f32 %v5118, %v5193
    %v5226 = vadd.f32 %v5119, %v5194
    %v5227 = vld [vmem:[%s353] sm:$0xfe]
    %v5228 = vld [vmem:[%s353 + $0x8] sm:$0xfe]
    %v5229 = vld [vmem:[%s353 + $0x10] sm:$0x1]
    %v5230 = vld [vmem:[%s353 + $0x18] sm:$0x1]
    %v5231 = vld [vmem:[%s353 + $0x20] sm:$0xfe]
    %v5232 = vld [vmem:[%s353 + $0x28] sm:$0xfe]
    %v5233 = vld [vmem:[%s353 + $0x30] sm:$0x1]
    %v5234 = vld [vmem:[%s353 + $0x38] sm:$0x1]
    %v5235 = vld [vmem:[%s353 + $0x40] sm:$0xfe]
    %v5236 = vld [vmem:[%s353 + $0x48] sm:$0xfe]
    %v5237 = vld [vmem:[%s353 + $0x50] sm:$0x1]
    %v5238 = vld [vmem:[%s353 + $0x58] sm:$0x1]
    %v5239 = vld [vmem:[%s353 + $0x60] sm:$0xfe]
    %v5240 = vld [vmem:[%s353 + $0x68] sm:$0xfe]
    %v5241 = vld [vmem:[%s353 + $0x70] sm:$0x1]
    %v5242 = vld [vmem:[%s353 + $0x78] sm:$0x1]
    %v5243 = vld [vmem:[%s353 + $0x80] sm:$0xfe]
    %v5244 = vld [vmem:[%s353 + $0x88] sm:$0xfe]
    %v5245 = vld [vmem:[%s353 + $0x90] sm:$0x1]
    %v5246 = vld [vmem:[%s353 + $0x98] sm:$0x1]
    %v5247 = vld [vmem:[%s353 + $0xa0] sm:$0xfe]
    %v5248 = vld [vmem:[%s353 + $0xa8] sm:$0xfe]
    %v5249 = vld [vmem:[%s353 + $0xb0] sm:$0x1]
    %v5250 = vld [vmem:[%s353 + $0xb8] sm:$0x1]
    %v5251 = vld [vmem:[%s353 + $0xc0] sm:$0xfe]
    %v5252 = vld [vmem:[%s353 + $0xc8] sm:$0xfe]
    %v5253 = vld [vmem:[%s353 + $0xd0] sm:$0x1]
    %v5254 = vld [vmem:[%s353 + $0xd8] sm:$0x1]
    %v5255 = vld [vmem:[%s353 + $0xe0] sm:$0xfe]
    %v5256 = vld [vmem:[%s353 + $0xe8] sm:$0xfe]
    %v5257 = vld [vmem:[%s353 + $0xf0] sm:$0x1]
    %v5258 = vld [vmem:[%s353 + $0xf8] sm:$0x1]
    %v5259 = vld [vmem:[%s353 + $0x140] sm:$0xfe]
    %v5260 = vld [vmem:[%s353 + $0x148] sm:$0xfe]
    %v5261 = vld [vmem:[%s353 + $0x150] sm:$0x1]
    %v5262 = vld [vmem:[%s353 + $0x158] sm:$0x1]
    %v5263 = vld [vmem:[%s353 + $0x160] sm:$0xfe]
    %v5264 = vld [vmem:[%s353 + $0x168] sm:$0xfe]
    %v5265 = vld [vmem:[%s353 + $0x170] sm:$0x1]
    %v5266 = vld [vmem:[%s353 + $0x178] sm:$0x1]
    %v5267 = vld [vmem:[%s353 + $0x180] sm:$0xfe]
    %v5268 = vld [vmem:[%s353 + $0x188] sm:$0xfe]
    %v5269 = vld [vmem:[%s353 + $0x190] sm:$0x1]
    %v5270 = vld [vmem:[%s353 + $0x198] sm:$0x1]
    %v5271 = vld [vmem:[%s353 + $0x1a0] sm:$0xfe]
    %v5272 = vld [vmem:[%s353 + $0x1a8] sm:$0xfe]
    %v5273 = vld [vmem:[%s353 + $0x1b0] sm:$0x1]
    %v5274 = vld [vmem:[%s353 + $0x1b8] sm:$0x1]
    %v5275 = vld [vmem:[%s353 + $0x1c0] sm:$0xfe]
    %v5276 = vld [vmem:[%s353 + $0x1c8] sm:$0xfe]
    %v5277 = vld [vmem:[%s353 + $0x1d0] sm:$0x1]
    %v5278 = vld [vmem:[%s353 + $0x1d8] sm:$0x1]
    %v5279 = vld [vmem:[%s353 + $0x1e0] sm:$0xfe]
    %v5280 = vld [vmem:[%s353 + $0x1e8] sm:$0xfe]
    %v5281 = vld [vmem:[%s353 + $0x1f0] sm:$0x1]
    %v5282 = vld [vmem:[%s353 + $0x1f8] sm:$0x1]
    %v5283 = vld [vmem:[%s353 + $0x200] sm:$0xfe]
    %v5284 = vld [vmem:[%s353 + $0x208] sm:$0xfe]
    %v5285 = vld [vmem:[%s353 + $0x210] sm:$0x1]
    %v5286 = vld [vmem:[%s353 + $0x218] sm:$0x1]
    %v5287 = vld [vmem:[%s353 + $0x220] sm:$0xfe]
    %v5288 = vld [vmem:[%s353 + $0x228] sm:$0xfe]
    %v5289 = vld [vmem:[%s353 + $0x230] sm:$0x1]
    %v5290 = vld [vmem:[%s353 + $0x238] sm:$0x1]
    %v5292 = vlaneseq
    %v5293 = vshrl.u32 %v5292, 7
    %v5294 = vsub.s32 0, %v5293
    %v5295 = vrot.slane %v4282, %v5294
    %v5296 = vlaneseq
    %v5297 = vshrl.u32 %v5296, 7
    %v5298 = vsub.s32 1, %v5297
    %v5299 = vrot.slane %v4282, %v5298
    %v5302 = vmul.f32 %v5227, %v5295
    %v5303 = vmul.f32 %v5228, %v5299
    %v5304 = vmul.f32 %v5229, %v5295
    %v5305 = vmul.f32 %v5230, %v5299
    %v5306 = vmul.f32 %v5231, %v5295
    %v5307 = vmul.f32 %v5232, %v5299
    %v5308 = vmul.f32 %v5233, %v5295
    %v5309 = vmul.f32 %v5234, %v5299
    %v5310 = vmul.f32 %v5235, %v5295
    %v5311 = vmul.f32 %v5236, %v5299
    %v5312 = vmul.f32 %v5237, %v5295
    %v5313 = vmul.f32 %v5238, %v5299
    %v5314 = vmul.f32 %v5239, %v5295
    %v5315 = vmul.f32 %v5240, %v5299
    %v5316 = vmul.f32 %v5241, %v5295
    %v5317 = vmul.f32 %v5242, %v5299
    %v5318 = vmul.f32 %v5243, %v5295
    %v5319 = vmul.f32 %v5244, %v5299
    %v5320 = vmul.f32 %v5245, %v5295
    %v5321 = vmul.f32 %v5246, %v5299
    %v5322 = vmul.f32 %v5247, %v5295
    %v5323 = vmul.f32 %v5248, %v5299
    %v5324 = vmul.f32 %v5249, %v5295
    %v5325 = vmul.f32 %v5250, %v5299
    %v5326 = vmul.f32 %v5251, %v5295
    %v5327 = vmul.f32 %v5252, %v5299
    %v5328 = vmul.f32 %v5253, %v5295
    %v5329 = vmul.f32 %v5254, %v5299
    %v5330 = vmul.f32 %v5255, %v5295
    %v5331 = vmul.f32 %v5256, %v5299
    %v5332 = vmul.f32 %v5257, %v5295
    %v5333 = vmul.f32 %v5258, %v5299
    %v5334 = vmul.f32 %v5259, %v5295
    %v5335 = vmul.f32 %v5260, %v5299
    %v5336 = vmul.f32 %v5261, %v5295
    %v5337 = vmul.f32 %v5262, %v5299
    %v5338 = vmul.f32 %v5263, %v5295
    %v5339 = vmul.f32 %v5264, %v5299
    %v5340 = vmul.f32 %v5265, %v5295
    %v5341 = vmul.f32 %v5266, %v5299
    %v5342 = vmul.f32 %v5267, %v5295
    %v5343 = vmul.f32 %v5268, %v5299
    %v5344 = vmul.f32 %v5269, %v5295
    %v5345 = vmul.f32 %v5270, %v5299
    %v5346 = vmul.f32 %v5271, %v5295
    %v5347 = vmul.f32 %v5272, %v5299
    %v5348 = vmul.f32 %v5273, %v5295
    %v5349 = vmul.f32 %v5274, %v5299
    %v5350 = vmul.f32 %v5275, %v5295
    %v5351 = vmul.f32 %v5276, %v5299
    %v5352 = vmul.f32 %v5277, %v5295
    %v5353 = vmul.f32 %v5278, %v5299
    %v5354 = vmul.f32 %v5279, %v5295
    %v5355 = vmul.f32 %v5280, %v5299
    %v5356 = vmul.f32 %v5281, %v5295
    %v5357 = vmul.f32 %v5282, %v5299
    %v5358 = vmul.f32 %v5283, %v5295
    %v5359 = vmul.f32 %v5284, %v5299
    %v5360 = vmul.f32 %v5285, %v5295
    %v5361 = vmul.f32 %v5286, %v5299
    %v5362 = vmul.f32 %v5287, %v5295
    %v5363 = vmul.f32 %v5288, %v5299
    %v5364 = vmul.f32 %v5289, %v5295
    %v5365 = vmul.f32 %v5290, %v5299
    %v5430 = vrot.slane %v5302, 1
    %v5431 = vrot.slane %v5304, 1
    %v5432 = vsel %vm1274, %v5430, %v5431
    %v5433 = vrot.slane %v5303, 1
    %v5434 = vrot.slane %v5305, 1
    %v5435 = vsel %vm1274, %v5433, %v5434
    %v5436 = vrot.slane %v5306, 1
    %v5437 = vrot.slane %v5308, 1
    %v5438 = vsel %vm1274, %v5436, %v5437
    %v5439 = vrot.slane %v5307, 1
    %v5440 = vrot.slane %v5309, 1
    %v5441 = vsel %vm1274, %v5439, %v5440
    %v5442 = vrot.slane %v5310, 1
    %v5443 = vrot.slane %v5312, 1
    %v5444 = vsel %vm1274, %v5442, %v5443
    %v5445 = vrot.slane %v5311, 1
    %v5446 = vrot.slane %v5313, 1
    %v5447 = vsel %vm1274, %v5445, %v5446
    %v5448 = vrot.slane %v5314, 1
    %v5449 = vrot.slane %v5316, 1
    %v5450 = vsel %vm1274, %v5448, %v5449
    %v5451 = vrot.slane %v5315, 1
    %v5452 = vrot.slane %v5317, 1
    %v5453 = vsel %vm1274, %v5451, %v5452
    %v5454 = vrot.slane %v5318, 1
    %v5455 = vrot.slane %v5320, 1
    %v5456 = vsel %vm1274, %v5454, %v5455
    %v5457 = vrot.slane %v5319, 1
    %v5458 = vrot.slane %v5321, 1
    %v5459 = vsel %vm1274, %v5457, %v5458
    %v5460 = vrot.slane %v5322, 1
    %v5461 = vrot.slane %v5324, 1
    %v5462 = vsel %vm1274, %v5460, %v5461
    %v5463 = vrot.slane %v5323, 1
    %v5464 = vrot.slane %v5325, 1
    %v5465 = vsel %vm1274, %v5463, %v5464
    %v5466 = vrot.slane %v5326, 1
    %v5467 = vrot.slane %v5328, 1
    %v5468 = vsel %vm1274, %v5466, %v5467
    %v5469 = vrot.slane %v5327, 1
    %v5470 = vrot.slane %v5329, 1
    %v5471 = vsel %vm1274, %v5469, %v5470
    %v5472 = vrot.slane %v5330, 1
    %v5473 = vrot.slane %v5332, 1
    %v5474 = vsel %vm1274, %v5472, %v5473
    %v5475 = vrot.slane %v5331, 1
    %v5476 = vrot.slane %v5333, 1
    %v5477 = vsel %vm1274, %v5475, %v5476
    %v5478 = vrot.slane %v5334, 1
    %v5479 = vrot.slane %v5336, 1
    %v5480 = vsel %vm1274, %v5478, %v5479
    %v5481 = vrot.slane %v5335, 1
    %v5482 = vrot.slane %v5337, 1
    %v5483 = vsel %vm1274, %v5481, %v5482
    %v5484 = vrot.slane %v5338, 1
    %v5485 = vrot.slane %v5340, 1
    %v5486 = vsel %vm1274, %v5484, %v5485
    %v5487 = vrot.slane %v5339, 1
    %v5488 = vrot.slane %v5341, 1
    %v5489 = vsel %vm1274, %v5487, %v5488
    %v5490 = vrot.slane %v5342, 1
    %v5491 = vrot.slane %v5344, 1
    %v5492 = vsel %vm1274, %v5490, %v5491
    %v5493 = vrot.slane %v5343, 1
    %v5494 = vrot.slane %v5345, 1
    %v5495 = vsel %vm1274, %v5493, %v5494
    %v5496 = vrot.slane %v5346, 1
    %v5497 = vrot.slane %v5348, 1
    %v5498 = vsel %vm1274, %v5496, %v5497
    %v5499 = vrot.slane %v5347, 1
    %v5500 = vrot.slane %v5349, 1
    %v5501 = vsel %vm1274, %v5499, %v5500
    %v5502 = vrot.slane %v5350, 1
    %v5503 = vrot.slane %v5352, 1
    %v5504 = vsel %vm1274, %v5502, %v5503
    %v5505 = vrot.slane %v5351, 1
    %v5506 = vrot.slane %v5353, 1
    %v5507 = vsel %vm1274, %v5505, %v5506
    %v5508 = vrot.slane %v5354, 1
    %v5509 = vrot.slane %v5356, 1
    %v5510 = vsel %vm1274, %v5508, %v5509
    %v5511 = vrot.slane %v5355, 1
    %v5512 = vrot.slane %v5357, 1
    %v5513 = vsel %vm1274, %v5511, %v5512
    %v5514 = vrot.slane %v5358, 1
    %v5515 = vrot.slane %v5360, 1
    %v5516 = vsel %vm1274, %v5514, %v5515
    %v5517 = vrot.slane %v5359, 1
    %v5518 = vrot.slane %v5361, 1
    %v5519 = vsel %vm1274, %v5517, %v5518
    %v5520 = vrot.slane %v5362, 1
    %v5521 = vrot.slane %v5364, 1
    %v5522 = vsel %vm1274, %v5520, %v5521
    %v5523 = vrot.slane %v5363, 1
    %v5524 = vrot.slane %v5365, 1
    %v5525 = vsel %vm1274, %v5523, %v5524
    %v5558 = vadd.f32 %v5195, %v5432
    %v5559 = vadd.f32 %v5196, %v5435
    %v5560 = vadd.f32 %v5197, %v5438
    %v5561 = vadd.f32 %v5198, %v5441
    %v5562 = vadd.f32 %v5199, %v5444
    %v5563 = vadd.f32 %v5200, %v5447
    %v5564 = vadd.f32 %v5201, %v5450
    %v5565 = vadd.f32 %v5202, %v5453
    %v5566 = vadd.f32 %v5203, %v5456
    %v5567 = vadd.f32 %v5204, %v5459
    %v5568 = vadd.f32 %v5205, %v5462
    %v5569 = vadd.f32 %v5206, %v5465
    %v5570 = vadd.f32 %v5207, %v5468
    %v5571 = vadd.f32 %v5208, %v5471
    %v5572 = vadd.f32 %v5209, %v5474
    %v5573 = vadd.f32 %v5210, %v5477
    %v5574 = vadd.f32 %v5211, %v5480
    %v5575 = vadd.f32 %v5212, %v5483
    %v5576 = vadd.f32 %v5213, %v5486
    %v5577 = vadd.f32 %v5214, %v5489
    %v5578 = vadd.f32 %v5215, %v5492
    %v5579 = vadd.f32 %v5216, %v5495
    %v5580 = vadd.f32 %v5217, %v5498
    %v5581 = vadd.f32 %v5218, %v5501
    %v5582 = vadd.f32 %v5219, %v5504
    %v5583 = vadd.f32 %v5220, %v5507
    %v5584 = vadd.f32 %v5221, %v5510
    %v5585 = vadd.f32 %v5222, %v5513
    %v5586 = vadd.f32 %v5223, %v5516
    %v5587 = vadd.f32 %v5224, %v5519
    %v5588 = vadd.f32 %v5225, %v5522
    %v5589 = vadd.f32 %v5226, %v5525
    %v5590 = vld [vmem:[%s353] sm:$0xfc]
    %v5591 = vld [vmem:[%s353 + $0x8] sm:$0xfc]
    %v5592 = vld [vmem:[%s353 + $0x10] sm:$0x3]
    %v5593 = vld [vmem:[%s353 + $0x18] sm:$0x3]
    %v5594 = vld [vmem:[%s353 + $0x20] sm:$0xfc]
    %v5595 = vld [vmem:[%s353 + $0x28] sm:$0xfc]
    %v5596 = vld [vmem:[%s353 + $0x30] sm:$0x3]
    %v5597 = vld [vmem:[%s353 + $0x38] sm:$0x3]
    %v5598 = vld [vmem:[%s353 + $0x40] sm:$0xfc]
    %v5599 = vld [vmem:[%s353 + $0x48] sm:$0xfc]
    %v5600 = vld [vmem:[%s353 + $0x50] sm:$0x3]
    %v5601 = vld [vmem:[%s353 + $0x58] sm:$0x3]
    %v5602 = vld [vmem:[%s353 + $0x60] sm:$0xfc]
    %v5603 = vld [vmem:[%s353 + $0x68] sm:$0xfc]
    %v5604 = vld [vmem:[%s353 + $0x70] sm:$0x3]
    %v5605 = vld [vmem:[%s353 + $0x78] sm:$0x3]
    %v5606 = vld [vmem:[%s353 + $0x80] sm:$0xfc]
    %v5607 = vld [vmem:[%s353 + $0x88] sm:$0xfc]
    %v5608 = vld [vmem:[%s353 + $0x90] sm:$0x3]
    %v5609 = vld [vmem:[%s353 + $0x98] sm:$0x3]
    %v5610 = vld [vmem:[%s353 + $0xa0] sm:$0xfc]
    %v5611 = vld [vmem:[%s353 + $0xa8] sm:$0xfc]
    %v5612 = vld [vmem:[%s353 + $0xb0] sm:$0x3]
    %v5613 = vld [vmem:[%s353 + $0xb8] sm:$0x3]
    %v5614 = vld [vmem:[%s353 + $0xc0] sm:$0xfc]
    %v5615 = vld [vmem:[%s353 + $0xc8] sm:$0xfc]
    %v5616 = vld [vmem:[%s353 + $0xd0] sm:$0x3]
    %v5617 = vld [vmem:[%s353 + $0xd8] sm:$0x3]
    %v5618 = vld [vmem:[%s353 + $0xe0] sm:$0xfc]
    %v5619 = vld [vmem:[%s353 + $0xe8] sm:$0xfc]
    %v5620 = vld [vmem:[%s353 + $0xf0] sm:$0x3]
    %v5621 = vld [vmem:[%s353 + $0xf8] sm:$0x3]
    %v5622 = vld [vmem:[%s353 + $0x140] sm:$0xfc]
    %v5623 = vld [vmem:[%s353 + $0x148] sm:$0xfc]
    %v5624 = vld [vmem:[%s353 + $0x150] sm:$0x3]
    %v5625 = vld [vmem:[%s353 + $0x158] sm:$0x3]
    %v5626 = vld [vmem:[%s353 + $0x160] sm:$0xfc]
    %v5627 = vld [vmem:[%s353 + $0x168] sm:$0xfc]
    %v5628 = vld [vmem:[%s353 + $0x170] sm:$0x3]
    %v5629 = vld [vmem:[%s353 + $0x178] sm:$0x3]
    %v5630 = vld [vmem:[%s353 + $0x180] sm:$0xfc]
    %v5631 = vld [vmem:[%s353 + $0x188] sm:$0xfc]
    %v5632 = vld [vmem:[%s353 + $0x190] sm:$0x3]
    %v5633 = vld [vmem:[%s353 + $0x198] sm:$0x3]
    %v5634 = vld [vmem:[%s353 + $0x1a0] sm:$0xfc]
    %v5635 = vld [vmem:[%s353 + $0x1a8] sm:$0xfc]
    %v5636 = vld [vmem:[%s353 + $0x1b0] sm:$0x3]
    %v5637 = vld [vmem:[%s353 + $0x1b8] sm:$0x3]
    %v5638 = vld [vmem:[%s353 + $0x1c0] sm:$0xfc]
    %v5639 = vld [vmem:[%s353 + $0x1c8] sm:$0xfc]
    %v5640 = vld [vmem:[%s353 + $0x1d0] sm:$0x3]
    %v5641 = vld [vmem:[%s353 + $0x1d8] sm:$0x3]
    %v5642 = vld [vmem:[%s353 + $0x1e0] sm:$0xfc]
    %v5643 = vld [vmem:[%s353 + $0x1e8] sm:$0xfc]
    %v5644 = vld [vmem:[%s353 + $0x1f0] sm:$0x3]
    %v5645 = vld [vmem:[%s353 + $0x1f8] sm:$0x3]
    %v5646 = vld [vmem:[%s353 + $0x200] sm:$0xfc]
    %v5647 = vld [vmem:[%s353 + $0x208] sm:$0xfc]
    %v5648 = vld [vmem:[%s353 + $0x210] sm:$0x3]
    %v5649 = vld [vmem:[%s353 + $0x218] sm:$0x3]
    %v5650 = vld [vmem:[%s353 + $0x220] sm:$0xfc]
    %v5651 = vld [vmem:[%s353 + $0x228] sm:$0xfc]
    %v5652 = vld [vmem:[%s353 + $0x230] sm:$0x3]
    %v5653 = vld [vmem:[%s353 + $0x238] sm:$0x3]
    %v5655 = vlaneseq
    %v5656 = vshrl.u32 %v5655, 7
    %v5657 = vsub.s32 0, %v5656
    %v5658 = vrot.slane %v4283, %v5657
    %v5659 = vlaneseq
    %v5660 = vshrl.u32 %v5659, 7
    %v5661 = vsub.s32 1, %v5660
    %v5662 = vrot.slane %v4283, %v5661
    %v5665 = vmul.f32 %v5590, %v5658
    %v5666 = vmul.f32 %v5591, %v5662
    %v5667 = vmul.f32 %v5592, %v5658
    %v5668 = vmul.f32 %v5593, %v5662
    %v5669 = vmul.f32 %v5594, %v5658
    %v5670 = vmul.f32 %v5595, %v5662
    %v5671 = vmul.f32 %v5596, %v5658
    %v5672 = vmul.f32 %v5597, %v5662
    %v5673 = vmul.f32 %v5598, %v5658
    %v5674 = vmul.f32 %v5599, %v5662
    %v5675 = vmul.f32 %v5600, %v5658
    %v5676 = vmul.f32 %v5601, %v5662
    %v5677 = vmul.f32 %v5602, %v5658
    %v5678 = vmul.f32 %v5603, %v5662
    %v5679 = vmul.f32 %v5604, %v5658
    %v5680 = vmul.f32 %v5605, %v5662
    %v5681 = vmul.f32 %v5606, %v5658
    %v5682 = vmul.f32 %v5607, %v5662
    %v5683 = vmul.f32 %v5608, %v5658
    %v5684 = vmul.f32 %v5609, %v5662
    %v5685 = vmul.f32 %v5610, %v5658
    %v5686 = vmul.f32 %v5611, %v5662
    %v5687 = vmul.f32 %v5612, %v5658
    %v5688 = vmul.f32 %v5613, %v5662
    %v5689 = vmul.f32 %v5614, %v5658
    %v5690 = vmul.f32 %v5615, %v5662
    %v5691 = vmul.f32 %v5616, %v5658
    %v5692 = vmul.f32 %v5617, %v5662
    %v5693 = vmul.f32 %v5618, %v5658
    %v5694 = vmul.f32 %v5619, %v5662
    %v5695 = vmul.f32 %v5620, %v5658
    %v5696 = vmul.f32 %v5621, %v5662
    %v5697 = vmul.f32 %v5622, %v5658
    %v5698 = vmul.f32 %v5623, %v5662
    %v5699 = vmul.f32 %v5624, %v5658
    %v5700 = vmul.f32 %v5625, %v5662
    %v5701 = vmul.f32 %v5626, %v5658
    %v5702 = vmul.f32 %v5627, %v5662
    %v5703 = vmul.f32 %v5628, %v5658
    %v5704 = vmul.f32 %v5629, %v5662
    %v5705 = vmul.f32 %v5630, %v5658
    %v5706 = vmul.f32 %v5631, %v5662
    %v5707 = vmul.f32 %v5632, %v5658
    %v5708 = vmul.f32 %v5633, %v5662
    %v5709 = vmul.f32 %v5634, %v5658
    %v5710 = vmul.f32 %v5635, %v5662
    %v5711 = vmul.f32 %v5636, %v5658
    %v5712 = vmul.f32 %v5637, %v5662
    %v5713 = vmul.f32 %v5638, %v5658
    %v5714 = vmul.f32 %v5639, %v5662
    %v5715 = vmul.f32 %v5640, %v5658
    %v5716 = vmul.f32 %v5641, %v5662
    %v5717 = vmul.f32 %v5642, %v5658
    %v5718 = vmul.f32 %v5643, %v5662
    %v5719 = vmul.f32 %v5644, %v5658
    %v5720 = vmul.f32 %v5645, %v5662
    %v5721 = vmul.f32 %v5646, %v5658
    %v5722 = vmul.f32 %v5647, %v5662
    %v5723 = vmul.f32 %v5648, %v5658
    %v5724 = vmul.f32 %v5649, %v5662
    %v5725 = vmul.f32 %v5650, %v5658
    %v5726 = vmul.f32 %v5651, %v5662
    %v5727 = vmul.f32 %v5652, %v5658
    %v5728 = vmul.f32 %v5653, %v5662
    %v5793 = vrot.slane %v5665, 2
    %v5794 = vrot.slane %v5667, 2
    %v5795 = vsel %vm1638, %v5793, %v5794
    %v5796 = vrot.slane %v5666, 2
    %v5797 = vrot.slane %v5668, 2
    %v5798 = vsel %vm1638, %v5796, %v5797
    %v5799 = vrot.slane %v5669, 2
    %v5800 = vrot.slane %v5671, 2
    %v5801 = vsel %vm1638, %v5799, %v5800
    %v5802 = vrot.slane %v5670, 2
    %v5803 = vrot.slane %v5672, 2
    %v5804 = vsel %vm1638, %v5802, %v5803
    %v5805 = vrot.slane %v5673, 2
    %v5806 = vrot.slane %v5675, 2
    %v5807 = vsel %vm1638, %v5805, %v5806
    %v5808 = vrot.slane %v5674, 2
    %v5809 = vrot.slane %v5676, 2
    %v5810 = vsel %vm1638, %v5808, %v5809
    %v5811 = vrot.slane %v5677, 2
    %v5812 = vrot.slane %v5679, 2
    %v5813 = vsel %vm1638, %v5811, %v5812
    %v5814 = vrot.slane %v5678, 2
    %v5815 = vrot.slane %v5680, 2
    %v5816 = vsel %vm1638, %v5814, %v5815
    %v5817 = vrot.slane %v5681, 2
    %v5818 = vrot.slane %v5683, 2
    %v5819 = vsel %vm1638, %v5817, %v5818
    %v5820 = vrot.slane %v5682, 2
    %v5821 = vrot.slane %v5684, 2
    %v5822 = vsel %vm1638, %v5820, %v5821
    %v5823 = vrot.slane %v5685, 2
    %v5824 = vrot.slane %v5687, 2
    %v5825 = vsel %vm1638, %v5823, %v5824
    %v5826 = vrot.slane %v5686, 2
    %v5827 = vrot.slane %v5688, 2
    %v5828 = vsel %vm1638, %v5826, %v5827
    %v5829 = vrot.slane %v5689, 2
    %v5830 = vrot.slane %v5691, 2
    %v5831 = vsel %vm1638, %v5829, %v5830
    %v5832 = vrot.slane %v5690, 2
    %v5833 = vrot.slane %v5692, 2
    %v5834 = vsel %vm1638, %v5832, %v5833
    %v5835 = vrot.slane %v5693, 2
    %v5836 = vrot.slane %v5695, 2
    %v5837 = vsel %vm1638, %v5835, %v5836
    %v5838 = vrot.slane %v5694, 2
    %v5839 = vrot.slane %v5696, 2
    %v5840 = vsel %vm1638, %v5838, %v5839
    %v5841 = vrot.slane %v5697, 2
    %v5842 = vrot.slane %v5699, 2
    %v5843 = vsel %vm1638, %v5841, %v5842
    %v5844 = vrot.slane %v5698, 2
    %v5845 = vrot.slane %v5700, 2
    %v5846 = vsel %vm1638, %v5844, %v5845
    %v5847 = vrot.slane %v5701, 2
    %v5848 = vrot.slane %v5703, 2
    %v5849 = vsel %vm1638, %v5847, %v5848
    %v5850 = vrot.slane %v5702, 2
    %v5851 = vrot.slane %v5704, 2
    %v5852 = vsel %vm1638, %v5850, %v5851
    %v5853 = vrot.slane %v5705, 2
    %v5854 = vrot.slane %v5707, 2
    %v5855 = vsel %vm1638, %v5853, %v5854
    %v5856 = vrot.slane %v5706, 2
    %v5857 = vrot.slane %v5708, 2
    %v5858 = vsel %vm1638, %v5856, %v5857
    %v5859 = vrot.slane %v5709, 2
    %v5860 = vrot.slane %v5711, 2
    %v5861 = vsel %vm1638, %v5859, %v5860
    %v5862 = vrot.slane %v5710, 2
    %v5863 = vrot.slane %v5712, 2
    %v5864 = vsel %vm1638, %v5862, %v5863
    %v5865 = vrot.slane %v5713, 2
    %v5866 = vrot.slane %v5715, 2
    %v5867 = vsel %vm1638, %v5865, %v5866
    %v5868 = vrot.slane %v5714, 2
    %v5869 = vrot.slane %v5716, 2
    %v5870 = vsel %vm1638, %v5868, %v5869
    %v5871 = vrot.slane %v5717, 2
    %v5872 = vrot.slane %v5719, 2
    %v5873 = vsel %vm1638, %v5871, %v5872
    %v5874 = vrot.slane %v5718, 2
    %v5875 = vrot.slane %v5720, 2
    %v5876 = vsel %vm1638, %v5874, %v5875
    %v5877 = vrot.slane %v5721, 2
    %v5878 = vrot.slane %v5723, 2
    %v5879 = vsel %vm1638, %v5877, %v5878
    %v5880 = vrot.slane %v5722, 2
    %v5881 = vrot.slane %v5724, 2
    %v5882 = vsel %vm1638, %v5880, %v5881
    %v5883 = vrot.slane %v5725, 2
    %v5884 = vrot.slane %v5727, 2
    %v5885 = vsel %vm1638, %v5883, %v5884
    %v5886 = vrot.slane %v5726, 2
    %v5887 = vrot.slane %v5728, 2
    %v5888 = vsel %vm1638, %v5886, %v5887
    %v5921 = vadd.f32 %v5558, %v5795
    %v5922 = vadd.f32 %v5559, %v5798
    %v5923 = vadd.f32 %v5560, %v5801
    %v5924 = vadd.f32 %v5561, %v5804
    %v5925 = vadd.f32 %v5562, %v5807
    %v5926 = vadd.f32 %v5563, %v5810
    %v5927 = vadd.f32 %v5564, %v5813
    %v5928 = vadd.f32 %v5565, %v5816
    %v5929 = vadd.f32 %v5566, %v5819
    %v5930 = vadd.f32 %v5567, %v5822
    %v5931 = vadd.f32 %v5568, %v5825
    %v5932 = vadd.f32 %v5569, %v5828
    %v5933 = vadd.f32 %v5570, %v5831
    %v5934 = vadd.f32 %v5571, %v5834
    %v5935 = vadd.f32 %v5572, %v5837
    %v5936 = vadd.f32 %v5573, %v5840
    %v5937 = vadd.f32 %v5574, %v5843
    %v5938 = vadd.f32 %v5575, %v5846
    %v5939 = vadd.f32 %v5576, %v5849
    %v5940 = vadd.f32 %v5577, %v5852
    %v5941 = vadd.f32 %v5578, %v5855
    %v5942 = vadd.f32 %v5579, %v5858
    %v5943 = vadd.f32 %v5580, %v5861
    %v5944 = vadd.f32 %v5581, %v5864
    %v5945 = vadd.f32 %v5582, %v5867
    %v5946 = vadd.f32 %v5583, %v5870
    %v5947 = vadd.f32 %v5584, %v5873
    %v5948 = vadd.f32 %v5585, %v5876
    %v5949 = vadd.f32 %v5586, %v5879
    %v5950 = vadd.f32 %v5587, %v5882
    %v5951 = vadd.f32 %v5588, %v5885
    %v5952 = vadd.f32 %v5589, %v5888
    %v5953 = vld [vmem:[%s2632] sm:$0xff]
    %v5954 = vld [vmem:[%s2632 + $0x8] sm:$0xff]
    %v5955 = vld [vmem:[%s2632 + $0x20] sm:$0xff]
    %v5956 = vld [vmem:[%s2632 + $0x28] sm:$0xff]
    %v5957 = vld [vmem:[%s2632 + $0x40] sm:$0xff]
    %v5958 = vld [vmem:[%s2632 + $0x48] sm:$0xff]
    %v5959 = vld [vmem:[%s2632 + $0x60] sm:$0xff]
    %v5960 = vld [vmem:[%s2632 + $0x68] sm:$0xff]
    %v5961 = vld [vmem:[%s2632 + $0x80] sm:$0xff]
    %v5962 = vld [vmem:[%s2632 + $0x88] sm:$0xff]
    %v5963 = vld [vmem:[%s2632 + $0xa0] sm:$0xff]
    %v5964 = vld [vmem:[%s2632 + $0xa8] sm:$0xff]
    %v5965 = vld [vmem:[%s2632 + $0xc0] sm:$0xff]
    %v5966 = vld [vmem:[%s2632 + $0xc8] sm:$0xff]
    %v5967 = vld [vmem:[%s2632 + $0xe0] sm:$0xff]
    %v5968 = vld [vmem:[%s2632 + $0xe8] sm:$0xff]
    %v5969 = vld [vmem:[%s2632 + $0x140] sm:$0xff]
    %v5970 = vld [vmem:[%s2632 + $0x148] sm:$0xff]
    %v5971 = vld [vmem:[%s2632 + $0x160] sm:$0xff]
    %v5972 = vld [vmem:[%s2632 + $0x168] sm:$0xff]
    %v5973 = vld [vmem:[%s2632 + $0x180] sm:$0xff]
    %v5974 = vld [vmem:[%s2632 + $0x188] sm:$0xff]
    %v5975 = vld [vmem:[%s2632 + $0x1a0] sm:$0xff]
    %v5976 = vld [vmem:[%s2632 + $0x1a8] sm:$0xff]
    %v5977 = vld [vmem:[%s2632 + $0x1c0] sm:$0xff]
    %v5978 = vld [vmem:[%s2632 + $0x1c8] sm:$0xff]
    %v5979 = vld [vmem:[%s2632 + $0x1e0] sm:$0xff]
    %v5980 = vld [vmem:[%s2632 + $0x1e8] sm:$0xff]
    %v5981 = vld [vmem:[%s2632 + $0x200] sm:$0xff]
    %v5982 = vld [vmem:[%s2632 + $0x208] sm:$0xff]
    %v5983 = vld [vmem:[%s2632 + $0x220] sm:$0xff]
    %v5984 = vld [vmem:[%s2632 + $0x228] sm:$0xff]
    %v5986 = vlaneseq
    %v5987 = vshrl.u32 %v5986, 7
    %v5988 = vsub.s32 0, %v5987
    %v5989 = vrot.slane %v4284, %v5988
    %v5990 = vlaneseq
    %v5991 = vshrl.u32 %v5990, 7
    %v5992 = vsub.s32 1, %v5991
    %v5993 = vrot.slane %v4284, %v5992
    %v5996 = vmul.f32 %v5953, %v5989
    %v5997 = vmul.f32 %v5954, %v5993
    %v5998 = vmul.f32 %v5955, %v5989
    %v5999 = vmul.f32 %v5956, %v5993
    %v6000 = vmul.f32 %v5957, %v5989
    %v6001 = vmul.f32 %v5958, %v5993
    %v6002 = vmul.f32 %v5959, %v5989
    %v6003 = vmul.f32 %v5960, %v5993
    %v6004 = vmul.f32 %v5961, %v5989
    %v6005 = vmul.f32 %v5962, %v5993
    %v6006 = vmul.f32 %v5963, %v5989
    %v6007 = vmul.f32 %v5964, %v5993
    %v6008 = vmul.f32 %v5965, %v5989
    %v6009 = vmul.f32 %v5966, %v5993
    %v6010 = vmul.f32 %v5967, %v5989
    %v6011 = vmul.f32 %v5968, %v5993
    %v6012 = vmul.f32 %v5969, %v5989
    %v6013 = vmul.f32 %v5970, %v5993
    %v6014 = vmul.f32 %v5971, %v5989
    %v6015 = vmul.f32 %v5972, %v5993
    %v6016 = vmul.f32 %v5973, %v5989
    %v6017 = vmul.f32 %v5974, %v5993
    %v6018 = vmul.f32 %v5975, %v5989
    %v6019 = vmul.f32 %v5976, %v5993
    %v6020 = vmul.f32 %v5977, %v5989
    %v6021 = vmul.f32 %v5978, %v5993
    %v6022 = vmul.f32 %v5979, %v5989
    %v6023 = vmul.f32 %v5980, %v5993
    %v6024 = vmul.f32 %v5981, %v5989
    %v6025 = vmul.f32 %v5982, %v5993
    %v6026 = vmul.f32 %v5983, %v5989
    %v6027 = vmul.f32 %v5984, %v5993
    %v6028 = vadd.f32 %v5921, %v5996
    %v6029 = vadd.f32 %v5922, %v5997
    %v6030 = vadd.f32 %v5923, %v5998
    %v6031 = vadd.f32 %v5924, %v5999
    %v6032 = vadd.f32 %v5925, %v6000
    %v6033 = vadd.f32 %v5926, %v6001
    %v6034 = vadd.f32 %v5927, %v6002
    %v6035 = vadd.f32 %v5928, %v6003
    %v6036 = vadd.f32 %v5929, %v6004
    %v6037 = vadd.f32 %v5930, %v6005
    %v6038 = vadd.f32 %v5931, %v6006
    %v6039 = vadd.f32 %v5932, %v6007
    %v6040 = vadd.f32 %v5933, %v6008
    %v6041 = vadd.f32 %v5934, %v6009
    %v6042 = vadd.f32 %v5935, %v6010
    %v6043 = vadd.f32 %v5936, %v6011
    %v6044 = vadd.f32 %v5937, %v6012
    %v6045 = vadd.f32 %v5938, %v6013
    %v6046 = vadd.f32 %v5939, %v6014
    %v6047 = vadd.f32 %v5940, %v6015
    %v6048 = vadd.f32 %v5941, %v6016
    %v6049 = vadd.f32 %v5942, %v6017
    %v6050 = vadd.f32 %v5943, %v6018
    %v6051 = vadd.f32 %v5944, %v6019
    %v6052 = vadd.f32 %v5945, %v6020
    %v6053 = vadd.f32 %v5946, %v6021
    %v6054 = vadd.f32 %v5947, %v6022
    %v6055 = vadd.f32 %v5948, %v6023
    %v6056 = vadd.f32 %v5949, %v6024
    %v6057 = vadd.f32 %v5950, %v6025
    %v6058 = vadd.f32 %v5951, %v6026
    %v6059 = vadd.f32 %v5952, %v6027
    %v6060 = vld [vmem:[%s2632] sm:$0xfe]
    %v6061 = vld [vmem:[%s2632 + $0x8] sm:$0xfe]
    %v6062 = vld [vmem:[%s2632 + $0x10] sm:$0x1]
    %v6063 = vld [vmem:[%s2632 + $0x18] sm:$0x1]
    %v6064 = vld [vmem:[%s2632 + $0x20] sm:$0xfe]
    %v6065 = vld [vmem:[%s2632 + $0x28] sm:$0xfe]
    %v6066 = vld [vmem:[%s2632 + $0x30] sm:$0x1]
    %v6067 = vld [vmem:[%s2632 + $0x38] sm:$0x1]
    %v6068 = vld [vmem:[%s2632 + $0x40] sm:$0xfe]
    %v6069 = vld [vmem:[%s2632 + $0x48] sm:$0xfe]
    %v6070 = vld [vmem:[%s2632 + $0x50] sm:$0x1]
    %v6071 = vld [vmem:[%s2632 + $0x58] sm:$0x1]
    %v6072 = vld [vmem:[%s2632 + $0x60] sm:$0xfe]
    %v6073 = vld [vmem:[%s2632 + $0x68] sm:$0xfe]
    %v6074 = vld [vmem:[%s2632 + $0x70] sm:$0x1]
    %v6075 = vld [vmem:[%s2632 + $0x78] sm:$0x1]
    %v6076 = vld [vmem:[%s2632 + $0x80] sm:$0xfe]
    %v6077 = vld [vmem:[%s2632 + $0x88] sm:$0xfe]
    %v6078 = vld [vmem:[%s2632 + $0x90] sm:$0x1]
    %v6079 = vld [vmem:[%s2632 + $0x98] sm:$0x1]
    %v6080 = vld [vmem:[%s2632 + $0xa0] sm:$0xfe]
    %v6081 = vld [vmem:[%s2632 + $0xa8] sm:$0xfe]
    %v6082 = vld [vmem:[%s2632 + $0xb0] sm:$0x1]
    %v6083 = vld [vmem:[%s2632 + $0xb8] sm:$0x1]
    %v6084 = vld [vmem:[%s2632 + $0xc0] sm:$0xfe]
    %v6085 = vld [vmem:[%s2632 + $0xc8] sm:$0xfe]
    %v6086 = vld [vmem:[%s2632 + $0xd0] sm:$0x1]
    %v6087 = vld [vmem:[%s2632 + $0xd8] sm:$0x1]
    %v6088 = vld [vmem:[%s2632 + $0xe0] sm:$0xfe]
    %v6089 = vld [vmem:[%s2632 + $0xe8] sm:$0xfe]
    %v6090 = vld [vmem:[%s2632 + $0xf0] sm:$0x1]
    %v6091 = vld [vmem:[%s2632 + $0xf8] sm:$0x1]
    %v6092 = vld [vmem:[%s2632 + $0x140] sm:$0xfe]
    %v6093 = vld [vmem:[%s2632 + $0x148] sm:$0xfe]
    %v6094 = vld [vmem:[%s2632 + $0x150] sm:$0x1]
    %v6095 = vld [vmem:[%s2632 + $0x158] sm:$0x1]
    %v6096 = vld [vmem:[%s2632 + $0x160] sm:$0xfe]
    %v6097 = vld [vmem:[%s2632 + $0x168] sm:$0xfe]
    %v6098 = vld [vmem:[%s2632 + $0x170] sm:$0x1]
    %v6099 = vld [vmem:[%s2632 + $0x178] sm:$0x1]
    %v6100 = vld [vmem:[%s2632 + $0x180] sm:$0xfe]
    %v6101 = vld [vmem:[%s2632 + $0x188] sm:$0xfe]
    %v6102 = vld [vmem:[%s2632 + $0x190] sm:$0x1]
    %v6103 = vld [vmem:[%s2632 + $0x198] sm:$0x1]
    %v6104 = vld [vmem:[%s2632 + $0x1a0] sm:$0xfe]
    %v6105 = vld [vmem:[%s2632 + $0x1a8] sm:$0xfe]
    %v6106 = vld [vmem:[%s2632 + $0x1b0] sm:$0x1]
    %v6107 = vld [vmem:[%s2632 + $0x1b8] sm:$0x1]
    %v6108 = vld [vmem:[%s2632 + $0x1c0] sm:$0xfe]
    %v6109 = vld [vmem:[%s2632 + $0x1c8] sm:$0xfe]
    %v6110 = vld [vmem:[%s2632 + $0x1d0] sm:$0x1]
    %v6111 = vld [vmem:[%s2632 + $0x1d8] sm:$0x1]
    %v6112 = vld [vmem:[%s2632 + $0x1e0] sm:$0xfe]
    %v6113 = vld [vmem:[%s2632 + $0x1e8] sm:$0xfe]
    %v6114 = vld [vmem:[%s2632 + $0x1f0] sm:$0x1]
    %v6115 = vld [vmem:[%s2632 + $0x1f8] sm:$0x1]
    %v6116 = vld [vmem:[%s2632 + $0x200] sm:$0xfe]
    %v6117 = vld [vmem:[%s2632 + $0x208] sm:$0xfe]
    %v6118 = vld [vmem:[%s2632 + $0x210] sm:$0x1]
    %v6119 = vld [vmem:[%s2632 + $0x218] sm:$0x1]
    %v6120 = vld [vmem:[%s2632 + $0x220] sm:$0xfe]
    %v6121 = vld [vmem:[%s2632 + $0x228] sm:$0xfe]
    %v6122 = vld [vmem:[%s2632 + $0x230] sm:$0x1]
    %v6123 = vld [vmem:[%s2632 + $0x238] sm:$0x1]
    %v6125 = vlaneseq
    %v6126 = vshrl.u32 %v6125, 7
    %v6127 = vsub.s32 0, %v6126
    %v6128 = vrot.slane %v4285, %v6127
    %v6129 = vlaneseq
    %v6130 = vshrl.u32 %v6129, 7
    %v6131 = vsub.s32 1, %v6130
    %v6132 = vrot.slane %v4285, %v6131
    %v6135 = vmul.f32 %v6060, %v6128
    %v6136 = vmul.f32 %v6061, %v6132
    %v6137 = vmul.f32 %v6062, %v6128
    %v6138 = vmul.f32 %v6063, %v6132
    %v6139 = vmul.f32 %v6064, %v6128
    %v6140 = vmul.f32 %v6065, %v6132
    %v6141 = vmul.f32 %v6066, %v6128
    %v6142 = vmul.f32 %v6067, %v6132
    %v6143 = vmul.f32 %v6068, %v6128
    %v6144 = vmul.f32 %v6069, %v6132
    %v6145 = vmul.f32 %v6070, %v6128
    %v6146 = vmul.f32 %v6071, %v6132
    %v6147 = vmul.f32 %v6072, %v6128
    %v6148 = vmul.f32 %v6073, %v6132
    %v6149 = vmul.f32 %v6074, %v6128
    %v6150 = vmul.f32 %v6075, %v6132
    %v6151 = vmul.f32 %v6076, %v6128
    %v6152 = vmul.f32 %v6077, %v6132
    %v6153 = vmul.f32 %v6078, %v6128
    %v6154 = vmul.f32 %v6079, %v6132
    %v6155 = vmul.f32 %v6080, %v6128
    %v6156 = vmul.f32 %v6081, %v6132
    %v6157 = vmul.f32 %v6082, %v6128
    %v6158 = vmul.f32 %v6083, %v6132
    %v6159 = vmul.f32 %v6084, %v6128
    %v6160 = vmul.f32 %v6085, %v6132
    %v6161 = vmul.f32 %v6086, %v6128
    %v6162 = vmul.f32 %v6087, %v6132
    %v6163 = vmul.f32 %v6088, %v6128
    %v6164 = vmul.f32 %v6089, %v6132
    %v6165 = vmul.f32 %v6090, %v6128
    %v6166 = vmul.f32 %v6091, %v6132
    %v6167 = vmul.f32 %v6092, %v6128
    %v6168 = vmul.f32 %v6093, %v6132
    %v6169 = vmul.f32 %v6094, %v6128
    %v6170 = vmul.f32 %v6095, %v6132
    %v6171 = vmul.f32 %v6096, %v6128
    %v6172 = vmul.f32 %v6097, %v6132
    %v6173 = vmul.f32 %v6098, %v6128
    %v6174 = vmul.f32 %v6099, %v6132
    %v6175 = vmul.f32 %v6100, %v6128
    %v6176 = vmul.f32 %v6101, %v6132
    %v6177 = vmul.f32 %v6102, %v6128
    %v6178 = vmul.f32 %v6103, %v6132
    %v6179 = vmul.f32 %v6104, %v6128
    %v6180 = vmul.f32 %v6105, %v6132
    %v6181 = vmul.f32 %v6106, %v6128
    %v6182 = vmul.f32 %v6107, %v6132
    %v6183 = vmul.f32 %v6108, %v6128
    %v6184 = vmul.f32 %v6109, %v6132
    %v6185 = vmul.f32 %v6110, %v6128
    %v6186 = vmul.f32 %v6111, %v6132
    %v6187 = vmul.f32 %v6112, %v6128
    %v6188 = vmul.f32 %v6113, %v6132
    %v6189 = vmul.f32 %v6114, %v6128
    %v6190 = vmul.f32 %v6115, %v6132
    %v6191 = vmul.f32 %v6116, %v6128
    %v6192 = vmul.f32 %v6117, %v6132
    %v6193 = vmul.f32 %v6118, %v6128
    %v6194 = vmul.f32 %v6119, %v6132
    %v6195 = vmul.f32 %v6120, %v6128
    %v6196 = vmul.f32 %v6121, %v6132
    %v6197 = vmul.f32 %v6122, %v6128
    %v6198 = vmul.f32 %v6123, %v6132
    %v6263 = vrot.slane %v6135, 1
    %v6264 = vrot.slane %v6137, 1
    %v6265 = vsel %vm1274, %v6263, %v6264
    %v6266 = vrot.slane %v6136, 1
    %v6267 = vrot.slane %v6138, 1
    %v6268 = vsel %vm1274, %v6266, %v6267
    %v6269 = vrot.slane %v6139, 1
    %v6270 = vrot.slane %v6141, 1
    %v6271 = vsel %vm1274, %v6269, %v6270
    %v6272 = vrot.slane %v6140, 1
    %v6273 = vrot.slane %v6142, 1
    %v6274 = vsel %vm1274, %v6272, %v6273
    %v6275 = vrot.slane %v6143, 1
    %v6276 = vrot.slane %v6145, 1
    %v6277 = vsel %vm1274, %v6275, %v6276
    %v6278 = vrot.slane %v6144, 1
    %v6279 = vrot.slane %v6146, 1
    %v6280 = vsel %vm1274, %v6278, %v6279
    %v6281 = vrot.slane %v6147, 1
    %v6282 = vrot.slane %v6149, 1
    %v6283 = vsel %vm1274, %v6281, %v6282
    %v6284 = vrot.slane %v6148, 1
    %v6285 = vrot.slane %v6150, 1
    %v6286 = vsel %vm1274, %v6284, %v6285
    %v6287 = vrot.slane %v6151, 1
    %v6288 = vrot.slane %v6153, 1
    %v6289 = vsel %vm1274, %v6287, %v6288
    %v6290 = vrot.slane %v6152, 1
    %v6291 = vrot.slane %v6154, 1
    %v6292 = vsel %vm1274, %v6290, %v6291
    %v6293 = vrot.slane %v6155, 1
    %v6294 = vrot.slane %v6157, 1
    %v6295 = vsel %vm1274, %v6293, %v6294
    %v6296 = vrot.slane %v6156, 1
    %v6297 = vrot.slane %v6158, 1
    %v6298 = vsel %vm1274, %v6296, %v6297
    %v6299 = vrot.slane %v6159, 1
    %v6300 = vrot.slane %v6161, 1
    %v6301 = vsel %vm1274, %v6299, %v6300
    %v6302 = vrot.slane %v6160, 1
    %v6303 = vrot.slane %v6162, 1
    %v6304 = vsel %vm1274, %v6302, %v6303
    %v6305 = vrot.slane %v6163, 1
    %v6306 = vrot.slane %v6165, 1
    %v6307 = vsel %vm1274, %v6305, %v6306
    %v6308 = vrot.slane %v6164, 1
    %v6309 = vrot.slane %v6166, 1
    %v6310 = vsel %vm1274, %v6308, %v6309
    %v6311 = vrot.slane %v6167, 1
    %v6312 = vrot.slane %v6169, 1
    %v6313 = vsel %vm1274, %v6311, %v6312
    %v6314 = vrot.slane %v6168, 1
    %v6315 = vrot.slane %v6170, 1
    %v6316 = vsel %vm1274, %v6314, %v6315
    %v6317 = vrot.slane %v6171, 1
    %v6318 = vrot.slane %v6173, 1
    %v6319 = vsel %vm1274, %v6317, %v6318
    %v6320 = vrot.slane %v6172, 1
    %v6321 = vrot.slane %v6174, 1
    %v6322 = vsel %vm1274, %v6320, %v6321
    %v6323 = vrot.slane %v6175, 1
    %v6324 = vrot.slane %v6177, 1
    %v6325 = vsel %vm1274, %v6323, %v6324
    %v6326 = vrot.slane %v6176, 1
    %v6327 = vrot.slane %v6178, 1
    %v6328 = vsel %vm1274, %v6326, %v6327
    %v6329 = vrot.slane %v6179, 1
    %v6330 = vrot.slane %v6181, 1
    %v6331 = vsel %vm1274, %v6329, %v6330
    %v6332 = vrot.slane %v6180, 1
    %v6333 = vrot.slane %v6182, 1
    %v6334 = vsel %vm1274, %v6332, %v6333
    %v6335 = vrot.slane %v6183, 1
    %v6336 = vrot.slane %v6185, 1
    %v6337 = vsel %vm1274, %v6335, %v6336
    %v6338 = vrot.slane %v6184, 1
    %v6339 = vrot.slane %v6186, 1
    %v6340 = vsel %vm1274, %v6338, %v6339
    %v6341 = vrot.slane %v6187, 1
    %v6342 = vrot.slane %v6189, 1
    %v6343 = vsel %vm1274, %v6341, %v6342
    %v6344 = vrot.slane %v6188, 1
    %v6345 = vrot.slane %v6190, 1
    %v6346 = vsel %vm1274, %v6344, %v6345
    %v6347 = vrot.slane %v6191, 1
    %v6348 = vrot.slane %v6193, 1
    %v6349 = vsel %vm1274, %v6347, %v6348
    %v6350 = vrot.slane %v6192, 1
    %v6351 = vrot.slane %v6194, 1
    %v6352 = vsel %vm1274, %v6350, %v6351
    %v6353 = vrot.slane %v6195, 1
    %v6354 = vrot.slane %v6197, 1
    %v6355 = vsel %vm1274, %v6353, %v6354
    %v6356 = vrot.slane %v6196, 1
    %v6357 = vrot.slane %v6198, 1
    %v6358 = vsel %vm1274, %v6356, %v6357
    %v6391 = vadd.f32 %v6028, %v6265
    %v6392 = vadd.f32 %v6029, %v6268
    %v6393 = vadd.f32 %v6030, %v6271
    %v6394 = vadd.f32 %v6031, %v6274
    %v6395 = vadd.f32 %v6032, %v6277
    %v6396 = vadd.f32 %v6033, %v6280
    %v6397 = vadd.f32 %v6034, %v6283
    %v6398 = vadd.f32 %v6035, %v6286
    %v6399 = vadd.f32 %v6036, %v6289
    %v6400 = vadd.f32 %v6037, %v6292
    %v6401 = vadd.f32 %v6038, %v6295
    %v6402 = vadd.f32 %v6039, %v6298
    %v6403 = vadd.f32 %v6040, %v6301
    %v6404 = vadd.f32 %v6041, %v6304
    %v6405 = vadd.f32 %v6042, %v6307
    %v6406 = vadd.f32 %v6043, %v6310
    %v6407 = vadd.f32 %v6044, %v6313
    %v6408 = vadd.f32 %v6045, %v6316
    %v6409 = vadd.f32 %v6046, %v6319
    %v6410 = vadd.f32 %v6047, %v6322
    %v6411 = vadd.f32 %v6048, %v6325
    %v6412 = vadd.f32 %v6049, %v6328
    %v6413 = vadd.f32 %v6050, %v6331
    %v6414 = vadd.f32 %v6051, %v6334
    %v6415 = vadd.f32 %v6052, %v6337
    %v6416 = vadd.f32 %v6053, %v6340
    %v6417 = vadd.f32 %v6054, %v6343
    %v6418 = vadd.f32 %v6055, %v6346
    %v6419 = vadd.f32 %v6056, %v6349
    %v6420 = vadd.f32 %v6057, %v6352
    %v6421 = vadd.f32 %v6058, %v6355
    %v6422 = vadd.f32 %v6059, %v6358
    %v6423 = vld [vmem:[%s2632] sm:$0xfc]
    %v6424 = vld [vmem:[%s2632 + $0x8] sm:$0xfc]
    %v6425 = vld [vmem:[%s2632 + $0x10] sm:$0x3]
    %v6426 = vld [vmem:[%s2632 + $0x18] sm:$0x3]
    %v6427 = vld [vmem:[%s2632 + $0x20] sm:$0xfc]
    %v6428 = vld [vmem:[%s2632 + $0x28] sm:$0xfc]
    %v6429 = vld [vmem:[%s2632 + $0x30] sm:$0x3]
    %v6430 = vld [vmem:[%s2632 + $0x38] sm:$0x3]
    %v6431 = vld [vmem:[%s2632 + $0x40] sm:$0xfc]
    %v6432 = vld [vmem:[%s2632 + $0x48] sm:$0xfc]
    %v6433 = vld [vmem:[%s2632 + $0x50] sm:$0x3]
    %v6434 = vld [vmem:[%s2632 + $0x58] sm:$0x3]
    %v6435 = vld [vmem:[%s2632 + $0x60] sm:$0xfc]
    %v6436 = vld [vmem:[%s2632 + $0x68] sm:$0xfc]
    %v6437 = vld [vmem:[%s2632 + $0x70] sm:$0x3]
    %v6438 = vld [vmem:[%s2632 + $0x78] sm:$0x3]
    %v6439 = vld [vmem:[%s2632 + $0x80] sm:$0xfc]
    %v6440 = vld [vmem:[%s2632 + $0x88] sm:$0xfc]
    %v6441 = vld [vmem:[%s2632 + $0x90] sm:$0x3]
    %v6442 = vld [vmem:[%s2632 + $0x98] sm:$0x3]
    %v6443 = vld [vmem:[%s2632 + $0xa0] sm:$0xfc]
    %v6444 = vld [vmem:[%s2632 + $0xa8] sm:$0xfc]
    %v6445 = vld [vmem:[%s2632 + $0xb0] sm:$0x3]
    %v6446 = vld [vmem:[%s2632 + $0xb8] sm:$0x3]
    %v6447 = vld [vmem:[%s2632 + $0xc0] sm:$0xfc]
    %v6448 = vld [vmem:[%s2632 + $0xc8] sm:$0xfc]
    %v6449 = vld [vmem:[%s2632 + $0xd0] sm:$0x3]
    %v6450 = vld [vmem:[%s2632 + $0xd8] sm:$0x3]
    %v6451 = vld [vmem:[%s2632 + $0xe0] sm:$0xfc]
    %v6452 = vld [vmem:[%s2632 + $0xe8] sm:$0xfc]
    %v6453 = vld [vmem:[%s2632 + $0xf0] sm:$0x3]
    %v6454 = vld [vmem:[%s2632 + $0xf8] sm:$0x3]
    %v6455 = vld [vmem:[%s2632 + $0x140] sm:$0xfc]
    %v6456 = vld [vmem:[%s2632 + $0x148] sm:$0xfc]
    %v6457 = vld [vmem:[%s2632 + $0x150] sm:$0x3]
    %v6458 = vld [vmem:[%s2632 + $0x158] sm:$0x3]
    %v6459 = vld [vmem:[%s2632 + $0x160] sm:$0xfc]
    %v6460 = vld [vmem:[%s2632 + $0x168] sm:$0xfc]
    %v6461 = vld [vmem:[%s2632 + $0x170] sm:$0x3]
    %v6462 = vld [vmem:[%s2632 + $0x178] sm:$0x3]
    %v6463 = vld [vmem:[%s2632 + $0x180] sm:$0xfc]
    %v6464 = vld [vmem:[%s2632 + $0x188] sm:$0xfc]
    %v6465 = vld [vmem:[%s2632 + $0x190] sm:$0x3]
    %v6466 = vld [vmem:[%s2632 + $0x198] sm:$0x3]
    %v6467 = vld [vmem:[%s2632 + $0x1a0] sm:$0xfc]
    %v6468 = vld [vmem:[%s2632 + $0x1a8] sm:$0xfc]
    %v6469 = vld [vmem:[%s2632 + $0x1b0] sm:$0x3]
    %v6470 = vld [vmem:[%s2632 + $0x1b8] sm:$0x3]
    %v6471 = vld [vmem:[%s2632 + $0x1c0] sm:$0xfc]
    %v6472 = vld [vmem:[%s2632 + $0x1c8] sm:$0xfc]
    %v6473 = vld [vmem:[%s2632 + $0x1d0] sm:$0x3]
    %v6474 = vld [vmem:[%s2632 + $0x1d8] sm:$0x3]
    %v6475 = vld [vmem:[%s2632 + $0x1e0] sm:$0xfc]
    %v6476 = vld [vmem:[%s2632 + $0x1e8] sm:$0xfc]
    %v6477 = vld [vmem:[%s2632 + $0x1f0] sm:$0x3]
    %v6478 = vld [vmem:[%s2632 + $0x1f8] sm:$0x3]
    %v6479 = vld [vmem:[%s2632 + $0x200] sm:$0xfc]
    %v6480 = vld [vmem:[%s2632 + $0x208] sm:$0xfc]
    %v6481 = vld [vmem:[%s2632 + $0x210] sm:$0x3]
    %v6482 = vld [vmem:[%s2632 + $0x218] sm:$0x3]
    %v6483 = vld [vmem:[%s2632 + $0x220] sm:$0xfc]
    %v6484 = vld [vmem:[%s2632 + $0x228] sm:$0xfc]
    %v6485 = vld [vmem:[%s2632 + $0x230] sm:$0x3]
    %v6486 = vld [vmem:[%s2632 + $0x238] sm:$0x3]
    %v6488 = vlaneseq
    %v6489 = vshrl.u32 %v6488, 7
    %v6490 = vsub.s32 0, %v6489
    %v6491 = vrot.slane %v4286, %v6490
    %v6492 = vlaneseq
    %v6493 = vshrl.u32 %v6492, 7
    %v6494 = vsub.s32 1, %v6493
    %v6495 = vrot.slane %v4286, %v6494
    %v6498 = vmul.f32 %v6423, %v6491
    %v6499 = vmul.f32 %v6424, %v6495
    %v6500 = vmul.f32 %v6425, %v6491
    %v6501 = vmul.f32 %v6426, %v6495
    %v6502 = vmul.f32 %v6427, %v6491
    %v6503 = vmul.f32 %v6428, %v6495
    %v6504 = vmul.f32 %v6429, %v6491
    %v6505 = vmul.f32 %v6430, %v6495
    %v6506 = vmul.f32 %v6431, %v6491
    %v6507 = vmul.f32 %v6432, %v6495
    %v6508 = vmul.f32 %v6433, %v6491
    %v6509 = vmul.f32 %v6434, %v6495
    %v6510 = vmul.f32 %v6435, %v6491
    %v6511 = vmul.f32 %v6436, %v6495
    %v6512 = vmul.f32 %v6437, %v6491
    %v6513 = vmul.f32 %v6438, %v6495
    %v6514 = vmul.f32 %v6439, %v6491
    %v6515 = vmul.f32 %v6440, %v6495
    %v6516 = vmul.f32 %v6441, %v6491
    %v6517 = vmul.f32 %v6442, %v6495
    %v6518 = vmul.f32 %v6443, %v6491
    %v6519 = vmul.f32 %v6444, %v6495
    %v6520 = vmul.f32 %v6445, %v6491
    %v6521 = vmul.f32 %v6446, %v6495
    %v6522 = vmul.f32 %v6447, %v6491
    %v6523 = vmul.f32 %v6448, %v6495
    %v6524 = vmul.f32 %v6449, %v6491
    %v6525 = vmul.f32 %v6450, %v6495
    %v6526 = vmul.f32 %v6451, %v6491
    %v6527 = vmul.f32 %v6452, %v6495
    %v6528 = vmul.f32 %v6453, %v6491
    %v6529 = vmul.f32 %v6454, %v6495
    %v6530 = vmul.f32 %v6455, %v6491
    %v6531 = vmul.f32 %v6456, %v6495
    %v6532 = vmul.f32 %v6457, %v6491
    %v6533 = vmul.f32 %v6458, %v6495
    %v6534 = vmul.f32 %v6459, %v6491
    %v6535 = vmul.f32 %v6460, %v6495
    %v6536 = vmul.f32 %v6461, %v6491
    %v6537 = vmul.f32 %v6462, %v6495
    %v6538 = vmul.f32 %v6463, %v6491
    %v6539 = vmul.f32 %v6464, %v6495
    %v6540 = vmul.f32 %v6465, %v6491
    %v6541 = vmul.f32 %v6466, %v6495
    %v6542 = vmul.f32 %v6467, %v6491
    %v6543 = vmul.f32 %v6468, %v6495
    %v6544 = vmul.f32 %v6469, %v6491
    %v6545 = vmul.f32 %v6470, %v6495
    %v6546 = vmul.f32 %v6471, %v6491
    %v6547 = vmul.f32 %v6472, %v6495
    %v6548 = vmul.f32 %v6473, %v6491
    %v6549 = vmul.f32 %v6474, %v6495
    %v6550 = vmul.f32 %v6475, %v6491
    %v6551 = vmul.f32 %v6476, %v6495
    %v6552 = vmul.f32 %v6477, %v6491
    %v6553 = vmul.f32 %v6478, %v6495
    %v6554 = vmul.f32 %v6479, %v6491
    %v6555 = vmul.f32 %v6480, %v6495
    %v6556 = vmul.f32 %v6481, %v6491
    %v6557 = vmul.f32 %v6482, %v6495
    %v6558 = vmul.f32 %v6483, %v6491
    %v6559 = vmul.f32 %v6484, %v6495
    %v6560 = vmul.f32 %v6485, %v6491
    %v6561 = vmul.f32 %v6486, %v6495
    %v6626 = vrot.slane %v6498, 2
    %v6627 = vrot.slane %v6500, 2
    %v6628 = vsel %vm1638, %v6626, %v6627
    %v6629 = vrot.slane %v6499, 2
    %v6630 = vrot.slane %v6501, 2
    %v6631 = vsel %vm1638, %v6629, %v6630
    %v6632 = vrot.slane %v6502, 2
    %v6633 = vrot.slane %v6504, 2
    %v6634 = vsel %vm1638, %v6632, %v6633
    %v6635 = vrot.slane %v6503, 2
    %v6636 = vrot.slane %v6505, 2
    %v6637 = vsel %vm1638, %v6635, %v6636
    %v6638 = vrot.slane %v6506, 2
    %v6639 = vrot.slane %v6508, 2
    %v6640 = vsel %vm1638, %v6638, %v6639
    %v6641 = vrot.slane %v6507, 2
    %v6642 = vrot.slane %v6509, 2
    %v6643 = vsel %vm1638, %v6641, %v6642
    %v6644 = vrot.slane %v6510, 2
    %v6645 = vrot.slane %v6512, 2
    %v6646 = vsel %vm1638, %v6644, %v6645
    %v6647 = vrot.slane %v6511, 2
    %v6648 = vrot.slane %v6513, 2
    %v6649 = vsel %vm1638, %v6647, %v6648
    %v6650 = vrot.slane %v6514, 2
    %v6651 = vrot.slane %v6516, 2
    %v6652 = vsel %vm1638, %v6650, %v6651
    %v6653 = vrot.slane %v6515, 2
    %v6654 = vrot.slane %v6517, 2
    %v6655 = vsel %vm1638, %v6653, %v6654
    %v6656 = vrot.slane %v6518, 2
    %v6657 = vrot.slane %v6520, 2
    %v6658 = vsel %vm1638, %v6656, %v6657
    %v6659 = vrot.slane %v6519, 2
    %v6660 = vrot.slane %v6521, 2
    %v6661 = vsel %vm1638, %v6659, %v6660
    %v6662 = vrot.slane %v6522, 2
    %v6663 = vrot.slane %v6524, 2
    %v6664 = vsel %vm1638, %v6662, %v6663
    %v6665 = vrot.slane %v6523, 2
    %v6666 = vrot.slane %v6525, 2
    %v6667 = vsel %vm1638, %v6665, %v6666
    %v6668 = vrot.slane %v6526, 2
    %v6669 = vrot.slane %v6528, 2
    %v6670 = vsel %vm1638, %v6668, %v6669
    %v6671 = vrot.slane %v6527, 2
    %v6672 = vrot.slane %v6529, 2
    %v6673 = vsel %vm1638, %v6671, %v6672
    %v6674 = vrot.slane %v6530, 2
    %v6675 = vrot.slane %v6532, 2
    %v6676 = vsel %vm1638, %v6674, %v6675
    %v6677 = vrot.slane %v6531, 2
    %v6678 = vrot.slane %v6533, 2
    %v6679 = vsel %vm1638, %v6677, %v6678
    %v6680 = vrot.slane %v6534, 2
    %v6681 = vrot.slane %v6536, 2
    %v6682 = vsel %vm1638, %v6680, %v6681
    %v6683 = vrot.slane %v6535, 2
    %v6684 = vrot.slane %v6537, 2
    %v6685 = vsel %vm1638, %v6683, %v6684
    %v6686 = vrot.slane %v6538, 2
    %v6687 = vrot.slane %v6540, 2
    %v6688 = vsel %vm1638, %v6686, %v6687
    %v6689 = vrot.slane %v6539, 2
    %v6690 = vrot.slane %v6541, 2
    %v6691 = vsel %vm1638, %v6689, %v6690
    %v6692 = vrot.slane %v6542, 2
    %v6693 = vrot.slane %v6544, 2
    %v6694 = vsel %vm1638, %v6692, %v6693
    %v6695 = vrot.slane %v6543, 2
    %v6696 = vrot.slane %v6545, 2
    %v6697 = vsel %vm1638, %v6695, %v6696
    %v6698 = vrot.slane %v6546, 2
    %v6699 = vrot.slane %v6548, 2
    %v6700 = vsel %vm1638, %v6698, %v6699
    %v6701 = vrot.slane %v6547, 2
    %v6702 = vrot.slane %v6549, 2
    %v6703 = vsel %vm1638, %v6701, %v6702
    %v6704 = vrot.slane %v6550, 2
    %v6705 = vrot.slane %v6552, 2
    %v6706 = vsel %vm1638, %v6704, %v6705
    %v6707 = vrot.slane %v6551, 2
    %v6708 = vrot.slane %v6553, 2
    %v6709 = vsel %vm1638, %v6707, %v6708
    %v6710 = vrot.slane %v6554, 2
    %v6711 = vrot.slane %v6556, 2
    %v6712 = vsel %vm1638, %v6710, %v6711
    %v6713 = vrot.slane %v6555, 2
    %v6714 = vrot.slane %v6557, 2
    %v6715 = vsel %vm1638, %v6713, %v6714
    %v6716 = vrot.slane %v6558, 2
    %v6717 = vrot.slane %v6560, 2
    %v6718 = vsel %vm1638, %v6716, %v6717
    %v6719 = vrot.slane %v6559, 2
    %v6720 = vrot.slane %v6561, 2
    %v6721 = vsel %vm1638, %v6719, %v6720
    %v6754 = vadd.f32 %v6391, %v6628
    %v6755 = vadd.f32 %v6392, %v6631
    %v6756 = vadd.f32 %v6393, %v6634
    %v6757 = vadd.f32 %v6394, %v6637
    %v6758 = vadd.f32 %v6395, %v6640
    %v6759 = vadd.f32 %v6396, %v6643
    %v6760 = vadd.f32 %v6397, %v6646
    %v6761 = vadd.f32 %v6398, %v6649
    %v6762 = vadd.f32 %v6399, %v6652
    %v6763 = vadd.f32 %v6400, %v6655
    %v6764 = vadd.f32 %v6401, %v6658
    %v6765 = vadd.f32 %v6402, %v6661
    %v6766 = vadd.f32 %v6403, %v6664
    %v6767 = vadd.f32 %v6404, %v6667
    %v6768 = vadd.f32 %v6405, %v6670
    %v6769 = vadd.f32 %v6406, %v6673
    %v6770 = vadd.f32 %v6407, %v6676
    %v6771 = vadd.f32 %v6408, %v6679
    %v6772 = vadd.f32 %v6409, %v6682
    %v6773 = vadd.f32 %v6410, %v6685
    %v6774 = vadd.f32 %v6411, %v6688
    %v6775 = vadd.f32 %v6412, %v6691
    %v6776 = vadd.f32 %v6413, %v6694
    %v6777 = vadd.f32 %v6414, %v6697
    %v6778 = vadd.f32 %v6415, %v6700
    %v6779 = vadd.f32 %v6416, %v6703
    %v6780 = vadd.f32 %v6417, %v6706
    %v6781 = vadd.f32 %v6418, %v6709
    %v6782 = vadd.f32 %v6419, %v6712
    %v6783 = vadd.f32 %v6420, %v6715
    %v6784 = vadd.f32 %v6421, %v6718
    %v6785 = vadd.f32 %v6422, %v6721
    %s6786 = scalar_lea.vmem %s6, 2
    %v6787 = vld [vmem:[%s6786] sm:$0x3]
    %v6789 = vlaneseq
    %v6790 = vshrl.u32 %v6789, 7
    %v6791 = vsub.s32 0, %v6790
    %v6792 = vrot.slane %v6787, %v6791
    %v6793 = vlaneseq
    %v6794 = vshrl.u32 %v6793, 7
    %v6795 = vsub.s32 1, %v6794
    %v6796 = vrot.slane %v6787, %v6795
    %v6799 = vadd.f32 %v6754, %v6792
    %v6800 = vadd.f32 %v6755, %v6796
    %v6801 = vadd.f32 %v6756, %v6792
    %v6802 = vadd.f32 %v6757, %v6796
    %v6803 = vadd.f32 %v6758, %v6792
    %v6804 = vadd.f32 %v6759, %v6796
    %v6805 = vadd.f32 %v6760, %v6792
    %v6806 = vadd.f32 %v6761, %v6796
    %v6807 = vadd.f32 %v6762, %v6792
    %v6808 = vadd.f32 %v6763, %v6796
    %v6809 = vadd.f32 %v6764, %v6792
    %v6810 = vadd.f32 %v6765, %v6796
    %v6811 = vadd.f32 %v6766, %v6792
    %v6812 = vadd.f32 %v6767, %v6796
    %v6813 = vadd.f32 %v6768, %v6792
    %v6814 = vadd.f32 %v6769, %v6796
    %v6815 = vadd.f32 %v6770, %v6792
    %v6816 = vadd.f32 %v6771, %v6796
    %v6817 = vadd.f32 %v6772, %v6792
    %v6818 = vadd.f32 %v6773, %v6796
    %v6819 = vadd.f32 %v6774, %v6792
    %v6820 = vadd.f32 %v6775, %v6796
    %v6821 = vadd.f32 %v6776, %v6792
    %v6822 = vadd.f32 %v6777, %v6796
    %v6823 = vadd.f32 %v6778, %v6792
    %v6824 = vadd.f32 %v6779, %v6796
    %v6825 = vadd.f32 %v6780, %v6792
    %v6826 = vadd.f32 %v6781, %v6796
    %v6827 = vadd.f32 %v6782, %v6792
    %v6828 = vadd.f32 %v6783, %v6796
    %v6829 = vadd.f32 %v6784, %v6792
    %v6830 = vadd.f32 %v6785, %v6796
    %v6831 = vmax.f32 %v6799, 0.0
    %v6832 = vmax.f32 %v6800, 0.0
    %v6833 = vmax.f32 %v6801, 0.0
    %v6834 = vmax.f32 %v6802, 0.0
    %v6835 = vmax.f32 %v6803, 0.0
    %v6836 = vmax.f32 %v6804, 0.0
    %v6837 = vmax.f32 %v6805, 0.0
    %v6838 = vmax.f32 %v6806, 0.0
    %v6839 = vmax.f32 %v6807, 0.0
    %v6840 = vmax.f32 %v6808, 0.0
    %v6841 = vmax.f32 %v6809, 0.0
    %v6842 = vmax.f32 %v6810, 0.0
    %v6843 = vmax.f32 %v6811, 0.0
    %v6844 = vmax.f32 %v6812, 0.0
    %v6845 = vmax.f32 %v6813, 0.0
    %v6846 = vmax.f32 %v6814, 0.0
    %v6847 = vmax.f32 %v6815, 0.0
    %v6848 = vmax.f32 %v6816, 0.0
    %v6849 = vmax.f32 %v6817, 0.0
    %v6850 = vmax.f32 %v6818, 0.0
    %v6851 = vmax.f32 %v6819, 0.0
    %v6852 = vmax.f32 %v6820, 0.0
    %v6853 = vmax.f32 %v6821, 0.0
    %v6854 = vmax.f32 %v6822, 0.0
    %v6855 = vmax.f32 %v6823, 0.0
    %v6856 = vmax.f32 %v6824, 0.0
    %v6857 = vmax.f32 %v6825, 0.0
    %v6858 = vmax.f32 %v6826, 0.0
    %v6859 = vmax.f32 %v6827, 0.0
    %v6860 = vmax.f32 %v6828, 0.0
    %v6861 = vmax.f32 %v6829, 0.0
    %v6862 = vmax.f32 %v6830, 0.0
    %v6863 = vmin.f32 %v6831, 6.0
    %v6864 = vmin.f32 %v6832, 6.0
    %v6865 = vmin.f32 %v6833, 6.0
    %v6866 = vmin.f32 %v6834, 6.0
    %v6867 = vmin.f32 %v6835, 6.0
    %v6868 = vmin.f32 %v6836, 6.0
    %v6869 = vmin.f32 %v6837, 6.0
    %v6870 = vmin.f32 %v6838, 6.0
    %v6871 = vmin.f32 %v6839, 6.0
    %v6872 = vmin.f32 %v6840, 6.0
    %v6873 = vmin.f32 %v6841, 6.0
    %v6874 = vmin.f32 %v6842, 6.0
    %v6875 = vmin.f32 %v6843, 6.0
    %v6876 = vmin.f32 %v6844, 6.0
    %v6877 = vmin.f32 %v6845, 6.0
    %v6878 = vmin.f32 %v6846, 6.0
    %v6879 = vmin.f32 %v6847, 6.0
    %v6880 = vmin.f32 %v6848, 6.0
    %v6881 = vmin.f32 %v6849, 6.0
    %v6882 = vmin.f32 %v6850, 6.0
    %v6883 = vmin.f32 %v6851, 6.0
    %v6884 = vmin.f32 %v6852, 6.0
    %v6885 = vmin.f32 %v6853, 6.0
    %v6886 = vmin.f32 %v6854, 6.0
    %v6887 = vmin.f32 %v6855, 6.0
    %v6888 = vmin.f32 %v6856, 6.0
    %v6889 = vmin.f32 %v6857, 6.0
    %v6890 = vmin.f32 %v6858, 6.0
    %v6891 = vmin.f32 %v6859, 6.0
    %v6892 = vmin.f32 %v6860, 6.0
    %v6893 = vmin.f32 %v6861, 6.0
    %v6894 = vmin.f32 %v6862, 6.0
    %v6895 = vpack.c.bf16 %v6865, %v6863
    %v6896 = vpack.c.bf16 %v6866, %v6864
    %v6897 = vpack.c.bf16 %v6869, %v6867
    %v6898 = vpack.c.bf16 %v6870, %v6868
    %v6899 = vpack.c.bf16 %v6873, %v6871
    %v6900 = vpack.c.bf16 %v6874, %v6872
    %v6901 = vpack.c.bf16 %v6877, %v6875
    %v6902 = vpack.c.bf16 %v6878, %v6876
    %v6903 = vpack.c.bf16 %v6881, %v6879
    %v6904 = vpack.c.bf16 %v6882, %v6880
    %v6905 = vpack.c.bf16 %v6885, %v6883
    %v6906 = vpack.c.bf16 %v6886, %v6884
    %v6907 = vpack.c.bf16 %v6889, %v6887
    %v6908 = vpack.c.bf16 %v6890, %v6888
    %v6909 = vpack.c.bf16 %v6893, %v6891
    %v6910 = vpack.c.bf16 %v6894, %v6892
    %v6911 = vld [vmem:[%s9] sm:$0xf]
    %v6912 = vld [vmem:[%s9 + $0x4] sm:$0xf]
    %v6913 = vld [vmem:[%s9 + $0x8] sm:$0xf]
    %v6914 = vld [vmem:[%s9 + $0xc] sm:$0xf]
    %v6919 = vunpack.c.l.b16 %v6911
    %v6920 = vunpack.c.l.b16 %v6912
    %v6921 = vunpack.c.l.b16 %v6913
    %v6922 = vunpack.c.l.b16 %v6914
    %v6923 = vpack.c.b16 %v6920, %v6919
    %v6924 = vpack.c.b16 %v6922, %v6921
    %6927 = vmatprep.subr.bf16.mxu0 %v6910
    %6928 = vmatpush1.bf16.msra.mxu0 %v6909
    %6929 = vmatprep.subr.bf16.mxu0 %v6908
    %6930 = vmatpush1.bf16.msra.mxu0 %v6907
    %6931 = vmatprep.subr.bf16.mxu0 %v6906
    %6932 = vmatpush1.bf16.msra.mxu0 %v6905
    %6933 = vmatprep.subr.bf16.mxu0 %v6904
    %6934 = vmatpush1.bf16.msra.mxu0 %v6903
    %6935 = vmatprep.subr.bf16.mxu0 %v6902
    %6936 = vmatpush1.bf16.msra.mxu0 %v6901
    %6937 = vmatprep.subr.bf16.mxu0 %v6900
    %6938 = vmatpush1.bf16.msra.mxu0 %v6899
    %6939 = vmatprep.subr.bf16.mxu0 %v6898
    %6940 = vmatpush1.bf16.msra.mxu0 %v6897
    %6941 = vmatprep.subr.bf16.mxu0 %v6896
    %6942 = vmatpush1.bf16.msra.mxu0 %v6895
    %6943 = vmatprep.subr.bf16.mxu0 0
    %6944 = vmatpush2.bf16.msra.mxu0 0
    %6945 = vmatprep.subr.bf16.mxu0 0
    %6946 = vmatpush2.bf16.msra.mxu0 0
    %6947 = vmatprep.subr.bf16.mxu0 0
    %6948 = vmatpush2.bf16.msra.mxu0 0
    %6949 = vmatprep.subr.bf16.mxu0 0
    %6950 = vmatpush2.bf16.msra.mxu0 0
    %6951 = vmatprep.subr.bf16.mxu0 0
    %6952 = vmatpush2.bf16.msra.mxu0 0
    %6953 = vmatprep.subr.bf16.mxu0 0
    %6954 = vmatpush2.bf16.msra.mxu0 0
    %6955 = vmatprep.subr.bf16.mxu0 0
    %6956 = vmatpush2.bf16.msra.mxu0 0
    %6957 = vmatprep.subr.bf16.mxu0 0
    %6958 = vmatpush2.bf16.msra.mxu0 0
    %6959 = vmatprep.mubr.bf16.mxu0 0
    %6960 = vmatmul.mubr.bf16.gmra.mxu0 %v6923
    %v6961 = vpop.f32.mrf.mxu0
    %v6962 = vadd.f32 0.0, %v6961
    %v6963 = vpop.f32.mrf.mxu0
    %v6964 = vadd.f32 0.0, %v6963
    %v6965 = vpop.f32.mrf.mxu0
    %v6966 = vadd.f32 0.0, %v6965
    %v6967 = vpop.f32.mrf.mxu0
    %v6968 = vadd.f32 0.0, %v6967
    %6969 = vmatprep.mubr.bf16.mxu0 0
    %6970 = vmatmul.mubr.bf16.gmra.mxu0 %v6924
    %v6971 = vpop.f32.mrf.mxu0
    %v6972 = vadd.f32 0.0, %v6971
    %v6973 = vpop.f32.mrf.mxu0
    %v6974 = vadd.f32 0.0, %v6973
    %v6975 = vpop.f32.mrf.mxu0
    %v6976 = vadd.f32 0.0, %v6975
    %v6977 = vpop.f32.mrf.mxu0
    %v6978 = vadd.f32 0.0, %v6977
    %6979 = vdwg.mxu0
    %v6980 = vpack.c.bf16 %v6966, %v6962
    %v6981 = vpack.c.bf16 %v6968, %v6964
    %v6982 = vpack.c.bf16 %v6976, %v6972
    %v6983 = vpack.c.bf16 %v6978, %v6974
    %s6984 = scalar_lea.vmem %s7, 128
    %v6985 = vld [vmem:[%s6984] sm:$0xf]
    %v6986 = vld [vmem:[%s6984 + $0x4] sm:$0xf]
    %v6987 = vld [vmem:[%s6984 + $0x8] sm:$0xf]
    %v6988 = vld [vmem:[%s6984 + $0xc] sm:$0xf]
    %v6989 = vld [vmem:[%s6984 + $0x10] sm:$0xf]
    %v6990 = vld [vmem:[%s6984 + $0x14] sm:$0xf]
    %v6991 = vld [vmem:[%s6984 + $0x18] sm:$0xf]
    %v6992 = vld [vmem:[%s6984 + $0x1c] sm:$0xf]
    %v6993 = vld [vmem:[%s6984 + $0x20] sm:$0xf]
    %v6994 = vld [vmem:[%s6984 + $0x24] sm:$0xf]
    %v6995 = vld [vmem:[%s6984 + $0x28] sm:$0xf]
    %v6996 = vld [vmem:[%s6984 + $0x2c] sm:$0xf]
    %v6997 = vld [vmem:[%s6984 + $0x30] sm:$0xf]
    %v6998 = vld [vmem:[%s6984 + $0x34] sm:$0xf]
    %v6999 = vld [vmem:[%s6984 + $0x38] sm:$0xf]
    %v7000 = vld [vmem:[%s6984 + $0x3c] sm:$0xf]
    %v7001 = vld [vmem:[%s6984 + $0x40] sm:$0xf]
    %v7002 = vld [vmem:[%s6984 + $0x44] sm:$0xf]
    %v7003 = vld [vmem:[%s6984 + $0x48] sm:$0xf]
    %v7004 = vld [vmem:[%s6984 + $0x4c] sm:$0xf]
    %v7005 = vld [vmem:[%s6984 + $0x50] sm:$0xf]
    %v7006 = vld [vmem:[%s6984 + $0x54] sm:$0xf]
    %v7007 = vld [vmem:[%s6984 + $0x58] sm:$0xf]
    %v7008 = vld [vmem:[%s6984 + $0x5c] sm:$0xf]
    %v7009 = vld [vmem:[%s6984 + $0x60] sm:$0xf]
    %v7010 = vld [vmem:[%s6984 + $0x64] sm:$0xf]
    %v7011 = vld [vmem:[%s6984 + $0x68] sm:$0xf]
    %v7012 = vld [vmem:[%s6984 + $0x6c] sm:$0xf]
    %v7013 = vld [vmem:[%s6984 + $0x70] sm:$0xf]
    %v7014 = vld [vmem:[%s6984 + $0x74] sm:$0xf]
    %v7015 = vld [vmem:[%s6984 + $0x78] sm:$0xf]
    %v7016 = vld [vmem:[%s6984 + $0x7c] sm:$0xf]
    %s7017 = scalar_lea.vmem %s8, 1
    %v7018 = vld [vmem:[%s7017] sm:$0x1]
    %v7020 = vlaneseq
    %v7021 = vshrl.u32 %v7020, 7
    %v7022 = vsub.s32 0, %v7021
    %v7023 = vrot.slane %v7018, %v7022
    %v7057 = vunpack.c.l.b16 %v6985
    %v7058 = vunpack.c.l.b16 %v6986
    %v7059 = vunpack.c.l.b16 %v6987
    %v7060 = vunpack.c.l.b16 %v6988
    %v7061 = vunpack.c.l.b16 %v6989
    %v7062 = vunpack.c.l.b16 %v6990
    %v7063 = vunpack.c.l.b16 %v6991
    %v7064 = vunpack.c.l.b16 %v6992
    %v7065 = vunpack.c.l.b16 %v6993
    %v7066 = vunpack.c.l.b16 %v6994
    %v7067 = vunpack.c.l.b16 %v6995
    %v7068 = vunpack.c.l.b16 %v6996
    %v7069 = vunpack.c.l.b16 %v6997
    %v7070 = vunpack.c.l.b16 %v6998
    %v7071 = vunpack.c.l.b16 %v6999
    %v7072 = vunpack.c.l.b16 %v7000
    %v7073 = vunpack.c.l.b16 %v7001
    %v7074 = vunpack.c.l.b16 %v7002
    %v7075 = vunpack.c.l.b16 %v7003
    %v7076 = vunpack.c.l.b16 %v7004
    %v7077 = vunpack.c.l.b16 %v7005
    %v7078 = vunpack.c.l.b16 %v7006
    %v7079 = vunpack.c.l.b16 %v7007
    %v7080 = vunpack.c.l.b16 %v7008
    %v7081 = vunpack.c.l.b16 %v7009
    %v7082 = vunpack.c.l.b16 %v7010
    %v7083 = vunpack.c.l.b16 %v7011
    %v7084 = vunpack.c.l.b16 %v7012
    %v7085 = vunpack.c.l.b16 %v7013
    %v7086 = vunpack.c.l.b16 %v7014
    %v7087 = vunpack.c.l.b16 %v7015
    %v7088 = vunpack.c.l.b16 %v7016
    %v7089 = vpack.c.b16 %v7058, %v7057
    %v7090 = vpack.c.b16 %v7060, %v7059
    %v7091 = vpack.c.b16 %v7062, %v7061
    %v7092 = vpack.c.b16 %v7064, %v7063
    %v7093 = vpack.c.b16 %v7066, %v7065
    %v7094 = vpack.c.b16 %v7068, %v7067
    %v7095 = vpack.c.b16 %v7070, %v7069
    %v7096 = vpack.c.b16 %v7072, %v7071
    %v7097 = vpack.c.b16 %v7074, %v7073
    %v7098 = vpack.c.b16 %v7076, %v7075
    %v7099 = vpack.c.b16 %v7078, %v7077
    %v7100 = vpack.c.b16 %v7080, %v7079
    %v7101 = vpack.c.b16 %v7082, %v7081
    %v7102 = vpack.c.b16 %v7084, %v7083
    %v7103 = vpack.c.b16 %v7086, %v7085
    %v7104 = vpack.c.b16 %v7088, %v7087
    %7121 = vmatprep.subr.bf16.mxu0 0
    %7122 = vmatpush1.bf16.msra.mxu0 %v7096
    %7123 = vmatprep.subr.bf16.mxu0 0
    %7124 = vmatpush1.bf16.msra.mxu0 %v7095
    %7125 = vmatprep.subr.bf16.mxu0 0
    %7126 = vmatpush1.bf16.msra.mxu0 %v7094
    %7127 = vmatprep.subr.bf16.mxu0 0
    %7128 = vmatpush1.bf16.msra.mxu0 %v7093
    %7129 = vmatprep.subr.bf16.mxu0 0
    %7130 = vmatpush1.bf16.msra.mxu0 %v7092
    %7131 = vmatprep.subr.bf16.mxu0 0
    %7132 = vmatpush1.bf16.msra.mxu0 %v7091
    %7133 = vmatprep.subr.bf16.mxu0 0
    %7134 = vmatpush1.bf16.msra.mxu0 %v7090
    %7135 = vmatprep.subr.bf16.mxu0 0
    %7136 = vmatpush1.bf16.msra.mxu0 %v7089
    %7137 = vmatprep.subr.bf16.mxu0 0
    %7138 = vmatpush2.bf16.msra.mxu0 %v7104
    %7139 = vmatprep.subr.bf16.mxu0 0
    %7140 = vmatpush2.bf16.msra.mxu0 %v7103
    %7141 = vmatprep.subr.bf16.mxu0 0
    %7142 = vmatpush2.bf16.msra.mxu0 %v7102
    %7143 = vmatprep.subr.bf16.mxu0 0
    %7144 = vmatpush2.bf16.msra.mxu0 %v7101
    %7145 = vmatprep.subr.bf16.mxu0 0
    %7146 = vmatpush2.bf16.msra.mxu0 %v7100
    %7147 = vmatprep.subr.bf16.mxu0 0
    %7148 = vmatpush2.bf16.msra.mxu0 %v7099
    %7149 = vmatprep.subr.bf16.mxu0 0
    %7150 = vmatpush2.bf16.msra.mxu0 %v7098
    %7151 = vmatprep.subr.bf16.mxu0 0
    %7152 = vmatpush2.bf16.msra.mxu0 %v7097
    %7153 = vmatprep.mubr.bf16.mxu0 %v6981
    %7154 = vmatmul.mubr.bf16.gmra.mxu0 %v6980
    %v7155 = vpop.f32.mrf.mxu0
    %v7156 = vadd.f32 %v7023, %v7155
    %v7157 = vpop.f32.mrf.mxu0
    %v7158 = vpop.f32.mrf.mxu0
    %v7159 = vadd.f32 %v7023, %v7158
    %v7160 = vpop.f32.mrf.mxu0
    %7161 = vmatprep.mubr.bf16.mxu0 %v6983
    %7162 = vmatmul.mubr.bf16.gmra.mxu0 %v6982
    %v7163 = vpop.f32.mrf.mxu0
    %v7164 = vadd.f32 %v7023, %v7163
    %v7165 = vpop.f32.mrf.mxu0
    %v7166 = vpop.f32.mrf.mxu0
    %v7167 = vadd.f32 %v7023, %v7166
    %v7168 = vpop.f32.mrf.mxu0
    %7169 = vdwg.mxu0
    %v7170 = vpack.c.bf16 %v7159, %v7156
    %v7171 = vpack.c.bf16 %v7167, %v7164
    %s7172 = scalar_lea.vmem %s3, 256
    %v7173 = vld [vmem:[%s7172] sm:$0xff]
    %v7174 = vld [vmem:[%s7172 + $0x8] sm:$0xff]
    %v7175 = vld [vmem:[%s7172 + $0x10] sm:$0xff]
    %v7176 = vld [vmem:[%s7172 + $0x18] sm:$0xff]
    %v7177 = vld [vmem:[%s7172 + $0x20] sm:$0xff]
    %v7178 = vld [vmem:[%s7172 + $0x28] sm:$0xff]
    %v7179 = vld [vmem:[%s7172 + $0x30] sm:$0xff]
    %v7180 = vld [vmem:[%s7172 + $0x38] sm:$0xff]
    %v7181 = vld [vmem:[%s7172 + $0x40] sm:$0xff]
    %v7182 = vld [vmem:[%s7172 + $0x48] sm:$0xff]
    %v7183 = vld [vmem:[%s7172 + $0x50] sm:$0xff]
    %v7184 = vld [vmem:[%s7172 + $0x58] sm:$0xff]
    %v7185 = vld [vmem:[%s7172 + $0x60] sm:$0xff]
    %v7186 = vld [vmem:[%s7172 + $0x68] sm:$0xff]
    %v7187 = vld [vmem:[%s7172 + $0x70] sm:$0xff]
    %v7188 = vld [vmem:[%s7172 + $0x78] sm:$0xff]
    %s7189 = scalar_lea.vmem %s4, 4
    %v7190 = vld [vmem:[%s7189] sm:$0x3]
    %v7192 = vlaneseq
    %v7193 = vshrl.u32 %v7192, 7
    %v7194 = vsub.s32 0, %v7193
    %v7195 = vrot.slane %v7190, %v7194
    %v7196 = vlaneseq
    %v7197 = vshrl.u32 %v7196, 7
    %v7198 = vsub.s32 1, %v7197
    %v7199 = vrot.slane %v7190, %v7198
    %v7218 = vunpack.c.l.b16 %v7173
    %v7219 = vunpack.c.h.b16 %v7173
    %v7220 = vunpack.c.l.b16 %v7174
    %v7221 = vunpack.c.h.b16 %v7174
    %v7222 = vunpack.c.l.b16 %v7175
    %v7223 = vunpack.c.h.b16 %v7175
    %v7224 = vunpack.c.l.b16 %v7176
    %v7225 = vunpack.c.h.b16 %v7176
    %v7226 = vunpack.c.l.b16 %v7177
    %v7227 = vunpack.c.h.b16 %v7177
    %v7228 = vunpack.c.l.b16 %v7178
    %v7229 = vunpack.c.h.b16 %v7178
    %v7230 = vunpack.c.l.b16 %v7179
    %v7231 = vunpack.c.h.b16 %v7179
    %v7232 = vunpack.c.l.b16 %v7180
    %v7233 = vunpack.c.h.b16 %v7180
    %v7234 = vunpack.c.l.b16 %v7181
    %v7235 = vunpack.c.h.b16 %v7181
    %v7236 = vunpack.c.l.b16 %v7182
    %v7237 = vunpack.c.h.b16 %v7182
    %v7238 = vunpack.c.l.b16 %v7183
    %v7239 = vunpack.c.h.b16 %v7183
    %v7240 = vunpack.c.l.b16 %v7184
    %v7241 = vunpack.c.h.b16 %v7184
    %v7242 = vunpack.c.l.b16 %v7185
    %v7243 = vunpack.c.h.b16 %v7185
    %v7244 = vunpack.c.l.b16 %v7186
    %v7245 = vunpack.c.h.b16 %v7186
    %v7246 = vunpack.c.l.b16 %v7187
    %v7247 = vunpack.c.h.b16 %v7187
    %v7248 = vunpack.c.l.b16 %v7188
    %v7249 = vunpack.c.h.b16 %v7188
    %v7250 = vpack.c.b16 %v7220, %v7218
    %v7251 = vpack.c.b16 %v7221, %v7219
    %v7252 = vpack.c.b16 %v7224, %v7222
    %v7253 = vpack.c.b16 %v7225, %v7223
    %v7254 = vpack.c.b16 %v7228, %v7226
    %v7255 = vpack.c.b16 %v7229, %v7227
    %v7256 = vpack.c.b16 %v7232, %v7230
    %v7257 = vpack.c.b16 %v7233, %v7231
    %v7258 = vpack.c.b16 %v7236, %v7234
    %v7259 = vpack.c.b16 %v7237, %v7235
    %v7260 = vpack.c.b16 %v7240, %v7238
    %v7261 = vpack.c.b16 %v7241, %v7239
    %v7262 = vpack.c.b16 %v7244, %v7242
    %v7263 = vpack.c.b16 %v7245, %v7243
    %v7264 = vpack.c.b16 %v7248, %v7246
    %v7265 = vpack.c.b16 %v7249, %v7247
    %7282 = vmatprep.subr.bf16.mxu0 %v7265
    %7283 = vmatpush1.bf16.msra.mxu0 %v7264
    %7284 = vmatprep.subr.bf16.mxu0 %v7263
    %7285 = vmatpush1.bf16.msra.mxu0 %v7262
    %7286 = vmatprep.subr.bf16.mxu0 %v7261
    %7287 = vmatpush1.bf16.msra.mxu0 %v7260
    %7288 = vmatprep.subr.bf16.mxu0 %v7259
    %7289 = vmatpush1.bf16.msra.mxu0 %v7258
    %7290 = vmatprep.subr.bf16.mxu0 %v7257
    %7291 = vmatpush1.bf16.msra.mxu0 %v7256
    %7292 = vmatprep.subr.bf16.mxu0 %v7255
    %7293 = vmatpush1.bf16.msra.mxu0 %v7254
    %7294 = vmatprep.subr.bf16.mxu0 %v7253
    %7295 = vmatpush1.bf16.msra.mxu0 %v7252
    %7296 = vmatprep.subr.bf16.mxu0 %v7251
    %7297 = vmatpush1.bf16.msra.mxu0 %v7250
    %7298 = vmatprep.subr.bf16.mxu0 0
    %7299 = vmatpush2.bf16.msra.mxu0 0
    %7300 = vmatprep.subr.bf16.mxu0 0
    %7301 = vmatpush2.bf16.msra.mxu0 0
    %7302 = vmatprep.subr.bf16.mxu0 0
    %7303 = vmatpush2.bf16.msra.mxu0 0
    %7304 = vmatprep.subr.bf16.mxu0 0
    %7305 = vmatpush2.bf16.msra.mxu0 0
    %7306 = vmatprep.subr.bf16.mxu0 0
    %7307 = vmatpush2.bf16.msra.mxu0 0
    %7308 = vmatprep.subr.bf16.mxu0 0
    %7309 = vmatpush2.bf16.msra.mxu0 0
    %7310 = vmatprep.subr.bf16.mxu0 0
    %7311 = vmatpush2.bf16.msra.mxu0 0
    %7312 = vmatprep.subr.bf16.mxu0 0
    %7313 = vmatpush2.bf16.msra.mxu0 0
    %7314 = vmatprep.mubr.bf16.mxu0 0
    %7315 = vmatmul.mubr.bf16.gmra.mxu0 %v7170
    %v7316 = vpop.f32.mrf.mxu0
    %v7317 = vadd.f32 %v7195, %v7316
    %v7318 = vpop.f32.mrf.mxu0
    %v7319 = vadd.f32 %v7199, %v7318
    %v7320 = vpop.f32.mrf.mxu0
    %v7321 = vadd.f32 %v7195, %v7320
    %v7322 = vpop.f32.mrf.mxu0
    %v7323 = vadd.f32 %v7199, %v7322
    %7324 = vmatprep.mubr.bf16.mxu0 0
    %7325 = vmatmul.mubr.bf16.gmra.mxu0 %v7171
    %v7326 = vpop.f32.mrf.mxu0
    %v7327 = vadd.f32 %v7195, %v7326
    %v7328 = vpop.f32.mrf.mxu0
    %v7329 = vadd.f32 %v7199, %v7328
    %v7330 = vpop.f32.mrf.mxu0
    %v7331 = vadd.f32 %v7195, %v7330
    %v7332 = vpop.f32.mrf.mxu0
    %v7333 = vadd.f32 %v7199, %v7332
    %7334 = vdwg.mxu0
    %v7335 = vmax.f32 %v7317, 0.0
    %v7336 = vmax.f32 %v7319, 0.0
    %v7337 = vmax.f32 %v7321, 0.0
    %v7338 = vmax.f32 %v7323, 0.0
    %v7339 = vmax.f32 %v7327, 0.0
    %v7340 = vmax.f32 %v7329, 0.0
    %v7341 = vmax.f32 %v7331, 0.0
    %v7342 = vmax.f32 %v7333, 0.0
    %v7343 = vmin.f32 %v7335, 6.0
    %v7344 = vmin.f32 %v7336, 6.0
    %v7345 = vmin.f32 %v7337, 6.0
    %v7346 = vmin.f32 %v7338, 6.0
    %v7347 = vmin.f32 %v7339, 6.0
    %v7348 = vmin.f32 %v7340, 6.0
    %v7349 = vmin.f32 %v7341, 6.0
    %v7350 = vmin.f32 %v7342, 6.0
    %v7359 = vcombine.low %v7343, %v7344
    %v7360 = vcombine.high %v7343, %v7344
    %v7361 = vcombine.low %v7345, %v7346
    %v7362 = vcombine.high %v7345, %v7346
    %v7363 = vcombine.low %v7347, %v7348
    %v7364 = vcombine.high %v7347, %v7348
    %v7365 = vcombine.low %v7349, %v7350
    %v7366 = vcombine.high %v7349, %v7350
    %v7367 = vcombine.high %v7359, %v7359
    %v7368 = vcombine.high %v7360, %v7360
    %v7369 = vcombine.high %v7361, %v7361
    %v7370 = vcombine.high %v7362, %v7362
    %v7371 = vcombine.high %v7363, %v7363
    %v7372 = vcombine.high %v7364, %v7364
    %v7373 = vcombine.high %v7365, %v7365
    %v7374 = vcombine.high %v7366, %v7366
    %v7375 = vrot.slane %v7359, 7
    %v7376 = vrot.slane %v7367, 7
    %v7377 = vrot.slane %v7360, 7
    %v7378 = vrot.slane %v7368, 7
    %v7379 = vrot.slane %v7361, 7
    %v7380 = vrot.slane %v7369, 7
    %v7381 = vrot.slane %v7362, 7
    %v7382 = vrot.slane %v7370, 7
    %v7383 = vrot.slane %v7363, 7
    %v7384 = vrot.slane %v7371, 7
    %v7385 = vrot.slane %v7364, 7
    %v7386 = vrot.slane %v7372, 7
    %v7387 = vrot.slane %v7365, 7
    %v7388 = vrot.slane %v7373, 7
    %v7389 = vrot.slane %v7366, 7
    %v7390 = vrot.slane %v7374, 7
    %7407 = vst [vmem:[%s462] sm:$0x1e] %v7375
    %7408 = vst [vmem:[%s462 + $0x8] sm:$0x1e] %v7376
    %7409 = vst [vmem:[%s462 + $0x10] sm:$0x1e] %v7377
    %7410 = vst [vmem:[%s462 + $0x18] sm:$0x1e] %v7378
    %7411 = vst [vmem:[%s462 + $0x20] sm:$0x1e] %v7379
    %7412 = vst [vmem:[%s462 + $0x28] sm:$0x1e] %v7380
    %7413 = vst [vmem:[%s462 + $0x30] sm:$0x1e] %v7381
    %7414 = vst [vmem:[%s462 + $0x38] sm:$0x1e] %v7382
    %7415 = vst [vmem:[%s462 + $0x60] sm:$0x1e] %v7383
    %7416 = vst [vmem:[%s462 + $0x68] sm:$0x1e] %v7384
    %7417 = vst [vmem:[%s462 + $0x70] sm:$0x1e] %v7385
    %7418 = vst [vmem:[%s462 + $0x78] sm:$0x1e] %v7386
    %7419 = vst [vmem:[%s462 + $0x80] sm:$0x1e] %v7387
    %7420 = vst [vmem:[%s462 + $0x88] sm:$0x1e] %v7388
    %7421 = vst [vmem:[%s462 + $0x90] sm:$0x1e] %v7389
    %7422 = vst [vmem:[%s462 + $0x98] sm:$0x1e] %v7390
    %s7423 = scalar_lea.vmem %s5, 36
    %v7424 = vld [vmem:[%s7423] sm:$0x3]
    %v7425 = vld [vmem:[%s7423 + $0x2] sm:$0x3]
    %v7426 = vld [vmem:[%s7423 + $0x4] sm:$0x3]
    %v7427 = vld [vmem:[%s7423 + $0x6] sm:$0x3]
    %v7428 = vld [vmem:[%s7423 + $0x8] sm:$0x3]
    %v7429 = vld [vmem:[%s7423 + $0xa] sm:$0x3]
    %v7430 = vld [vmem:[%s7423 + $0xc] sm:$0x3]
    %v7431 = vld [vmem:[%s7423 + $0xe] sm:$0x3]
    %v7432 = vld [vmem:[%s7423 + $0x10] sm:$0x3]
    %v7433 = vld [vmem:[#allocation3] sm:$0xf]
    %v7434 = vld [vmem:[#allocation3 + $0x8] sm:$0xf]
    %v7435 = vld [vmem:[#allocation3 + $0x10] sm:$0xf]
    %v7436 = vld [vmem:[#allocation3 + $0x18] sm:$0xf]
    %v7437 = vld [vmem:[#allocation3 + $0x20] sm:$0xf]
    %v7438 = vld [vmem:[#allocation3 + $0x28] sm:$0xf]
    %v7439 = vld [vmem:[#allocation3 + $0x30] sm:$0xf]
    %v7440 = vld [vmem:[#allocation3 + $0x38] sm:$0xf]
    %v7441 = vld [vmem:[#allocation3 + $0x60] sm:$0xf]
    %v7442 = vld [vmem:[#allocation3 + $0x68] sm:$0xf]
    %v7443 = vld [vmem:[#allocation3 + $0x70] sm:$0xf]
    %v7444 = vld [vmem:[#allocation3 + $0x78] sm:$0xf]
    %v7445 = vld [vmem:[#allocation3 + $0x80] sm:$0xf]
    %v7446 = vld [vmem:[#allocation3 + $0x88] sm:$0xf]
    %v7447 = vld [vmem:[#allocation3 + $0x90] sm:$0xf]
    %v7448 = vld [vmem:[#allocation3 + $0x98] sm:$0xf]
    %v7450 = vlaneseq
    %v7451 = vshrl.u32 %v7450, 7
    %v7452 = vsub.s32 0, %v7451
    %v7453 = vrot.slane %v7424, %v7452
    %v7454 = vlaneseq
    %v7455 = vshrl.u32 %v7454, 7
    %v7456 = vsub.s32 1, %v7455
    %v7457 = vrot.slane %v7424, %v7456
    %v7460 = vmul.f32 %v7433, %v7453
    %v7461 = vmul.f32 %v7434, %v7457
    %v7462 = vmul.f32 %v7435, %v7453
    %v7463 = vmul.f32 %v7436, %v7457
    %v7464 = vmul.f32 %v7437, %v7453
    %v7465 = vmul.f32 %v7438, %v7457
    %v7466 = vmul.f32 %v7439, %v7453
    %v7467 = vmul.f32 %v7440, %v7457
    %v7468 = vmul.f32 %v7441, %v7453
    %v7469 = vmul.f32 %v7442, %v7457
    %v7470 = vmul.f32 %v7443, %v7453
    %v7471 = vmul.f32 %v7444, %v7457
    %v7472 = vmul.f32 %v7445, %v7453
    %v7473 = vmul.f32 %v7446, %v7457
    %v7474 = vmul.f32 %v7447, %v7453
    %v7475 = vmul.f32 %v7448, %v7457
    %v7476 = vadd.f32 %v7460, 0.0
    %v7477 = vadd.f32 %v7461, 0.0
    %v7478 = vadd.f32 %v7462, 0.0
    %v7479 = vadd.f32 %v7463, 0.0
    %v7480 = vadd.f32 %v7464, 0.0
    %v7481 = vadd.f32 %v7465, 0.0
    %v7482 = vadd.f32 %v7466, 0.0
    %v7483 = vadd.f32 %v7467, 0.0
    %v7484 = vadd.f32 %v7468, 0.0
    %v7485 = vadd.f32 %v7469, 0.0
    %v7486 = vadd.f32 %v7470, 0.0
    %v7487 = vadd.f32 %v7471, 0.0
    %v7488 = vadd.f32 %v7472, 0.0
    %v7489 = vadd.f32 %v7473, 0.0
    %v7490 = vadd.f32 %v7474, 0.0
    %v7491 = vadd.f32 %v7475, 0.0
    %v7492 = vld [vmem:[#allocation3] sm:$0x1e]
    %v7493 = vld [vmem:[#allocation3 + $0x8] sm:$0x1e]
    %v7494 = vld [vmem:[#allocation3 + $0x10] sm:$0x1e]
    %v7495 = vld [vmem:[#allocation3 + $0x18] sm:$0x1e]
    %v7496 = vld [vmem:[#allocation3 + $0x20] sm:$0x1e]
    %v7497 = vld [vmem:[#allocation3 + $0x28] sm:$0x1e]
    %v7498 = vld [vmem:[#allocation3 + $0x30] sm:$0x1e]
    %v7499 = vld [vmem:[#allocation3 + $0x38] sm:$0x1e]
    %v7500 = vld [vmem:[#allocation3 + $0x60] sm:$0x1e]
    %v7501 = vld [vmem:[#allocation3 + $0x68] sm:$0x1e]
    %v7502 = vld [vmem:[#allocation3 + $0x70] sm:$0x1e]
    %v7503 = vld [vmem:[#allocation3 + $0x78] sm:$0x1e]
    %v7504 = vld [vmem:[#allocation3 + $0x80] sm:$0x1e]
    %v7505 = vld [vmem:[#allocation3 + $0x88] sm:$0x1e]
    %v7506 = vld [vmem:[#allocation3 + $0x90] sm:$0x1e]
    %v7507 = vld [vmem:[#allocation3 + $0x98] sm:$0x1e]
    %v7509 = vlaneseq
    %v7510 = vshrl.u32 %v7509, 7
    %v7511 = vsub.s32 0, %v7510
    %v7512 = vrot.slane %v7425, %v7511
    %v7513 = vlaneseq
    %v7514 = vshrl.u32 %v7513, 7
    %v7515 = vsub.s32 1, %v7514
    %v7516 = vrot.slane %v7425, %v7515
    %v7519 = vmul.f32 %v7492, %v7512
    %v7520 = vmul.f32 %v7493, %v7516
    %v7521 = vmul.f32 %v7494, %v7512
    %v7522 = vmul.f32 %v7495, %v7516
    %v7523 = vmul.f32 %v7496, %v7512
    %v7524 = vmul.f32 %v7497, %v7516
    %v7525 = vmul.f32 %v7498, %v7512
    %v7526 = vmul.f32 %v7499, %v7516
    %v7527 = vmul.f32 %v7500, %v7512
    %v7528 = vmul.f32 %v7501, %v7516
    %v7529 = vmul.f32 %v7502, %v7512
    %v7530 = vmul.f32 %v7503, %v7516
    %v7531 = vmul.f32 %v7504, %v7512
    %v7532 = vmul.f32 %v7505, %v7516
    %v7533 = vmul.f32 %v7506, %v7512
    %v7534 = vmul.f32 %v7507, %v7516
    %v7551 = vrot.slane %v7519, 1
    %v7552 = vrot.slane %v7520, 1
    %v7553 = vrot.slane %v7521, 1
    %v7554 = vrot.slane %v7522, 1
    %v7555 = vrot.slane %v7523, 1
    %v7556 = vrot.slane %v7524, 1
    %v7557 = vrot.slane %v7525, 1
    %v7558 = vrot.slane %v7526, 1
    %v7559 = vrot.slane %v7527, 1
    %v7560 = vrot.slane %v7528, 1
    %v7561 = vrot.slane %v7529, 1
    %v7562 = vrot.slane %v7530, 1
    %v7563 = vrot.slane %v7531, 1
    %v7564 = vrot.slane %v7532, 1
    %v7565 = vrot.slane %v7533, 1
    %v7566 = vrot.slane %v7534, 1
    %v7583 = vadd.f32 %v7476, %v7551
    %v7584 = vadd.f32 %v7477, %v7552
    %v7585 = vadd.f32 %v7478, %v7553
    %v7586 = vadd.f32 %v7479, %v7554
    %v7587 = vadd.f32 %v7480, %v7555
    %v7588 = vadd.f32 %v7481, %v7556
    %v7589 = vadd.f32 %v7482, %v7557
    %v7590 = vadd.f32 %v7483, %v7558
    %v7591 = vadd.f32 %v7484, %v7559
    %v7592 = vadd.f32 %v7485, %v7560
    %v7593 = vadd.f32 %v7486, %v7561
    %v7594 = vadd.f32 %v7487, %v7562
    %v7595 = vadd.f32 %v7488, %v7563
    %v7596 = vadd.f32 %v7489, %v7564
    %v7597 = vadd.f32 %v7490, %v7565
    %v7598 = vadd.f32 %v7491, %v7566
    %v7599 = vld [vmem:[#allocation3] sm:$0x3c]
    %v7600 = vld [vmem:[#allocation3 + $0x8] sm:$0x3c]
    %v7601 = vld [vmem:[#allocation3 + $0x10] sm:$0x3c]
    %v7602 = vld [vmem:[#allocation3 + $0x18] sm:$0x3c]
    %v7603 = vld [vmem:[#allocation3 + $0x20] sm:$0x3c]
    %v7604 = vld [vmem:[#allocation3 + $0x28] sm:$0x3c]
    %v7605 = vld [vmem:[#allocation3 + $0x30] sm:$0x3c]
    %v7606 = vld [vmem:[#allocation3 + $0x38] sm:$0x3c]
    %v7607 = vld [vmem:[#allocation3 + $0x60] sm:$0x3c]
    %v7608 = vld [vmem:[#allocation3 + $0x68] sm:$0x3c]
    %v7609 = vld [vmem:[#allocation3 + $0x70] sm:$0x3c]
    %v7610 = vld [vmem:[#allocation3 + $0x78] sm:$0x3c]
    %v7611 = vld [vmem:[#allocation3 + $0x80] sm:$0x3c]
    %v7612 = vld [vmem:[#allocation3 + $0x88] sm:$0x3c]
    %v7613 = vld [vmem:[#allocation3 + $0x90] sm:$0x3c]
    %v7614 = vld [vmem:[#allocation3 + $0x98] sm:$0x3c]
    %v7616 = vlaneseq
    %v7617 = vshrl.u32 %v7616, 7
    %v7618 = vsub.s32 0, %v7617
    %v7619 = vrot.slane %v7426, %v7618
    %v7620 = vlaneseq
    %v7621 = vshrl.u32 %v7620, 7
    %v7622 = vsub.s32 1, %v7621
    %v7623 = vrot.slane %v7426, %v7622
    %v7626 = vmul.f32 %v7599, %v7619
    %v7627 = vmul.f32 %v7600, %v7623
    %v7628 = vmul.f32 %v7601, %v7619
    %v7629 = vmul.f32 %v7602, %v7623
    %v7630 = vmul.f32 %v7603, %v7619
    %v7631 = vmul.f32 %v7604, %v7623
    %v7632 = vmul.f32 %v7605, %v7619
    %v7633 = vmul.f32 %v7606, %v7623
    %v7634 = vmul.f32 %v7607, %v7619
    %v7635 = vmul.f32 %v7608, %v7623
    %v7636 = vmul.f32 %v7609, %v7619
    %v7637 = vmul.f32 %v7610, %v7623
    %v7638 = vmul.f32 %v7611, %v7619
    %v7639 = vmul.f32 %v7612, %v7623
    %v7640 = vmul.f32 %v7613, %v7619
    %v7641 = vmul.f32 %v7614, %v7623
    %v7658 = vrot.slane %v7626, 2
    %v7659 = vrot.slane %v7627, 2
    %v7660 = vrot.slane %v7628, 2
    %v7661 = vrot.slane %v7629, 2
    %v7662 = vrot.slane %v7630, 2
    %v7663 = vrot.slane %v7631, 2
    %v7664 = vrot.slane %v7632, 2
    %v7665 = vrot.slane %v7633, 2
    %v7666 = vrot.slane %v7634, 2
    %v7667 = vrot.slane %v7635, 2
    %v7668 = vrot.slane %v7636, 2
    %v7669 = vrot.slane %v7637, 2
    %v7670 = vrot.slane %v7638, 2
    %v7671 = vrot.slane %v7639, 2
    %v7672 = vrot.slane %v7640, 2
    %v7673 = vrot.slane %v7641, 2
    %v7690 = vadd.f32 %v7583, %v7658
    %v7691 = vadd.f32 %v7584, %v7659
    %v7692 = vadd.f32 %v7585, %v7660
    %v7693 = vadd.f32 %v7586, %v7661
    %v7694 = vadd.f32 %v7587, %v7662
    %v7695 = vadd.f32 %v7588, %v7663
    %v7696 = vadd.f32 %v7589, %v7664
    %v7697 = vadd.f32 %v7590, %v7665
    %v7698 = vadd.f32 %v7591, %v7666
    %v7699 = vadd.f32 %v7592, %v7667
    %v7700 = vadd.f32 %v7593, %v7668
    %v7701 = vadd.f32 %v7594, %v7669
    %v7702 = vadd.f32 %v7595, %v7670
    %v7703 = vadd.f32 %v7596, %v7671
    %v7704 = vadd.f32 %v7597, %v7672
    %v7705 = vadd.f32 %v7598, %v7673
    %v7706 = vld [vmem:[%s462] sm:$0xf]
    %v7707 = vld [vmem:[%s462 + $0x8] sm:$0xf]
    %v7708 = vld [vmem:[%s462 + $0x10] sm:$0xf]
    %v7709 = vld [vmem:[%s462 + $0x18] sm:$0xf]
    %v7710 = vld [vmem:[%s462 + $0x20] sm:$0xf]
    %v7711 = vld [vmem:[%s462 + $0x28] sm:$0xf]
    %v7712 = vld [vmem:[%s462 + $0x30] sm:$0xf]
    %v7713 = vld [vmem:[%s462 + $0x38] sm:$0xf]
    %v7714 = vld [vmem:[%s462 + $0x60] sm:$0xf]
    %v7715 = vld [vmem:[%s462 + $0x68] sm:$0xf]
    %v7716 = vld [vmem:[%s462 + $0x70] sm:$0xf]
    %v7717 = vld [vmem:[%s462 + $0x78] sm:$0xf]
    %v7718 = vld [vmem:[%s462 + $0x80] sm:$0xf]
    %v7719 = vld [vmem:[%s462 + $0x88] sm:$0xf]
    %v7720 = vld [vmem:[%s462 + $0x90] sm:$0xf]
    %v7721 = vld [vmem:[%s462 + $0x98] sm:$0xf]
    %v7723 = vlaneseq
    %v7724 = vshrl.u32 %v7723, 7
    %v7725 = vsub.s32 0, %v7724
    %v7726 = vrot.slane %v7427, %v7725
    %v7727 = vlaneseq
    %v7728 = vshrl.u32 %v7727, 7
    %v7729 = vsub.s32 1, %v7728
    %v7730 = vrot.slane %v7427, %v7729
    %v7733 = vmul.f32 %v7706, %v7726
    %v7734 = vmul.f32 %v7707, %v7730
    %v7735 = vmul.f32 %v7708, %v7726
    %v7736 = vmul.f32 %v7709, %v7730
    %v7737 = vmul.f32 %v7710, %v7726
    %v7738 = vmul.f32 %v7711, %v7730
    %v7739 = vmul.f32 %v7712, %v7726
    %v7740 = vmul.f32 %v7713, %v7730
    %v7741 = vmul.f32 %v7714, %v7726
    %v7742 = vmul.f32 %v7715, %v7730
    %v7743 = vmul.f32 %v7716, %v7726
    %v7744 = vmul.f32 %v7717, %v7730
    %v7745 = vmul.f32 %v7718, %v7726
    %v7746 = vmul.f32 %v7719, %v7730
    %v7747 = vmul.f32 %v7720, %v7726
    %v7748 = vmul.f32 %v7721, %v7730
    %v7749 = vadd.f32 %v7690, %v7733
    %v7750 = vadd.f32 %v7691, %v7734
    %v7751 = vadd.f32 %v7692, %v7735
    %v7752 = vadd.f32 %v7693, %v7736
    %v7753 = vadd.f32 %v7694, %v7737
    %v7754 = vadd.f32 %v7695, %v7738
    %v7755 = vadd.f32 %v7696, %v7739
    %v7756 = vadd.f32 %v7697, %v7740
    %v7757 = vadd.f32 %v7698, %v7741
    %v7758 = vadd.f32 %v7699, %v7742
    %v7759 = vadd.f32 %v7700, %v7743
    %v7760 = vadd.f32 %v7701, %v7744
    %v7761 = vadd.f32 %v7702, %v7745
    %v7762 = vadd.f32 %v7703, %v7746
    %v7763 = vadd.f32 %v7704, %v7747
    %v7764 = vadd.f32 %v7705, %v7748
    %v7765 = vld [vmem:[%s462] sm:$0x1e]
    %v7766 = vld [vmem:[%s462 + $0x8] sm:$0x1e]
    %v7767 = vld [vmem:[%s462 + $0x10] sm:$0x1e]
    %v7768 = vld [vmem:[%s462 + $0x18] sm:$0x1e]
    %v7769 = vld [vmem:[%s462 + $0x20] sm:$0x1e]
    %v7770 = vld [vmem:[%s462 + $0x28] sm:$0x1e]
    %v7771 = vld [vmem:[%s462 + $0x30] sm:$0x1e]
    %v7772 = vld [vmem:[%s462 + $0x38] sm:$0x1e]
    %v7773 = vld [vmem:[%s462 + $0x60] sm:$0x1e]
    %v7774 = vld [vmem:[%s462 + $0x68] sm:$0x1e]
    %v7775 = vld [vmem:[%s462 + $0x70] sm:$0x1e]
    %v7776 = vld [vmem:[%s462 + $0x78] sm:$0x1e]
    %v7777 = vld [vmem:[%s462 + $0x80] sm:$0x1e]
    %v7778 = vld [vmem:[%s462 + $0x88] sm:$0x1e]
    %v7779 = vld [vmem:[%s462 + $0x90] sm:$0x1e]
    %v7780 = vld [vmem:[%s462 + $0x98] sm:$0x1e]
    %v7782 = vlaneseq
    %v7783 = vshrl.u32 %v7782, 7
    %v7784 = vsub.s32 0, %v7783
    %v7785 = vrot.slane %v7428, %v7784
    %v7786 = vlaneseq
    %v7787 = vshrl.u32 %v7786, 7
    %v7788 = vsub.s32 1, %v7787
    %v7789 = vrot.slane %v7428, %v7788
    %v7792 = vmul.f32 %v7765, %v7785
    %v7793 = vmul.f32 %v7766, %v7789
    %v7794 = vmul.f32 %v7767, %v7785
    %v7795 = vmul.f32 %v7768, %v7789
    %v7796 = vmul.f32 %v7769, %v7785
    %v7797 = vmul.f32 %v7770, %v7789
    %v7798 = vmul.f32 %v7771, %v7785
    %v7799 = vmul.f32 %v7772, %v7789
    %v7800 = vmul.f32 %v7773, %v7785
    %v7801 = vmul.f32 %v7774, %v7789
    %v7802 = vmul.f32 %v7775, %v7785
    %v7803 = vmul.f32 %v7776, %v7789
    %v7804 = vmul.f32 %v7777, %v7785
    %v7805 = vmul.f32 %v7778, %v7789
    %v7806 = vmul.f32 %v7779, %v7785
    %v7807 = vmul.f32 %v7780, %v7789
    %v7824 = vrot.slane %v7792, 1
    %v7825 = vrot.slane %v7793, 1
    %v7826 = vrot.slane %v7794, 1
    %v7827 = vrot.slane %v7795, 1
    %v7828 = vrot.slane %v7796, 1
    %v7829 = vrot.slane %v7797, 1
    %v7830 = vrot.slane %v7798, 1
    %v7831 = vrot.slane %v7799, 1
    %v7832 = vrot.slane %v7800, 1
    %v7833 = vrot.slane %v7801, 1
    %v7834 = vrot.slane %v7802, 1
    %v7835 = vrot.slane %v7803, 1
    %v7836 = vrot.slane %v7804, 1
    %v7837 = vrot.slane %v7805, 1
    %v7838 = vrot.slane %v7806, 1
    %v7839 = vrot.slane %v7807, 1
    %v7856 = vadd.f32 %v7749, %v7824
    %v7857 = vadd.f32 %v7750, %v7825
    %v7858 = vadd.f32 %v7751, %v7826
    %v7859 = vadd.f32 %v7752, %v7827
    %v7860 = vadd.f32 %v7753, %v7828
    %v7861 = vadd.f32 %v7754, %v7829
    %v7862 = vadd.f32 %v7755, %v7830
    %v7863 = vadd.f32 %v7756, %v7831
    %v7864 = vadd.f32 %v7757, %v7832
    %v7865 = vadd.f32 %v7758, %v7833
    %v7866 = vadd.f32 %v7759, %v7834
    %v7867 = vadd.f32 %v7760, %v7835
    %v7868 = vadd.f32 %v7761, %v7836
    %v7869 = vadd.f32 %v7762, %v7837
    %v7870 = vadd.f32 %v7763, %v7838
    %v7871 = vadd.f32 %v7764, %v7839
    %v7872 = vld [vmem:[%s462] sm:$0x3c]
    %v7873 = vld [vmem:[%s462 + $0x8] sm:$0x3c]
    %v7874 = vld [vmem:[%s462 + $0x10] sm:$0x3c]
    %v7875 = vld [vmem:[%s462 + $0x18] sm:$0x3c]
    %v7876 = vld [vmem:[%s462 + $0x20] sm:$0x3c]
    %v7877 = vld [vmem:[%s462 + $0x28] sm:$0x3c]
    %v7878 = vld [vmem:[%s462 + $0x30] sm:$0x3c]
    %v7879 = vld [vmem:[%s462 + $0x38] sm:$0x3c]
    %v7880 = vld [vmem:[%s462 + $0x60] sm:$0x3c]
    %v7881 = vld [vmem:[%s462 + $0x68] sm:$0x3c]
    %v7882 = vld [vmem:[%s462 + $0x70] sm:$0x3c]
    %v7883 = vld [vmem:[%s462 + $0x78] sm:$0x3c]
    %v7884 = vld [vmem:[%s462 + $0x80] sm:$0x3c]
    %v7885 = vld [vmem:[%s462 + $0x88] sm:$0x3c]
    %v7886 = vld [vmem:[%s462 + $0x90] sm:$0x3c]
    %v7887 = vld [vmem:[%s462 + $0x98] sm:$0x3c]
    %v7889 = vlaneseq
    %v7890 = vshrl.u32 %v7889, 7
    %v7891 = vsub.s32 0, %v7890
    %v7892 = vrot.slane %v7429, %v7891
    %v7893 = vlaneseq
    %v7894 = vshrl.u32 %v7893, 7
    %v7895 = vsub.s32 1, %v7894
    %v7896 = vrot.slane %v7429, %v7895
    %v7899 = vmul.f32 %v7872, %v7892
    %v7900 = vmul.f32 %v7873, %v7896
    %v7901 = vmul.f32 %v7874, %v7892
    %v7902 = vmul.f32 %v7875, %v7896
    %v7903 = vmul.f32 %v7876, %v7892
    %v7904 = vmul.f32 %v7877, %v7896
    %v7905 = vmul.f32 %v7878, %v7892
    %v7906 = vmul.f32 %v7879, %v7896
    %v7907 = vmul.f32 %v7880, %v7892
    %v7908 = vmul.f32 %v7881, %v7896
    %v7909 = vmul.f32 %v7882, %v7892
    %v7910 = vmul.f32 %v7883, %v7896
    %v7911 = vmul.f32 %v7884, %v7892
    %v7912 = vmul.f32 %v7885, %v7896
    %v7913 = vmul.f32 %v7886, %v7892
    %v7914 = vmul.f32 %v7887, %v7896
    %v7931 = vrot.slane %v7899, 2
    %v7932 = vrot.slane %v7900, 2
    %v7933 = vrot.slane %v7901, 2
    %v7934 = vrot.slane %v7902, 2
    %v7935 = vrot.slane %v7903, 2
    %v7936 = vrot.slane %v7904, 2
    %v7937 = vrot.slane %v7905, 2
    %v7938 = vrot.slane %v7906, 2
    %v7939 = vrot.slane %v7907, 2
    %v7940 = vrot.slane %v7908, 2
    %v7941 = vrot.slane %v7909, 2
    %v7942 = vrot.slane %v7910, 2
    %v7943 = vrot.slane %v7911, 2
    %v7944 = vrot.slane %v7912, 2
    %v7945 = vrot.slane %v7913, 2
    %v7946 = vrot.slane %v7914, 2
    %v7963 = vadd.f32 %v7856, %v7931
    %v7964 = vadd.f32 %v7857, %v7932
    %v7965 = vadd.f32 %v7858, %v7933
    %v7966 = vadd.f32 %v7859, %v7934
    %v7967 = vadd.f32 %v7860, %v7935
    %v7968 = vadd.f32 %v7861, %v7936
    %v7969 = vadd.f32 %v7862, %v7937
    %v7970 = vadd.f32 %v7863, %v7938
    %v7971 = vadd.f32 %v7864, %v7939
    %v7972 = vadd.f32 %v7865, %v7940
    %v7973 = vadd.f32 %v7866, %v7941
    %v7974 = vadd.f32 %v7867, %v7942
    %v7975 = vadd.f32 %v7868, %v7943
    %v7976 = vadd.f32 %v7869, %v7944
    %v7977 = vadd.f32 %v7870, %v7945
    %v7978 = vadd.f32 %v7871, %v7946
    %s7979 = scalar_lea.vmem [#allocation3], 32
    %v7980 = vld [vmem:[%s7979] sm:$0xf]
    %v7981 = vld [vmem:[%s7979 + $0x8] sm:$0xf]
    %v7982 = vld [vmem:[%s7979 + $0x10] sm:$0xf]
    %v7983 = vld [vmem:[%s7979 + $0x18] sm:$0xf]
    %v7984 = vld [vmem:[%s7979 + $0x20] sm:$0xf]
    %v7985 = vld [vmem:[%s7979 + $0x28] sm:$0xf]
    %v7986 = vld [vmem:[%s7979 + $0x30] sm:$0xf]
    %v7987 = vld [vmem:[%s7979 + $0x38] sm:$0xf]
    %v7988 = vld [vmem:[%s7979 + $0x60] sm:$0xf]
    %v7989 = vld [vmem:[%s7979 + $0x68] sm:$0xf]
    %v7990 = vld [vmem:[%s7979 + $0x70] sm:$0xf]
    %v7991 = vld [vmem:[%s7979 + $0x78] sm:$0xf]
    %v7992 = vld [vmem:[%s7979 + $0x80] sm:$0xf]
    %v7993 = vld [vmem:[%s7979 + $0x88] sm:$0xf]
    %v7994 = vld [vmem:[%s7979 + $0x90] sm:$0xf]
    %v7995 = vld [vmem:[%s7979 + $0x98] sm:$0xf]
    %v7997 = vlaneseq
    %v7998 = vshrl.u32 %v7997, 7
    %v7999 = vsub.s32 0, %v7998
    %v8000 = vrot.slane %v7430, %v7999
    %v8001 = vlaneseq
    %v8002 = vshrl.u32 %v8001, 7
    %v8003 = vsub.s32 1, %v8002
    %v8004 = vrot.slane %v7430, %v8003
    %v8007 = vmul.f32 %v7980, %v8000
    %v8008 = vmul.f32 %v7981, %v8004
    %v8009 = vmul.f32 %v7982, %v8000
    %v8010 = vmul.f32 %v7983, %v8004
    %v8011 = vmul.f32 %v7984, %v8000
    %v8012 = vmul.f32 %v7985, %v8004
    %v8013 = vmul.f32 %v7986, %v8000
    %v8014 = vmul.f32 %v7987, %v8004
    %v8015 = vmul.f32 %v7988, %v8000
    %v8016 = vmul.f32 %v7989, %v8004
    %v8017 = vmul.f32 %v7990, %v8000
    %v8018 = vmul.f32 %v7991, %v8004
    %v8019 = vmul.f32 %v7992, %v8000
    %v8020 = vmul.f32 %v7993, %v8004
    %v8021 = vmul.f32 %v7994, %v8000
    %v8022 = vmul.f32 %v7995, %v8004
    %v8023 = vadd.f32 %v7963, %v8007
    %v8024 = vadd.f32 %v7964, %v8008
    %v8025 = vadd.f32 %v7965, %v8009
    %v8026 = vadd.f32 %v7966, %v8010
    %v8027 = vadd.f32 %v7967, %v8011
    %v8028 = vadd.f32 %v7968, %v8012
    %v8029 = vadd.f32 %v7969, %v8013
    %v8030 = vadd.f32 %v7970, %v8014
    %v8031 = vadd.f32 %v7971, %v8015
    %v8032 = vadd.f32 %v7972, %v8016
    %v8033 = vadd.f32 %v7973, %v8017
    %v8034 = vadd.f32 %v7974, %v8018
    %v8035 = vadd.f32 %v7975, %v8019
    %v8036 = vadd.f32 %v7976, %v8020
    %v8037 = vadd.f32 %v7977, %v8021
    %v8038 = vadd.f32 %v7978, %v8022
    %v8039 = vld [vmem:[%s7979] sm:$0x1e]
    %v8040 = vld [vmem:[%s7979 + $0x8] sm:$0x1e]
    %v8041 = vld [vmem:[%s7979 + $0x10] sm:$0x1e]
    %v8042 = vld [vmem:[%s7979 + $0x18] sm:$0x1e]
    %v8043 = vld [vmem:[%s7979 + $0x20] sm:$0x1e]
    %v8044 = vld [vmem:[%s7979 + $0x28] sm:$0x1e]
    %v8045 = vld [vmem:[%s7979 + $0x30] sm:$0x1e]
    %v8046 = vld [vmem:[%s7979 + $0x38] sm:$0x1e]
    %v8047 = vld [vmem:[%s7979 + $0x60] sm:$0x1e]
    %v8048 = vld [vmem:[%s7979 + $0x68] sm:$0x1e]
    %v8049 = vld [vmem:[%s7979 + $0x70] sm:$0x1e]
    %v8050 = vld [vmem:[%s7979 + $0x78] sm:$0x1e]
    %v8051 = vld [vmem:[%s7979 + $0x80] sm:$0x1e]
    %v8052 = vld [vmem:[%s7979 + $0x88] sm:$0x1e]
    %v8053 = vld [vmem:[%s7979 + $0x90] sm:$0x1e]
    %v8054 = vld [vmem:[%s7979 + $0x98] sm:$0x1e]
    %v8056 = vlaneseq
    %v8057 = vshrl.u32 %v8056, 7
    %v8058 = vsub.s32 0, %v8057
    %v8059 = vrot.slane %v7431, %v8058
    %v8060 = vlaneseq
    %v8061 = vshrl.u32 %v8060, 7
    %v8062 = vsub.s32 1, %v8061
    %v8063 = vrot.slane %v7431, %v8062
    %v8066 = vmul.f32 %v8039, %v8059
    %v8067 = vmul.f32 %v8040, %v8063
    %v8068 = vmul.f32 %v8041, %v8059
    %v8069 = vmul.f32 %v8042, %v8063
    %v8070 = vmul.f32 %v8043, %v8059
    %v8071 = vmul.f32 %v8044, %v8063
    %v8072 = vmul.f32 %v8045, %v8059
    %v8073 = vmul.f32 %v8046, %v8063
    %v8074 = vmul.f32 %v8047, %v8059
    %v8075 = vmul.f32 %v8048, %v8063
    %v8076 = vmul.f32 %v8049, %v8059
    %v8077 = vmul.f32 %v8050, %v8063
    %v8078 = vmul.f32 %v8051, %v8059
    %v8079 = vmul.f32 %v8052, %v8063
    %v8080 = vmul.f32 %v8053, %v8059
    %v8081 = vmul.f32 %v8054, %v8063
    %v8098 = vrot.slane %v8066, 1
    %v8099 = vrot.slane %v8067, 1
    %v8100 = vrot.slane %v8068, 1
    %v8101 = vrot.slane %v8069, 1
    %v8102 = vrot.slane %v8070, 1
    %v8103 = vrot.slane %v8071, 1
    %v8104 = vrot.slane %v8072, 1
    %v8105 = vrot.slane %v8073, 1
    %v8106 = vrot.slane %v8074, 1
    %v8107 = vrot.slane %v8075, 1
    %v8108 = vrot.slane %v8076, 1
    %v8109 = vrot.slane %v8077, 1
    %v8110 = vrot.slane %v8078, 1
    %v8111 = vrot.slane %v8079, 1
    %v8112 = vrot.slane %v8080, 1
    %v8113 = vrot.slane %v8081, 1
    %v8130 = vadd.f32 %v8023, %v8098
    %v8131 = vadd.f32 %v8024, %v8099
    %v8132 = vadd.f32 %v8025, %v8100
    %v8133 = vadd.f32 %v8026, %v8101
    %v8134 = vadd.f32 %v8027, %v8102
    %v8135 = vadd.f32 %v8028, %v8103
    %v8136 = vadd.f32 %v8029, %v8104
    %v8137 = vadd.f32 %v8030, %v8105
    %v8138 = vadd.f32 %v8031, %v8106
    %v8139 = vadd.f32 %v8032, %v8107
    %v8140 = vadd.f32 %v8033, %v8108
    %v8141 = vadd.f32 %v8034, %v8109
    %v8142 = vadd.f32 %v8035, %v8110
    %v8143 = vadd.f32 %v8036, %v8111
    %v8144 = vadd.f32 %v8037, %v8112
    %v8145 = vadd.f32 %v8038, %v8113
    %v8146 = vld [vmem:[%s7979] sm:$0x3c]
    %v8147 = vld [vmem:[%s7979 + $0x8] sm:$0x3c]
    %v8148 = vld [vmem:[%s7979 + $0x10] sm:$0x3c]
    %v8149 = vld [vmem:[%s7979 + $0x18] sm:$0x3c]
    %v8150 = vld [vmem:[%s7979 + $0x20] sm:$0x3c]
    %v8151 = vld [vmem:[%s7979 + $0x28] sm:$0x3c]
    %v8152 = vld [vmem:[%s7979 + $0x30] sm:$0x3c]
    %v8153 = vld [vmem:[%s7979 + $0x38] sm:$0x3c]
    %v8154 = vld [vmem:[%s7979 + $0x60] sm:$0x3c]
    %v8155 = vld [vmem:[%s7979 + $0x68] sm:$0x3c]
    %v8156 = vld [vmem:[%s7979 + $0x70] sm:$0x3c]
    %v8157 = vld [vmem:[%s7979 + $0x78] sm:$0x3c]
    %v8158 = vld [vmem:[%s7979 + $0x80] sm:$0x3c]
    %v8159 = vld [vmem:[%s7979 + $0x88] sm:$0x3c]
    %v8160 = vld [vmem:[%s7979 + $0x90] sm:$0x3c]
    %v8161 = vld [vmem:[%s7979 + $0x98] sm:$0x3c]
    %v8163 = vlaneseq
    %v8164 = vshrl.u32 %v8163, 7
    %v8165 = vsub.s32 0, %v8164
    %v8166 = vrot.slane %v7432, %v8165
    %v8167 = vlaneseq
    %v8168 = vshrl.u32 %v8167, 7
    %v8169 = vsub.s32 1, %v8168
    %v8170 = vrot.slane %v7432, %v8169
    %v8173 = vmul.f32 %v8146, %v8166
    %v8174 = vmul.f32 %v8147, %v8170
    %v8175 = vmul.f32 %v8148, %v8166
    %v8176 = vmul.f32 %v8149, %v8170
    %v8177 = vmul.f32 %v8150, %v8166
    %v8178 = vmul.f32 %v8151, %v8170
    %v8179 = vmul.f32 %v8152, %v8166
    %v8180 = vmul.f32 %v8153, %v8170
    %v8181 = vmul.f32 %v8154, %v8166
    %v8182 = vmul.f32 %v8155, %v8170
    %v8183 = vmul.f32 %v8156, %v8166
    %v8184 = vmul.f32 %v8157, %v8170
    %v8185 = vmul.f32 %v8158, %v8166
    %v8186 = vmul.f32 %v8159, %v8170
    %v8187 = vmul.f32 %v8160, %v8166
    %v8188 = vmul.f32 %v8161, %v8170
    %v8205 = vrot.slane %v8173, 2
    %v8206 = vrot.slane %v8174, 2
    %v8207 = vrot.slane %v8175, 2
    %v8208 = vrot.slane %v8176, 2
    %v8209 = vrot.slane %v8177, 2
    %v8210 = vrot.slane %v8178, 2
    %v8211 = vrot.slane %v8179, 2
    %v8212 = vrot.slane %v8180, 2
    %v8213 = vrot.slane %v8181, 2
    %v8214 = vrot.slane %v8182, 2
    %v8215 = vrot.slane %v8183, 2
    %v8216 = vrot.slane %v8184, 2
    %v8217 = vrot.slane %v8185, 2
    %v8218 = vrot.slane %v8186, 2
    %v8219 = vrot.slane %v8187, 2
    %v8220 = vrot.slane %v8188, 2
    %v8237 = vadd.f32 %v8130, %v8205
    %v8238 = vadd.f32 %v8131, %v8206
    %v8239 = vadd.f32 %v8132, %v8207
    %v8240 = vadd.f32 %v8133, %v8208
    %v8241 = vadd.f32 %v8134, %v8209
    %v8242 = vadd.f32 %v8135, %v8210
    %v8243 = vadd.f32 %v8136, %v8211
    %v8244 = vadd.f32 %v8137, %v8212
    %v8245 = vadd.f32 %v8138, %v8213
    %v8246 = vadd.f32 %v8139, %v8214
    %v8247 = vadd.f32 %v8140, %v8215
    %v8248 = vadd.f32 %v8141, %v8216
    %v8249 = vadd.f32 %v8142, %v8217
    %v8250 = vadd.f32 %v8143, %v8218
    %v8251 = vadd.f32 %v8144, %v8219
    %v8252 = vadd.f32 %v8145, %v8220
    %s8253 = scalar_lea.vmem %s6, 4
    %v8254 = vld [vmem:[%s8253] sm:$0x3]
    %v8256 = vlaneseq
    %v8257 = vshrl.u32 %v8256, 7
    %v8258 = vsub.s32 0, %v8257
    %v8259 = vrot.slane %v8254, %v8258
    %v8260 = vlaneseq
    %v8261 = vshrl.u32 %v8260, 7
    %v8262 = vsub.s32 1, %v8261
    %v8263 = vrot.slane %v8254, %v8262
    %v8266 = vadd.f32 %v8237, %v8259
    %v8267 = vadd.f32 %v8238, %v8263
    %v8268 = vadd.f32 %v8239, %v8259
    %v8269 = vadd.f32 %v8240, %v8263
    %v8270 = vadd.f32 %v8241, %v8259
    %v8271 = vadd.f32 %v8242, %v8263
    %v8272 = vadd.f32 %v8243, %v8259
    %v8273 = vadd.f32 %v8244, %v8263
    %v8274 = vadd.f32 %v8245, %v8259
    %v8275 = vadd.f32 %v8246, %v8263
    %v8276 = vadd.f32 %v8247, %v8259
    %v8277 = vadd.f32 %v8248, %v8263
    %v8278 = vadd.f32 %v8249, %v8259
    %v8279 = vadd.f32 %v8250, %v8263
    %v8280 = vadd.f32 %v8251, %v8259
    %v8281 = vadd.f32 %v8252, %v8263
    %v8282 = vmax.f32 %v8266, 0.0
    %v8283 = vmax.f32 %v8267, 0.0
    %v8284 = vmax.f32 %v8268, 0.0
    %v8285 = vmax.f32 %v8269, 0.0
    %v8286 = vmax.f32 %v8270, 0.0
    %v8287 = vmax.f32 %v8271, 0.0
    %v8288 = vmax.f32 %v8272, 0.0
    %v8289 = vmax.f32 %v8273, 0.0
    %v8290 = vmax.f32 %v8274, 0.0
    %v8291 = vmax.f32 %v8275, 0.0
    %v8292 = vmax.f32 %v8276, 0.0
    %v8293 = vmax.f32 %v8277, 0.0
    %v8294 = vmax.f32 %v8278, 0.0
    %v8295 = vmax.f32 %v8279, 0.0
    %v8296 = vmax.f32 %v8280, 0.0
    %v8297 = vmax.f32 %v8281, 0.0
    %v8298 = vmin.f32 %v8282, 6.0
    %v8299 = vmin.f32 %v8283, 6.0
    %v8300 = vmin.f32 %v8284, 6.0
    %v8301 = vmin.f32 %v8285, 6.0
    %v8302 = vmin.f32 %v8286, 6.0
    %v8303 = vmin.f32 %v8287, 6.0
    %v8304 = vmin.f32 %v8288, 6.0
    %v8305 = vmin.f32 %v8289, 6.0
    %v8306 = vmin.f32 %v8290, 6.0
    %v8307 = vmin.f32 %v8291, 6.0
    %v8308 = vmin.f32 %v8292, 6.0
    %v8309 = vmin.f32 %v8293, 6.0
    %v8310 = vmin.f32 %v8294, 6.0
    %v8311 = vmin.f32 %v8295, 6.0
    %v8312 = vmin.f32 %v8296, 6.0
    %v8313 = vmin.f32 %v8297, 6.0
    %v8330 = vcombine.low %v8298, %v8299
    %v8331 = vcombine.low %v8300, %v8301
    %v8332 = vcombine.low %v8302, %v8303
    %v8333 = vcombine.low %v8304, %v8305
    %v8334 = vcombine.low %v8306, %v8307
    %v8335 = vcombine.low %v8308, %v8309
    %v8336 = vcombine.low %v8310, %v8311
    %v8337 = vcombine.low %v8312, %v8313
    %v8338 = vcombine.low %v8330, %v8331
    %v8339 = vcombine.high %v8330, %v8331
    %v8340 = vcombine.low %v8332, %v8333
    %v8341 = vcombine.high %v8332, %v8333
    %v8342 = vcombine.low %v8334, %v8335
    %v8343 = vcombine.high %v8334, %v8335
    %v8344 = vcombine.low %v8336, %v8337
    %v8345 = vcombine.high %v8336, %v8337
    %v8354 = vpack.c.bf16 %v8340, %v8338
    %v8355 = vpack.c.bf16 %v8341, %v8339
    %v8356 = vpack.c.bf16 %v8344, %v8342
    %v8357 = vpack.c.bf16 %v8345, %v8343
    %s8358 = scalar_lea.vmem %s7, 256
    %v8359 = vld [vmem:[%s8358] sm:$0xf]
    %v8360 = vld [vmem:[%s8358 + $0x4] sm:$0xf]
    %v8361 = vld [vmem:[%s8358 + $0x8] sm:$0xf]
    %v8362 = vld [vmem:[%s8358 + $0xc] sm:$0xf]
    %v8363 = vld [vmem:[%s8358 + $0x10] sm:$0xf]
    %v8364 = vld [vmem:[%s8358 + $0x14] sm:$0xf]
    %v8365 = vld [vmem:[%s8358 + $0x18] sm:$0xf]
    %v8366 = vld [vmem:[%s8358 + $0x1c] sm:$0xf]
    %v8367 = vld [vmem:[%s8358 + $0x20] sm:$0xf]
    %v8368 = vld [vmem:[%s8358 + $0x24] sm:$0xf]
    %v8369 = vld [vmem:[%s8358 + $0x28] sm:$0xf]
    %v8370 = vld [vmem:[%s8358 + $0x2c] sm:$0xf]
    %v8371 = vld [vmem:[%s8358 + $0x30] sm:$0xf]
    %v8372 = vld [vmem:[%s8358 + $0x34] sm:$0xf]
    %v8373 = vld [vmem:[%s8358 + $0x38] sm:$0xf]
    %v8374 = vld [vmem:[%s8358 + $0x3c] sm:$0xf]
    %v8375 = vld [vmem:[%s8358 + $0x40] sm:$0xf]
    %v8376 = vld [vmem:[%s8358 + $0x44] sm:$0xf]
    %v8377 = vld [vmem:[%s8358 + $0x48] sm:$0xf]
    %v8378 = vld [vmem:[%s8358 + $0x4c] sm:$0xf]
    %v8379 = vld [vmem:[%s8358 + $0x50] sm:$0xf]
    %v8380 = vld [vmem:[%s8358 + $0x54] sm:$0xf]
    %v8381 = vld [vmem:[%s8358 + $0x58] sm:$0xf]
    %v8382 = vld [vmem:[%s8358 + $0x5c] sm:$0xf]
    %v8383 = vld [vmem:[%s8358 + $0x60] sm:$0xf]
    %v8384 = vld [vmem:[%s8358 + $0x64] sm:$0xf]
    %v8385 = vld [vmem:[%s8358 + $0x68] sm:$0xf]
    %v8386 = vld [vmem:[%s8358 + $0x6c] sm:$0xf]
    %v8387 = vld [vmem:[%s8358 + $0x70] sm:$0xf]
    %v8388 = vld [vmem:[%s8358 + $0x74] sm:$0xf]
    %v8389 = vld [vmem:[%s8358 + $0x78] sm:$0xf]
    %v8390 = vld [vmem:[%s8358 + $0x7c] sm:$0xf]
    %s8391 = scalar_lea.vmem %s8, 2
    %v8392 = vld [vmem:[%s8391] sm:$0x1]
    %v8394 = vlaneseq
    %v8395 = vshrl.u32 %v8394, 7
    %v8396 = vsub.s32 0, %v8395
    %v8397 = vrot.slane %v8392, %v8396
    %v8431 = vunpack.c.l.b16 %v8359
    %v8432 = vunpack.c.l.b16 %v8360
    %v8433 = vunpack.c.l.b16 %v8361
    %v8434 = vunpack.c.l.b16 %v8362
    %v8435 = vunpack.c.l.b16 %v8363
    %v8436 = vunpack.c.l.b16 %v8364
    %v8437 = vunpack.c.l.b16 %v8365
    %v8438 = vunpack.c.l.b16 %v8366
    %v8439 = vunpack.c.l.b16 %v8367
    %v8440 = vunpack.c.l.b16 %v8368
    %v8441 = vunpack.c.l.b16 %v8369
    %v8442 = vunpack.c.l.b16 %v8370
    %v8443 = vunpack.c.l.b16 %v8371
    %v8444 = vunpack.c.l.b16 %v8372
    %v8445 = vunpack.c.l.b16 %v8373
    %v8446 = vunpack.c.l.b16 %v8374
    %v8447 = vunpack.c.l.b16 %v8375
    %v8448 = vunpack.c.l.b16 %v8376
    %v8449 = vunpack.c.l.b16 %v8377
    %v8450 = vunpack.c.l.b16 %v8378
    %v8451 = vunpack.c.l.b16 %v8379
    %v8452 = vunpack.c.l.b16 %v8380
    %v8453 = vunpack.c.l.b16 %v8381
    %v8454 = vunpack.c.l.b16 %v8382
    %v8455 = vunpack.c.l.b16 %v8383
    %v8456 = vunpack.c.l.b16 %v8384
    %v8457 = vunpack.c.l.b16 %v8385
    %v8458 = vunpack.c.l.b16 %v8386
    %v8459 = vunpack.c.l.b16 %v8387
    %v8460 = vunpack.c.l.b16 %v8388
    %v8461 = vunpack.c.l.b16 %v8389
    %v8462 = vunpack.c.l.b16 %v8390
    %v8463 = vpack.c.b16 %v8432, %v8431
    %v8464 = vpack.c.b16 %v8434, %v8433
    %v8465 = vpack.c.b16 %v8436, %v8435
    %v8466 = vpack.c.b16 %v8438, %v8437
    %v8467 = vpack.c.b16 %v8440, %v8439
    %v8468 = vpack.c.b16 %v8442, %v8441
    %v8469 = vpack.c.b16 %v8444, %v8443
    %v8470 = vpack.c.b16 %v8446, %v8445
    %v8471 = vpack.c.b16 %v8448, %v8447
    %v8472 = vpack.c.b16 %v8450, %v8449
    %v8473 = vpack.c.b16 %v8452, %v8451
    %v8474 = vpack.c.b16 %v8454, %v8453
    %v8475 = vpack.c.b16 %v8456, %v8455
    %v8476 = vpack.c.b16 %v8458, %v8457
    %v8477 = vpack.c.b16 %v8460, %v8459
    %v8478 = vpack.c.b16 %v8462, %v8461
    %8495 = vmatprep.subr.bf16.mxu0 0
    %8496 = vmatpush1.bf16.msra.mxu0 %v8470
    %8497 = vmatprep.subr.bf16.mxu0 0
    %8498 = vmatpush1.bf16.msra.mxu0 %v8469
    %8499 = vmatprep.subr.bf16.mxu0 0
    %8500 = vmatpush1.bf16.msra.mxu0 %v8468
    %8501 = vmatprep.subr.bf16.mxu0 0
    %8502 = vmatpush1.bf16.msra.mxu0 %v8467
    %8503 = vmatprep.subr.bf16.mxu0 0
    %8504 = vmatpush1.bf16.msra.mxu0 %v8466
    %8505 = vmatprep.subr.bf16.mxu0 0
    %8506 = vmatpush1.bf16.msra.mxu0 %v8465
    %8507 = vmatprep.subr.bf16.mxu0 0
    %8508 = vmatpush1.bf16.msra.mxu0 %v8464
    %8509 = vmatprep.subr.bf16.mxu0 0
    %8510 = vmatpush1.bf16.msra.mxu0 %v8463
    %8511 = vmatprep.subr.bf16.mxu0 0
    %8512 = vmatpush2.bf16.msra.mxu0 %v8478
    %8513 = vmatprep.subr.bf16.mxu0 0
    %8514 = vmatpush2.bf16.msra.mxu0 %v8477
    %8515 = vmatprep.subr.bf16.mxu0 0
    %8516 = vmatpush2.bf16.msra.mxu0 %v8476
    %8517 = vmatprep.subr.bf16.mxu0 0
    %8518 = vmatpush2.bf16.msra.mxu0 %v8475
    %8519 = vmatprep.subr.bf16.mxu0 0
    %8520 = vmatpush2.bf16.msra.mxu0 %v8474
    %8521 = vmatprep.subr.bf16.mxu0 0
    %8522 = vmatpush2.bf16.msra.mxu0 %v8473
    %8523 = vmatprep.subr.bf16.mxu0 0
    %8524 = vmatpush2.bf16.msra.mxu0 %v8472
    %8525 = vmatprep.subr.bf16.mxu0 0
    %8526 = vmatpush2.bf16.msra.mxu0 %v8471
    %8527 = vmatprep.mubr.bf16.mxu0 %v8355
    %8528 = vmatmul.mubr.bf16.gmra.mxu0 %v8354
    %v8529 = vpop.f32.mrf.mxu0
    %v8530 = vadd.f32 %v8397, %v8529
    %v8531 = vpop.f32.mrf.mxu0
    %v8532 = vpop.f32.mrf.mxu0
    %v8533 = vadd.f32 %v8397, %v8532
    %v8534 = vpop.f32.mrf.mxu0
    %8535 = vmatprep.mubr.bf16.mxu0 %v8357
    %8536 = vmatmul.mubr.bf16.gmra.mxu0 %v8356
    %v8537 = vpop.f32.mrf.mxu0
    %v8538 = vadd.f32 %v8397, %v8537
    %v8539 = vpop.f32.mrf.mxu0
    %v8540 = vpop.f32.mrf.mxu0
    %v8541 = vadd.f32 %v8397, %v8540
    %v8542 = vpop.f32.mrf.mxu0
    %8543 = vdwg.mxu0
    %v8544 = vunpack.c.l.bf16 %v7170
    %v8545 = vunpack.c.h.bf16 %v7170
    %v8546 = vunpack.c.l.bf16 %v7171
    %v8547 = vunpack.c.h.bf16 %v7171
    %v8548 = vadd.f32 %v8530, %v8544
    %v8549 = vadd.f32 %v8533, %v8545
    %v8550 = vadd.f32 %v8538, %v8546
    %v8551 = vadd.f32 %v8541, %v8547
    %v8552 = vpack.c.bf16 %v8549, %v8548
    %v8553 = vpack.c.bf16 %v8551, %v8550
    %v8554 = vld [vmem:[%s10] sm:$0xf]
    %v8555 = vld [vmem:[%s10 + $0x4] sm:$0xf]
    %v8556 = vld [vmem:[%s10 + $0x8] sm:$0xf]
    %v8557 = vld [vmem:[%s10 + $0xc] sm:$0xf]
    %v8558 = vld [vmem:[%s10 + $0x10] sm:$0xf]
    %v8559 = vld [vmem:[%s10 + $0x14] sm:$0xf]
    %v8560 = vld [vmem:[%s10 + $0x18] sm:$0xf]
    %v8561 = vld [vmem:[%s10 + $0x1c] sm:$0xf]
    %v8562 = vld [vmem:[%s10 + $0x20] sm:$0xf]
    %v8563 = vld [vmem:[%s10 + $0x24] sm:$0xf]
    %v8564 = vld [vmem:[%s10 + $0x28] sm:$0xf]
    %v8565 = vld [vmem:[%s10 + $0x2c] sm:$0xf]
    %v8566 = vld [vmem:[%s10 + $0x30] sm:$0xf]
    %v8567 = vld [vmem:[%s10 + $0x34] sm:$0xf]
    %v8568 = vld [vmem:[%s10 + $0x38] sm:$0xf]
    %v8569 = vld [vmem:[%s10 + $0x3c] sm:$0xf]
    %v8570 = vld [vmem:[%s11] sm:$0x1]
    %v8572 = vlaneseq
    %v8573 = vshrl.u32 %v8572, 7
    %v8574 = vsub.s32 0, %v8573
    %v8575 = vrot.slane %v8570, %v8574
    %v8593 = vunpack.c.l.b16 %v8554
    %v8594 = vunpack.c.l.b16 %v8555
    %v8595 = vunpack.c.l.b16 %v8556
    %v8596 = vunpack.c.l.b16 %v8557
    %v8597 = vunpack.c.l.b16 %v8558
    %v8598 = vunpack.c.l.b16 %v8559
    %v8599 = vunpack.c.l.b16 %v8560
    %v8600 = vunpack.c.l.b16 %v8561
    %v8601 = vunpack.c.l.b16 %v8562
    %v8602 = vunpack.c.l.b16 %v8563
    %v8603 = vunpack.c.l.b16 %v8564
    %v8604 = vunpack.c.l.b16 %v8565
    %v8605 = vunpack.c.l.b16 %v8566
    %v8606 = vunpack.c.l.b16 %v8567
    %v8607 = vunpack.c.l.b16 %v8568
    %v8608 = vunpack.c.l.b16 %v8569
    %v8609 = vpack.c.b16 %v8594, %v8593
    %v8610 = vpack.c.b16 %v8596, %v8595
    %v8611 = vpack.c.b16 %v8598, %v8597
    %v8612 = vpack.c.b16 %v8600, %v8599
    %v8613 = vpack.c.b16 %v8602, %v8601
    %v8614 = vpack.c.b16 %v8604, %v8603
    %v8615 = vpack.c.b16 %v8606, %v8605
    %v8616 = vpack.c.b16 %v8608, %v8607
    %8625 = vmatprep.subr.bf16.mxu0 0
    %8626 = vmatpush1.bf16.msra.mxu0 %v8616
    %8627 = vmatprep.subr.bf16.mxu0 0
    %8628 = vmatpush1.bf16.msra.mxu0 %v8615
    %8629 = vmatprep.subr.bf16.mxu0 0
    %8630 = vmatpush1.bf16.msra.mxu0 %v8614
    %8631 = vmatprep.subr.bf16.mxu0 0
    %8632 = vmatpush1.bf16.msra.mxu0 %v8613
    %8633 = vmatprep.subr.bf16.mxu0 0
    %8634 = vmatpush1.bf16.msra.mxu0 %v8612
    %8635 = vmatprep.subr.bf16.mxu0 0
    %8636 = vmatpush1.bf16.msra.mxu0 %v8611
    %8637 = vmatprep.subr.bf16.mxu0 0
    %8638 = vmatpush1.bf16.msra.mxu0 %v8610
    %8639 = vmatprep.subr.bf16.mxu0 0
    %8640 = vmatpush1.bf16.msra.mxu0 %v8609
    %8641 = vmatprep.subr.bf16.mxu0 0
    %8642 = vmatpush2.bf16.msra.mxu0 0
    %8643 = vmatprep.subr.bf16.mxu0 0
    %8644 = vmatpush2.bf16.msra.mxu0 0
    %8645 = vmatprep.subr.bf16.mxu0 0
    %8646 = vmatpush2.bf16.msra.mxu0 0
    %8647 = vmatprep.subr.bf16.mxu0 0
    %8648 = vmatpush2.bf16.msra.mxu0 0
    %8649 = vmatprep.subr.bf16.mxu0 0
    %8650 = vmatpush2.bf16.msra.mxu0 0
    %8651 = vmatprep.subr.bf16.mxu0 0
    %8652 = vmatpush2.bf16.msra.mxu0 0
    %8653 = vmatprep.subr.bf16.mxu0 0
    %8654 = vmatpush2.bf16.msra.mxu0 0
    %8655 = vmatprep.subr.bf16.mxu0 0
    %8656 = vmatpush2.bf16.msra.mxu0 0
    %8657 = vmatprep.mubr.bf16.mxu0 0
    %8658 = vmatmul.mubr.bf16.gmra.mxu0 %v8552
    %v8659 = vpop.f32.mrf.mxu0
    %v8660 = vadd.f32 %v8575, %v8659
    %v8661 = vpop.f32.mrf.mxu0
    %v8662 = vpop.f32.mrf.mxu0
    %v8663 = vadd.f32 %v8575, %v8662
    %v8664 = vpop.f32.mrf.mxu0
    %8665 = vmatprep.mubr.bf16.mxu0 0
    %8666 = vmatmul.mubr.bf16.gmra.mxu0 %v8553
    %v8667 = vpop.f32.mrf.mxu0
    %v8668 = vadd.f32 %v8575, %v8667
    %v8669 = vpop.f32.mrf.mxu0
    %v8670 = vpop.f32.mrf.mxu0
    %v8671 = vadd.f32 %v8575, %v8670
    %v8672 = vpop.f32.mrf.mxu0
    %8673 = vdwg.mxu0
    %v8674 = vmax.f32 %v8660, 0.0
    %v8675 = vmax.f32 %v8663, 0.0
    %v8676 = vmax.f32 %v8668, 0.0
    %v8677 = vmax.f32 %v8671, 0.0
    %v8678 = vmin.f32 %v8674, 6.0
    %v8679 = vmin.f32 %v8675, 6.0
    %v8680 = vmin.f32 %v8676, 6.0
    %v8681 = vmin.f32 %v8677, 6.0
    %v8682 = vadd.f32 %v8678, %v8679
    %v8683 = vrot.slane %v8682, 4
    %v8684 = vadd.f32 %v8682, %v8683
    %v8685 = vrot.slane %v8684, 2
    %v8686 = vadd.f32 %v8684, %v8685
    %v8687 = vrot.slane %v8686, 1
    %v8688 = vadd.f32 %v8686, %v8687
    %v8689 = vadd.f32 %v8680, %v8681
    %v8690 = vrot.slane %v8689, 4
    %v8691 = vadd.f32 %v8689, %v8690
    %v8692 = vrot.slane %v8691, 2
    %v8693 = vadd.f32 %v8691, %v8692
    %v8694 = vrot.slane %v8693, 1
    %v8695 = vadd.f32 %v8693, %v8694
    %v8696 = vrcp.pop 16.0
    %v8697 = vmul.f32 %v8688, %v8696
    %v8698 = vmul.f32 %v8695, %v8696
    %v8699 = vpack.c.bf16 %v8697, %v8697
    %v8700 = vpack.c.bf16 %v8698, %v8698
    %v8701 = vld [vmem:[%s12] sm:$0xf]
    %v8702 = vld [vmem:[%s12 + $0x4] sm:$0xf]
    %v8703 = vld [vmem:[%s12 + $0x8] sm:$0xf]
    %v8704 = vld [vmem:[%s12 + $0xc] sm:$0xf]
    %v8705 = vld [vmem:[%s12 + $0x10] sm:$0xf]
    %v8706 = vld [vmem:[%s12 + $0x14] sm:$0xf]
    %v8707 = vld [vmem:[%s12 + $0x18] sm:$0xf]
    %v8708 = vld [vmem:[%s12 + $0x1c] sm:$0xf]
    %v8709 = vld [vmem:[%s12 + $0x20] sm:$0xf]
    %v8710 = vld [vmem:[%s12 + $0x24] sm:$0xf]
    %v8711 = vld [vmem:[%s12 + $0x28] sm:$0xf]
    %v8712 = vld [vmem:[%s12 + $0x2c] sm:$0xf]
    %v8713 = vld [vmem:[%s12 + $0x30] sm:$0xf]
    %v8714 = vld [vmem:[%s12 + $0x34] sm:$0xf]
    %v8715 = vld [vmem:[%s12 + $0x38] sm:$0xf]
    %v8716 = vld [vmem:[%s12 + $0x3c] sm:$0xf]
    %v8717 = vld [vmem:[%s13] sm:$0x1]
    %v8719 = vlaneseq
    %v8720 = vshrl.u32 %v8719, 7
    %v8721 = vsub.s32 0, %v8720
    %v8722 = vrot.slane %v8717, %v8721
    %v8726 = vunpack.c.l.b16 %v8699
    %v8727 = vunpack.c.l.b16 %v8700
    %vm8728 = vcmask 1041409
    %v8729 = vsel %vm8728, %v8727, %v8726
    %v8730 = vpack.c.b16 %v8729, %v8729
    %v8748 = vunpack.c.l.b16 %v8701
    %v8749 = vunpack.c.l.b16 %v8702
    %v8750 = vunpack.c.l.b16 %v8703
    %v8751 = vunpack.c.l.b16 %v8704
    %v8752 = vunpack.c.l.b16 %v8705
    %v8753 = vunpack.c.l.b16 %v8706
    %v8754 = vunpack.c.l.b16 %v8707
    %v8755 = vunpack.c.l.b16 %v8708
    %v8756 = vunpack.c.l.b16 %v8709
    %v8757 = vunpack.c.l.b16 %v8710
    %v8758 = vunpack.c.l.b16 %v8711
    %v8759 = vunpack.c.l.b16 %v8712
    %v8760 = vunpack.c.l.b16 %v8713
    %v8761 = vunpack.c.l.b16 %v8714
    %v8762 = vunpack.c.l.b16 %v8715
    %v8763 = vunpack.c.l.b16 %v8716
    %v8764 = vpack.c.b16 %v8749, %v8748
    %v8765 = vpack.c.b16 %v8751, %v8750
    %v8766 = vpack.c.b16 %v8753, %v8752
    %v8767 = vpack.c.b16 %v8755, %v8754
    %v8768 = vpack.c.b16 %v8757, %v8756
    %v8769 = vpack.c.b16 %v8759, %v8758
    %v8770 = vpack.c.b16 %v8761, %v8760
    %v8771 = vpack.c.b16 %v8763, %v8762
    %8780 = vmatprep.subr.bf16.mxu0 0
    %8781 = vmatpush1.bf16.msra.mxu0 %v8771
    %8782 = vmatprep.subr.bf16.mxu0 0
    %8783 = vmatpush1.bf16.msra.mxu0 %v8770
    %8784 = vmatprep.subr.bf16.mxu0 0
    %8785 = vmatpush1.bf16.msra.mxu0 %v8769
    %8786 = vmatprep.subr.bf16.mxu0 0
    %8787 = vmatpush1.bf16.msra.mxu0 %v8768
    %8788 = vmatprep.subr.bf16.mxu0 0
    %8789 = vmatpush1.bf16.msra.mxu0 %v8767
    %8790 = vmatprep.subr.bf16.mxu0 0
    %8791 = vmatpush1.bf16.msra.mxu0 %v8766
    %8792 = vmatprep.subr.bf16.mxu0 0
    %8793 = vmatpush1.bf16.msra.mxu0 %v8765
    %8794 = vmatprep.subr.bf16.mxu0 0
    %8795 = vmatpush1.bf16.msra.mxu0 %v8764
    %8796 = vmatprep.subr.bf16.mxu0 0
    %8797 = vmatpush2.bf16.msra.mxu0 0
    %8798 = vmatprep.subr.bf16.mxu0 0
    %8799 = vmatpush2.bf16.msra.mxu0 0
    %8800 = vmatprep.subr.bf16.mxu0 0
    %8801 = vmatpush2.bf16.msra.mxu0 0
    %8802 = vmatprep.subr.bf16.mxu0 0
    %8803 = vmatpush2.bf16.msra.mxu0 0
    %8804 = vmatprep.subr.bf16.mxu0 0
    %8805 = vmatpush2.bf16.msra.mxu0 0
    %8806 = vmatprep.subr.bf16.mxu0 0
    %8807 = vmatpush2.bf16.msra.mxu0 0
    %8808 = vmatprep.subr.bf16.mxu0 0
    %8809 = vmatpush2.bf16.msra.mxu0 0
    %8810 = vmatprep.subr.bf16.mxu0 0
    %8811 = vmatpush2.bf16.msra.mxu0 0
    %8812 = vmatprep.mubr.bf16.mxu0 0
    %8813 = vmatmul.mubr.bf16.gmra.mxu0 %v8730
    %v8814 = vpop.f32.mrf.mxu0
    %v8815 = vadd.f32 %v8722, %v8814
    %v8816 = vpop.f32.mrf.mxu0
    %v8817 = vpop.f32.mrf.mxu0
    %v8818 = vpop.f32.mrf.mxu0
    %8819 = vdwg.mxu0
    %v8820 = vmul.f32 %v8815, %v8815
    %vm8821 = vcmask 1041408
    %v8822 = vsel %vm8821, %v8820, 0.0
    %8823 = vadd.xlane.f32.xlu0 %v8822
    %v8824 = vpop.xlane.xlu0 %8823
    %v8825 = vmax.f32 %v8824, 1e-24
    %v8826 = vrsqrt.pop %v8825
    %v8827 = vmul.f32 %v8815, %v8826
    %v8828 = vld [vmem:[%s14] sm:$0xf]
    %v8829 = vld [vmem:[%s14 + $0x4] sm:$0xf]
    %v8830 = vld [vmem:[%s14 + $0x8] sm:$0xf]
    %v8831 = vld [vmem:[%s14 + $0xc] sm:$0xf]
    %v8832 = vld [vmem:[%s14 + $0x10] sm:$0xf]
    %v8833 = vld [vmem:[%s14 + $0x14] sm:$0xf]
    %v8834 = vld [vmem:[%s14 + $0x18] sm:$0xf]
    %v8835 = vld [vmem:[%s14 + $0x1c] sm:$0xf]
    %v8836 = vld [vmem:[%s14 + $0x20] sm:$0xf]
    %v8837 = vld [vmem:[%s14 + $0x24] sm:$0xf]
    %v8838 = vld [vmem:[%s14 + $0x28] sm:$0xf]
    %v8839 = vld [vmem:[%s14 + $0x2c] sm:$0xf]
    %v8840 = vld [vmem:[%s14 + $0x30] sm:$0xf]
    %v8841 = vld [vmem:[%s14 + $0x34] sm:$0xf]
    %v8842 = vld [vmem:[%s14 + $0x38] sm:$0xf]
    %v8843 = vld [vmem:[%s14 + $0x3c] sm:$0xf]
    %v8844 = vld [vmem:[%s15] sm:$0x1]
    %v8846 = vlaneseq
    %v8847 = vshrl.u32 %v8846, 7
    %v8848 = vsub.s32 0, %v8847
    %v8849 = vrot.slane %v8844, %v8848
    %v8867 = vunpack.c.l.b16 %v8828
    %v8868 = vunpack.c.l.b16 %v8829
    %v8869 = vunpack.c.l.b16 %v8830
    %v8870 = vunpack.c.l.b16 %v8831
    %v8871 = vunpack.c.l.b16 %v8832
    %v8872 = vunpack.c.l.b16 %v8833
    %v8873 = vunpack.c.l.b16 %v8834
    %v8874 = vunpack.c.l.b16 %v8835
    %v8875 = vunpack.c.l.b16 %v8836
    %v8876 = vunpack.c.l.b16 %v8837
    %v8877 = vunpack.c.l.b16 %v8838
    %v8878 = vunpack.c.l.b16 %v8839
    %v8879 = vunpack.c.l.b16 %v8840
    %v8880 = vunpack.c.l.b16 %v8841
    %v8881 = vunpack.c.l.b16 %v8842
    %v8882 = vunpack.c.l.b16 %v8843
    %v8883 = vpack.c.b16 %v8868, %v8867
    %v8884 = vpack.c.b16 %v8870, %v8869
    %v8885 = vpack.c.b16 %v8872, %v8871
    %v8886 = vpack.c.b16 %v8874, %v8873
    %v8887 = vpack.c.b16 %v8876, %v8875
    %v8888 = vpack.c.b16 %v8878, %v8877
    %v8889 = vpack.c.b16 %v8880, %v8879
    %v8890 = vpack.c.b16 %v8882, %v8881
    %8899 = vmatprep.subr.bf16.mxu0 0
    %8900 = vmatpush1.bf16.msra.mxu0 %v8890
    %8901 = vmatprep.subr.bf16.mxu0 0
    %8902 = vmatpush1.bf16.msra.mxu0 %v8889
    %8903 = vmatprep.subr.bf16.mxu0 0
    %8904 = vmatpush1.bf16.msra.mxu0 %v8888
    %8905 = vmatprep.subr.bf16.mxu0 0
    %8906 = vmatpush1.bf16.msra.mxu0 %v8887
    %8907 = vmatprep.subr.bf16.mxu0 0
    %8908 = vmatpush1.bf16.msra.mxu0 %v8886
    %8909 = vmatprep.subr.bf16.mxu0 0
    %8910 = vmatpush1.bf16.msra.mxu0 %v8885
    %8911 = vmatprep.subr.bf16.mxu0 0
    %8912 = vmatpush1.bf16.msra.mxu0 %v8884
    %8913 = vmatprep.subr.bf16.mxu0 0
    %8914 = vmatpush1.bf16.msra.mxu0 %v8883
    %8915 = vmatprep.subr.bf16.mxu0 0
    %8916 = vmatpush2.bf16.msra.mxu0 0
    %8917 = vmatprep.subr.bf16.mxu0 0
    %8918 = vmatpush2.bf16.msra.mxu0 0
    %8919 = vmatprep.subr.bf16.mxu0 0
    %8920 = vmatpush2.bf16.msra.mxu0 0
    %8921 = vmatprep.subr.bf16.mxu0 0
    %8922 = vmatpush2.bf16.msra.mxu0 0
    %8923 = vmatprep.subr.bf16.mxu0 0
    %8924 = vmatpush2.bf16.msra.mxu0 0
    %8925 = vmatprep.subr.bf16.mxu0 0
    %8926 = vmatpush2.bf16.msra.mxu0 0
    %8927 = vmatprep.subr.bf16.mxu0 0
    %8928 = vmatpush2.bf16.msra.mxu0 0
    %8929 = vmatprep.subr.bf16.mxu0 0
    %8930 = vmatpush2.bf16.msra.mxu0 0
    %8931 = vmatprep.mubr.bf16.mxu0 0
    %8932 = vmatmul.mubr.bf16.gmra.mxu0 %v8730
    %v8933 = vpop.f32.mrf.mxu0
    %v8934 = vadd.f32 %v8849, %v8933
    %v8935 = vpop.f32.mrf.mxu0
    %v8936 = vpop.f32.mrf.mxu0
    %v8937 = vpop.f32.mrf.mxu0
    %8938 = vdwg.mxu0
    %v8939 = vmax.f32 %v8934, 0.0
    %v8940 = vpack.c.bf16 %v8939, %v8939
    %v8941 = vld [vmem:[%s16] sm:$0xf]
    %v8942 = vld [vmem:[%s16 + $0x4] sm:$0xf]
    %v8943 = vld [vmem:[%s16 + $0x8] sm:$0xf]
    %v8944 = vld [vmem:[%s16 + $0xc] sm:$0xf]
    %v8945 = vld [vmem:[%s16 + $0x10] sm:$0xf]
    %v8946 = vld [vmem:[%s16 + $0x14] sm:$0xf]
    %v8947 = vld [vmem:[%s16 + $0x18] sm:$0xf]
    %v8948 = vld [vmem:[%s16 + $0x1c] sm:$0xf]
    %v8949 = vld [vmem:[%s16 + $0x20] sm:$0xf]
    %v8950 = vld [vmem:[%s16 + $0x24] sm:$0xf]
    %v8951 = vld [vmem:[%s16 + $0x28] sm:$0xf]
    %v8952 = vld [vmem:[%s16 + $0x2c] sm:$0xf]
    %v8953 = vld [vmem:[%s16 + $0x30] sm:$0xf]
    %v8954 = vld [vmem:[%s16 + $0x34] sm:$0xf]
    %v8955 = vld [vmem:[%s16 + $0x38] sm:$0xf]
    %v8956 = vld [vmem:[%s16 + $0x3c] sm:$0xf]
    %v8957 = vld [vmem:[%s17] sm:$0x1]
    %v8959 = vlaneseq
    %v8960 = vshrl.u32 %v8959, 7
    %v8961 = vsub.s32 0, %v8960
    %v8962 = vrot.slane %v8957, %v8961
    %v8980 = vunpack.c.l.b16 %v8941
    %v8981 = vunpack.c.l.b16 %v8942
    %v8982 = vunpack.c.l.b16 %v8943
    %v8983 = vunpack.c.l.b16 %v8944
    %v8984 = vunpack.c.l.b16 %v8945
    %v8985 = vunpack.c.l.b16 %v8946
    %v8986 = vunpack.c.l.b16 %v8947
    %v8987 = vunpack.c.l.b16 %v8948
    %v8988 = vunpack.c.l.b16 %v8949
    %v8989 = vunpack.c.l.b16 %v8950
    %v8990 = vunpack.c.l.b16 %v8951
    %v8991 = vunpack.c.l.b16 %v8952
    %v8992 = vunpack.c.l.b16 %v8953
    %v8993 = vunpack.c.l.b16 %v8954
    %v8994 = vunpack.c.l.b16 %v8955
    %v8995 = vunpack.c.l.b16 %v8956
    %v8996 = vpack.c.b16 %v8981, %v8980
    %v8997 = vpack.c.b16 %v8983, %v8982
    %v8998 = vpack.c.b16 %v8985, %v8984
    %v8999 = vpack.c.b16 %v8987, %v8986
    %v9000 = vpack.c.b16 %v8989, %v8988
    %v9001 = vpack.c.b16 %v8991, %v8990
    %v9002 = vpack.c.b16 %v8993, %v8992
    %v9003 = vpack.c.b16 %v8995, %v8994
    %9012 = vmatprep.subr.bf16.mxu0 0
    %9013 = vmatpush1.bf16.msra.mxu0 %v9003
    %9014 = vmatprep.subr.bf16.mxu0 0
    %9015 = vmatpush1.bf16.msra.mxu0 %v9002
    %9016 = vmatprep.subr.bf16.mxu0 0
    %9017 = vmatpush1.bf16.msra.mxu0 %v9001
    %9018 = vmatprep.subr.bf16.mxu0 0
    %9019 = vmatpush1.bf16.msra.mxu0 %v9000
    %9020 = vmatprep.subr.bf16.mxu0 0
    %9021 = vmatpush1.bf16.msra.mxu0 %v8999
    %9022 = vmatprep.subr.bf16.mxu0 0
    %9023 = vmatpush1.bf16.msra.mxu0 %v8998
    %9024 = vmatprep.subr.bf16.mxu0 0
    %9025 = vmatpush1.bf16.msra.mxu0 %v8997
    %9026 = vmatprep.subr.bf16.mxu0 0
    %9027 = vmatpush1.bf16.msra.mxu0 %v8996
    %9028 = vmatprep.subr.bf16.mxu0 0
    %9029 = vmatpush2.bf16.msra.mxu0 0
    %9030 = vmatprep.subr.bf16.mxu0 0
    %9031 = vmatpush2.bf16.msra.mxu0 0
    %9032 = vmatprep.subr.bf16.mxu0 0
    %9033 = vmatpush2.bf16.msra.mxu0 0
    %9034 = vmatprep.subr.bf16.mxu0 0
    %9035 = vmatpush2.bf16.msra.mxu0 0
    %9036 = vmatprep.subr.bf16.mxu0 0
    %9037 = vmatpush2.bf16.msra.mxu0 0
    %9038 = vmatprep.subr.bf16.mxu0 0
    %9039 = vmatpush2.bf16.msra.mxu0 0
    %9040 = vmatprep.subr.bf16.mxu0 0
    %9041 = vmatpush2.bf16.msra.mxu0 0
    %9042 = vmatprep.subr.bf16.mxu0 0
    %9043 = vmatpush2.bf16.msra.mxu0 0
    %9044 = vmatprep.mubr.bf16.mxu0 0
    %9045 = vmatmul.mubr.bf16.gmra.mxu0 %v8940
    %v9046 = vpop.f32.mrf.mxu0
    %v9047 = vadd.f32 %v8962, %v9046
    %v9048 = vpop.f32.mrf.mxu0
    %v9049 = vpop.f32.mrf.mxu0
    %v9050 = vpop.f32.mrf.mxu0
    %9051 = vdwg.mxu0
    %9052 = vst [vmem:[#allocation4] sm:$0x3] %v9047
    %9053 = vst [vmem:[#allocation6] sm:$0x3] %v8827
    // Predicated region
    $region74: #{sr_detector_forward.1} parent=1 // pred_check
      _
    $region75: #{sr_detector_forward.1} parent=1 // pred_check_branch
      %9055 = sbr.rel (0) target = $region77
    $region76: #{sr_detector_forward.1} parent=1 // pred_region
      %s9057 = ssub.s32 32, 32
      %9058 = vsyncadd [#allocation5], %s9057
      %s9060 = sshll.u32 [#allocation4], 4
      %s9061 = int_to_ptr.vmem [resolvable:$true] %s9060
      %9063 = dma.vmem_to_hbm [thread:$0]  %s9061, 32, %s18, [#allocation5]
    $region77: #{sr_detector_forward.1} parent=1 // pred_fallthru
      _
    // Predicated region
    $region78: #{sr_detector_forward.1} parent=1 // pred_check
      _
    $region79: #{sr_detector_forward.1} parent=1 // pred_check_branch
      %9065 = sbr.rel (0) target = $region81
    $region80: #{sr_detector_forward.1} parent=1 // pred_region
      %s9067 = ssub.s32 32, 32
      %9068 = vsyncadd [#allocation7], %s9067
      %s9070 = sshll.u32 [#allocation6], 4
      %s9071 = int_to_ptr.vmem [resolvable:$true] %s9070
      %9073 = dma.vmem_to_hbm [thread:$0]  %s9071, 32, %s19, [#allocation7]
    $region81: #{sr_detector_forward.1} parent=1 // pred_fallthru
      _
    // Predicated region
    $region82: #{sr_detector_forward.1} parent=1 // pred_check
      _
    $region83: #{sr_detector_forward.1} parent=1 // pred_check_branch
      %9075 = sbr.rel (0) target = $region85
    $region84: #{sr_detector_forward.1} parent=1 // pred_region
      %9076 = dma.done [#allocation5], 32
    $region85: #{sr_detector_forward.1} parent=1 // pred_fallthru
      _
    // Predicated region
    $region86: #{sr_detector_forward.1} parent=1 // pred_check
      _
    $region87: #{sr_detector_forward.1} parent=1 // pred_check_branch
      %9078 = sbr.rel (0) target = $region89
    $region88: #{sr_detector_forward.1} parent=1 // pred_region
      %9079 = dma.done [#allocation7], 32
    $region89: #{sr_detector_forward.1} parent=1 // pred_fallthru
      _
    %9080 = vsyncpa [#allocation5], 1
    %9081 = vsyncpa [#allocation7], 1

</llo_original>
